<compile_context>
chip_gen: v7x
topology: tpu7x:2x2x1
jax: 0.10.0
libtpu: 0.0.40
codegen_flags: <defaults>
</compile_context>

<pallas_src>
import functools
import math

import numpy as np
import jax
import jax.numpy as jnp
from jax.experimental import pallas as pl
from jax.experimental.pallas import tpu as pltpu

_EPS = 1e-5  # nn.LayerNorm default eps


# ----------------------------------------------------------------------------
# Pallas kernels (fused: whole residual sub-layers stay in VMEM / vregs)
# ----------------------------------------------------------------------------
def _linear_kernel(x_ref, w_ref, b_ref, o_ref, *, act):
    y = jnp.dot(x_ref[...], w_ref[...], preferred_element_type=jnp.float32)
    y = y + b_ref[...]
    if act == "relu":
        y = jnp.maximum(y, 0.0)
    o_ref[...] = y.astype(o_ref.dtype)


def _ln_kernel(x_ref, g_ref, b_ref, o_ref):
    x = x_ref[...].astype(jnp.float32)
    mu = jnp.mean(x, axis=-1, keepdims=True)
    xc = x - mu
    var = jnp.mean(xc * xc, axis=-1, keepdims=True)
    y = xc * jax.lax.rsqrt(var + _EPS)
    o_ref[...] = (y * g_ref[...] + b_ref[...]).astype(o_ref.dtype)


def _add_ln_kernel(a_ref, b_ref, g_ref, be_ref, o_ref):
    x = a_ref[...].astype(jnp.float32) + b_ref[...].astype(jnp.float32)
    mu = jnp.mean(x, axis=-1, keepdims=True)
    xc = x - mu
    var = jnp.mean(xc * xc, axis=-1, keepdims=True)
    y = xc * jax.lax.rsqrt(var + _EPS)
    o_ref[...] = (y * g_ref[...] + be_ref[...]).astype(o_ref.dtype)


def _ffn_kernel(x_ref, w1_ref, b1_ref, w2_ref, b2_ref, g_ref, be_ref, o_ref):
    x = x_ref[...].astype(jnp.float32)
    h = jnp.dot(x, w1_ref[...], preferred_element_type=jnp.float32) + b1_ref[...]
    h = jnp.maximum(h, 0.0)
    y = jnp.dot(h, w2_ref[...], preferred_element_type=jnp.float32) + b2_ref[...]
    y = x + y
    mu = jnp.mean(y, axis=-1, keepdims=True)
    yc = y - mu
    var = jnp.mean(yc * yc, axis=-1, keepdims=True)
    yn = yc * jax.lax.rsqrt(var + _EPS)
    o_ref[...] = (yn * g_ref[...] + be_ref[...]).astype(o_ref.dtype)


def _mlp3_kernel(x_ref, w1_ref, b1_ref, w2_ref, b2_ref, w3_ref, b3_ref, o_ref):
    x = x_ref[...].astype(jnp.float32)
    h = jnp.maximum(jnp.dot(x, w1_ref[...], preferred_element_type=jnp.float32) + b1_ref[...], 0.0)
    h = jnp.maximum(jnp.dot(h, w2_ref[...], preferred_element_type=jnp.float32) + b2_ref[...], 0.0)
    y = jnp.dot(h, w3_ref[...], preferred_element_type=jnp.float32) + b3_ref[...]
    o_ref[...] = y.astype(o_ref.dtype)


def _attn_layer_kernel(q_ref, k_ref, v_ref, res_ref, wqkv_ref, bqkv_ref,
                       wo_ref, bo_ref, g_ref, bln_ref, o_ref, *, nheads, scale):
    """Fused post-norm (self/cross) attention layer for one batch element:
    QKV projection -> per-head softmax(QK^T)V -> output projection ->
    residual add -> LayerNorm.  Heads stay packed on the 128-lane axis (C)."""
    q = q_ref[0].astype(jnp.float32)          # (Lq, C)
    k = k_ref[0].astype(jnp.float32)          # (Lk, C)
    v = v_ref[0].astype(jnp.float32)          # (Lk, C)
    qp = jnp.dot(q, wqkv_ref[0], preferred_element_type=jnp.float32) + bqkv_ref[0]
    kp = jnp.dot(k, wqkv_ref[1], preferred_element_type=jnp.float32) + bqkv_ref[1]
    vp = jnp.dot(v, wqkv_ref[2], preferred_element_type=jnp.float32) + bqkv_ref[2]
    C = qp.shape[-1]
    Dh = C // nheads
    heads = []
    for h in range(nheads):                   # static unroll over heads
        sl = slice(h * Dh, (h + 1) * Dh)
        qh, kh, vh = qp[:, sl], kp[:, sl], vp[:, sl]
        s = jax.lax.dot_general(qh, kh, (((1,), (1,)), ((), ())),
                                preferred_element_type=jnp.float32) * scale
        s = s - jnp.max(s, axis=-1, keepdims=True)
        p = jnp.exp(s)
        p = p * pl.reciprocal(jnp.sum(p, axis=-1, keepdims=True), approx=True)
        heads.append(jnp.dot(p, vh, preferred_element_type=jnp.float32))
    attn = jnp.concatenate(heads, axis=-1)    # (Lq, C)
    o = jnp.dot(attn, wo_ref[...], preferred_element_type=jnp.float32) + bo_ref[...]
    y = res_ref[0].astype(jnp.float32) + o
    mu = jnp.mean(y, axis=-1, keepdims=True)
    yc = y - mu
    var = jnp.mean(yc * yc, axis=-1, keepdims=True)
    yn = yc * jax.lax.rsqrt(var + _EPS)
    o_ref[...] = ((yn * g_ref[...] + bln_ref[...])[None, :, :]).astype(o_ref.dtype)


def _time_pool_kernel(src_ref, wt_ref, bt_ref, o_ref):
    """Fused time_aware_attn linear + softmax over frames (axis 0) + weighted sum."""
    src = src_ref[...].astype(jnp.float32)                               # (T, N, C)
    lg = jnp.sum(src * wt_ref[...], axis=-1, keepdims=True) + bt_ref[...]  # (T, N, 1)
    lg = lg - jnp.max(lg, axis=0, keepdims=True)
    e = jnp.exp(lg)
    w = e * pl.reciprocal(jnp.sum(e, axis=0, keepdims=True), approx=True)
    o_ref[...] = jnp.sum(src * w, axis=0).astype(o_ref.dtype)


# ----------------------------------------------------------------------------
# Cached pallas_call builders (one per distinct static shape; called under jit)
# ----------------------------------------------------------------------------
def _pick_row_tile(M, cap=512):
    """Full block when small; otherwise the largest multiple-of-8 divisor <= cap
    so the M axis pipelines and a single block never blows v7x's smaller VMEM."""
    if M <= cap:
        return M
    t = cap - cap % 8
    while t >= 8:
        if M % t == 0:
            return t
        t -= 8
    return M


@functools.lru_cache(maxsize=None)
def _linear_call(M, K, N, act, tile_m):
    return pl.pallas_call(
        functools.partial(_linear_kernel, act=act),
        out_shape=jax.ShapeDtypeStruct((M, N), jnp.float32),
        grid=(M // tile_m,),
        in_specs=[pl.BlockSpec((tile_m, K), lambda i: (i, 0)),
                  pl.BlockSpec((K, N), lambda i: (0, 0)),
                  pl.BlockSpec((1, N), lambda i: (0, 0))],
        out_specs=pl.BlockSpec((tile_m, N), lambda i: (i, 0)),
        compiler_params=pltpu.CompilerParams(dimension_semantics=("parallel",)),
    )


@functools.lru_cache(maxsize=None)
def _ln_call(M, C):
    return pl.pallas_call(
        _ln_kernel,
        out_shape=jax.ShapeDtypeStruct((M, C), jnp.float32),
        grid=(1,),
        in_specs=[pl.BlockSpec((M, C), lambda i: (0, 0)),
                  pl.BlockSpec((1, C), lambda i: (0, 0)),
                  pl.BlockSpec((1, C), lambda i: (0, 0))],
        out_specs=pl.BlockSpec((M, C), lambda i: (0, 0)),
    )


@functools.lru_cache(maxsize=None)
def _add_ln_call(M, C):
    return pl.pallas_call(
        _add_ln_kernel,
        out_shape=jax.ShapeDtypeStruct((M, C), jnp.float32),
        grid=(1,),
        in_specs=[pl.BlockSpec((M, C), lambda i: (0, 0)),
                  pl.BlockSpec((M, C), lambda i: (0, 0)),
                  pl.BlockSpec((1, C), lambda i: (0, 0)),
                  pl.BlockSpec((1, C), lambda i: (0, 0))],
        out_specs=pl.BlockSpec((M, C), lambda i: (0, 0)),
    )


@functools.lru_cache(maxsize=None)
def _ffn_call(M, C, F):
    return pl.pallas_call(
        _ffn_kernel,
        out_shape=jax.ShapeDtypeStruct((M, C), jnp.float32),
        grid=(1,),
        in_specs=[pl.BlockSpec((M, C), lambda i: (0, 0)),
                  pl.BlockSpec((C, F), lambda i: (0, 0)),
                  pl.BlockSpec((1, F), lambda i: (0, 0)),
                  pl.BlockSpec((F, C), lambda i: (0, 0)),
                  pl.BlockSpec((1, C), lambda i: (0, 0)),
                  pl.BlockSpec((1, C), lambda i: (0, 0)),
                  pl.BlockSpec((1, C), lambda i: (0, 0))],
        out_specs=pl.BlockSpec((M, C), lambda i: (0, 0)),
    )


@functools.lru_cache(maxsize=None)
def _mlp3_call(M, C, H, O):
    return pl.pallas_call(
        _mlp3_kernel,
        out_shape=jax.ShapeDtypeStruct((M, O), jnp.float32),
        grid=(1,),
        in_specs=[pl.BlockSpec((M, C), lambda i: (0, 0)),
                  pl.BlockSpec((C, H), lambda i: (0, 0)),
                  pl.BlockSpec((1, H), lambda i: (0, 0)),
                  pl.BlockSpec((H, H), lambda i: (0, 0)),
                  pl.BlockSpec((1, H), lambda i: (0, 0)),
                  pl.BlockSpec((H, O), lambda i: (0, 0)),
                  pl.BlockSpec((1, O), lambda i: (0, 0))],
        out_specs=pl.BlockSpec((M, O), lambda i: (0, 0)),
    )


@functools.lru_cache(maxsize=None)
def _attn_layer_call(N, Lq, Lk, C, nheads):
    scale = 1.0 / math.sqrt(C // nheads)
    return pl.pallas_call(
        functools.partial(_attn_layer_kernel, nheads=nheads, scale=scale),
        out_shape=jax.ShapeDtypeStruct((N, Lq, C), jnp.float32),
        grid=(N,),
        in_specs=[pl.BlockSpec((1, Lq, C), lambda n: (n, 0, 0)),
                  pl.BlockSpec((1, Lk, C), lambda n: (n, 0, 0)),
                  pl.BlockSpec((1, Lk, C), lambda n: (n, 0, 0)),
                  pl.BlockSpec((1, Lq, C), lambda n: (n, 0, 0)),
                  pl.BlockSpec((3, C, C), lambda n: (0, 0, 0)),
                  pl.BlockSpec((3, 1, C), lambda n: (0, 0, 0)),
                  pl.BlockSpec((C, C), lambda n: (0, 0)),
                  pl.BlockSpec((1, C), lambda n: (0, 0)),
                  pl.BlockSpec((1, C), lambda n: (0, 0)),
                  pl.BlockSpec((1, C), lambda n: (0, 0))],
        out_specs=pl.BlockSpec((1, Lq, C), lambda n: (n, 0, 0)),
        compiler_params=pltpu.CompilerParams(dimension_semantics=("parallel",)),
    )


@functools.lru_cache(maxsize=None)
def _time_pool_call(T, N, C):
    return pl.pallas_call(
        _time_pool_kernel,
        out_shape=jax.ShapeDtypeStruct((N, C), jnp.float32),
        grid=(1,),
        in_specs=[pl.BlockSpec((T, N, C), lambda i: (0, 0, 0)),
                  pl.BlockSpec((1, C), lambda i: (0, 0)),
                  pl.BlockSpec((1, 1), lambda i: (0, 0))],
        out_specs=pl.BlockSpec((N, C), lambda i: (0, 0)),   # 2-D index map (bug fix)
    )


# ----------------------------------------------------------------------------
# Thin wrappers (reshape-only glue; weights are already kernel-layout)
# ----------------------------------------------------------------------------
def linear(x, w_t, b_row, act=None):
    """y = x @ w_t + b_row (optional ReLU); w_t pre-transposed (in, out)."""
    K = x.shape[-1]
    lead = x.shape[:-1]
    x2 = x.reshape(-1, K)
    M, N = x2.shape[0], w_t.shape[1]
    out = _linear_call(M, K, N, act, _pick_row_tile(M))(x2, w_t, b_row)
    return out.reshape(*lead, N)


def layer_norm(x, p):
    g, b = p
    C = x.shape[-1]
    lead = x.shape[:-1]
    x2 = x.reshape(-1, C)
    return _ln_call(x2.shape[0], C)(x2, g, b).reshape(*lead, C)


def add_layer_norm(a, b, p):
    g, be = p
    C = a.shape[-1]
    lead = a.shape[:-1]
    a2 = a.reshape(-1, C)
    b2 = b.reshape(-1, C)
    return _add_ln_call(a2.shape[0], C)(a2, b2, g, be).reshape(*lead, C)


def attention_layer(p, q_in, k_in, v_in, res, *, nheads):
    """Fused post-norm attention layer; inputs (L*, N, C) seq-major."""
    Lq, N, C = q_in.shape
    Lk = k_in.shape[0]
    out = _attn_layer_call(N, Lq, Lk, C, nheads)(
        q_in.transpose(1, 0, 2), k_in.transpose(1, 0, 2), v_in.transpose(1, 0, 2),
        res.transpose(1, 0, 2), p["wqkv"], p["bqkv"], p["wo"], p["bo"], p["g"], p["b"])
    return out.transpose(1, 0, 2)


def ffn_layer(p, x):
    Lq, N, C = x.shape
    F = p["w1"].shape[1]
    out = _ffn_call(Lq * N, C, F)(x.reshape(Lq * N, C), p["w1"], p["b1"],
                                  p["w2"], p["b2"], p["g"], p["b"])
    return out.reshape(Lq, N, C)


def mlp3(p, x):
    C = x.shape[-1]
    lead = x.shape[:-1]
    x2 = x.reshape(-1, C)
    H, O = p["w1"].shape[1], p["w3"].shape[1]
    out = _mlp3_call(x2.shape[0], C, H, O)(x2, p["w1"], p["b1"], p["w2"], p["b2"],
                                           p["w3"], p["b3"])
    return out.reshape(*lead, O)


def time_weighted_pool(p, src):
    T, N, C = src.shape
    return _time_pool_call(T, N, C)(src, p[0], p[1])


def _unfold1d_replicate(x, K):
    """im2col for Conv1d(padding='same', padding_mode='replicate'), channel-last.
    x: (Bn, T, C) -> (Bn*T, K*C) with column index k*C + ci."""
    Bn, T, C = x.shape
    pad_l = (K - 1) // 2
    xp = jnp.pad(x, ((0, 0), (pad_l, K - 1 - pad_l), (0, 0)), mode="edge")
    cols = jnp.concatenate([xp[:, k:k + T, :] for k in range(K)], axis=-1)
    return cols.reshape(Bn * T, K * C)


def sine_pos_1d(T, C, temperature=10000.0):
    # TODO(synk): PositionEmbeddingSine1D source not provided; standard 1D
    # sinusoidal embedding along the temporal axis (C features) reconstructed.
    t = jnp.arange(1, T + 1, dtype=jnp.float32)
    dim = jnp.arange(C, dtype=jnp.float32)
    div = temperature ** (2.0 * jnp.floor(dim / 2.0) / C)
    ang = t[:, None] / div[None, :]
    return jnp.where((jnp.arange(C) % 2) == 0, jnp.sin(ang), jnp.cos(ang))  # (T, C)


# ----------------------------------------------------------------------------
# Host-side Hungarian matching (mirrors `.detach().cpu()` + linear_sum_assignment)
# ----------------------------------------------------------------------------
def _hungarian_min(cost):
    cost = np.asarray(cost, dtype=np.float64)
    n, m = cost.shape
    INF = float("inf")
    u = np.zeros(n + 1)
    v = np.zeros(m + 1)
    p = np.zeros(m + 1, dtype=np.int64)
    way = np.zeros(m + 1, dtype=np.int64)
    for i in range(1, n + 1):
        p[0] = i
        j0 = 0
        minv = np.full(m + 1, INF)
        used = np.zeros(m + 1, dtype=bool)
        while True:
            used[j0] = True
            i0 = p[j0]
            delta = INF
            j1 = 0
            for j in range(1, m + 1):
                if not used[j]:
                    cur = cost[i0 - 1, j - 1] - u[i0] - v[j]
                    if cur < minv[j]:
                        minv[j] = cur
                        way[j] = j0
                    if minv[j] < delta:
                        delta = minv[j]
                        j1 = j
            for j in range(m + 1):
                if used[j]:
                    u[p[j]] += delta
                    v[j] -= delta
                else:
                    minv[j] -= delta
            j0 = j1
            if p[j0] == 0:
                break
        while True:
            j1 = way[j0]
            p[j0] = p[j1]
            j0 = j1
            if j0 == 0:
                break
    col_of_row = np.zeros(n, dtype=np.int64)
    for j in range(1, m + 1):
        if p[j] > 0:
            col_of_row[p[j] - 1] = j - 1
    return np.arange(n), col_of_row


def match_from_embds_np(tgt_embds, cur_embds):
    cur = cur_embds / np.linalg.norm(cur_embds, axis=1, keepdims=True)
    tgt = tgt_embds / np.linalg.norm(tgt_embds, axis=1, keepdims=True)
    cost = 1.0 - cur @ tgt.T
    _, indices = _hungarian_min(cost.T)
    return indices


# ----------------------------------------------------------------------------
# SSA forward core (single jitted graph; eval mode, B = 1)
# ----------------------------------------------------------------------------
def _ssa_core(kp, frame_query, sentence_feat, perm, *, nheads, num_layers):
    L, BT, fQ, C = frame_query.shape
    B = 1
    T = BT // B
    LB = L * B

    fq = frame_query.reshape(LB, T, fQ, C).transpose(1, 2, 0, 3)    # (T, fQ, LB, C)

    # apply the host-computed inter-frame matching permutation (device gather)
    ti = jnp.arange(T)[:, None, None]
    ji = jnp.arange(LB)[None, None, :]
    src = fq[ti, jnp.transpose(perm, (0, 2, 1)), ji, :]             # (T, fQ, LB, C)
    frame_query_matched = src            # input_proj_dec / src_embed are Identity

    # ---- temporal enhancement: short conv branch + residual LN + long self-attn
    Bn = fQ * LB
    xt = src.transpose(1, 2, 0, 3).reshape(Bn, T, C)                # channel-last (NWC)
    h = linear(_unfold1d_replicate(xt, 5), *kp["short_conv1"], act="relu").reshape(Bn, T, C)
    y = linear(_unfold1d_replicate(h, 3), *kp["short_conv2"]).reshape(Bn, T, C)
    z = add_layer_norm(y, xt, kp["temporal_norm"])                  # (Bn, T, C)
    z = z.transpose(1, 0, 2)                                        # (T, fQ*LB, C)
    pos = sine_pos_1d(T, C)
    q_in = z + jnp.broadcast_to(pos[:, None, :], (T, Bn, C))
    src_enh = attention_layer(kp["long_temporal"], q_in, q_in, z, z, nheads=nheads)

    # ---- time-aware softmax pooling over frames (fused linear+softmax+sum)
    output = time_weighted_pool(kp["time_attn"], src_enh).reshape(fQ, LB, C)

    # ---- frame-level similarity embedding (matched, un-enhanced frame queries)
    fqm = frame_query_matched.reshape(T * fQ, LB, C)
    pred_fq_embed = linear(fqm, *kp["sim_frame"])
    pred_fq_embed = pred_fq_embed.transpose(1, 0, 2).reshape(L, B, T, fQ, C)

    src_flat = src_enh.reshape(T * fQ, LB, C)
    dec_pos = jnp.tile(kp["fq_pos"][None, :, None, :], (T, 1, LB, 1)).reshape(T * fQ, LB, C)
    query_embed = jnp.tile(kp["query_embed"][:, None, :], (1, LB, 1))   # (cQ, LB, C)

    sf = jnp.tile(sentence_feat, (1, L, 1)).reshape(B, T, L, C)
    text_features = sf.transpose(1, 2, 0, 3).reshape(T, LB, C)

    out = output
    for i in range(num_layers):
        lp = kp["layers"][i]
        out = attention_layer(lp["fusion"], out + query_embed,
                              text_features, text_features, out, nheads=nheads)
        out = attention_layer(lp["cross"], out + query_embed,
                              src_flat + dec_pos, src_flat, out, nheads=nheads)
        q = out + query_embed
        out = attention_layer(lp["self"], q, q, out, out, nheads=nheads)
        out = ffn_layer(lp["ffn"], out)

    cQ = out.shape[0]
    dec = layer_norm(out, kp["decoder_norm"])                       # (cQ, LB, C)
    dec = dec.transpose(1, 0, 2).reshape(L, B, cQ, C)
    decoder_outputs = dec[None]                                     # (D=1, L, B, cQ, C)

    pred_cls = linear(decoder_outputs, *kp["class_embed"])
    pred_mask_embed = mlp3(kp["mask_embed"], decoder_outputs)
    pred_cq_embed = linear(decoder_outputs, *kp["sim_clip"])

    return {
        "pred_logits": pred_cls[-1],
        "pred_mask_embed": pred_mask_embed[-1],
        "pred_fq_embed": pred_fq_embed,
        "pred_cq_embed": pred_cq_embed[-1],
    }


_ssa_forward_jit = jax.jit(_ssa_core, static_argnames=("nheads", "num_layers"))


def ssa_forward(kparams, frame_query, sentence_feat, lang_mask, *, nheads, num_layers):
    del lang_mask                        # unused by the module's forward
    fq_last = frame_query[-1:]           # eval mode: last IFC decoder layer only
    L, BT, fQ, C = fq_last.shape
    B = 1
    T = BT // B
    LB = L * B

    # Inter-frame Hungarian matching stays on the host (as in the original
    # `.detach().cpu()` + scipy); only the tiny (T, LB, fQ) permutation goes
    # back to the device and the gather runs inside the jitted graph.
    fq_np = np.asarray(jax.device_get(fq_last), dtype=np.float32)
    cur = fq_np.reshape(LB, T, fQ, C).transpose(1, 2, 0, 3).copy()   # (T, fQ, LB, C)
    perm = np.tile(np.arange(fQ, dtype=np.int32), (T, LB, 1))
    for i in range(1, T):
        for j in range(LB):
            idx = match_from_embds_np(cur[i - 1, :, j, :], cur[i, :, j, :])
            cur[i, :, j, :] = cur[i, idx, j, :]
            perm[i, j] = idx

    out = dict(_ssa_forward_jit(kparams, fq_last, sentence_feat, jnp.asarray(perm),
                                nheads=nheads, num_layers=num_layers))
    out["aux_outputs"] = []              # eval: single decoder output -> no aux losses
    return out


# ----------------------------------------------------------------------------
# Parameter init (torch layout, shapes follow SSA.__init__) + one-time prep
# ----------------------------------------------------------------------------
def init_params(key, *, C, dim_ff, num_layers, num_queries,
                num_frame_queries, num_classes, mask_dim):
    key_iter = iter(jax.random.split(key, 256))

    def nk():
        return next(key_iter)

    def lin_p(out_dim, in_dim):
        bound = 1.0 / math.sqrt(in_dim)
        w = jax.random.uniform(nk(), (out_dim, in_dim), jnp.float32, -bound, bound)
        b = jax.random.uniform(nk(), (out_dim,), jnp.float32, -bound, bound)
        return (w, b)

    def conv_p(out_c, in_c, ksz):
        bound = 1.0 / math.sqrt(in_c * ksz)
        w = jax.random.uniform(nk(), (out_c, in_c, ksz), jnp.float32, -bound, bound)
        b = jax.random.uniform(nk(), (out_c,), jnp.float32, -bound, bound)
        return (w, b)

    def norm_p():
        return (jnp.ones((C,), jnp.float32), jnp.zeros((C,), jnp.float32))

    def mha_p():
        in_w, in_b = lin_p(3 * C, C)
        out_w, out_b = lin_p(C, C)
        return {"in_w": in_w, "in_b": in_b, "out_w": out_w, "out_b": out_b}

    def attn_layer_p():
        return {"mha": mha_p(), "norm": norm_p()}

    layers = []
    for _ in range(num_layers):
        w1, b1 = lin_p(dim_ff, C)
        w2, b2 = lin_p(C, dim_ff)
        layers.append({
            "fusion": attn_layer_p(),
            "cross": attn_layer_p(),
            "self": attn_layer_p(),
            "ffn": {"w1": w1, "b1": b1, "w2": w2, "b2": b2, "norm": norm_p()},
        })

    return {
        "short_conv1": conv_p(C, C, 5),
        "short_conv2": conv_p(C, C, 3),
        "temporal_norm": norm_p(),
        "long_temporal": attn_layer_p(),
        "time_attn": lin_p(1, C),
        "layers": layers,
        "decoder_norm": norm_p(),
        "query_embed": jax.random.normal(nk(), (num_queries, C), jnp.float32),
        "fq_pos": jax.random.normal(nk(), (num_frame_queries, C), jnp.float32),
        "class_embed": lin_p(num_classes + 1, C),
        "mask_embed": [lin_p(C, C), lin_p(C, C), lin_p(mask_dim, C)],
        "sim_frame": lin_p(C, C),
        "sim_clip": lin_p(C, C),
        # NOTE: vita_mask_features (Conv2d) is declared in __init__ but never
        # used inside SSA.forward, so it is omitted here.
    }


def prepare_params(p, C):
    """One-time conversion to kernel layout: pre-transposed (in, out) weights,
    (1, N) row biases, per-head-packed QKV weights.  Runs once, outside jit."""
    f32 = functools.partial(jnp.asarray, dtype=jnp.float32)

    def lin(wb):
        w, b = wb
        return (f32(w).T, f32(b).reshape(1, -1))

    def norm(nb):
        g, b = nb
        return (f32(g).reshape(1, -1), f32(b).reshape(1, -1))

    def conv(wb):
        w, b = wb                       # (Cout, Cin, K)
        Cout, Cin, K = w.shape
        wt = f32(w).transpose(2, 1, 0).reshape(K * Cin, Cout)   # row index k*Cin + ci
        return (wt, f32(b).reshape(1, -1))

    def attn(al):
        m = al["mha"]
        in_w = f32(m["in_w"])           # (3C, C): [Wq; Wk; Wv]
        wqkv = jnp.stack([in_w[:C].T, in_w[C:2 * C].T, in_w[2 * C:].T], axis=0)
        bqkv = f32(m["in_b"]).reshape(3, 1, C)
        g, b = norm(al["norm"])
        return {"wqkv": wqkv, "bqkv": bqkv,
                "wo": f32(m["out_w"]).T, "bo": f32(m["out_b"]).reshape(1, C),
                "g": g, "b": b}

    def ffn(fp):
        g, b = norm(fp["norm"])
        return {"w1": f32(fp["w1"]).T, "b1": f32(fp["b1"]).reshape(1, -1),
                "w2": f32(fp["w2"]).T, "b2": f32(fp["b2"]).reshape(1, -1),
                "g": g, "b": b}

    def mlp(mp):
        (w1, b1), (w2, b2), (w3, b3) = mp
        return {"w1": f32(w1).T, "b1": f32(b1).reshape(1, -1),
                "w2": f32(w2).T, "b2": f32(b2).reshape(1, -1),
                "w3": f32(w3).T, "b3": f32(b3).reshape(1, -1)}

    tw, tb = p["time_attn"]             # (1, C), (1,)
    return {
        "short_conv1": conv(p["short_conv1"]),
        "short_conv2": conv(p["short_conv2"]),
        "temporal_norm": norm(p["temporal_norm"]),
        "long_temporal": attn(p["long_temporal"]),
        "time_attn": (f32(tw).reshape(1, C), f32(tb).reshape(1, 1)),
        "layers": [{"fusion": attn(lp["fusion"]), "cross": attn(lp["cross"]),
                    "self": attn(lp["self"]), "ffn": ffn(lp["ffn"])}
                   for lp in p["layers"]],
        "decoder_norm": norm(p["decoder_norm"]),
        "query_embed": f32(p["query_embed"]),
        "fq_pos": f32(p["fq_pos"]),
        "class_embed": lin(p["class_embed"]),
        "mask_embed": mlp(p["mask_embed"]),
        "sim_frame": lin(p["sim_frame"]),
        "sim_clip": lin(p["sim_clip"]),
    }


if __name__ == "__main__":
    # Small config consistent with the module's forward.
    C = 32           # hidden_dim
    nheads = 4
    dim_ff = 64
    num_layers = 2   # dec_layers
    fQ = 8           # num_frame_queries
    cQ = 8           # num_queries (== fQ: decoder queries are the pooled frame queries)
    num_classes = 10
    mask_dim = 16
    L_in = 3         # IFC decoder layers present in frame_query (eval uses last)
    T = 4            # frames
    B = 1            # eval mode batch

    key = jax.random.PRNGKey(0)
    kp_key, k1, k2 = jax.random.split(key, 3)
    raw_params = init_params(kp_key, C=C, dim_ff=dim_ff, num_layers=num_layers,
                             num_queries=cQ, num_frame_queries=fQ,
                             num_classes=num_classes, mask_dim=mask_dim)
    params = prepare_params(raw_params, C)

    frame_query = jax.random.normal(k1, (L_in, B * T, fQ, C), jnp.float32)
    sentence_feat = jax.random.normal(k2, (B, T, C), jnp.float32)
    lang_mask = jnp.ones((B, T), jnp.float32)   # unused by forward

    out = ssa_forward(params, frame_query, sentence_feat, lang_mask,
                      nheads=nheads, num_layers=num_layers)
    jax.block_until_ready((out["pred_logits"], out["pred_mask_embed"],
                           out["pred_fq_embed"], out["pred_cq_embed"]))

    assert out["pred_logits"].shape == (1, B, cQ, num_classes + 1)
    assert out["pred_mask_embed"].shape == (1, B, cQ, mask_dim)
    assert out["pred_fq_embed"].shape == (1, B, T, fQ, C)
    assert out["pred_cq_embed"].shape == (1, B, cQ, C)
    for k in ("pred_logits", "pred_mask_embed", "pred_fq_embed", "pred_cq_embed"):
        assert not bool(jnp.isnan(out[k]).any())
    print("KERNEL_OK")
</pallas_src>

<mosaic_0001>
module attributes {stable_mosaic.version = 11 : i64} {
  func.func @_linear_kernel(%arg0: i32, %arg1: memref<32x160xf32, #tpu.memory_space<vmem>>, %arg2: memref<160x32xf32, #tpu.memory_space<vmem>>, %arg3: memref<1x32xf32, #tpu.memory_space<vmem>>, %arg4: memref<32x32xf32, #tpu.memory_space<vmem>>) attributes {dimension_semantics = [#tpu.dimension_semantics<parallel>], iteration_bounds = array<i64: 1>, scalar_prefetch = 0 : i64, scratch_operands = 0 : i64, tpu.core_type = #tpu.core_type<tc>, window_params = [{transform_indices = @transform_0, window_bounds = array<i64: 32, 160>}, {pipeline_mode = #tpu.pipeline_mode<synchronous>, transform_indices = @transform_1, window_bounds = array<i64: 160, 32>}, {pipeline_mode = #tpu.pipeline_mode<synchronous>, transform_indices = @transform_2, window_bounds = array<i64: 1, 32>}, {transform_indices = @transform_3, window_bounds = array<i64: 32, 32>}]} {
    %c0 = arith.constant 0 : index
    %c0_0 = arith.constant 0 : index
    %0 = vector.load %arg1[%c0, %c0_0] : memref<32x160xf32, #tpu.memory_space<vmem>>, vector<32x160xf32>
    %c0_1 = arith.constant 0 : index
    %c0_2 = arith.constant 0 : index
    %1 = vector.load %arg2[%c0_1, %c0_2] : memref<160x32xf32, #tpu.memory_space<vmem>>, vector<160x32xf32>
    %cst = arith.constant dense<0.000000e+00> : vector<32x32xf32>
    %2 = tpu.matmul %0, %1, %cst {dimension_numbers = #tpu.dot_dimension_numbers<[1], [0], [0], [1], [0, 0, 1, 1], [], []>} : vector<32x160xf32>, vector<160x32xf32>, vector<32x32xf32> -> vector<32x32xf32>
    %c0_3 = arith.constant 0 : index
    %c0_4 = arith.constant 0 : index
    %3 = vector.load %arg3[%c0_3, %c0_4] : memref<1x32xf32, #tpu.memory_space<vmem>>, vector<1x32xf32>
    %4 = vector.broadcast %3 : vector<1x32xf32> to vector<32x32xf32>
    %5 = arith.addf %2, %4 : vector<32x32xf32>
    %cst_5 = arith.constant 0.000000e+00 : f32
    %6 = vector.broadcast %cst_5 : f32 to vector<32x32xf32>
    %7 = arith.maximumf %5, %6 : vector<32x32xf32>
    %c0_6 = arith.constant 0 : index
    %c0_7 = arith.constant 0 : index
    %8 = vector.load %arg4[%c0_6, %c0_7] : memref<32x32xf32, #tpu.memory_space<vmem>>, vector<32x32xf32>
    tpu.vector_store %arg4[%c0_6, %c0_7], %7 {strides = array<i32>} : memref<32x32xf32, #tpu.memory_space<vmem>>, vector<32x32xf32>,
    return
  }
  func.func @transform_0(%arg0: i32) -> (i32, i32) {
    %c0_i32 = arith.constant 0 : i32
    %c0_i32_0 = arith.constant 0 : i32
    return %arg0, %c0_i32 : i32, i32
  }
  func.func @transform_1(%arg0: i32) -> (i32, i32) {
    %c0_i32 = arith.constant 0 : i32
    %c0_i32_0 = arith.constant 0 : i32
    %c0_i32_1 = arith.constant 0 : i32
    return %c0_i32, %c0_i32_0 : i32, i32
  }
  func.func @transform_2(%arg0: i32) -> (i32, i32) {
    %c0_i32 = arith.constant 0 : i32
    %c0_i32_0 = arith.constant 0 : i32
    %c0_i32_1 = arith.constant 0 : i32
    return %c0_i32, %c0_i32_0 : i32, i32
  }
  func.func @transform_3(%arg0: i32) -> (i32, i32) {
    %c0_i32 = arith.constant 0 : i32
    %c0_i32_0 = arith.constant 0 : i32
    return %arg0, %c0_i32 : i32, i32
  }
}

module attributes {stable_mosaic.version = 11 : i64} {
  func.func @_linear_kernel(%arg0: i32, %arg1: memref<32x96xf32, #tpu.memory_space<vmem>>, %arg2: memref<96x32xf32, #tpu.memory_space<vmem>>, %arg3: memref<1x32xf32, #tpu.memory_space<vmem>>, %arg4: memref<32x32xf32, #tpu.memory_space<vmem>>) attributes {dimension_semantics = [#tpu.dimension_semantics<parallel>], iteration_bounds = array<i64: 1>, scalar_prefetch = 0 : i64, scratch_operands = 0 : i64, tpu.core_type = #tpu.core_type<tc>, window_params = [{transform_indices = @transform_0, window_bounds = array<i64: 32, 96>}, {pipeline_mode = #tpu.pipeline_mode<synchronous>, transform_indices = @transform_1, window_bounds = array<i64: 96, 32>}, {pipeline_mode = #tpu.pipeline_mode<synchronous>, transform_indices = @transform_2, window_bounds = array<i64: 1, 32>}, {transform_indices = @transform_3, window_bounds = array<i64: 32, 32>}]} {
    %c0 = arith.constant 0 : index
    %c0_0 = arith.constant 0 : index
    %0 = vector.load %arg1[%c0, %c0_0] : memref<32x96xf32, #tpu.memory_space<vmem>>, vector<32x96xf32>
    %c0_1 = arith.constant 0 : index
    %c0_2 = arith.constant 0 : index
    %1 = vector.load %arg2[%c0_1, %c0_2] : memref<96x32xf32, #tpu.memory_space<vmem>>, vector<96x32xf32>
    %cst = arith.constant dense<0.000000e+00> : vector<32x32xf32>
    %2 = tpu.matmul %0, %1, %cst {dimension_numbers = #tpu.dot_dimension_numbers<[1], [0], [0], [1], [0, 0, 1, 1], [], []>} : vector<32x96xf32>, vector<96x32xf32>, vector<32x32xf32> -> vector<32x32xf32>
    %c0_3 = arith.constant 0 : index
    %c0_4 = arith.constant 0 : index
    %3 = vector.load %arg3[%c0_3, %c0_4] : memref<1x32xf32, #tpu.memory_space<vmem>>, vector<1x32xf32>
    %4 = vector.broadcast %3 : vector<1x32xf32> to vector<32x32xf32>
    %5 = arith.addf %2, %4 : vector<32x32xf32>
    %c0_5 = arith.constant 0 : index
    %c0_6 = arith.constant 0 : index
    %6 = vector.load %arg4[%c0_5, %c0_6] : memref<32x32xf32, #tpu.memory_space<vmem>>, vector<32x32xf32>
    tpu.vector_store %arg4[%c0_5, %c0_6], %5 {strides = array<i32>} : memref<32x32xf32, #tpu.memory_space<vmem>>, vector<32x32xf32>,
    return
  }
  func.func @transform_0(%arg0: i32) -> (i32, i32) {
    %c0_i32 = arith.constant 0 : i32
    %c0_i32_0 = arith.constant 0 : i32
    return %arg0, %c0_i32 : i32, i32
  }
  func.func @transform_1(%arg0: i32) -> (i32, i32) {
    %c0_i32 = arith.constant 0 : i32
    %c0_i32_0 = arith.constant 0 : i32
    %c0_i32_1 = arith.constant 0 : i32
    return %c0_i32, %c0_i32_0 : i32, i32
  }
  func.func @transform_2(%arg0: i32) -> (i32, i32) {
    %c0_i32 = arith.constant 0 : i32
    %c0_i32_0 = arith.constant 0 : i32
    %c0_i32_1 = arith.constant 0 : i32
    return %c0_i32, %c0_i32_0 : i32, i32
  }
  func.func @transform_3(%arg0: i32) -> (i32, i32) {
    %c0_i32 = arith.constant 0 : i32
    %c0_i32_0 = arith.constant 0 : i32
    return %arg0, %c0_i32 : i32, i32
  }
}

module attributes {stable_mosaic.version = 11 : i64} {
  func.func @_add_ln_kernel(%arg0: i32, %arg1: memref<32x32xf32, #tpu.memory_space<vmem>>, %arg2: memref<32x32xf32, #tpu.memory_space<vmem>>, %arg3: memref<1x32xf32, #tpu.memory_space<vmem>>, %arg4: memref<1x32xf32, #tpu.memory_space<vmem>>, %arg5: memref<32x32xf32, #tpu.memory_space<vmem>>) attributes {dimension_semantics = [#tpu.dimension_semantics<arbitrary>], iteration_bounds = array<i64: 1>, scalar_prefetch = 0 : i64, scratch_operands = 0 : i64, tpu.core_type = #tpu.core_type<tc>, window_params = [{pipeline_mode = #tpu.pipeline_mode<synchronous>, transform_indices = @transform_0, window_bounds = array<i64: 32, 32>}, {pipeline_mode = #tpu.pipeline_mode<synchronous>, transform_indices = @transform_1, window_bounds = array<i64: 32, 32>}, {pipeline_mode = #tpu.pipeline_mode<synchronous>, transform_indices = @transform_2, window_bounds = array<i64: 1, 32>}, {pipeline_mode = #tpu.pipeline_mode<synchronous>, transform_indices = @transform_3, window_bounds = array<i64: 1, 32>}, {pipeline_mode = #tpu.pipeline_mode<synchronous>, transform_indices = @transform_4, window_bounds = array<i64: 32, 32>}]} {
    %c0 = arith.constant 0 : index
    %c0_0 = arith.constant 0 : index
    %0 = vector.load %arg1[%c0, %c0_0] : memref<32x32xf32, #tpu.memory_space<vmem>>, vector<32x32xf32>
    %c0_1 = arith.constant 0 : index
    %c0_2 = arith.constant 0 : index
    %1 = vector.load %arg2[%c0_1, %c0_2] : memref<32x32xf32, #tpu.memory_space<vmem>>, vector<32x32xf32>
    %2 = arith.addf %0, %1 : vector<32x32xf32>
    %cst = arith.constant dense<0.000000e+00> : vector<32xf32>
    %3 = vector.multi_reduction <add>, %2, %cst [1] : vector<32x32xf32> to vector<32xf32>
    %4 = vector.shape_cast %3 : vector<32xf32> to vector<32x1xf32>
    %cst_3 = arith.constant 3.200000e+01 : f32
    %5 = vector.broadcast %cst_3 : f32 to vector<32x1xf32>
    %6 = arith.divf %4, %5 : vector<32x1xf32>
    %7 = vector.broadcast %6 : vector<32x1xf32> to vector<32x32xf32>
    %8 = arith.subf %2, %7 : vector<32x32xf32>
    %9 = arith.mulf %8, %8 : vector<32x32xf32>
    %cst_4 = arith.constant dense<0.000000e+00> : vector<32xf32>
    %10 = vector.multi_reduction <add>, %9, %cst_4 [1] : vector<32x32xf32> to vector<32xf32>
    %11 = vector.shape_cast %10 : vector<32xf32> to vector<32x1xf32>
    %cst_5 = arith.constant 3.200000e+01 : f32
    %12 = vector.broadcast %cst_5 : f32 to vector<32x1xf32>
    %13 = arith.divf %11, %12 : vector<32x1xf32>
    %cst_6 = arith.constant 9.99999974E-6 : f32
    %14 = vector.broadcast %cst_6 : f32 to vector<32x1xf32>
    %15 = arith.addf %13, %14 : vector<32x1xf32>
    %16 = math.rsqrt %15 : vector<32x1xf32>
    %17 = vector.broadcast %16 : vector<32x1xf32> to vector<32x32xf32>
    %18 = arith.mulf %8, %17 : vector<32x32xf32>
    %c0_7 = arith.constant 0 : index
    %c0_8 = arith.constant 0 : index
    %19 = vector.load %arg3[%c0_7, %c0_8] : memref<1x32xf32, #tpu.memory_space<vmem>>, vector<1x32xf32>
    %20 = vector.broadcast %19 : vector<1x32xf32> to vector<32x32xf32>
    %21 = arith.mulf %18, %20 : vector<32x32xf32>
    %c0_9 = arith.constant 0 : index
    %c0_10 = arith.constant 0 : index
    %22 = vector.load %arg4[%c0_9, %c0_10] : memref<1x32xf32, #tpu.memory_space<vmem>>, vector<1x32xf32>
    %23 = vector.broadcast %22 : vector<1x32xf32> to vector<32x32xf32>
    %24 = arith.addf %21, %23 : vector<32x32xf32>
    %c0_11 = arith.constant 0 : index
    %c0_12 = arith.constant 0 : index
    %25 = vector.load %arg5[%c0_11, %c0_12] : memref<32x32xf32, #tpu.memory_space<vmem>>, vector<32x32xf32>
    tpu.vector_store %arg5[%c0_11, %c0_12], %24 {strides = array<i32>} : memref<32x32xf32, #tpu.memory_space<vmem>>, vector<32x32xf32>,
    return
  }
  func.func @transform_0(%arg0: i32) -> (i32, i32) {
    %c0_i32 = arith.constant 0 : i32
    %c0_i32_0 = arith.constant 0 : i32
    %c0_i32_1 = arith.constant 0 : i32
    return %c0_i32, %c0_i32_0 : i32, i32
  }
  func.func @transform_1(%arg0: i32) -> (i32, i32) {
    %c0_i32 = arith.constant 0 : i32
    %c0_i32_0 = arith.constant 0 : i32
    %c0_i32_1 = arith.constant 0 : i32
    return %c0_i32, %c0_i32_0 : i32, i32
  }
  func.func @transform_2(%arg0: i32) -> (i32, i32) {
    %c0_i32 = arith.constant 0 : i32
    %c0_i32_0 = arith.constant 0 : i32
    %c0_i32_1 = arith.constant 0 : i32
    return %c0_i32, %c0_i32_0 : i32, i32
  }
  func.func @transform_3(%arg0: i32) -> (i32, i32) {
    %c0_i32 = arith.constant 0 : i32
    %c0_i32_0 = arith.constant 0 : i32
    %c0_i32_1 = arith.constant 0 : i32
    return %c0_i32, %c0_i32_0 : i32, i32
  }
  func.func @transform_4(%arg0: i32) -> (i32, i32) {
    %c0_i32 = arith.constant 0 : i32
    %c0_i32_0 = arith.constant 0 : i32
    %c0_i32_1 = arith.constant 0 : i32
    return %c0_i32, %c0_i32_0 : i32, i32
  }
}

module attributes {stable_mosaic.version = 11 : i64} {
  func.func @_attn_layer_kernel(%arg0: i32, %arg1: memref<1x4x32xf32, #tpu.memory_space<vmem>>, %arg2: memref<1x4x32xf32, #tpu.memory_space<vmem>>, %arg3: memref<1x4x32xf32, #tpu.memory_space<vmem>>, %arg4: memref<1x4x32xf32, #tpu.memory_space<vmem>>, %arg5: memref<3x32x32xf32, #tpu.memory_space<vmem>>, %arg6: memref<3x1x32xf32, #tpu.memory_space<vmem>>, %arg7: memref<32x32xf32, #tpu.memory_space<vmem>>, %arg8: memref<1x32xf32, #tpu.memory_space<vmem>>, %arg9: memref<1x32xf32, #tpu.memory_space<vmem>>, %arg10: memref<1x32xf32, #tpu.memory_space<vmem>>, %arg11: memref<1x4x32xf32, #tpu.memory_space<vmem>>) attributes {dimension_semantics = [#tpu.dimension_semantics<parallel>], iteration_bounds = array<i64: 8>, scalar_prefetch = 0 : i64, scratch_operands = 0 : i64, tpu.core_type = #tpu.core_type<tc>, window_params = [{transform_indices = @transform_0, window_bounds = array<i64: 1, 4, 32>}, {transform_indices = @transform_1, window_bounds = array<i64: 1, 4, 32>}, {transform_indices = @transform_2, window_bounds = array<i64: 1, 4, 32>}, {transform_indices = @transform_3, window_bounds = array<i64: 1, 4, 32>}, {pipeline_mode = #tpu.pipeline_mode<synchronous>, transform_indices = @transform_4, window_bounds = array<i64: 3, 32, 32>}, {pipeline_mode = #tpu.pipeline_mode<synchronous>, transform_indices = @transform_5, window_bounds = array<i64: 3, 1, 32>}, {pipeline_mode = #tpu.pipeline_mode<synchronous>, transform_indices = @transform_6, window_bounds = array<i64: 32, 32>}, {pipeline_mode = #tpu.pipeline_mode<synchronous>, transform_indices = @transform_7, window_bounds = array<i64: 1, 32>}, {pipeline_mode = #tpu.pipeline_mode<synchronous>, transform_indices = @transform_8, window_bounds = array<i64: 1, 32>}, {pipeline_mode = #tpu.pipeline_mode<synchronous>, transform_indices = @transform_9, window_bounds = array<i64: 1, 32>}, {transform_indices = @transform_10, window_bounds = array<i64: 1, 4, 32>}]} {
    %c0 = arith.constant 0 : index
    %c0_0 = arith.constant 0 : index
    %c0_1 = arith.constant 0 : index
    %0 = vector.load %arg1[%c0, %c0_0, %c0_1] : memref<1x4x32xf32, #tpu.memory_space<vmem>>, vector<1x4x32xf32>
    %1 = vector.shape_cast %0 : vector<1x4x32xf32> to vector<4x32xf32>
    %c0_2 = arith.constant 0 : index
    %c0_3 = arith.constant 0 : index
    %c0_4 = arith.constant 0 : index
    %2 = vector.load %arg2[%c0_2, %c0_3, %c0_4] : memref<1x4x32xf32, #tpu.memory_space<vmem>>, vector<1x4x32xf32>
    %3 = vector.shape_cast %2 : vector<1x4x32xf32> to vector<4x32xf32>
    %c0_5 = arith.constant 0 : index
    %c0_6 = arith.constant 0 : index
    %c0_7 = arith.constant 0 : index
    %4 = vector.load %arg3[%c0_5, %c0_6, %c0_7] : memref<1x4x32xf32, #tpu.memory_space<vmem>>, vector<1x4x32xf32>
    %5 = vector.shape_cast %4 : vector<1x4x32xf32> to vector<4x32xf32>
    %c0_8 = arith.constant 0 : index
    %c0_9 = arith.constant 0 : index
    %c0_10 = arith.constant 0 : index
    %6 = vector.load %arg5[%c0_8, %c0_9, %c0_10] : memref<3x32x32xf32, #tpu.memory_space<vmem>>, vector<1x32x32xf32>
    %7 = vector.shape_cast %6 : vector<1x32x32xf32> to vector<32x32xf32>
    %cst = arith.constant dense<0.000000e+00> : vector<4x32xf32>
    %8 = tpu.matmul %1, %7, %cst {dimension_numbers = #tpu.dot_dimension_numbers<[1], [0], [0], [1], [0, 0, 1, 1], [], []>} : vector<4x32xf32>, vector<32x32xf32>, vector<4x32xf32> -> vector<4x32xf32>
    %c0_11 = arith.constant 0 : index
    %c0_12 = arith.constant 0 : index
    %c0_13 = arith.constant 0 : index
    %9 = vector.load %arg6[%c0_11, %c0_12, %c0_13] : memref<3x1x32xf32, #tpu.memory_space<vmem>>, vector<1x1x32xf32>
    %10 = vector.shape_cast %9 : vector<1x1x32xf32> to vector<1x32xf32>
    %11 = vector.broadcast %10 : vector<1x32xf32> to vector<4x32xf32>
    %12 = arith.addf %8, %11 : vector<4x32xf32>
    %c1 = arith.constant 1 : index
    %c0_14 = arith.constant 0 : index
    %c0_15 = arith.constant 0 : index
    %13 = vector.load %arg5[%c1, %c0_14, %c0_15] : memref<3x32x32xf32, #tpu.memory_space<vmem>>, vector<1x32x32xf32>
    %14 = vector.shape_cast %13 : vector<1x32x32xf32> to vector<32x32xf32>
    %cst_16 = arith.constant dense<0.000000e+00> : vector<4x32xf32>
    %15 = tpu.matmul %3, %14, %cst_16 {dimension_numbers = #tpu.dot_dimension_numbers<[1], [0], [0], [1], [0, 0, 1, 1], [], []>} : vector<4x32xf32>, vector<32x32xf32>, vector<4x32xf32> -> vector<4x32xf32>
    %c1_17 = arith.constant 1 : index
    %c0_18 = arith.constant 0 : index
    %c0_19 = arith.constant 0 : index
    %16 = vector.load %arg6[%c1_17, %c0_18, %c0_19] : memref<3x1x32xf32, #tpu.memory_space<vmem>>, vector<1x1x32xf32>
    %17 = vector.shape_cast %16 : vector<1x1x32xf32> to vector<1x32xf32>
    %18 = vector.broadcast %17 : vector<1x32xf32> to vector<4x32xf32>
    %19 = arith.addf %15, %18 : vector<4x32xf32>
    %c2 = arith.constant 2 : index
    %c0_20 = arith.constant 0 : index
    %c0_21 = arith.constant 0 : index
    %20 = vector.load %arg5[%c2, %c0_20, %c0_21] : memref<3x32x32xf32, #tpu.memory_space<vmem>>, vector<1x32x32xf32>
    %21 = vector.shape_cast %20 : vector<1x32x32xf32> to vector<32x32xf32>
    %cst_22 = arith.constant dense<0.000000e+00> : vector<4x32xf32>
    %22 = tpu.matmul %5, %21, %cst_22 {dimension_numbers = #tpu.dot_dimension_numbers<[1], [0], [0], [1], [0, 0, 1, 1], [], []>} : vector<4x32xf32>, vector<32x32xf32>, vector<4x32xf32> -> vector<4x32xf32>
    %c2_23 = arith.constant 2 : index
    %c0_24 = arith.constant 0 : index
    %c0_25 = arith.constant 0 : index
    %23 = vector.load %arg6[%c2_23, %c0_24, %c0_25] : memref<3x1x32xf32, #tpu.memory_space<vmem>>, vector<1x1x32xf32>
    %24 = vector.shape_cast %23 : vector<1x1x32xf32> to vector<1x32xf32>
    %25 = vector.broadcast %24 : vector<1x32xf32> to vector<4x32xf32>
    %26 = arith.addf %22, %25 : vector<4x32xf32>
    %27 = vector.extract_strided_slice %12 {offsets = [0, 0], sizes = [4, 8], strides = [1, 1]} : vector<4x32xf32> to vector<4x8xf32>
    %28 = vector.extract_strided_slice %19 {offsets = [0, 0], sizes = [4, 8], strides = [1, 1]} : vector<4x32xf32> to vector<4x8xf32>
    %29 = vector.extract_strided_slice %26 {offsets = [0, 0], sizes = [4, 8], strides = [1, 1]} : vector<4x32xf32> to vector<4x8xf32>
    %cst_26 = arith.constant dense<0.000000e+00> : vector<4x4xf32>
    %30 = tpu.matmul %27, %28, %cst_26 {dimension_numbers = #tpu.dot_dimension_numbers<[1], [1], [0], [0], [0, 0, 1, 0], [], []>} : vector<4x8xf32>, vector<4x8xf32>, vector<4x4xf32> -> vector<4x4xf32>
    %cst_27 = arith.constant 0.353553385 : f32
    %31 = vector.broadcast %cst_27 : f32 to vector<4x4xf32>
    %32 = arith.mulf %30, %31 : vector<4x4xf32>
    %cst_28 = arith.constant dense<0xFF800000> : vector<4xf32>
    %33 = vector.multi_reduction <maximumf>, %32, %cst_28 [1] : vector<4x4xf32> to vector<4xf32>
    %34 = vector.shape_cast %33 : vector<4xf32> to vector<4x1xf32>
    %35 = vector.broadcast %34 : vector<4x1xf32> to vector<4x4xf32>
    %36 = arith.subf %32, %35 : vector<4x4xf32>
    %37 = math.exp %36 : vector<4x4xf32>
    %cst_29 = arith.constant dense<0.000000e+00> : vector<4xf32>
    %38 = vector.multi_reduction <add>, %37, %cst_29 [1] : vector<4x4xf32> to vector<4xf32>
    %39 = vector.shape_cast %38 : vector<4xf32> to vector<4x1xf32>
    %40 = tpu.reciprocal %39 {approx = true} : vector<4x1xf32> -> vector<4x1xf32>
    %41 = vector.broadcast %40 : vector<4x1xf32> to vector<4x4xf32>
    %42 = arith.mulf %37, %41 : vector<4x4xf32>
    %cst_30 = arith.constant dense<0.000000e+00> : vector<4x8xf32>
    %43 = tpu.matmul %42, %29, %cst_30 {dimension_numbers = #tpu.dot_dimension_numbers<[1], [0], [0], [1], [0, 0, 1, 1], [], []>} : vector<4x4xf32>, vector<4x8xf32>, vector<4x8xf32> -> vector<4x8xf32>
    %44 = vector.extract_strided_slice %12 {offsets = [0, 8], sizes = [4, 8], strides = [1, 1]} : vector<4x32xf32> to vector<4x8xf32>
    %45 = vector.extract_strided_slice %19 {offsets = [0, 8], sizes = [4, 8], strides = [1, 1]} : vector<4x32xf32> to vector<4x8xf32>
    %46 = vector.extract_strided_slice %26 {offsets = [0, 8], sizes = [4, 8], strides = [1, 1]} : vector<4x32xf32> to vector<4x8xf32>
    %cst_31 = arith.constant dense<0.000000e+00> : vector<4x4xf32>
    %47 = tpu.matmul %44, %45, %cst_31 {dimension_numbers = #tpu.dot_dimension_numbers<[1], [1], [0], [0], [0, 0, 1, 0], [], []>} : vector<4x8xf32>, vector<4x8xf32>, vector<4x4xf32> -> vector<4x4xf32>
    %cst_32 = arith.constant 0.353553385 : f32
    %48 = vector.broadcast %cst_32 : f32 to vector<4x4xf32>
    %49 = arith.mulf %47, %48 : vector<4x4xf32>
    %cst_33 = arith.constant dense<0xFF800000> : vector<4xf32>
    %50 = vector.multi_reduction <maximumf>, %49, %cst_33 [1] : vector<4x4xf32> to vector<4xf32>
    %51 = vector.shape_cast %50 : vector<4xf32> to vector<4x1xf32>
    %52 = vector.broadcast %51 : vector<4x1xf32> to vector<4x4xf32>
    %53 = arith.subf %49, %52 : vector<4x4xf32>
    %54 = math.exp %53 : vector<4x4xf32>
    %cst_34 = arith.constant dense<0.000000e+00> : vector<4xf32>
    %55 = vector.multi_reduction <add>, %54, %cst_34 [1] : vector<4x4xf32> to vector<4xf32>
    %56 = vector.shape_cast %55 : vector<4xf32> to vector<4x1xf32>
    %57 = tpu.reciprocal %56 {approx = true} : vector<4x1xf32> -> vector<4x1xf32>
    %58 = vector.broadcast %57 : vector<4x1xf32> to vector<4x4xf32>
    %59 = arith.mulf %54, %58 : vector<4x4xf32>
    %cst_35 = arith.constant dense<0.000000e+00> : vector<4x8xf32>
    %60 = tpu.matmul %59, %46, %cst_35 {dimension_numbers = #tpu.dot_dimension_numbers<[1], [0], [0], [1], [0, 0, 1, 1], [], []>} : vector<4x4xf32>, vector<4x8xf32>, vector<4x8xf32> -> vector<4x8xf32>
    %61 = vector.extract_strided_slice %12 {offsets = [0, 16], sizes = [4, 8], strides = [1, 1]} : vector<4x32xf32> to vector<4x8xf32>
    %62 = vector.extract_strided_slice %19 {offsets = [0, 16], sizes = [4, 8], strides = [1, 1]} : vector<4x32xf32> to vector<4x8xf32>
    %63 = vector.extract_strided_slice %26 {offsets = [0, 16], sizes = [4, 8], strides = [1, 1]} : vector<4x32xf32> to vector<4x8xf32>
    %cst_36 = arith.constant dense<0.000000e+00> : vector<4x4xf32>
    %64 = tpu.matmul %61, %62, %cst_36 {dimension_numbers = #tpu.dot_dimension_numbers<[1], [1], [0], [0], [0, 0, 1, 0], [], []>} : vector<4x8xf32>, vector<4x8xf32>, vector<4x4xf32> -> vector<4x4xf32>
    %cst_37 = arith.constant 0.353553385 : f32
    %65 = vector.broadcast %cst_37 : f32 to vector<4x4xf32>
    %66 = arith.mulf %64, %65 : vector<4x4xf32>
    %cst_38 = arith.constant dense<0xFF800000> : vector<4xf32>
    %67 = vector.multi_reduction <maximumf>, %66, %cst_38 [1] : vector<4x4xf32> to vector<4xf32>
    %68 = vector.shape_cast %67 : vector<4xf32> to vector<4x1xf32>
    %69 = vector.broadcast %68 : vector<4x1xf32> to vector<4x4xf32>
    %70 = arith.subf %66, %69 : vector<4x4xf32>
    %71 = math.exp %70 : vector<4x4xf32>
    %cst_39 = arith.constant dense<0.000000e+00> : vector<4xf32>
    %72 = vector.multi_reduction <add>, %71, %cst_39 [1] : vector<4x4xf32> to vector<4xf32>
    %73 = vector.shape_cast %72 : vector<4xf32> to vector<4x1xf32>
    %74 = tpu.reciprocal %73 {approx = true} : vector<4x1xf32> -> vector<4x1xf32>
    %75 = vector.broadcast %74 : vector<4x1xf32> to vector<4x4xf32>
    %76 = arith.mulf %71, %75 : vector<4x4xf32>
    %cst_40 = arith.constant dense<0.000000e+00> : vector<4x8xf32>
    %77 = tpu.matmul %76, %63, %cst_40 {dimension_numbers = #tpu.dot_dimension_numbers<[1], [0], [0], [1], [0, 0, 1, 1], [], []>} : vector<4x4xf32>, vector<4x8xf32>, vector<4x8xf32> -> vector<4x8xf32>
    %78 = vector.extract_strided_slice %12 {offsets = [0, 24], sizes = [4, 8], strides = [1, 1]} : vector<4x32xf32> to vector<4x8xf32>
    %79 = vector.extract_strided_slice %19 {offsets = [0, 24], sizes = [4, 8], strides = [1, 1]} : vector<4x32xf32> to vector<4x8xf32>
    %80 = vector.extract_strided_slice %26 {offsets = [0, 24], sizes = [4, 8], strides = [1, 1]} : vector<4x32xf32> to vector<4x8xf32>
    %cst_41 = arith.constant dense<0.000000e+00> : vector<4x4xf32>
    %81 = tpu.matmul %78, %79, %cst_41 {dimension_numbers = #tpu.dot_dimension_numbers<[1], [1], [0], [0], [0, 0, 1, 0], [], []>} : vector<4x8xf32>, vector<4x8xf32>, vector<4x4xf32> -> vector<4x4xf32>
    %cst_42 = arith.constant 0.353553385 : f32
    %82 = vector.broadcast %cst_42 : f32 to vector<4x4xf32>
    %83 = arith.mulf %81, %82 : vector<4x4xf32>
    %cst_43 = arith.constant dense<0xFF800000> : vector<4xf32>
    %84 = vector.multi_reduction <maximumf>, %83, %cst_43 [1] : vector<4x4xf32> to vector<4xf32>
    %85 = vector.shape_cast %84 : vector<4xf32> to vector<4x1xf32>
    %86 = vector.broadcast %85 : vector<4x1xf32> to vector<4x4xf32>
    %87 = arith.subf %83, %86 : vector<4x4xf32>
    %88 = math.exp %87 : vector<4x4xf32>
    %cst_44 = arith.constant dense<0.000000e+00> : vector<4xf32>
    %89 = vector.multi_reduction <add>, %88, %cst_44 [1] : vector<4x4xf32> to vector<4xf32>
    %90 = vector.shape_cast %89 : vector<4xf32> to vector<4x1xf32>
    %91 = tpu.reciprocal %90 {approx = true} : vector<4x1xf32> -> vector<4x1xf32>
    %92 = vector.broadcast %91 : vector<4x1xf32> to vector<4x4xf32>
    %93 = arith.mulf %88, %92 : vector<4x4xf32>
    %cst_45 = arith.constant dense<0.000000e+00> : vector<4x8xf32>
    %94 = tpu.matmul %93, %80, %cst_45 {dimension_numbers = #tpu.dot_dimension_numbers<[1], [0], [0], [1], [0, 0, 1, 1], [], []>} : vector<4x4xf32>, vector<4x8xf32>, vector<4x8xf32> -> vector<4x8xf32>
    %95 = tpu.concatenate %43, %60, %77, %94 in 1 : vector<4x8xf32>, vector<4x8xf32>, vector<4x8xf32>, vector<4x8xf32> -> vector<4x32xf32>
    %c0_46 = arith.constant 0 : index
    %c0_47 = arith.constant 0 : index
    %96 = vector.load %arg7[%c0_46, %c0_47] : memref<32x32xf32, #tpu.memory_space<vmem>>, vector<32x32xf32>
    %cst_48 = arith.constant dense<0.000000e+00> : vector<4x32xf32>
    %97 = tpu.matmul %95, %96, %cst_48 {dimension_numbers = #tpu.dot_dimension_numbers<[1], [0], [0], [1], [0, 0, 1, 1], [], []>} : vector<4x32xf32>, vector<32x32xf32>, vector<4x32xf32> -> vector<4x32xf32>
    %c0_49 = arith.constant 0 : index
    %c0_50 = arith.constant 0 : index
    %98 = vector.load %arg8[%c0_49, %c0_50] : memref<1x32xf32, #tpu.memory_space<vmem>>, vector<1x32xf32>
    %99 = vector.broadcast %98 : vector<1x32xf32> to vector<4x32xf32>
    %100 = arith.addf %97, %99 : vector<4x32xf32>
    %c0_51 = arith.constant 0 : index
    %c0_52 = arith.constant 0 : index
    %c0_53 = arith.constant 0 : index
    %101 = vector.load %arg4[%c0_51, %c0_52, %c0_53] : memref<1x4x32xf32, #tpu.memory_space<vmem>>, vector<1x4x32xf32>
    %102 = vector.shape_cast %101 : vector<1x4x32xf32> to vector<4x32xf32>
    %103 = arith.addf %102, %100 : vector<4x32xf32>
    %cst_54 = arith.constant dense<0.000000e+00> : vector<4xf32>
    %104 = vector.multi_reduction <add>, %103, %cst_54 [1] : vector<4x32xf32> to vector<4xf32>
    %105 = vector.shape_cast %104 : vector<4xf32> to vector<4x1xf32>
    %cst_55 = arith.constant 3.200000e+01 : f32
    %106 = vector.broadcast %cst_55 : f32 to vector<4x1xf32>
    %107 = arith.divf %105, %106 : vector<4x1xf32>
    %108 = vector.broadcast %107 : vector<4x1xf32> to vector<4x32xf32>
    %109 = arith.subf %103, %108 : vector<4x32xf32>
    %110 = arith.mulf %109, %109 : vector<4x32xf32>
    %cst_56 = arith.constant dense<0.000000e+00> : vector<4xf32>
    %111 = vector.multi_reduction <add>, %110, %cst_56 [1] : vector<4x32xf32> to vector<4xf32>
    %112 = vector.shape_cast %111 : vector<4xf32> to vector<4x1xf32>
    %cst_57 = arith.constant 3.200000e+01 : f32
    %113 = vector.broadcast %cst_57 : f32 to vector<4x1xf32>
    %114 = arith.divf %112, %113 : vector<4x1xf32>
    %cst_58 = arith.constant 9.99999974E-6 : f32
    %115 = vector.broadcast %cst_58 : f32 to vector<4x1xf32>
    %116 = arith.addf %114, %115 : vector<4x1xf32>
    %117 = math.rsqrt %116 : vector<4x1xf32>
    %118 = vector.broadcast %117 : vector<4x1xf32> to vector<4x32xf32>
    %119 = arith.mulf %109, %118 : vector<4x32xf32>
    %c0_59 = arith.constant 0 : index
    %c0_60 = arith.constant 0 : index
    %120 = vector.load %arg9[%c0_59, %c0_60] : memref<1x32xf32, #tpu.memory_space<vmem>>, vector<1x32xf32>
    %121 = vector.broadcast %120 : vector<1x32xf32> to vector<4x32xf32>
    %122 = arith.mulf %119, %121 : vector<4x32xf32>
    %c0_61 = arith.constant 0 : index
    %c0_62 = arith.constant 0 : index
    %123 = vector.load %arg10[%c0_61, %c0_62] : memref<1x32xf32, #tpu.memory_space<vmem>>, vector<1x32xf32>
    %124 = vector.broadcast %123 : vector<1x32xf32> to vector<4x32xf32>
    %125 = arith.addf %122, %124 : vector<4x32xf32>
    %126 = vector.shape_cast %125 : vector<4x32xf32> to vector<1x4x32xf32>
    %c0_63 = arith.constant 0 : index
    %c0_64 = arith.constant 0 : index
    %c0_65 = arith.constant 0 : index
    %127 = vector.load %arg11[%c0_63, %c0_64, %c0_65] : memref<1x4x32xf32, #tpu.memory_space<vmem>>, vector<1x4x32xf32>
    tpu.vector_store %arg11[%c0_63, %c0_64, %c0_65], %126 {strides = array<i32>} : memref<1x4x32xf32, #tpu.memory_space<vmem>>, vector<1x4x32xf32>,
    return
  }
  func.func @transform_0(%arg0: i32) -> (i32, i32, i32) {
    %c0_i32 = arith.constant 0 : i32
    %c0_i32_0 = arith.constant 0 : i32
    %c0_i32_1 = arith.constant 0 : i32
    return %arg0, %c0_i32, %c0_i32_0 : i32, i32, i32
  }
  func.func @transform_1(%arg0: i32) -> (i32, i32, i32) {
    %c0_i32 = arith.constant 0 : i32
    %c0_i32_0 = arith.constant 0 : i32
    %c0_i32_1 = arith.constant 0 : i32
    return %arg0, %c0_i32, %c0_i32_0 : i32, i32, i32
  }
  func.func @transform_2(%arg0: i32) -> (i32, i32, i32) {
    %c0_i32 = arith.constant 0 : i32
    %c0_i32_0 = arith.constant 0 : i32
    %c0_i32_1 = arith.constant 0 : i32
    return %arg0, %c0_i32, %c0_i32_0 : i32, i32, i32
  }
  func.func @transform_3(%arg0: i32) -> (i32, i32, i32) {
    %c0_i32 = arith.constant 0 : i32
    %c0_i32_0 = arith.constant 0 : i32
    %c0_i32_1 = arith.constant 0 : i32
    return %arg0, %c0_i32, %c0_i32_0 : i32, i32, i32
  }
  func.func @transform_4(%arg0: i32) -> (i32, i32, i32) {
    %c0_i32 = arith.constant 0 : i32
    %c0_i32_0 = arith.constant 0 : i32
    %c0_i32_1 = arith.constant 0 : i32
    %c0_i32_2 = arith.constant 0 : i32
    return %c0_i32, %c0_i32_0, %c0_i32_1 : i32, i32, i32
  }
  func.func @transform_5(%arg0: i32) -> (i32, i32, i32) {
    %c0_i32 = arith.constant 0 : i32
    %c0_i32_0 = arith.constant 0 : i32
    %c0_i32_1 = arith.constant 0 : i32
    %c0_i32_2 = arith.constant 0 : i32
    return %c0_i32, %c0_i32_0, %c0_i32_1 : i32, i32, i32
  }
  func.func @transform_6(%arg0: i32) -> (i32, i32) {
    %c0_i32 = arith.constant 0 : i32
    %c0_i32_0 = arith.constant 0 : i32
    %c0_i32_1 = arith.constant 0 : i32
    return %c0_i32, %c0_i32_0 : i32, i32
  }
  func.func @transform_7(%arg0: i32) -> (i32, i32) {
    %c0_i32 = arith.constant 0 : i32
    %c0_i32_0 = arith.constant 0 : i32
    %c0_i32_1 = arith.constant 0 : i32
    return %c0_i32, %c0_i32_0 : i32, i32
  }
  func.func @transform_8(%arg0: i32) -> (i32, i32) {
    %c0_i32 = arith.constant 0 : i32
    %c0_i32_0 = arith.constant 0 : i32
    %c0_i32_1 = arith.constant 0 : i32
    return %c0_i32, %c0_i32_0 : i32, i32
  }
  func.func @transform_9(%arg0: i32) -> (i32, i32) {
    %c0_i32 = arith.constant 0 : i32
    %c0_i32_0 = arith.constant 0 : i32
    %c0_i32_1 = arith.constant 0 : i32
    return %c0_i32, %c0_i32_0 : i32, i32
  }
  func.func @transform_10(%arg0: i32) -> (i32, i32, i32) {
    %c0_i32 = arith.constant 0 : i32
    %c0_i32_0 = arith.constant 0 : i32
    %c0_i32_1 = arith.constant 0 : i32
    return %arg0, %c0_i32, %c0_i32_0 : i32, i32, i32
  }
}

module attributes {stable_mosaic.version = 11 : i64} {
  func.func @_time_pool_kernel(%arg0: i32, %arg1: memref<4x8x32xf32, #tpu.memory_space<vmem>>, %arg2: memref<1x32xf32, #tpu.memory_space<vmem>>, %arg3: memref<1x1xf32, #tpu.memory_space<vmem>>, %arg4: memref<8x32xf32, #tpu.memory_space<vmem>>) attributes {dimension_semantics = [#tpu.dimension_semantics<arbitrary>], iteration_bounds = array<i64: 1>, scalar_prefetch = 0 : i64, scratch_operands = 0 : i64, tpu.core_type = #tpu.core_type<tc>, window_params = [{pipeline_mode = #tpu.pipeline_mode<synchronous>, transform_indices = @transform_0, window_bounds = array<i64: 4, 8, 32>}, {pipeline_mode = #tpu.pipeline_mode<synchronous>, transform_indices = @transform_1, window_bounds = array<i64: 1, 32>}, {pipeline_mode = #tpu.pipeline_mode<synchronous>, transform_indices = @transform_2, window_bounds = array<i64: 1, 1>}, {pipeline_mode = #tpu.pipeline_mode<synchronous>, transform_indices = @transform_3, window_bounds = array<i64: 8, 32>}]} {
    %c0 = arith.constant 0 : index
    %c0_0 = arith.constant 0 : index
    %c0_1 = arith.constant 0 : index
    %0 = vector.load %arg1[%c0, %c0_0, %c0_1] : memref<4x8x32xf32, #tpu.memory_space<vmem>>, vector<4x8x32xf32>
    %c0_2 = arith.constant 0 : index
    %c0_3 = arith.constant 0 : index
    %1 = vector.load %arg2[%c0_2, %c0_3] : memref<1x32xf32, #tpu.memory_space<vmem>>, vector<1x32xf32>
    %2 = vector.shape_cast %1 : vector<1x32xf32> to vector<1x1x32xf32>
    %3 = vector.broadcast %2 : vector<1x1x32xf32> to vector<4x8x32xf32>
    %4 = arith.mulf %0, %3 : vector<4x8x32xf32>
    %cst = arith.constant dense<0.000000e+00> : vector<4x8xf32>
    %5 = vector.multi_reduction <add>, %4, %cst [2] : vector<4x8x32xf32> to vector<4x8xf32>
    %6 = vector.shape_cast %5 : vector<4x8xf32> to vector<4x8x1xf32>
    %c0_4 = arith.constant 0 : index
    %c0_5 = arith.constant 0 : index
    %7 = vector.load %arg3[%c0_4, %c0_5] : memref<1x1xf32, #tpu.memory_space<vmem>>, vector<1x1xf32>
    %8 = vector.shape_cast %7 : vector<1x1xf32> to vector<1x1x1xf32>
    %9 = vector.broadcast %8 : vector<1x1x1xf32> to vector<4x8x1xf32>
    %10 = arith.addf %6, %9 : vector<4x8x1xf32>
    %cst_6 = arith.constant dense<0xFF800000> : vector<8x1xf32>
    %11 = vector.multi_reduction <maximumf>, %10, %cst_6 [0] : vector<4x8x1xf32> to vector<8x1xf32>
    %12 = vector.shape_cast %11 : vector<8x1xf32> to vector<1x8x1xf32>
    %13 = vector.broadcast %12 : vector<1x8x1xf32> to vector<4x8x1xf32>
    %14 = arith.subf %10, %13 : vector<4x8x1xf32>
    %15 = math.exp %14 : vector<4x8x1xf32>
    %cst_7 = arith.constant dense<0.000000e+00> : vector<8x1xf32>
    %16 = vector.multi_reduction <add>, %15, %cst_7 [0] : vector<4x8x1xf32> to vector<8x1xf32>
    %17 = vector.shape_cast %16 : vector<8x1xf32> to vector<1x8x1xf32>
    %18 = tpu.reciprocal %17 {approx = true} : vector<1x8x1xf32> -> vector<1x8x1xf32>
    %19 = vector.broadcast %18 : vector<1x8x1xf32> to vector<4x8x1xf32>
    %20 = arith.mulf %15, %19 : vector<4x8x1xf32>
    %21 = vector.broadcast %20 : vector<4x8x1xf32> to vector<4x8x32xf32>
    %22 = arith.mulf %0, %21 : vector<4x8x32xf32>
    %cst_8 = arith.constant dense<0.000000e+00> : vector<8x32xf32>
    %23 = vector.multi_reduction <add>, %22, %cst_8 [0] : vector<4x8x32xf32> to vector<8x32xf32>
    %c0_9 = arith.constant 0 : index
    %c0_10 = arith.constant 0 : index
    %24 = vector.load %arg4[%c0_9, %c0_10] : memref<8x32xf32, #tpu.memory_space<vmem>>, vector<8x32xf32>
    tpu.vector_store %arg4[%c0_9, %c0_10], %23 {strides = array<i32>} : memref<8x32xf32, #tpu.memory_space<vmem>>, vector<8x32xf32>,
    return
  }
  func.func @transform_0(%arg0: i32) -> (i32, i32, i32) {
    %c0_i32 = arith.constant 0 : i32
    %c0_i32_0 = arith.constant 0 : i32
    %c0_i32_1 = arith.constant 0 : i32
    %c0_i32_2 = arith.constant 0 : i32
    return %c0_i32, %c0_i32_0, %c0_i32_1 : i32, i32, i32
  }
  func.func @transform_1(%arg0: i32) -> (i32, i32) {
    %c0_i32 = arith.constant 0 : i32
    %c0_i32_0 = arith.constant 0 : i32
    %c0_i32_1 = arith.constant 0 : i32
    return %c0_i32, %c0_i32_0 : i32, i32
  }
  func.func @transform_2(%arg0: i32) -> (i32, i32) {
    %c0_i32 = arith.constant 0 : i32
    %c0_i32_0 = arith.constant 0 : i32
    %c0_i32_1 = arith.constant 0 : i32
    return %c0_i32, %c0_i32_0 : i32, i32
  }
  func.func @transform_3(%arg0: i32) -> (i32, i32) {
    %c0_i32 = arith.constant 0 : i32
    %c0_i32_0 = arith.constant 0 : i32
    %c0_i32_1 = arith.constant 0 : i32
    return %c0_i32, %c0_i32_0 : i32, i32
  }
}

module attributes {stable_mosaic.version = 11 : i64} {
  func.func @_attn_layer_kernel(%arg0: i32, %arg1: memref<1x8x32xf32, #tpu.memory_space<vmem>>, %arg2: memref<1x4x32xf32, #tpu.memory_space<vmem>>, %arg3: memref<1x4x32xf32, #tpu.memory_space<vmem>>, %arg4: memref<1x8x32xf32, #tpu.memory_space<vmem>>, %arg5: memref<3x32x32xf32, #tpu.memory_space<vmem>>, %arg6: memref<3x1x32xf32, #tpu.memory_space<vmem>>, %arg7: memref<32x32xf32, #tpu.memory_space<vmem>>, %arg8: memref<1x32xf32, #tpu.memory_space<vmem>>, %arg9: memref<1x32xf32, #tpu.memory_space<vmem>>, %arg10: memref<1x32xf32, #tpu.memory_space<vmem>>, %arg11: memref<1x8x32xf32, #tpu.memory_space<vmem>>) attributes {dimension_semantics = [#tpu.dimension_semantics<parallel>], iteration_bounds = array<i64: 1>, scalar_prefetch = 0 : i64, scratch_operands = 0 : i64, tpu.core_type = #tpu.core_type<tc>, window_params = [{transform_indices = @transform_0, window_bounds = array<i64: 1, 8, 32>}, {transform_indices = @transform_1, window_bounds = array<i64: 1, 4, 32>}, {transform_indices = @transform_2, window_bounds = array<i64: 1, 4, 32>}, {transform_indices = @transform_3, window_bounds = array<i64: 1, 8, 32>}, {pipeline_mode = #tpu.pipeline_mode<synchronous>, transform_indices = @transform_4, window_bounds = array<i64: 3, 32, 32>}, {pipeline_mode = #tpu.pipeline_mode<synchronous>, transform_indices = @transform_5, window_bounds = array<i64: 3, 1, 32>}, {pipeline_mode = #tpu.pipeline_mode<synchronous>, transform_indices = @transform_6, window_bounds = array<i64: 32, 32>}, {pipeline_mode = #tpu.pipeline_mode<synchronous>, transform_indices = @transform_7, window_bounds = array<i64: 1, 32>}, {pipeline_mode = #tpu.pipeline_mode<synchronous>, transform_indices = @transform_8, window_bounds = array<i64: 1, 32>}, {pipeline_mode = #tpu.pipeline_mode<synchronous>, transform_indices = @transform_9, window_bounds = array<i64: 1, 32>}, {transform_indices = @transform_10, window_bounds = array<i64: 1, 8, 32>}]} {
    %c0 = arith.constant 0 : index
    %c0_0 = arith.constant 0 : index
    %c0_1 = arith.constant 0 : index
    %0 = vector.load %arg1[%c0, %c0_0, %c0_1] : memref<1x8x32xf32, #tpu.memory_space<vmem>>, vector<1x8x32xf32>
    %1 = vector.shape_cast %0 : vector<1x8x32xf32> to vector<8x32xf32>
    %c0_2 = arith.constant 0 : index
    %c0_3 = arith.constant 0 : index
    %c0_4 = arith.constant 0 : index
    %2 = vector.load %arg2[%c0_2, %c0_3, %c0_4] : memref<1x4x32xf32, #tpu.memory_space<vmem>>, vector<1x4x32xf32>
    %3 = vector.shape_cast %2 : vector<1x4x32xf32> to vector<4x32xf32>
    %c0_5 = arith.constant 0 : index
    %c0_6 = arith.constant 0 : index
    %c0_7 = arith.constant 0 : index
    %4 = vector.load %arg3[%c0_5, %c0_6, %c0_7] : memref<1x4x32xf32, #tpu.memory_space<vmem>>, vector<1x4x32xf32>
    %5 = vector.shape_cast %4 : vector<1x4x32xf32> to vector<4x32xf32>
    %c0_8 = arith.constant 0 : index
    %c0_9 = arith.constant 0 : index
    %c0_10 = arith.constant 0 : index
    %6 = vector.load %arg5[%c0_8, %c0_9, %c0_10] : memref<3x32x32xf32, #tpu.memory_space<vmem>>, vector<1x32x32xf32>
    %7 = vector.shape_cast %6 : vector<1x32x32xf32> to vector<32x32xf32>
    %cst = arith.constant dense<0.000000e+00> : vector<8x32xf32>
    %8 = tpu.matmul %1, %7, %cst {dimension_numbers = #tpu.dot_dimension_numbers<[1], [0], [0], [1], [0, 0, 1, 1], [], []>} : vector<8x32xf32>, vector<32x32xf32>, vector<8x32xf32> -> vector<8x32xf32>
    %c0_11 = arith.constant 0 : index
    %c0_12 = arith.constant 0 : index
    %c0_13 = arith.constant 0 : index
    %9 = vector.load %arg6[%c0_11, %c0_12, %c0_13] : memref<3x1x32xf32, #tpu.memory_space<vmem>>, vector<1x1x32xf32>
    %10 = vector.shape_cast %9 : vector<1x1x32xf32> to vector<1x32xf32>
    %11 = vector.broadcast %10 : vector<1x32xf32> to vector<8x32xf32>
    %12 = arith.addf %8, %11 : vector<8x32xf32>
    %c1 = arith.constant 1 : index
    %c0_14 = arith.constant 0 : index
    %c0_15 = arith.constant 0 : index
    %13 = vector.load %arg5[%c1, %c0_14, %c0_15] : memref<3x32x32xf32, #tpu.memory_space<vmem>>, vector<1x32x32xf32>
    %14 = vector.shape_cast %13 : vector<1x32x32xf32> to vector<32x32xf32>
    %cst_16 = arith.constant dense<0.000000e+00> : vector<4x32xf32>
    %15 = tpu.matmul %3, %14, %cst_16 {dimension_numbers = #tpu.dot_dimension_numbers<[1], [0], [0], [1], [0, 0, 1, 1], [], []>} : vector<4x32xf32>, vector<32x32xf32>, vector<4x32xf32> -> vector<4x32xf32>
    %c1_17 = arith.constant 1 : index
    %c0_18 = arith.constant 0 : index
    %c0_19 = arith.constant 0 : index
    %16 = vector.load %arg6[%c1_17, %c0_18, %c0_19] : memref<3x1x32xf32, #tpu.memory_space<vmem>>, vector<1x1x32xf32>
    %17 = vector.shape_cast %16 : vector<1x1x32xf32> to vector<1x32xf32>
    %18 = vector.broadcast %17 : vector<1x32xf32> to vector<4x32xf32>
    %19 = arith.addf %15, %18 : vector<4x32xf32>
    %c2 = arith.constant 2 : index
    %c0_20 = arith.constant 0 : index
    %c0_21 = arith.constant 0 : index
    %20 = vector.load %arg5[%c2, %c0_20, %c0_21] : memref<3x32x32xf32, #tpu.memory_space<vmem>>, vector<1x32x32xf32>
    %21 = vector.shape_cast %20 : vector<1x32x32xf32> to vector<32x32xf32>
    %cst_22 = arith.constant dense<0.000000e+00> : vector<4x32xf32>
    %22 = tpu.matmul %5, %21, %cst_22 {dimension_numbers = #tpu.dot_dimension_numbers<[1], [0], [0], [1], [0, 0, 1, 1], [], []>} : vector<4x32xf32>, vector<32x32xf32>, vector<4x32xf32> -> vector<4x32xf32>
    %c2_23 = arith.constant 2 : index
    %c0_24 = arith.constant 0 : index
    %c0_25 = arith.constant 0 : index
    %23 = vector.load %arg6[%c2_23, %c0_24, %c0_25] : memref<3x1x32xf32, #tpu.memory_space<vmem>>, vector<1x1x32xf32>
    %24 = vector.shape_cast %23 : vector<1x1x32xf32> to vector<1x32xf32>
    %25 = vector.broadcast %24 : vector<1x32xf32> to vector<4x32xf32>
    %26 = arith.addf %22, %25 : vector<4x32xf32>
    %27 = vector.extract_strided_slice %12 {offsets = [0, 0], sizes = [8, 8], strides = [1, 1]} : vector<8x32xf32> to vector<8x8xf32>
    %28 = vector.extract_strided_slice %19 {offsets = [0, 0], sizes = [4, 8], strides = [1, 1]} : vector<4x32xf32> to vector<4x8xf32>
    %29 = vector.extract_strided_slice %26 {offsets = [0, 0], sizes = [4, 8], strides = [1, 1]} : vector<4x32xf32> to vector<4x8xf32>
    %cst_26 = arith.constant dense<0.000000e+00> : vector<8x4xf32>
    %30 = tpu.matmul %27, %28, %cst_26 {dimension_numbers = #tpu.dot_dimension_numbers<[1], [1], [0], [0], [0, 0, 1, 0], [], []>} : vector<8x8xf32>, vector<4x8xf32>, vector<8x4xf32> -> vector<8x4xf32>
    %cst_27 = arith.constant 0.353553385 : f32
    %31 = vector.broadcast %cst_27 : f32 to vector<8x4xf32>
    %32 = arith.mulf %30, %31 : vector<8x4xf32>
    %cst_28 = arith.constant dense<0xFF800000> : vector<8xf32>
    %33 = vector.multi_reduction <maximumf>, %32, %cst_28 [1] : vector<8x4xf32> to vector<8xf32>
    %34 = vector.shape_cast %33 : vector<8xf32> to vector<8x1xf32>
    %35 = vector.broadcast %34 : vector<8x1xf32> to vector<8x4xf32>
    %36 = arith.subf %32, %35 : vector<8x4xf32>
    %37 = math.exp %36 : vector<8x4xf32>
    %cst_29 = arith.constant dense<0.000000e+00> : vector<8xf32>
    %38 = vector.multi_reduction <add>, %37, %cst_29 [1] : vector<8x4xf32> to vector<8xf32>
    %39 = vector.shape_cast %38 : vector<8xf32> to vector<8x1xf32>
    %40 = tpu.reciprocal %39 {approx = true} : vector<8x1xf32> -> vector<8x1xf32>
    %41 = vector.broadcast %40 : vector<8x1xf32> to vector<8x4xf32>
    %42 = arith.mulf %37, %41 : vector<8x4xf32>
    %cst_30 = arith.constant dense<0.000000e+00> : vector<8x8xf32>
    %43 = tpu.matmul %42, %29, %cst_30 {dimension_numbers = #tpu.dot_dimension_numbers<[1], [0], [0], [1], [0, 0, 1, 1], [], []>} : vector<8x4xf32>, vector<4x8xf32>, vector<8x8xf32> -> vector<8x8xf32>
    %44 = vector.extract_strided_slice %12 {offsets = [0, 8], sizes = [8, 8], strides = [1, 1]} : vector<8x32xf32> to vector<8x8xf32>
    %45 = vector.extract_strided_slice %19 {offsets = [0, 8], sizes = [4, 8], strides = [1, 1]} : vector<4x32xf32> to vector<4x8xf32>
    %46 = vector.extract_strided_slice %26 {offsets = [0, 8], sizes = [4, 8], strides = [1, 1]} : vector<4x32xf32> to vector<4x8xf32>
    %cst_31 = arith.constant dense<0.000000e+00> : vector<8x4xf32>
    %47 = tpu.matmul %44, %45, %cst_31 {dimension_numbers = #tpu.dot_dimension_numbers<[1], [1], [0], [0], [0, 0, 1, 0], [], []>} : vector<8x8xf32>, vector<4x8xf32>, vector<8x4xf32> -> vector<8x4xf32>
    %cst_32 = arith.constant 0.353553385 : f32
    %48 = vector.broadcast %cst_32 : f32 to vector<8x4xf32>
    %49 = arith.mulf %47, %48 : vector<8x4xf32>
    %cst_33 = arith.constant dense<0xFF800000> : vector<8xf32>
    %50 = vector.multi_reduction <maximumf>, %49, %cst_33 [1] : vector<8x4xf32> to vector<8xf32>
    %51 = vector.shape_cast %50 : vector<8xf32> to vector<8x1xf32>
    %52 = vector.broadcast %51 : vector<8x1xf32> to vector<8x4xf32>
    %53 = arith.subf %49, %52 : vector<8x4xf32>
    %54 = math.exp %53 : vector<8x4xf32>
    %cst_34 = arith.constant dense<0.000000e+00> : vector<8xf32>
    %55 = vector.multi_reduction <add>, %54, %cst_34 [1] : vector<8x4xf32> to vector<8xf32>
    %56 = vector.shape_cast %55 : vector<8xf32> to vector<8x1xf32>
    %57 = tpu.reciprocal %56 {approx = true} : vector<8x1xf32> -> vector<8x1xf32>
    %58 = vector.broadcast %57 : vector<8x1xf32> to vector<8x4xf32>
    %59 = arith.mulf %54, %58 : vector<8x4xf32>
    %cst_35 = arith.constant dense<0.000000e+00> : vector<8x8xf32>
    %60 = tpu.matmul %59, %46, %cst_35 {dimension_numbers = #tpu.dot_dimension_numbers<[1], [0], [0], [1], [0, 0, 1, 1], [], []>} : vector<8x4xf32>, vector<4x8xf32>, vector<8x8xf32> -> vector<8x8xf32>
    %61 = vector.extract_strided_slice %12 {offsets = [0, 16], sizes = [8, 8], strides = [1, 1]} : vector<8x32xf32> to vector<8x8xf32>
    %62 = vector.extract_strided_slice %19 {offsets = [0, 16], sizes = [4, 8], strides = [1, 1]} : vector<4x32xf32> to vector<4x8xf32>
    %63 = vector.extract_strided_slice %26 {offsets = [0, 16], sizes = [4, 8], strides = [1, 1]} : vector<4x32xf32> to vector<4x8xf32>
    %cst_36 = arith.constant dense<0.000000e+00> : vector<8x4xf32>
    %64 = tpu.matmul %61, %62, %cst_36 {dimension_numbers = #tpu.dot_dimension_numbers<[1], [1], [0], [0], [0, 0, 1, 0], [], []>} : vector<8x8xf32>, vector<4x8xf32>, vector<8x4xf32> -> vector<8x4xf32>
    %cst_37 = arith.constant 0.353553385 : f32
    %65 = vector.broadcast %cst_37 : f32 to vector<8x4xf32>
    %66 = arith.mulf %64, %65 : vector<8x4xf32>
    %cst_38 = arith.constant dense<0xFF800000> : vector<8xf32>
    %67 = vector.multi_reduction <maximumf>, %66, %cst_38 [1] : vector<8x4xf32> to vector<8xf32>
    %68 = vector.shape_cast %67 : vector<8xf32> to vector<8x1xf32>
    %69 = vector.broadcast %68 : vector<8x1xf32> to vector<8x4xf32>
    %70 = arith.subf %66, %69 : vector<8x4xf32>
    %71 = math.exp %70 : vector<8x4xf32>
    %cst_39 = arith.constant dense<0.000000e+00> : vector<8xf32>
    %72 = vector.multi_reduction <add>, %71, %cst_39 [1] : vector<8x4xf32> to vector<8xf32>
    %73 = vector.shape_cast %72 : vector<8xf32> to vector<8x1xf32>
    %74 = tpu.reciprocal %73 {approx = true} : vector<8x1xf32> -> vector<8x1xf32>
    %75 = vector.broadcast %74 : vector<8x1xf32> to vector<8x4xf32>
    %76 = arith.mulf %71, %75 : vector<8x4xf32>
    %cst_40 = arith.constant dense<0.000000e+00> : vector<8x8xf32>
    %77 = tpu.matmul %76, %63, %cst_40 {dimension_numbers = #tpu.dot_dimension_numbers<[1], [0], [0], [1], [0, 0, 1, 1], [], []>} : vector<8x4xf32>, vector<4x8xf32>, vector<8x8xf32> -> vector<8x8xf32>
    %78 = vector.extract_strided_slice %12 {offsets = [0, 24], sizes = [8, 8], strides = [1, 1]} : vector<8x32xf32> to vector<8x8xf32>
    %79 = vector.extract_strided_slice %19 {offsets = [0, 24], sizes = [4, 8], strides = [1, 1]} : vector<4x32xf32> to vector<4x8xf32>
    %80 = vector.extract_strided_slice %26 {offsets = [0, 24], sizes = [4, 8], strides = [1, 1]} : vector<4x32xf32> to vector<4x8xf32>
    %cst_41 = arith.constant dense<0.000000e+00> : vector<8x4xf32>
    %81 = tpu.matmul %78, %79, %cst_41 {dimension_numbers = #tpu.dot_dimension_numbers<[1], [1], [0], [0], [0, 0, 1, 0], [], []>} : vector<8x8xf32>, vector<4x8xf32>, vector<8x4xf32> -> vector<8x4xf32>
    %cst_42 = arith.constant 0.353553385 : f32
    %82 = vector.broadcast %cst_42 : f32 to vector<8x4xf32>
    %83 = arith.mulf %81, %82 : vector<8x4xf32>
    %cst_43 = arith.constant dense<0xFF800000> : vector<8xf32>
    %84 = vector.multi_reduction <maximumf>, %83, %cst_43 [1] : vector<8x4xf32> to vector<8xf32>
    %85 = vector.shape_cast %84 : vector<8xf32> to vector<8x1xf32>
    %86 = vector.broadcast %85 : vector<8x1xf32> to vector<8x4xf32>
    %87 = arith.subf %83, %86 : vector<8x4xf32>
    %88 = math.exp %87 : vector<8x4xf32>
    %cst_44 = arith.constant dense<0.000000e+00> : vector<8xf32>
    %89 = vector.multi_reduction <add>, %88, %cst_44 [1] : vector<8x4xf32> to vector<8xf32>
    %90 = vector.shape_cast %89 : vector<8xf32> to vector<8x1xf32>
    %91 = tpu.reciprocal %90 {approx = true} : vector<8x1xf32> -> vector<8x1xf32>
    %92 = vector.broadcast %91 : vector<8x1xf32> to vector<8x4xf32>
    %93 = arith.mulf %88, %92 : vector<8x4xf32>
    %cst_45 = arith.constant dense<0.000000e+00> : vector<8x8xf32>
    %94 = tpu.matmul %93, %80, %cst_45 {dimension_numbers = #tpu.dot_dimension_numbers<[1], [0], [0], [1], [0, 0, 1, 1], [], []>} : vector<8x4xf32>, vector<4x8xf32>, vector<8x8xf32> -> vector<8x8xf32>
    %95 = tpu.concatenate %43, %60, %77, %94 in 1 : vector<8x8xf32>, vector<8x8xf32>, vector<8x8xf32>, vector<8x8xf32> -> vector<8x32xf32>
    %c0_46 = arith.constant 0 : index
    %c0_47 = arith.constant 0 : index
    %96 = vector.load %arg7[%c0_46, %c0_47] : memref<32x32xf32, #tpu.memory_space<vmem>>, vector<32x32xf32>
    %cst_48 = arith.constant dense<0.000000e+00> : vector<8x32xf32>
    %97 = tpu.matmul %95, %96, %cst_48 {dimension_numbers = #tpu.dot_dimension_numbers<[1], [0], [0], [1], [0, 0, 1, 1], [], []>} : vector<8x32xf32>, vector<32x32xf32>, vector<8x32xf32> -> vector<8x32xf32>
    %c0_49 = arith.constant 0 : index
    %c0_50 = arith.constant 0 : index
    %98 = vector.load %arg8[%c0_49, %c0_50] : memref<1x32xf32, #tpu.memory_space<vmem>>, vector<1x32xf32>
    %99 = vector.broadcast %98 : vector<1x32xf32> to vector<8x32xf32>
    %100 = arith.addf %97, %99 : vector<8x32xf32>
    %c0_51 = arith.constant 0 : index
    %c0_52 = arith.constant 0 : index
    %c0_53 = arith.constant 0 : index
    %101 = vector.load %arg4[%c0_51, %c0_52, %c0_53] : memref<1x8x32xf32, #tpu.memory_space<vmem>>, vector<1x8x32xf32>
    %102 = vector.shape_cast %101 : vector<1x8x32xf32> to vector<8x32xf32>
    %103 = arith.addf %102, %100 : vector<8x32xf32>
    %cst_54 = arith.constant dense<0.000000e+00> : vector<8xf32>
    %104 = vector.multi_reduction <add>, %103, %cst_54 [1] : vector<8x32xf32> to vector<8xf32>
    %105 = vector.shape_cast %104 : vector<8xf32> to vector<8x1xf32>
    %cst_55 = arith.constant 3.200000e+01 : f32
    %106 = vector.broadcast %cst_55 : f32 to vector<8x1xf32>
    %107 = arith.divf %105, %106 : vector<8x1xf32>
    %108 = vector.broadcast %107 : vector<8x1xf32> to vector<8x32xf32>
    %109 = arith.subf %103, %108 : vector<8x32xf32>
    %110 = arith.mulf %109, %109 : vector<8x32xf32>
    %cst_56 = arith.constant dense<0.000000e+00> : vector<8xf32>
    %111 = vector.multi_reduction <add>, %110, %cst_56 [1] : vector<8x32xf32> to vector<8xf32>
    %112 = vector.shape_cast %111 : vector<8xf32> to vector<8x1xf32>
    %cst_57 = arith.constant 3.200000e+01 : f32
    %113 = vector.broadcast %cst_57 : f32 to vector<8x1xf32>
    %114 = arith.divf %112, %113 : vector<8x1xf32>
    %cst_58 = arith.constant 9.99999974E-6 : f32
    %115 = vector.broadcast %cst_58 : f32 to vector<8x1xf32>
    %116 = arith.addf %114, %115 : vector<8x1xf32>
    %117 = math.rsqrt %116 : vector<8x1xf32>
    %118 = vector.broadcast %117 : vector<8x1xf32> to vector<8x32xf32>
    %119 = arith.mulf %109, %118 : vector<8x32xf32>
    %c0_59 = arith.constant 0 : index
    %c0_60 = arith.constant 0 : index
    %120 = vector.load %arg9[%c0_59, %c0_60] : memref<1x32xf32, #tpu.memory_space<vmem>>, vector<1x32xf32>
    %121 = vector.broadcast %120 : vector<1x32xf32> to vector<8x32xf32>
    %122 = arith.mulf %119, %121 : vector<8x32xf32>
    %c0_61 = arith.constant 0 : index
    %c0_62 = arith.constant 0 : index
    %123 = vector.load %arg10[%c0_61, %c0_62] : memref<1x32xf32, #tpu.memory_space<vmem>>, vector<1x32xf32>
    %124 = vector.broadcast %123 : vector<1x32xf32> to vector<8x32xf32>
    %125 = arith.addf %122, %124 : vector<8x32xf32>
    %126 = vector.shape_cast %125 : vector<8x32xf32> to vector<1x8x32xf32>
    %c0_63 = arith.constant 0 : index
    %c0_64 = arith.constant 0 : index
    %c0_65 = arith.constant 0 : index
    %127 = vector.load %arg11[%c0_63, %c0_64, %c0_65] : memref<1x8x32xf32, #tpu.memory_space<vmem>>, vector<1x8x32xf32>
    tpu.vector_store %arg11[%c0_63, %c0_64, %c0_65], %126 {strides = array<i32>} : memref<1x8x32xf32, #tpu.memory_space<vmem>>, vector<1x8x32xf32>,
    return
  }
  func.func @transform_0(%arg0: i32) -> (i32, i32, i32) {
    %c0_i32 = arith.constant 0 : i32
    %c0_i32_0 = arith.constant 0 : i32
    %c0_i32_1 = arith.constant 0 : i32
    return %arg0, %c0_i32, %c0_i32_0 : i32, i32, i32
  }
  func.func @transform_1(%arg0: i32) -> (i32, i32, i32) {
    %c0_i32 = arith.constant 0 : i32
    %c0_i32_0 = arith.constant 0 : i32
    %c0_i32_1 = arith.constant 0 : i32
    return %arg0, %c0_i32, %c0_i32_0 : i32, i32, i32
  }
  func.func @transform_2(%arg0: i32) -> (i32, i32, i32) {
    %c0_i32 = arith.constant 0 : i32
    %c0_i32_0 = arith.constant 0 : i32
    %c0_i32_1 = arith.constant 0 : i32
    return %arg0, %c0_i32, %c0_i32_0 : i32, i32, i32
  }
  func.func @transform_3(%arg0: i32) -> (i32, i32, i32) {
    %c0_i32 = arith.constant 0 : i32
    %c0_i32_0 = arith.constant 0 : i32
    %c0_i32_1 = arith.constant 0 : i32
    return %arg0, %c0_i32, %c0_i32_0 : i32, i32, i32
  }
  func.func @transform_4(%arg0: i32) -> (i32, i32, i32) {
    %c0_i32 = arith.constant 0 : i32
    %c0_i32_0 = arith.constant 0 : i32
    %c0_i32_1 = arith.constant 0 : i32
    %c0_i32_2 = arith.constant 0 : i32
    return %c0_i32, %c0_i32_0, %c0_i32_1 : i32, i32, i32
  }
  func.func @transform_5(%arg0: i32) -> (i32, i32, i32) {
    %c0_i32 = arith.constant 0 : i32
    %c0_i32_0 = arith.constant 0 : i32
    %c0_i32_1 = arith.constant 0 : i32
    %c0_i32_2 = arith.constant 0 : i32
    return %c0_i32, %c0_i32_0, %c0_i32_1 : i32, i32, i32
  }
  func.func @transform_6(%arg0: i32) -> (i32, i32) {
    %c0_i32 = arith.constant 0 : i32
    %c0_i32_0 = arith.constant 0 : i32
    %c0_i32_1 = arith.constant 0 : i32
    return %c0_i32, %c0_i32_0 : i32, i32
  }
  func.func @transform_7(%arg0: i32) -> (i32, i32) {
    %c0_i32 = arith.constant 0 : i32
    %c0_i32_0 = arith.constant 0 : i32
    %c0_i32_1 = arith.constant 0 : i32
    return %c0_i32, %c0_i32_0 : i32, i32
  }
  func.func @transform_8(%arg0: i32) -> (i32, i32) {
    %c0_i32 = arith.constant 0 : i32
    %c0_i32_0 = arith.constant 0 : i32
    %c0_i32_1 = arith.constant 0 : i32
    return %c0_i32, %c0_i32_0 : i32, i32
  }
  func.func @transform_9(%arg0: i32) -> (i32, i32) {
    %c0_i32 = arith.constant 0 : i32
    %c0_i32_0 = arith.constant 0 : i32
    %c0_i32_1 = arith.constant 0 : i32
    return %c0_i32, %c0_i32_0 : i32, i32
  }
  func.func @transform_10(%arg0: i32) -> (i32, i32, i32) {
    %c0_i32 = arith.constant 0 : i32
    %c0_i32_0 = arith.constant 0 : i32
    %c0_i32_1 = arith.constant 0 : i32
    return %arg0, %c0_i32, %c0_i32_0 : i32, i32, i32
  }
}

module attributes {stable_mosaic.version = 11 : i64} {
  func.func @_attn_layer_kernel(%arg0: i32, %arg1: memref<1x8x32xf32, #tpu.memory_space<vmem>>, %arg2: memref<1x32x32xf32, #tpu.memory_space<vmem>>, %arg3: memref<1x32x32xf32, #tpu.memory_space<vmem>>, %arg4: memref<1x8x32xf32, #tpu.memory_space<vmem>>, %arg5: memref<3x32x32xf32, #tpu.memory_space<vmem>>, %arg6: memref<3x1x32xf32, #tpu.memory_space<vmem>>, %arg7: memref<32x32xf32, #tpu.memory_space<vmem>>, %arg8: memref<1x32xf32, #tpu.memory_space<vmem>>, %arg9: memref<1x32xf32, #tpu.memory_space<vmem>>, %arg10: memref<1x32xf32, #tpu.memory_space<vmem>>, %arg11: memref<1x8x32xf32, #tpu.memory_space<vmem>>) attributes {dimension_semantics = [#tpu.dimension_semantics<parallel>], iteration_bounds = array<i64: 1>, scalar_prefetch = 0 : i64, scratch_operands = 0 : i64, tpu.core_type = #tpu.core_type<tc>, window_params = [{transform_indices = @transform_0, window_bounds = array<i64: 1, 8, 32>}, {transform_indices = @transform_1, window_bounds = array<i64: 1, 32, 32>}, {transform_indices = @transform_2, window_bounds = array<i64: 1, 32, 32>}, {transform_indices = @transform_3, window_bounds = array<i64: 1, 8, 32>}, {pipeline_mode = #tpu.pipeline_mode<synchronous>, transform_indices = @transform_4, window_bounds = array<i64: 3, 32, 32>}, {pipeline_mode = #tpu.pipeline_mode<synchronous>, transform_indices = @transform_5, window_bounds = array<i64: 3, 1, 32>}, {pipeline_mode = #tpu.pipeline_mode<synchronous>, transform_indices = @transform_6, window_bounds = array<i64: 32, 32>}, {pipeline_mode = #tpu.pipeline_mode<synchronous>, transform_indices = @transform_7, window_bounds = array<i64: 1, 32>}, {pipeline_mode = #tpu.pipeline_mode<synchronous>, transform_indices = @transform_8, window_bounds = array<i64: 1, 32>}, {pipeline_mode = #tpu.pipeline_mode<synchronous>, transform_indices = @transform_9, window_bounds = array<i64: 1, 32>}, {transform_indices = @transform_10, window_bounds = array<i64: 1, 8, 32>}]} {
    %c0 = arith.constant 0 : index
    %c0_0 = arith.constant 0 : index
    %c0_1 = arith.constant 0 : index
    %0 = vector.load %arg1[%c0, %c0_0, %c0_1] : memref<1x8x32xf32, #tpu.memory_space<vmem>>, vector<1x8x32xf32>
    %1 = vector.shape_cast %0 : vector<1x8x32xf32> to vector<8x32xf32>
    %c0_2 = arith.constant 0 : index
    %c0_3 = arith.constant 0 : index
    %c0_4 = arith.constant 0 : index
    %2 = vector.load %arg2[%c0_2, %c0_3, %c0_4] : memref<1x32x32xf32, #tpu.memory_space<vmem>>, vector<1x32x32xf32>
    %3 = vector.shape_cast %2 : vector<1x32x32xf32> to vector<32x32xf32>
    %c0_5 = arith.constant 0 : index
    %c0_6 = arith.constant 0 : index
    %c0_7 = arith.constant 0 : index
    %4 = vector.load %arg3[%c0_5, %c0_6, %c0_7] : memref<1x32x32xf32, #tpu.memory_space<vmem>>, vector<1x32x32xf32>
    %5 = vector.shape_cast %4 : vector<1x32x32xf32> to vector<32x32xf32>
    %c0_8 = arith.constant 0 : index
    %c0_9 = arith.constant 0 : index
    %c0_10 = arith.constant 0 : index
    %6 = vector.load %arg5[%c0_8, %c0_9, %c0_10] : memref<3x32x32xf32, #tpu.memory_space<vmem>>, vector<1x32x32xf32>
    %7 = vector.shape_cast %6 : vector<1x32x32xf32> to vector<32x32xf32>
    %cst = arith.constant dense<0.000000e+00> : vector<8x32xf32>
    %8 = tpu.matmul %1, %7, %cst {dimension_numbers = #tpu.dot_dimension_numbers<[1], [0], [0], [1], [0, 0, 1, 1], [], []>} : vector<8x32xf32>, vector<32x32xf32>, vector<8x32xf32> -> vector<8x32xf32>
    %c0_11 = arith.constant 0 : index
    %c0_12 = arith.constant 0 : index
    %c0_13 = arith.constant 0 : index
    %9 = vector.load %arg6[%c0_11, %c0_12, %c0_13] : memref<3x1x32xf32, #tpu.memory_space<vmem>>, vector<1x1x32xf32>
    %10 = vector.shape_cast %9 : vector<1x1x32xf32> to vector<1x32xf32>
    %11 = vector.broadcast %10 : vector<1x32xf32> to vector<8x32xf32>
    %12 = arith.addf %8, %11 : vector<8x32xf32>
    %c1 = arith.constant 1 : index
    %c0_14 = arith.constant 0 : index
    %c0_15 = arith.constant 0 : index
    %13 = vector.load %arg5[%c1, %c0_14, %c0_15] : memref<3x32x32xf32, #tpu.memory_space<vmem>>, vector<1x32x32xf32>
    %14 = vector.shape_cast %13 : vector<1x32x32xf32> to vector<32x32xf32>
    %cst_16 = arith.constant dense<0.000000e+00> : vector<32x32xf32>
    %15 = tpu.matmul %3, %14, %cst_16 {dimension_numbers = #tpu.dot_dimension_numbers<[1], [0], [0], [1], [0, 0, 1, 1], [], []>} : vector<32x32xf32>, vector<32x32xf32>, vector<32x32xf32> -> vector<32x32xf32>
    %c1_17 = arith.constant 1 : index
    %c0_18 = arith.constant 0 : index
    %c0_19 = arith.constant 0 : index
    %16 = vector.load %arg6[%c1_17, %c0_18, %c0_19] : memref<3x1x32xf32, #tpu.memory_space<vmem>>, vector<1x1x32xf32>
    %17 = vector.shape_cast %16 : vector<1x1x32xf32> to vector<1x32xf32>
    %18 = vector.broadcast %17 : vector<1x32xf32> to vector<32x32xf32>
    %19 = arith.addf %15, %18 : vector<32x32xf32>
    %c2 = arith.constant 2 : index
    %c0_20 = arith.constant 0 : index
    %c0_21 = arith.constant 0 : index
    %20 = vector.load %arg5[%c2, %c0_20, %c0_21] : memref<3x32x32xf32, #tpu.memory_space<vmem>>, vector<1x32x32xf32>
    %21 = vector.shape_cast %20 : vector<1x32x32xf32> to vector<32x32xf32>
    %cst_22 = arith.constant dense<0.000000e+00> : vector<32x32xf32>
    %22 = tpu.matmul %5, %21, %cst_22 {dimension_numbers = #tpu.dot_dimension_numbers<[1], [0], [0], [1], [0, 0, 1, 1], [], []>} : vector<32x32xf32>, vector<32x32xf32>, vector<32x32xf32> -> vector<32x32xf32>
    %c2_23 = arith.constant 2 : index
    %c0_24 = arith.constant 0 : index
    %c0_25 = arith.constant 0 : index
    %23 = vector.load %arg6[%c2_23, %c0_24, %c0_25] : memref<3x1x32xf32, #tpu.memory_space<vmem>>, vector<1x1x32xf32>
    %24 = vector.shape_cast %23 : vector<1x1x32xf32> to vector<1x32xf32>
    %25 = vector.broadcast %24 : vector<1x32xf32> to vector<32x32xf32>
    %26 = arith.addf %22, %25 : vector<32x32xf32>
    %27 = vector.extract_strided_slice %12 {offsets = [0, 0], sizes = [8, 8], strides = [1, 1]} : vector<8x32xf32> to vector<8x8xf32>
    %28 = vector.extract_strided_slice %19 {offsets = [0, 0], sizes = [32, 8], strides = [1, 1]} : vector<32x32xf32> to vector<32x8xf32>
    %29 = vector.extract_strided_slice %26 {offsets = [0, 0], sizes = [32, 8], strides = [1, 1]} : vector<32x32xf32> to vector<32x8xf32>
    %cst_26 = arith.constant dense<0.000000e+00> : vector<8x32xf32>
    %30 = tpu.matmul %27, %28, %cst_26 {dimension_numbers = #tpu.dot_dimension_numbers<[1], [1], [0], [0], [0, 0, 1, 0], [], []>} : vector<8x8xf32>, vector<32x8xf32>, vector<8x32xf32> -> vector<8x32xf32>
    %cst_27 = arith.constant 0.353553385 : f32
    %31 = vector.broadcast %cst_27 : f32 to vector<8x32xf32>
    %32 = arith.mulf %30, %31 : vector<8x32xf32>
    %cst_28 = arith.constant dense<0xFF800000> : vector<8xf32>
    %33 = vector.multi_reduction <maximumf>, %32, %cst_28 [1] : vector<8x32xf32> to vector<8xf32>
    %34 = vector.shape_cast %33 : vector<8xf32> to vector<8x1xf32>
    %35 = vector.broadcast %34 : vector<8x1xf32> to vector<8x32xf32>
    %36 = arith.subf %32, %35 : vector<8x32xf32>
    %37 = math.exp %36 : vector<8x32xf32>
    %cst_29 = arith.constant dense<0.000000e+00> : vector<8xf32>
    %38 = vector.multi_reduction <add>, %37, %cst_29 [1] : vector<8x32xf32> to vector<8xf32>
    %39 = vector.shape_cast %38 : vector<8xf32> to vector<8x1xf32>
    %40 = tpu.reciprocal %39 {approx = true} : vector<8x1xf32> -> vector<8x1xf32>
    %41 = vector.broadcast %40 : vector<8x1xf32> to vector<8x32xf32>
    %42 = arith.mulf %37, %41 : vector<8x32xf32>
    %cst_30 = arith.constant dense<0.000000e+00> : vector<8x8xf32>
    %43 = tpu.matmul %42, %29, %cst_30 {dimension_numbers = #tpu.dot_dimension_numbers<[1], [0], [0], [1], [0, 0, 1, 1], [], []>} : vector<8x32xf32>, vector<32x8xf32>, vector<8x8xf32> -> vector<8x8xf32>
    %44 = vector.extract_strided_slice %12 {offsets = [0, 8], sizes = [8, 8], strides = [1, 1]} : vector<8x32xf32> to vector<8x8xf32>
    %45 = vector.extract_strided_slice %19 {offsets = [0, 8], sizes = [32, 8], strides = [1, 1]} : vector<32x32xf32> to vector<32x8xf32>
    %46 = vector.extract_strided_slice %26 {offsets = [0, 8], sizes = [32, 8], strides = [1, 1]} : vector<32x32xf32> to vector<32x8xf32>
    %cst_31 = arith.constant dense<0.000000e+00> : vector<8x32xf32>
    %47 = tpu.matmul %44, %45, %cst_31 {dimension_numbers = #tpu.dot_dimension_numbers<[1], [1], [0], [0], [0, 0, 1, 0], [], []>} : vector<8x8xf32>, vector<32x8xf32>, vector<8x32xf32> -> vector<8x32xf32>
    %cst_32 = arith.constant 0.353553385 : f32
    %48 = vector.broadcast %cst_32 : f32 to vector<8x32xf32>
    %49 = arith.mulf %47, %48 : vector<8x32xf32>
    %cst_33 = arith.constant dense<0xFF800000> : vector<8xf32>
    %50 = vector.multi_reduction <maximumf>, %49, %cst_33 [1] : vector<8x32xf32> to vector<8xf32>
    %51 = vector.shape_cast %50 : vector<8xf32> to vector<8x1xf32>
    %52 = vector.broadcast %51 : vector<8x1xf32> to vector<8x32xf32>
    %53 = arith.subf %49, %52 : vector<8x32xf32>
    %54 = math.exp %53 : vector<8x32xf32>
    %cst_34 = arith.constant dense<0.000000e+00> : vector<8xf32>
    %55 = vector.multi_reduction <add>, %54, %cst_34 [1] : vector<8x32xf32> to vector<8xf32>
    %56 = vector.shape_cast %55 : vector<8xf32> to vector<8x1xf32>
    %57 = tpu.reciprocal %56 {approx = true} : vector<8x1xf32> -> vector<8x1xf32>
    %58 = vector.broadcast %57 : vector<8x1xf32> to vector<8x32xf32>
    %59 = arith.mulf %54, %58 : vector<8x32xf32>
    %cst_35 = arith.constant dense<0.000000e+00> : vector<8x8xf32>
    %60 = tpu.matmul %59, %46, %cst_35 {dimension_numbers = #tpu.dot_dimension_numbers<[1], [0], [0], [1], [0, 0, 1, 1], [], []>} : vector<8x32xf32>, vector<32x8xf32>, vector<8x8xf32> -> vector<8x8xf32>
    %61 = vector.extract_strided_slice %12 {offsets = [0, 16], sizes = [8, 8], strides = [1, 1]} : vector<8x32xf32> to vector<8x8xf32>
    %62 = vector.extract_strided_slice %19 {offsets = [0, 16], sizes = [32, 8], strides = [1, 1]} : vector<32x32xf32> to vector<32x8xf32>
    %63 = vector.extract_strided_slice %26 {offsets = [0, 16], sizes = [32, 8], strides = [1, 1]} : vector<32x32xf32> to vector<32x8xf32>
    %cst_36 = arith.constant dense<0.000000e+00> : vector<8x32xf32>
    %64 = tpu.matmul %61, %62, %cst_36 {dimension_numbers = #tpu.dot_dimension_numbers<[1], [1], [0], [0], [0, 0, 1, 0], [], []>} : vector<8x8xf32>, vector<32x8xf32>, vector<8x32xf32> -> vector<8x32xf32>
    %cst_37 = arith.constant 0.353553385 : f32
    %65 = vector.broadcast %cst_37 : f32 to vector<8x32xf32>
    %66 = arith.mulf %64, %65 : vector<8x32xf32>
    %cst_38 = arith.constant dense<0xFF800000> : vector<8xf32>
    %67 = vector.multi_reduction <maximumf>, %66, %cst_38 [1] : vector<8x32xf32> to vector<8xf32>
    %68 = vector.shape_cast %67 : vector<8xf32> to vector<8x1xf32>
    %69 = vector.broadcast %68 : vector<8x1xf32> to vector<8x32xf32>
    %70 = arith.subf %66, %69 : vector<8x32xf32>
    %71 = math.exp %70 : vector<8x32xf32>
    %cst_39 = arith.constant dense<0.000000e+00> : vector<8xf32>
    %72 = vector.multi_reduction <add>, %71, %cst_39 [1] : vector<8x32xf32> to vector<8xf32>
    %73 = vector.shape_cast %72 : vector<8xf32> to vector<8x1xf32>
    %74 = tpu.reciprocal %73 {approx = true} : vector<8x1xf32> -> vector<8x1xf32>
    %75 = vector.broadcast %74 : vector<8x1xf32> to vector<8x32xf32>
    %76 = arith.mulf %71, %75 : vector<8x32xf32>
    %cst_40 = arith.constant dense<0.000000e+00> : vector<8x8xf32>
    %77 = tpu.matmul %76, %63, %cst_40 {dimension_numbers = #tpu.dot_dimension_numbers<[1], [0], [0], [1], [0, 0, 1, 1], [], []>} : vector<8x32xf32>, vector<32x8xf32>, vector<8x8xf32> -> vector<8x8xf32>
    %78 = vector.extract_strided_slice %12 {offsets = [0, 24], sizes = [8, 8], strides = [1, 1]} : vector<8x32xf32> to vector<8x8xf32>
    %79 = vector.extract_strided_slice %19 {offsets = [0, 24], sizes = [32, 8], strides = [1, 1]} : vector<32x32xf32> to vector<32x8xf32>
    %80 = vector.extract_strided_slice %26 {offsets = [0, 24], sizes = [32, 8], strides = [1, 1]} : vector<32x32xf32> to vector<32x8xf32>
    %cst_41 = arith.constant dense<0.000000e+00> : vector<8x32xf32>
    %81 = tpu.matmul %78, %79, %cst_41 {dimension_numbers = #tpu.dot_dimension_numbers<[1], [1], [0], [0], [0, 0, 1, 0], [], []>} : vector<8x8xf32>, vector<32x8xf32>, vector<8x32xf32> -> vector<8x32xf32>
    %cst_42 = arith.constant 0.353553385 : f32
    %82 = vector.broadcast %cst_42 : f32 to vector<8x32xf32>
    %83 = arith.mulf %81, %82 : vector<8x32xf32>
    %cst_43 = arith.constant dense<0xFF800000> : vector<8xf32>
    %84 = vector.multi_reduction <maximumf>, %83, %cst_43 [1] : vector<8x32xf32> to vector<8xf32>
    %85 = vector.shape_cast %84 : vector<8xf32> to vector<8x1xf32>
    %86 = vector.broadcast %85 : vector<8x1xf32> to vector<8x32xf32>
    %87 = arith.subf %83, %86 : vector<8x32xf32>
    %88 = math.exp %87 : vector<8x32xf32>
    %cst_44 = arith.constant dense<0.000000e+00> : vector<8xf32>
    %89 = vector.multi_reduction <add>, %88, %cst_44 [1] : vector<8x32xf32> to vector<8xf32>
    %90 = vector.shape_cast %89 : vector<8xf32> to vector<8x1xf32>
    %91 = tpu.reciprocal %90 {approx = true} : vector<8x1xf32> -> vector<8x1xf32>
    %92 = vector.broadcast %91 : vector<8x1xf32> to vector<8x32xf32>
    %93 = arith.mulf %88, %92 : vector<8x32xf32>
    %cst_45 = arith.constant dense<0.000000e+00> : vector<8x8xf32>
    %94 = tpu.matmul %93, %80, %cst_45 {dimension_numbers = #tpu.dot_dimension_numbers<[1], [0], [0], [1], [0, 0, 1, 1], [], []>} : vector<8x32xf32>, vector<32x8xf32>, vector<8x8xf32> -> vector<8x8xf32>
    %95 = tpu.concatenate %43, %60, %77, %94 in 1 : vector<8x8xf32>, vector<8x8xf32>, vector<8x8xf32>, vector<8x8xf32> -> vector<8x32xf32>
    %c0_46 = arith.constant 0 : index
    %c0_47 = arith.constant 0 : index
    %96 = vector.load %arg7[%c0_46, %c0_47] : memref<32x32xf32, #tpu.memory_space<vmem>>, vector<32x32xf32>
    %cst_48 = arith.constant dense<0.000000e+00> : vector<8x32xf32>
    %97 = tpu.matmul %95, %96, %cst_48 {dimension_numbers = #tpu.dot_dimension_numbers<[1], [0], [0], [1], [0, 0, 1, 1], [], []>} : vector<8x32xf32>, vector<32x32xf32>, vector<8x32xf32> -> vector<8x32xf32>
    %c0_49 = arith.constant 0 : index
    %c0_50 = arith.constant 0 : index
    %98 = vector.load %arg8[%c0_49, %c0_50] : memref<1x32xf32, #tpu.memory_space<vmem>>, vector<1x32xf32>
    %99 = vector.broadcast %98 : vector<1x32xf32> to vector<8x32xf32>
    %100 = arith.addf %97, %99 : vector<8x32xf32>
    %c0_51 = arith.constant 0 : index
    %c0_52 = arith.constant 0 : index
    %c0_53 = arith.constant 0 : index
    %101 = vector.load %arg4[%c0_51, %c0_52, %c0_53] : memref<1x8x32xf32, #tpu.memory_space<vmem>>, vector<1x8x32xf32>
    %102 = vector.shape_cast %101 : vector<1x8x32xf32> to vector<8x32xf32>
    %103 = arith.addf %102, %100 : vector<8x32xf32>
    %cst_54 = arith.constant dense<0.000000e+00> : vector<8xf32>
    %104 = vector.multi_reduction <add>, %103, %cst_54 [1] : vector<8x32xf32> to vector<8xf32>
    %105 = vector.shape_cast %104 : vector<8xf32> to vector<8x1xf32>
    %cst_55 = arith.constant 3.200000e+01 : f32
    %106 = vector.broadcast %cst_55 : f32 to vector<8x1xf32>
    %107 = arith.divf %105, %106 : vector<8x1xf32>
    %108 = vector.broadcast %107 : vector<8x1xf32> to vector<8x32xf32>
    %109 = arith.subf %103, %108 : vector<8x32xf32>
    %110 = arith.mulf %109, %109 : vector<8x32xf32>
    %cst_56 = arith.constant dense<0.000000e+00> : vector<8xf32>
    %111 = vector.multi_reduction <add>, %110, %cst_56 [1] : vector<8x32xf32> to vector<8xf32>
    %112 = vector.shape_cast %111 : vector<8xf32> to vector<8x1xf32>
    %cst_57 = arith.constant 3.200000e+01 : f32
    %113 = vector.broadcast %cst_57 : f32 to vector<8x1xf32>
    %114 = arith.divf %112, %113 : vector<8x1xf32>
    %cst_58 = arith.constant 9.99999974E-6 : f32
    %115 = vector.broadcast %cst_58 : f32 to vector<8x1xf32>
    %116 = arith.addf %114, %115 : vector<8x1xf32>
    %117 = math.rsqrt %116 : vector<8x1xf32>
    %118 = vector.broadcast %117 : vector<8x1xf32> to vector<8x32xf32>
    %119 = arith.mulf %109, %118 : vector<8x32xf32>
    %c0_59 = arith.constant 0 : index
    %c0_60 = arith.constant 0 : index
    %120 = vector.load %arg9[%c0_59, %c0_60] : memref<1x32xf32, #tpu.memory_space<vmem>>, vector<1x32xf32>
    %121 = vector.broadcast %120 : vector<1x32xf32> to vector<8x32xf32>
    %122 = arith.mulf %119, %121 : vector<8x32xf32>
    %c0_61 = arith.constant 0 : index
    %c0_62 = arith.constant 0 : index
    %123 = vector.load %arg10[%c0_61, %c0_62] : memref<1x32xf32, #tpu.memory_space<vmem>>, vector<1x32xf32>
    %124 = vector.broadcast %123 : vector<1x32xf32> to vector<8x32xf32>
    %125 = arith.addf %122, %124 : vector<8x32xf32>
    %126 = vector.shape_cast %125 : vector<8x32xf32> to vector<1x8x32xf32>
    %c0_63 = arith.constant 0 : index
    %c0_64 = arith.constant 0 : index
    %c0_65 = arith.constant 0 : index
    %127 = vector.load %arg11[%c0_63, %c0_64, %c0_65] : memref<1x8x32xf32, #tpu.memory_space<vmem>>, vector<1x8x32xf32>
    tpu.vector_store %arg11[%c0_63, %c0_64, %c0_65], %126 {strides = array<i32>} : memref<1x8x32xf32, #tpu.memory_space<vmem>>, vector<1x8x32xf32>,
    return
  }
  func.func @transform_0(%arg0: i32) -> (i32, i32, i32) {
    %c0_i32 = arith.constant 0 : i32
    %c0_i32_0 = arith.constant 0 : i32
    %c0_i32_1 = arith.constant 0 : i32
    return %arg0, %c0_i32, %c0_i32_0 : i32, i32, i32
  }
  func.func @transform_1(%arg0: i32) -> (i32, i32, i32) {
    %c0_i32 = arith.constant 0 : i32
    %c0_i32_0 = arith.constant 0 : i32
    %c0_i32_1 = arith.constant 0 : i32
    return %arg0, %c0_i32, %c0_i32_0 : i32, i32, i32
  }
  func.func @transform_2(%arg0: i32) -> (i32, i32, i32) {
    %c0_i32 = arith.constant 0 : i32
    %c0_i32_0 = arith.constant 0 : i32
    %c0_i32_1 = arith.constant 0 : i32
    return %arg0, %c0_i32, %c0_i32_0 : i32, i32, i32
  }
  func.func @transform_3(%arg0: i32) -> (i32, i32, i32) {
    %c0_i32 = arith.constant 0 : i32
    %c0_i32_0 = arith.constant 0 : i32
    %c0_i32_1 = arith.constant 0 : i32
    return %arg0, %c0_i32, %c0_i32_0 : i32, i32, i32
  }
  func.func @transform_4(%arg0: i32) -> (i32, i32, i32) {
    %c0_i32 = arith.constant 0 : i32
    %c0_i32_0 = arith.constant 0 : i32
    %c0_i32_1 = arith.constant 0 : i32
    %c0_i32_2 = arith.constant 0 : i32
    return %c0_i32, %c0_i32_0, %c0_i32_1 : i32, i32, i32
  }
  func.func @transform_5(%arg0: i32) -> (i32, i32, i32) {
    %c0_i32 = arith.constant 0 : i32
    %c0_i32_0 = arith.constant 0 : i32
    %c0_i32_1 = arith.constant 0 : i32
    %c0_i32_2 = arith.constant 0 : i32
    return %c0_i32, %c0_i32_0, %c0_i32_1 : i32, i32, i32
  }
  func.func @transform_6(%arg0: i32) -> (i32, i32) {
    %c0_i32 = arith.constant 0 : i32
    %c0_i32_0 = arith.constant 0 : i32
    %c0_i32_1 = arith.constant 0 : i32
    return %c0_i32, %c0_i32_0 : i32, i32
  }
  func.func @transform_7(%arg0: i32) -> (i32, i32) {
    %c0_i32 = arith.constant 0 : i32
    %c0_i32_0 = arith.constant 0 : i32
    %c0_i32_1 = arith.constant 0 : i32
    return %c0_i32, %c0_i32_0 : i32, i32
  }
  func.func @transform_8(%arg0: i32) -> (i32, i32) {
    %c0_i32 = arith.constant 0 : i32
    %c0_i32_0 = arith.constant 0 : i32
    %c0_i32_1 = arith.constant 0 : i32
    return %c0_i32, %c0_i32_0 : i32, i32
  }
  func.func @transform_9(%arg0: i32) -> (i32, i32) {
    %c0_i32 = arith.constant 0 : i32
    %c0_i32_0 = arith.constant 0 : i32
    %c0_i32_1 = arith.constant 0 : i32
    return %c0_i32, %c0_i32_0 : i32, i32
  }
  func.func @transform_10(%arg0: i32) -> (i32, i32, i32) {
    %c0_i32 = arith.constant 0 : i32
    %c0_i32_0 = arith.constant 0 : i32
    %c0_i32_1 = arith.constant 0 : i32
    return %arg0, %c0_i32, %c0_i32_0 : i32, i32, i32
  }
}

module attributes {stable_mosaic.version = 11 : i64} {
  func.func @_attn_layer_kernel(%arg0: i32, %arg1: memref<1x8x32xf32, #tpu.memory_space<vmem>>, %arg2: memref<1x8x32xf32, #tpu.memory_space<vmem>>, %arg3: memref<1x8x32xf32, #tpu.memory_space<vmem>>, %arg4: memref<1x8x32xf32, #tpu.memory_space<vmem>>, %arg5: memref<3x32x32xf32, #tpu.memory_space<vmem>>, %arg6: memref<3x1x32xf32, #tpu.memory_space<vmem>>, %arg7: memref<32x32xf32, #tpu.memory_space<vmem>>, %arg8: memref<1x32xf32, #tpu.memory_space<vmem>>, %arg9: memref<1x32xf32, #tpu.memory_space<vmem>>, %arg10: memref<1x32xf32, #tpu.memory_space<vmem>>, %arg11: memref<1x8x32xf32, #tpu.memory_space<vmem>>) attributes {dimension_semantics = [#tpu.dimension_semantics<parallel>], iteration_bounds = array<i64: 1>, scalar_prefetch = 0 : i64, scratch_operands = 0 : i64, tpu.core_type = #tpu.core_type<tc>, window_params = [{transform_indices = @transform_0, window_bounds = array<i64: 1, 8, 32>}, {transform_indices = @transform_1, window_bounds = array<i64: 1, 8, 32>}, {transform_indices = @transform_2, window_bounds = array<i64: 1, 8, 32>}, {transform_indices = @transform_3, window_bounds = array<i64: 1, 8, 32>}, {pipeline_mode = #tpu.pipeline_mode<synchronous>, transform_indices = @transform_4, window_bounds = array<i64: 3, 32, 32>}, {pipeline_mode = #tpu.pipeline_mode<synchronous>, transform_indices = @transform_5, window_bounds = array<i64: 3, 1, 32>}, {pipeline_mode = #tpu.pipeline_mode<synchronous>, transform_indices = @transform_6, window_bounds = array<i64: 32, 32>}, {pipeline_mode = #tpu.pipeline_mode<synchronous>, transform_indices = @transform_7, window_bounds = array<i64: 1, 32>}, {pipeline_mode = #tpu.pipeline_mode<synchronous>, transform_indices = @transform_8, window_bounds = array<i64: 1, 32>}, {pipeline_mode = #tpu.pipeline_mode<synchronous>, transform_indices = @transform_9, window_bounds = array<i64: 1, 32>}, {transform_indices = @transform_10, window_bounds = array<i64: 1, 8, 32>}]} {
    %c0 = arith.constant 0 : index
    %c0_0 = arith.constant 0 : index
    %c0_1 = arith.constant 0 : index
    %0 = vector.load %arg1[%c0, %c0_0, %c0_1] : memref<1x8x32xf32, #tpu.memory_space<vmem>>, vector<1x8x32xf32>
    %1 = vector.shape_cast %0 : vector<1x8x32xf32> to vector<8x32xf32>
    %c0_2 = arith.constant 0 : index
    %c0_3 = arith.constant 0 : index
    %c0_4 = arith.constant 0 : index
    %2 = vector.load %arg2[%c0_2, %c0_3, %c0_4] : memref<1x8x32xf32, #tpu.memory_space<vmem>>, vector<1x8x32xf32>
    %3 = vector.shape_cast %2 : vector<1x8x32xf32> to vector<8x32xf32>
    %c0_5 = arith.constant 0 : index
    %c0_6 = arith.constant 0 : index
    %c0_7 = arith.constant 0 : index
    %4 = vector.load %arg3[%c0_5, %c0_6, %c0_7] : memref<1x8x32xf32, #tpu.memory_space<vmem>>, vector<1x8x32xf32>
    %5 = vector.shape_cast %4 : vector<1x8x32xf32> to vector<8x32xf32>
    %c0_8 = arith.constant 0 : index
    %c0_9 = arith.constant 0 : index
    %c0_10 = arith.constant 0 : index
    %6 = vector.load %arg5[%c0_8, %c0_9, %c0_10] : memref<3x32x32xf32, #tpu.memory_space<vmem>>, vector<1x32x32xf32>
    %7 = vector.shape_cast %6 : vector<1x32x32xf32> to vector<32x32xf32>
    %cst = arith.constant dense<0.000000e+00> : vector<8x32xf32>
    %8 = tpu.matmul %1, %7, %cst {dimension_numbers = #tpu.dot_dimension_numbers<[1], [0], [0], [1], [0, 0, 1, 1], [], []>} : vector<8x32xf32>, vector<32x32xf32>, vector<8x32xf32> -> vector<8x32xf32>
    %c0_11 = arith.constant 0 : index
    %c0_12 = arith.constant 0 : index
    %c0_13 = arith.constant 0 : index
    %9 = vector.load %arg6[%c0_11, %c0_12, %c0_13] : memref<3x1x32xf32, #tpu.memory_space<vmem>>, vector<1x1x32xf32>
    %10 = vector.shape_cast %9 : vector<1x1x32xf32> to vector<1x32xf32>
    %11 = vector.broadcast %10 : vector<1x32xf32> to vector<8x32xf32>
    %12 = arith.addf %8, %11 : vector<8x32xf32>
    %c1 = arith.constant 1 : index
    %c0_14 = arith.constant 0 : index
    %c0_15 = arith.constant 0 : index
    %13 = vector.load %arg5[%c1, %c0_14, %c0_15] : memref<3x32x32xf32, #tpu.memory_space<vmem>>, vector<1x32x32xf32>
    %14 = vector.shape_cast %13 : vector<1x32x32xf32> to vector<32x32xf32>
    %cst_16 = arith.constant dense<0.000000e+00> : vector<8x32xf32>
    %15 = tpu.matmul %3, %14, %cst_16 {dimension_numbers = #tpu.dot_dimension_numbers<[1], [0], [0], [1], [0, 0, 1, 1], [], []>} : vector<8x32xf32>, vector<32x32xf32>, vector<8x32xf32> -> vector<8x32xf32>
    %c1_17 = arith.constant 1 : index
    %c0_18 = arith.constant 0 : index
    %c0_19 = arith.constant 0 : index
    %16 = vector.load %arg6[%c1_17, %c0_18, %c0_19] : memref<3x1x32xf32, #tpu.memory_space<vmem>>, vector<1x1x32xf32>
    %17 = vector.shape_cast %16 : vector<1x1x32xf32> to vector<1x32xf32>
    %18 = vector.broadcast %17 : vector<1x32xf32> to vector<8x32xf32>
    %19 = arith.addf %15, %18 : vector<8x32xf32>
    %c2 = arith.constant 2 : index
    %c0_20 = arith.constant 0 : index
    %c0_21 = arith.constant 0 : index
    %20 = vector.load %arg5[%c2, %c0_20, %c0_21] : memref<3x32x32xf32, #tpu.memory_space<vmem>>, vector<1x32x32xf32>
    %21 = vector.shape_cast %20 : vector<1x32x32xf32> to vector<32x32xf32>
    %cst_22 = arith.constant dense<0.000000e+00> : vector<8x32xf32>
    %22 = tpu.matmul %5, %21, %cst_22 {dimension_numbers = #tpu.dot_dimension_numbers<[1], [0], [0], [1], [0, 0, 1, 1], [], []>} : vector<8x32xf32>, vector<32x32xf32>, vector<8x32xf32> -> vector<8x32xf32>
    %c2_23 = arith.constant 2 : index
    %c0_24 = arith.constant 0 : index
    %c0_25 = arith.constant 0 : index
    %23 = vector.load %arg6[%c2_23, %c0_24, %c0_25] : memref<3x1x32xf32, #tpu.memory_space<vmem>>, vector<1x1x32xf32>
    %24 = vector.shape_cast %23 : vector<1x1x32xf32> to vector<1x32xf32>
    %25 = vector.broadcast %24 : vector<1x32xf32> to vector<8x32xf32>
    %26 = arith.addf %22, %25 : vector<8x32xf32>
    %27 = vector.extract_strided_slice %12 {offsets = [0, 0], sizes = [8, 8], strides = [1, 1]} : vector<8x32xf32> to vector<8x8xf32>
    %28 = vector.extract_strided_slice %19 {offsets = [0, 0], sizes = [8, 8], strides = [1, 1]} : vector<8x32xf32> to vector<8x8xf32>
    %29 = vector.extract_strided_slice %26 {offsets = [0, 0], sizes = [8, 8], strides = [1, 1]} : vector<8x32xf32> to vector<8x8xf32>
    %cst_26 = arith.constant dense<0.000000e+00> : vector<8x8xf32>
    %30 = tpu.matmul %27, %28, %cst_26 {dimension_numbers = #tpu.dot_dimension_numbers<[1], [1], [0], [0], [0, 0, 1, 0], [], []>} : vector<8x8xf32>, vector<8x8xf32>, vector<8x8xf32> -> vector<8x8xf32>
    %cst_27 = arith.constant 0.353553385 : f32
    %31 = vector.broadcast %cst_27 : f32 to vector<8x8xf32>
    %32 = arith.mulf %30, %31 : vector<8x8xf32>
    %cst_28 = arith.constant dense<0xFF800000> : vector<8xf32>
    %33 = vector.multi_reduction <maximumf>, %32, %cst_28 [1] : vector<8x8xf32> to vector<8xf32>
    %34 = vector.shape_cast %33 : vector<8xf32> to vector<8x1xf32>
    %35 = vector.broadcast %34 : vector<8x1xf32> to vector<8x8xf32>
    %36 = arith.subf %32, %35 : vector<8x8xf32>
    %37 = math.exp %36 : vector<8x8xf32>
    %cst_29 = arith.constant dense<0.000000e+00> : vector<8xf32>
    %38 = vector.multi_reduction <add>, %37, %cst_29 [1] : vector<8x8xf32> to vector<8xf32>
    %39 = vector.shape_cast %38 : vector<8xf32> to vector<8x1xf32>
    %40 = tpu.reciprocal %39 {approx = true} : vector<8x1xf32> -> vector<8x1xf32>
    %41 = vector.broadcast %40 : vector<8x1xf32> to vector<8x8xf32>
    %42 = arith.mulf %37, %41 : vector<8x8xf32>
    %cst_30 = arith.constant dense<0.000000e+00> : vector<8x8xf32>
    %43 = tpu.matmul %42, %29, %cst_30 {dimension_numbers = #tpu.dot_dimension_numbers<[1], [0], [0], [1], [0, 0, 1, 1], [], []>} : vector<8x8xf32>, vector<8x8xf32>, vector<8x8xf32> -> vector<8x8xf32>
    %44 = vector.extract_strided_slice %12 {offsets = [0, 8], sizes = [8, 8], strides = [1, 1]} : vector<8x32xf32> to vector<8x8xf32>
    %45 = vector.extract_strided_slice %19 {offsets = [0, 8], sizes = [8, 8], strides = [1, 1]} : vector<8x32xf32> to vector<8x8xf32>
    %46 = vector.extract_strided_slice %26 {offsets = [0, 8], sizes = [8, 8], strides = [1, 1]} : vector<8x32xf32> to vector<8x8xf32>
    %cst_31 = arith.constant dense<0.000000e+00> : vector<8x8xf32>
    %47 = tpu.matmul %44, %45, %cst_31 {dimension_numbers = #tpu.dot_dimension_numbers<[1], [1], [0], [0], [0, 0, 1, 0], [], []>} : vector<8x8xf32>, vector<8x8xf32>, vector<8x8xf32> -> vector<8x8xf32>
    %cst_32 = arith.constant 0.353553385 : f32
    %48 = vector.broadcast %cst_32 : f32 to vector<8x8xf32>
    %49 = arith.mulf %47, %48 : vector<8x8xf32>
    %cst_33 = arith.constant dense<0xFF800000> : vector<8xf32>
    %50 = vector.multi_reduction <maximumf>, %49, %cst_33 [1] : vector<8x8xf32> to vector<8xf32>
    %51 = vector.shape_cast %50 : vector<8xf32> to vector<8x1xf32>
    %52 = vector.broadcast %51 : vector<8x1xf32> to vector<8x8xf32>
    %53 = arith.subf %49, %52 : vector<8x8xf32>
    %54 = math.exp %53 : vector<8x8xf32>
    %cst_34 = arith.constant dense<0.000000e+00> : vector<8xf32>
    %55 = vector.multi_reduction <add>, %54, %cst_34 [1] : vector<8x8xf32> to vector<8xf32>
    %56 = vector.shape_cast %55 : vector<8xf32> to vector<8x1xf32>
    %57 = tpu.reciprocal %56 {approx = true} : vector<8x1xf32> -> vector<8x1xf32>
    %58 = vector.broadcast %57 : vector<8x1xf32> to vector<8x8xf32>
    %59 = arith.mulf %54, %58 : vector<8x8xf32>
    %cst_35 = arith.constant dense<0.000000e+00> : vector<8x8xf32>
    %60 = tpu.matmul %59, %46, %cst_35 {dimension_numbers = #tpu.dot_dimension_numbers<[1], [0], [0], [1], [0, 0, 1, 1], [], []>} : vector<8x8xf32>, vector<8x8xf32>, vector<8x8xf32> -> vector<8x8xf32>
    %61 = vector.extract_strided_slice %12 {offsets = [0, 16], sizes = [8, 8], strides = [1, 1]} : vector<8x32xf32> to vector<8x8xf32>
    %62 = vector.extract_strided_slice %19 {offsets = [0, 16], sizes = [8, 8], strides = [1, 1]} : vector<8x32xf32> to vector<8x8xf32>
    %63 = vector.extract_strided_slice %26 {offsets = [0, 16], sizes = [8, 8], strides = [1, 1]} : vector<8x32xf32> to vector<8x8xf32>
    %cst_36 = arith.constant dense<0.000000e+00> : vector<8x8xf32>
    %64 = tpu.matmul %61, %62, %cst_36 {dimension_numbers = #tpu.dot_dimension_numbers<[1], [1], [0], [0], [0, 0, 1, 0], [], []>} : vector<8x8xf32>, vector<8x8xf32>, vector<8x8xf32> -> vector<8x8xf32>
    %cst_37 = arith.constant 0.353553385 : f32
    %65 = vector.broadcast %cst_37 : f32 to vector<8x8xf32>
    %66 = arith.mulf %64, %65 : vector<8x8xf32>
    %cst_38 = arith.constant dense<0xFF800000> : vector<8xf32>
    %67 = vector.multi_reduction <maximumf>, %66, %cst_38 [1] : vector<8x8xf32> to vector<8xf32>
    %68 = vector.shape_cast %67 : vector<8xf32> to vector<8x1xf32>
    %69 = vector.broadcast %68 : vector<8x1xf32> to vector<8x8xf32>
    %70 = arith.subf %66, %69 : vector<8x8xf32>
    %71 = math.exp %70 : vector<8x8xf32>
    %cst_39 = arith.constant dense<0.000000e+00> : vector<8xf32>
    %72 = vector.multi_reduction <add>, %71, %cst_39 [1] : vector<8x8xf32> to vector<8xf32>
    %73 = vector.shape_cast %72 : vector<8xf32> to vector<8x1xf32>
    %74 = tpu.reciprocal %73 {approx = true} : vector<8x1xf32> -> vector<8x1xf32>
    %75 = vector.broadcast %74 : vector<8x1xf32> to vector<8x8xf32>
    %76 = arith.mulf %71, %75 : vector<8x8xf32>
    %cst_40 = arith.constant dense<0.000000e+00> : vector<8x8xf32>
    %77 = tpu.matmul %76, %63, %cst_40 {dimension_numbers = #tpu.dot_dimension_numbers<[1], [0], [0], [1], [0, 0, 1, 1], [], []>} : vector<8x8xf32>, vector<8x8xf32>, vector<8x8xf32> -> vector<8x8xf32>
    %78 = vector.extract_strided_slice %12 {offsets = [0, 24], sizes = [8, 8], strides = [1, 1]} : vector<8x32xf32> to vector<8x8xf32>
    %79 = vector.extract_strided_slice %19 {offsets = [0, 24], sizes = [8, 8], strides = [1, 1]} : vector<8x32xf32> to vector<8x8xf32>
    %80 = vector.extract_strided_slice %26 {offsets = [0, 24], sizes = [8, 8], strides = [1, 1]} : vector<8x32xf32> to vector<8x8xf32>
    %cst_41 = arith.constant dense<0.000000e+00> : vector<8x8xf32>
    %81 = tpu.matmul %78, %79, %cst_41 {dimension_numbers = #tpu.dot_dimension_numbers<[1], [1], [0], [0], [0, 0, 1, 0], [], []>} : vector<8x8xf32>, vector<8x8xf32>, vector<8x8xf32> -> vector<8x8xf32>
    %cst_42 = arith.constant 0.353553385 : f32
    %82 = vector.broadcast %cst_42 : f32 to vector<8x8xf32>
    %83 = arith.mulf %81, %82 : vector<8x8xf32>
    %cst_43 = arith.constant dense<0xFF800000> : vector<8xf32>
    %84 = vector.multi_reduction <maximumf>, %83, %cst_43 [1] : vector<8x8xf32> to vector<8xf32>
    %85 = vector.shape_cast %84 : vector<8xf32> to vector<8x1xf32>
    %86 = vector.broadcast %85 : vector<8x1xf32> to vector<8x8xf32>
    %87 = arith.subf %83, %86 : vector<8x8xf32>
    %88 = math.exp %87 : vector<8x8xf32>
    %cst_44 = arith.constant dense<0.000000e+00> : vector<8xf32>
    %89 = vector.multi_reduction <add>, %88, %cst_44 [1] : vector<8x8xf32> to vector<8xf32>
    %90 = vector.shape_cast %89 : vector<8xf32> to vector<8x1xf32>
    %91 = tpu.reciprocal %90 {approx = true} : vector<8x1xf32> -> vector<8x1xf32>
    %92 = vector.broadcast %91 : vector<8x1xf32> to vector<8x8xf32>
    %93 = arith.mulf %88, %92 : vector<8x8xf32>
    %cst_45 = arith.constant dense<0.000000e+00> : vector<8x8xf32>
    %94 = tpu.matmul %93, %80, %cst_45 {dimension_numbers = #tpu.dot_dimension_numbers<[1], [0], [0], [1], [0, 0, 1, 1], [], []>} : vector<8x8xf32>, vector<8x8xf32>, vector<8x8xf32> -> vector<8x8xf32>
    %95 = tpu.concatenate %43, %60, %77, %94 in 1 : vector<8x8xf32>, vector<8x8xf32>, vector<8x8xf32>, vector<8x8xf32> -> vector<8x32xf32>
    %c0_46 = arith.constant 0 : index
    %c0_47 = arith.constant 0 : index
    %96 = vector.load %arg7[%c0_46, %c0_47] : memref<32x32xf32, #tpu.memory_space<vmem>>, vector<32x32xf32>
    %cst_48 = arith.constant dense<0.000000e+00> : vector<8x32xf32>
    %97 = tpu.matmul %95, %96, %cst_48 {dimension_numbers = #tpu.dot_dimension_numbers<[1], [0], [0], [1], [0, 0, 1, 1], [], []>} : vector<8x32xf32>, vector<32x32xf32>, vector<8x32xf32> -> vector<8x32xf32>
    %c0_49 = arith.constant 0 : index
    %c0_50 = arith.constant 0 : index
    %98 = vector.load %arg8[%c0_49, %c0_50] : memref<1x32xf32, #tpu.memory_space<vmem>>, vector<1x32xf32>
    %99 = vector.broadcast %98 : vector<1x32xf32> to vector<8x32xf32>
    %100 = arith.addf %97, %99 : vector<8x32xf32>
    %c0_51 = arith.constant 0 : index
    %c0_52 = arith.constant 0 : index
    %c0_53 = arith.constant 0 : index
    %101 = vector.load %arg4[%c0_51, %c0_52, %c0_53] : memref<1x8x32xf32, #tpu.memory_space<vmem>>, vector<1x8x32xf32>
    %102 = vector.shape_cast %101 : vector<1x8x32xf32> to vector<8x32xf32>
    %103 = arith.addf %102, %100 : vector<8x32xf32>
    %cst_54 = arith.constant dense<0.000000e+00> : vector<8xf32>
    %104 = vector.multi_reduction <add>, %103, %cst_54 [1] : vector<8x32xf32> to vector<8xf32>
    %105 = vector.shape_cast %104 : vector<8xf32> to vector<8x1xf32>
    %cst_55 = arith.constant 3.200000e+01 : f32
    %106 = vector.broadcast %cst_55 : f32 to vector<8x1xf32>
    %107 = arith.divf %105, %106 : vector<8x1xf32>
    %108 = vector.broadcast %107 : vector<8x1xf32> to vector<8x32xf32>
    %109 = arith.subf %103, %108 : vector<8x32xf32>
    %110 = arith.mulf %109, %109 : vector<8x32xf32>
    %cst_56 = arith.constant dense<0.000000e+00> : vector<8xf32>
    %111 = vector.multi_reduction <add>, %110, %cst_56 [1] : vector<8x32xf32> to vector<8xf32>
    %112 = vector.shape_cast %111 : vector<8xf32> to vector<8x1xf32>
    %cst_57 = arith.constant 3.200000e+01 : f32
    %113 = vector.broadcast %cst_57 : f32 to vector<8x1xf32>
    %114 = arith.divf %112, %113 : vector<8x1xf32>
    %cst_58 = arith.constant 9.99999974E-6 : f32
    %115 = vector.broadcast %cst_58 : f32 to vector<8x1xf32>
    %116 = arith.addf %114, %115 : vector<8x1xf32>
    %117 = math.rsqrt %116 : vector<8x1xf32>
    %118 = vector.broadcast %117 : vector<8x1xf32> to vector<8x32xf32>
    %119 = arith.mulf %109, %118 : vector<8x32xf32>
    %c0_59 = arith.constant 0 : index
    %c0_60 = arith.constant 0 : index
    %120 = vector.load %arg9[%c0_59, %c0_60] : memref<1x32xf32, #tpu.memory_space<vmem>>, vector<1x32xf32>
    %121 = vector.broadcast %120 : vector<1x32xf32> to vector<8x32xf32>
    %122 = arith.mulf %119, %121 : vector<8x32xf32>
    %c0_61 = arith.constant 0 : index
    %c0_62 = arith.constant 0 : index
    %123 = vector.load %arg10[%c0_61, %c0_62] : memref<1x32xf32, #tpu.memory_space<vmem>>, vector<1x32xf32>
    %124 = vector.broadcast %123 : vector<1x32xf32> to vector<8x32xf32>
    %125 = arith.addf %122, %124 : vector<8x32xf32>
    %126 = vector.shape_cast %125 : vector<8x32xf32> to vector<1x8x32xf32>
    %c0_63 = arith.constant 0 : index
    %c0_64 = arith.constant 0 : index
    %c0_65 = arith.constant 0 : index
    %127 = vector.load %arg11[%c0_63, %c0_64, %c0_65] : memref<1x8x32xf32, #tpu.memory_space<vmem>>, vector<1x8x32xf32>
    tpu.vector_store %arg11[%c0_63, %c0_64, %c0_65], %126 {strides = array<i32>} : memref<1x8x32xf32, #tpu.memory_space<vmem>>, vector<1x8x32xf32>,
    return
  }
  func.func @transform_0(%arg0: i32) -> (i32, i32, i32) {
    %c0_i32 = arith.constant 0 : i32
    %c0_i32_0 = arith.constant 0 : i32
    %c0_i32_1 = arith.constant 0 : i32
    return %arg0, %c0_i32, %c0_i32_0 : i32, i32, i32
  }
  func.func @transform_1(%arg0: i32) -> (i32, i32, i32) {
    %c0_i32 = arith.constant 0 : i32
    %c0_i32_0 = arith.constant 0 : i32
    %c0_i32_1 = arith.constant 0 : i32
    return %arg0, %c0_i32, %c0_i32_0 : i32, i32, i32
  }
  func.func @transform_2(%arg0: i32) -> (i32, i32, i32) {
    %c0_i32 = arith.constant 0 : i32
    %c0_i32_0 = arith.constant 0 : i32
    %c0_i32_1 = arith.constant 0 : i32
    return %arg0, %c0_i32, %c0_i32_0 : i32, i32, i32
  }
  func.func @transform_3(%arg0: i32) -> (i32, i32, i32) {
    %c0_i32 = arith.constant 0 : i32
    %c0_i32_0 = arith.constant 0 : i32
    %c0_i32_1 = arith.constant 0 : i32
    return %arg0, %c0_i32, %c0_i32_0 : i32, i32, i32
  }
  func.func @transform_4(%arg0: i32) -> (i32, i32, i32) {
    %c0_i32 = arith.constant 0 : i32
    %c0_i32_0 = arith.constant 0 : i32
    %c0_i32_1 = arith.constant 0 : i32
    %c0_i32_2 = arith.constant 0 : i32
    return %c0_i32, %c0_i32_0, %c0_i32_1 : i32, i32, i32
  }
  func.func @transform_5(%arg0: i32) -> (i32, i32, i32) {
    %c0_i32 = arith.constant 0 : i32
    %c0_i32_0 = arith.constant 0 : i32
    %c0_i32_1 = arith.constant 0 : i32
    %c0_i32_2 = arith.constant 0 : i32
    return %c0_i32, %c0_i32_0, %c0_i32_1 : i32, i32, i32
  }
  func.func @transform_6(%arg0: i32) -> (i32, i32) {
    %c0_i32 = arith.constant 0 : i32
    %c0_i32_0 = arith.constant 0 : i32
    %c0_i32_1 = arith.constant 0 : i32
    return %c0_i32, %c0_i32_0 : i32, i32
  }
  func.func @transform_7(%arg0: i32) -> (i32, i32) {
    %c0_i32 = arith.constant 0 : i32
    %c0_i32_0 = arith.constant 0 : i32
    %c0_i32_1 = arith.constant 0 : i32
    return %c0_i32, %c0_i32_0 : i32, i32
  }
  func.func @transform_8(%arg0: i32) -> (i32, i32) {
    %c0_i32 = arith.constant 0 : i32
    %c0_i32_0 = arith.constant 0 : i32
    %c0_i32_1 = arith.constant 0 : i32
    return %c0_i32, %c0_i32_0 : i32, i32
  }
  func.func @transform_9(%arg0: i32) -> (i32, i32) {
    %c0_i32 = arith.constant 0 : i32
    %c0_i32_0 = arith.constant 0 : i32
    %c0_i32_1 = arith.constant 0 : i32
    return %c0_i32, %c0_i32_0 : i32, i32
  }
  func.func @transform_10(%arg0: i32) -> (i32, i32, i32) {
    %c0_i32 = arith.constant 0 : i32
    %c0_i32_0 = arith.constant 0 : i32
    %c0_i32_1 = arith.constant 0 : i32
    return %arg0, %c0_i32, %c0_i32_0 : i32, i32, i32
  }
}

module attributes {stable_mosaic.version = 11 : i64} {
  func.func @_ln_kernel(%arg0: i32, %arg1: memref<8x32xf32, #tpu.memory_space<vmem>>, %arg2: memref<1x32xf32, #tpu.memory_space<vmem>>, %arg3: memref<1x32xf32, #tpu.memory_space<vmem>>, %arg4: memref<8x32xf32, #tpu.memory_space<vmem>>) attributes {dimension_semantics = [#tpu.dimension_semantics<arbitrary>], iteration_bounds = array<i64: 1>, scalar_prefetch = 0 : i64, scratch_operands = 0 : i64, tpu.core_type = #tpu.core_type<tc>, window_params = [{pipeline_mode = #tpu.pipeline_mode<synchronous>, transform_indices = @transform_0, window_bounds = array<i64: 8, 32>}, {pipeline_mode = #tpu.pipeline_mode<synchronous>, transform_indices = @transform_1, window_bounds = array<i64: 1, 32>}, {pipeline_mode = #tpu.pipeline_mode<synchronous>, transform_indices = @transform_2, window_bounds = array<i64: 1, 32>}, {pipeline_mode = #tpu.pipeline_mode<synchronous>, transform_indices = @transform_3, window_bounds = array<i64: 8, 32>}]} {
    %c0 = arith.constant 0 : index
    %c0_0 = arith.constant 0 : index
    %0 = vector.load %arg1[%c0, %c0_0] : memref<8x32xf32, #tpu.memory_space<vmem>>, vector<8x32xf32>
    %cst = arith.constant dense<0.000000e+00> : vector<8xf32>
    %1 = vector.multi_reduction <add>, %0, %cst [1] : vector<8x32xf32> to vector<8xf32>
    %2 = vector.shape_cast %1 : vector<8xf32> to vector<8x1xf32>
    %cst_1 = arith.constant 3.200000e+01 : f32
    %3 = vector.broadcast %cst_1 : f32 to vector<8x1xf32>
    %4 = arith.divf %2, %3 : vector<8x1xf32>
    %5 = vector.broadcast %4 : vector<8x1xf32> to vector<8x32xf32>
    %6 = arith.subf %0, %5 : vector<8x32xf32>
    %7 = arith.mulf %6, %6 : vector<8x32xf32>
    %cst_2 = arith.constant dense<0.000000e+00> : vector<8xf32>
    %8 = vector.multi_reduction <add>, %7, %cst_2 [1] : vector<8x32xf32> to vector<8xf32>
    %9 = vector.shape_cast %8 : vector<8xf32> to vector<8x1xf32>
    %cst_3 = arith.constant 3.200000e+01 : f32
    %10 = vector.broadcast %cst_3 : f32 to vector<8x1xf32>
    %11 = arith.divf %9, %10 : vector<8x1xf32>
    %cst_4 = arith.constant 9.99999974E-6 : f32
    %12 = vector.broadcast %cst_4 : f32 to vector<8x1xf32>
    %13 = arith.addf %11, %12 : vector<8x1xf32>
    %14 = math.rsqrt %13 : vector<8x1xf32>
    %15 = vector.broadcast %14 : vector<8x1xf32> to vector<8x32xf32>
    %16 = arith.mulf %6, %15 : vector<8x32xf32>
    %c0_5 = arith.constant 0 : index
    %c0_6 = arith.constant 0 : index
    %17 = vector.load %arg2[%c0_5, %c0_6] : memref<1x32xf32, #tpu.memory_space<vmem>>, vector<1x32xf32>
    %18 = vector.broadcast %17 : vector<1x32xf32> to vector<8x32xf32>
    %19 = arith.mulf %16, %18 : vector<8x32xf32>
    %c0_7 = arith.constant 0 : index
    %c0_8 = arith.constant 0 : index
    %20 = vector.load %arg3[%c0_7, %c0_8] : memref<1x32xf32, #tpu.memory_space<vmem>>, vector<1x32xf32>
    %21 = vector.broadcast %20 : vector<1x32xf32> to vector<8x32xf32>
    %22 = arith.addf %19, %21 : vector<8x32xf32>
    %c0_9 = arith.constant 0 : index
    %c0_10 = arith.constant 0 : index
    %23 = vector.load %arg4[%c0_9, %c0_10] : memref<8x32xf32, #tpu.memory_space<vmem>>, vector<8x32xf32>
    tpu.vector_store %arg4[%c0_9, %c0_10], %22 {strides = array<i32>} : memref<8x32xf32, #tpu.memory_space<vmem>>, vector<8x32xf32>,
    return
  }
  func.func @transform_0(%arg0: i32) -> (i32, i32) {
    %c0_i32 = arith.constant 0 : i32
    %c0_i32_0 = arith.constant 0 : i32
    %c0_i32_1 = arith.constant 0 : i32
    return %c0_i32, %c0_i32_0 : i32, i32
  }
  func.func @transform_1(%arg0: i32) -> (i32, i32) {
    %c0_i32 = arith.constant 0 : i32
    %c0_i32_0 = arith.constant 0 : i32
    %c0_i32_1 = arith.constant 0 : i32
    return %c0_i32, %c0_i32_0 : i32, i32
  }
  func.func @transform_2(%arg0: i32) -> (i32, i32) {
    %c0_i32 = arith.constant 0 : i32
    %c0_i32_0 = arith.constant 0 : i32
    %c0_i32_1 = arith.constant 0 : i32
    return %c0_i32, %c0_i32_0 : i32, i32
  }
  func.func @transform_3(%arg0: i32) -> (i32, i32) {
    %c0_i32 = arith.constant 0 : i32
    %c0_i32_0 = arith.constant 0 : i32
    %c0_i32_1 = arith.constant 0 : i32
    return %c0_i32, %c0_i32_0 : i32, i32
  }
}

module attributes {stable_mosaic.version = 11 : i64} {
  func.func @_ffn_kernel(%arg0: i32, %arg1: memref<8x32xf32, #tpu.memory_space<vmem>>, %arg2: memref<32x64xf32, #tpu.memory_space<vmem>>, %arg3: memref<1x64xf32, #tpu.memory_space<vmem>>, %arg4: memref<64x32xf32, #tpu.memory_space<vmem>>, %arg5: memref<1x32xf32, #tpu.memory_space<vmem>>, %arg6: memref<1x32xf32, #tpu.memory_space<vmem>>, %arg7: memref<1x32xf32, #tpu.memory_space<vmem>>, %arg8: memref<8x32xf32, #tpu.memory_space<vmem>>) attributes {dimension_semantics = [#tpu.dimension_semantics<arbitrary>], iteration_bounds = array<i64: 1>, scalar_prefetch = 0 : i64, scratch_operands = 0 : i64, tpu.core_type = #tpu.core_type<tc>, window_params = [{pipeline_mode = #tpu.pipeline_mode<synchronous>, transform_indices = @transform_0, window_bounds = array<i64: 8, 32>}, {pipeline_mode = #tpu.pipeline_mode<synchronous>, transform_indices = @transform_1, window_bounds = array<i64: 32, 64>}, {pipeline_mode = #tpu.pipeline_mode<synchronous>, transform_indices = @transform_2, window_bounds = array<i64: 1, 64>}, {pipeline_mode = #tpu.pipeline_mode<synchronous>, transform_indices = @transform_3, window_bounds = array<i64: 64, 32>}, {pipeline_mode = #tpu.pipeline_mode<synchronous>, transform_indices = @transform_4, window_bounds = array<i64: 1, 32>}, {pipeline_mode = #tpu.pipeline_mode<synchronous>, transform_indices = @transform_5, window_bounds = array<i64: 1, 32>}, {pipeline_mode = #tpu.pipeline_mode<synchronous>, transform_indices = @transform_6, window_bounds = array<i64: 1, 32>}, {pipeline_mode = #tpu.pipeline_mode<synchronous>, transform_indices = @transform_7, window_bounds = array<i64: 8, 32>}]} {
    %c0 = arith.constant 0 : index
    %c0_0 = arith.constant 0 : index
    %0 = vector.load %arg1[%c0, %c0_0] : memref<8x32xf32, #tpu.memory_space<vmem>>, vector<8x32xf32>
    %c0_1 = arith.constant 0 : index
    %c0_2 = arith.constant 0 : index
    %1 = vector.load %arg2[%c0_1, %c0_2] : memref<32x64xf32, #tpu.memory_space<vmem>>, vector<32x64xf32>
    %cst = arith.constant dense<0.000000e+00> : vector<8x64xf32>
    %2 = tpu.matmul %0, %1, %cst {dimension_numbers = #tpu.dot_dimension_numbers<[1], [0], [0], [1], [0, 0, 1, 1], [], []>} : vector<8x32xf32>, vector<32x64xf32>, vector<8x64xf32> -> vector<8x64xf32>
    %c0_3 = arith.constant 0 : index
    %c0_4 = arith.constant 0 : index
    %3 = vector.load %arg3[%c0_3, %c0_4] : memref<1x64xf32, #tpu.memory_space<vmem>>, vector<1x64xf32>
    %4 = vector.broadcast %3 : vector<1x64xf32> to vector<8x64xf32>
    %5 = arith.addf %2, %4 : vector<8x64xf32>
    %cst_5 = arith.constant 0.000000e+00 : f32
    %6 = vector.broadcast %cst_5 : f32 to vector<8x64xf32>
    %7 = arith.maximumf %5, %6 : vector<8x64xf32>
    %c0_6 = arith.constant 0 : index
    %c0_7 = arith.constant 0 : index
    %8 = vector.load %arg4[%c0_6, %c0_7] : memref<64x32xf32, #tpu.memory_space<vmem>>, vector<64x32xf32>
    %cst_8 = arith.constant dense<0.000000e+00> : vector<8x32xf32>
    %9 = tpu.matmul %7, %8, %cst_8 {dimension_numbers = #tpu.dot_dimension_numbers<[1], [0], [0], [1], [0, 0, 1, 1], [], []>} : vector<8x64xf32>, vector<64x32xf32>, vector<8x32xf32> -> vector<8x32xf32>
    %c0_9 = arith.constant 0 : index
    %c0_10 = arith.constant 0 : index
    %10 = vector.load %arg5[%c0_9, %c0_10] : memref<1x32xf32, #tpu.memory_space<vmem>>, vector<1x32xf32>
    %11 = vector.broadcast %10 : vector<1x32xf32> to vector<8x32xf32>
    %12 = arith.addf %9, %11 : vector<8x32xf32>
    %13 = arith.addf %0, %12 : vector<8x32xf32>
    %cst_11 = arith.constant dense<0.000000e+00> : vector<8xf32>
    %14 = vector.multi_reduction <add>, %13, %cst_11 [1] : vector<8x32xf32> to vector<8xf32>
    %15 = vector.shape_cast %14 : vector<8xf32> to vector<8x1xf32>
    %cst_12 = arith.constant 3.200000e+01 : f32
    %16 = vector.broadcast %cst_12 : f32 to vector<8x1xf32>
    %17 = arith.divf %15, %16 : vector<8x1xf32>
    %18 = vector.broadcast %17 : vector<8x1xf32> to vector<8x32xf32>
    %19 = arith.subf %13, %18 : vector<8x32xf32>
    %20 = arith.mulf %19, %19 : vector<8x32xf32>
    %cst_13 = arith.constant dense<0.000000e+00> : vector<8xf32>
    %21 = vector.multi_reduction <add>, %20, %cst_13 [1] : vector<8x32xf32> to vector<8xf32>
    %22 = vector.shape_cast %21 : vector<8xf32> to vector<8x1xf32>
    %cst_14 = arith.constant 3.200000e+01 : f32
    %23 = vector.broadcast %cst_14 : f32 to vector<8x1xf32>
    %24 = arith.divf %22, %23 : vector<8x1xf32>
    %cst_15 = arith.constant 9.99999974E-6 : f32
    %25 = vector.broadcast %cst_15 : f32 to vector<8x1xf32>
    %26 = arith.addf %24, %25 : vector<8x1xf32>
    %27 = math.rsqrt %26 : vector<8x1xf32>
    %28 = vector.broadcast %27 : vector<8x1xf32> to vector<8x32xf32>
    %29 = arith.mulf %19, %28 : vector<8x32xf32>
    %c0_16 = arith.constant 0 : index
    %c0_17 = arith.constant 0 : index
    %30 = vector.load %arg6[%c0_16, %c0_17] : memref<1x32xf32, #tpu.memory_space<vmem>>, vector<1x32xf32>
    %31 = vector.broadcast %30 : vector<1x32xf32> to vector<8x32xf32>
    %32 = arith.mulf %29, %31 : vector<8x32xf32>
    %c0_18 = arith.constant 0 : index
    %c0_19 = arith.constant 0 : index
    %33 = vector.load %arg7[%c0_18, %c0_19] : memref<1x32xf32, #tpu.memory_space<vmem>>, vector<1x32xf32>
    %34 = vector.broadcast %33 : vector<1x32xf32> to vector<8x32xf32>
    %35 = arith.addf %32, %34 : vector<8x32xf32>
    %c0_20 = arith.constant 0 : index
    %c0_21 = arith.constant 0 : index
    %36 = vector.load %arg8[%c0_20, %c0_21] : memref<8x32xf32, #tpu.memory_space<vmem>>, vector<8x32xf32>
    tpu.vector_store %arg8[%c0_20, %c0_21], %35 {strides = array<i32>} : memref<8x32xf32, #tpu.memory_space<vmem>>, vector<8x32xf32>,
    return
  }
  func.func @transform_0(%arg0: i32) -> (i32, i32) {
    %c0_i32 = arith.constant 0 : i32
    %c0_i32_0 = arith.constant 0 : i32
    %c0_i32_1 = arith.constant 0 : i32
    return %c0_i32, %c0_i32_0 : i32, i32
  }
  func.func @transform_1(%arg0: i32) -> (i32, i32) {
    %c0_i32 = arith.constant 0 : i32
    %c0_i32_0 = arith.constant 0 : i32
    %c0_i32_1 = arith.constant 0 : i32
    return %c0_i32, %c0_i32_0 : i32, i32
  }
  func.func @transform_2(%arg0: i32) -> (i32, i32) {
    %c0_i32 = arith.constant 0 : i32
    %c0_i32_0 = arith.constant 0 : i32
    %c0_i32_1 = arith.constant 0 : i32
    return %c0_i32, %c0_i32_0 : i32, i32
  }
  func.func @transform_3(%arg0: i32) -> (i32, i32) {
    %c0_i32 = arith.constant 0 : i32
    %c0_i32_0 = arith.constant 0 : i32
    %c0_i32_1 = arith.constant 0 : i32
    return %c0_i32, %c0_i32_0 : i32, i32
  }
  func.func @transform_4(%arg0: i32) -> (i32, i32) {
    %c0_i32 = arith.constant 0 : i32
    %c0_i32_0 = arith.constant 0 : i32
    %c0_i32_1 = arith.constant 0 : i32
    return %c0_i32, %c0_i32_0 : i32, i32
  }
  func.func @transform_5(%arg0: i32) -> (i32, i32) {
    %c0_i32 = arith.constant 0 : i32
    %c0_i32_0 = arith.constant 0 : i32
    %c0_i32_1 = arith.constant 0 : i32
    return %c0_i32, %c0_i32_0 : i32, i32
  }
  func.func @transform_6(%arg0: i32) -> (i32, i32) {
    %c0_i32 = arith.constant 0 : i32
    %c0_i32_0 = arith.constant 0 : i32
    %c0_i32_1 = arith.constant 0 : i32
    return %c0_i32, %c0_i32_0 : i32, i32
  }
  func.func @transform_7(%arg0: i32) -> (i32, i32) {
    %c0_i32 = arith.constant 0 : i32
    %c0_i32_0 = arith.constant 0 : i32
    %c0_i32_1 = arith.constant 0 : i32
    return %c0_i32, %c0_i32_0 : i32, i32
  }
}

module attributes {stable_mosaic.version = 11 : i64} {
  func.func @_linear_kernel(%arg0: i32, %arg1: memref<8x32xf32, #tpu.memory_space<vmem>>, %arg2: memref<32x11xf32, #tpu.memory_space<vmem>>, %arg3: memref<1x11xf32, #tpu.memory_space<vmem>>, %arg4: memref<8x11xf32, #tpu.memory_space<vmem>>) attributes {dimension_semantics = [#tpu.dimension_semantics<parallel>], iteration_bounds = array<i64: 1>, scalar_prefetch = 0 : i64, scratch_operands = 0 : i64, tpu.core_type = #tpu.core_type<tc>, window_params = [{transform_indices = @transform_0, window_bounds = array<i64: 8, 32>}, {pipeline_mode = #tpu.pipeline_mode<synchronous>, transform_indices = @transform_1, window_bounds = array<i64: 32, 11>}, {pipeline_mode = #tpu.pipeline_mode<synchronous>, transform_indices = @transform_2, window_bounds = array<i64: 1, 11>}, {transform_indices = @transform_3, window_bounds = array<i64: 8, 11>}]} {
    %c0 = arith.constant 0 : index
    %c0_0 = arith.constant 0 : index
    %0 = vector.load %arg1[%c0, %c0_0] : memref<8x32xf32, #tpu.memory_space<vmem>>, vector<8x32xf32>
    %c0_1 = arith.constant 0 : index
    %c0_2 = arith.constant 0 : index
    %1 = vector.load %arg2[%c0_1, %c0_2] : memref<32x11xf32, #tpu.memory_space<vmem>>, vector<32x11xf32>
    %cst = arith.constant dense<0.000000e+00> : vector<8x11xf32>
    %2 = tpu.matmul %0, %1, %cst {dimension_numbers = #tpu.dot_dimension_numbers<[1], [0], [0], [1], [0, 0, 1, 1], [], []>} : vector<8x32xf32>, vector<32x11xf32>, vector<8x11xf32> -> vector<8x11xf32>
    %c0_3 = arith.constant 0 : index
    %c0_4 = arith.constant 0 : index
    %3 = vector.load %arg3[%c0_3, %c0_4] : memref<1x11xf32, #tpu.memory_space<vmem>>, vector<1x11xf32>
    %4 = vector.broadcast %3 : vector<1x11xf32> to vector<8x11xf32>
    %5 = arith.addf %2, %4 : vector<8x11xf32>
    %c0_5 = arith.constant 0 : index
    %c0_6 = arith.constant 0 : index
    %6 = vector.load %arg4[%c0_5, %c0_6] : memref<8x11xf32, #tpu.memory_space<vmem>>, vector<8x11xf32>
    tpu.vector_store %arg4[%c0_5, %c0_6], %5 {strides = array<i32>} : memref<8x11xf32, #tpu.memory_space<vmem>>, vector<8x11xf32>,
    return
  }
  func.func @transform_0(%arg0: i32) -> (i32, i32) {
    %c0_i32 = arith.constant 0 : i32
    %c0_i32_0 = arith.constant 0 : i32
    return %arg0, %c0_i32 : i32, i32
  }
  func.func @transform_1(%arg0: i32) -> (i32, i32) {
    %c0_i32 = arith.constant 0 : i32
    %c0_i32_0 = arith.constant 0 : i32
    %c0_i32_1 = arith.constant 0 : i32
    return %c0_i32, %c0_i32_0 : i32, i32
  }
  func.func @transform_2(%arg0: i32) -> (i32, i32) {
    %c0_i32 = arith.constant 0 : i32
    %c0_i32_0 = arith.constant 0 : i32
    %c0_i32_1 = arith.constant 0 : i32
    return %c0_i32, %c0_i32_0 : i32, i32
  }
  func.func @transform_3(%arg0: i32) -> (i32, i32) {
    %c0_i32 = arith.constant 0 : i32
    %c0_i32_0 = arith.constant 0 : i32
    return %arg0, %c0_i32 : i32, i32
  }
}

module attributes {stable_mosaic.version = 11 : i64} {
  func.func @_mlp3_kernel(%arg0: i32, %arg1: memref<8x32xf32, #tpu.memory_space<vmem>>, %arg2: memref<32x32xf32, #tpu.memory_space<vmem>>, %arg3: memref<1x32xf32, #tpu.memory_space<vmem>>, %arg4: memref<32x32xf32, #tpu.memory_space<vmem>>, %arg5: memref<1x32xf32, #tpu.memory_space<vmem>>, %arg6: memref<32x16xf32, #tpu.memory_space<vmem>>, %arg7: memref<1x16xf32, #tpu.memory_space<vmem>>, %arg8: memref<8x16xf32, #tpu.memory_space<vmem>>) attributes {dimension_semantics = [#tpu.dimension_semantics<arbitrary>], iteration_bounds = array<i64: 1>, scalar_prefetch = 0 : i64, scratch_operands = 0 : i64, tpu.core_type = #tpu.core_type<tc>, window_params = [{pipeline_mode = #tpu.pipeline_mode<synchronous>, transform_indices = @transform_0, window_bounds = array<i64: 8, 32>}, {pipeline_mode = #tpu.pipeline_mode<synchronous>, transform_indices = @transform_1, window_bounds = array<i64: 32, 32>}, {pipeline_mode = #tpu.pipeline_mode<synchronous>, transform_indices = @transform_2, window_bounds = array<i64: 1, 32>}, {pipeline_mode = #tpu.pipeline_mode<synchronous>, transform_indices = @transform_3, window_bounds = array<i64: 32, 32>}, {pipeline_mode = #tpu.pipeline_mode<synchronous>, transform_indices = @transform_4, window_bounds = array<i64: 1, 32>}, {pipeline_mode = #tpu.pipeline_mode<synchronous>, transform_indices = @transform_5, window_bounds = array<i64: 32, 16>}, {pipeline_mode = #tpu.pipeline_mode<synchronous>, transform_indices = @transform_6, window_bounds = array<i64: 1, 16>}, {pipeline_mode = #tpu.pipeline_mode<synchronous>, transform_indices = @transform_7, window_bounds = array<i64: 8, 16>}]} {
    %c0 = arith.constant 0 : index
    %c0_0 = arith.constant 0 : index
    %0 = vector.load %arg1[%c0, %c0_0] : memref<8x32xf32, #tpu.memory_space<vmem>>, vector<8x32xf32>
    %c0_1 = arith.constant 0 : index
    %c0_2 = arith.constant 0 : index
    %1 = vector.load %arg2[%c0_1, %c0_2] : memref<32x32xf32, #tpu.memory_space<vmem>>, vector<32x32xf32>
    %cst = arith.constant dense<0.000000e+00> : vector<8x32xf32>
    %2 = tpu.matmul %0, %1, %cst {dimension_numbers = #tpu.dot_dimension_numbers<[1], [0], [0], [1], [0, 0, 1, 1], [], []>} : vector<8x32xf32>, vector<32x32xf32>, vector<8x32xf32> -> vector<8x32xf32>
    %c0_3 = arith.constant 0 : index
    %c0_4 = arith.constant 0 : index
    %3 = vector.load %arg3[%c0_3, %c0_4] : memref<1x32xf32, #tpu.memory_space<vmem>>, vector<1x32xf32>
    %4 = vector.broadcast %3 : vector<1x32xf32> to vector<8x32xf32>
    %5 = arith.addf %2, %4 : vector<8x32xf32>
    %cst_5 = arith.constant 0.000000e+00 : f32
    %6 = vector.broadcast %cst_5 : f32 to vector<8x32xf32>
    %7 = arith.maximumf %5, %6 : vector<8x32xf32>
    %c0_6 = arith.constant 0 : index
    %c0_7 = arith.constant 0 : index
    %8 = vector.load %arg4[%c0_6, %c0_7] : memref<32x32xf32, #tpu.memory_space<vmem>>, vector<32x32xf32>
    %cst_8 = arith.constant dense<0.000000e+00> : vector<8x32xf32>
    %9 = tpu.matmul %7, %8, %cst_8 {dimension_numbers = #tpu.dot_dimension_numbers<[1], [0], [0], [1], [0, 0, 1, 1], [], []>} : vector<8x32xf32>, vector<32x32xf32>, vector<8x32xf32> -> vector<8x32xf32>
    %c0_9 = arith.constant 0 : index
    %c0_10 = arith.constant 0 : index
    %10 = vector.load %arg5[%c0_9, %c0_10] : memref<1x32xf32, #tpu.memory_space<vmem>>, vector<1x32xf32>
    %11 = vector.broadcast %10 : vector<1x32xf32> to vector<8x32xf32>
    %12 = arith.addf %9, %11 : vector<8x32xf32>
    %cst_11 = arith.constant 0.000000e+00 : f32
    %13 = vector.broadcast %cst_11 : f32 to vector<8x32xf32>
    %14 = arith.maximumf %12, %13 : vector<8x32xf32>
    %c0_12 = arith.constant 0 : index
    %c0_13 = arith.constant 0 : index
    %15 = vector.load %arg6[%c0_12, %c0_13] : memref<32x16xf32, #tpu.memory_space<vmem>>, vector<32x16xf32>
    %cst_14 = arith.constant dense<0.000000e+00> : vector<8x16xf32>
    %16 = tpu.matmul %14, %15, %cst_14 {dimension_numbers = #tpu.dot_dimension_numbers<[1], [0], [0], [1], [0, 0, 1, 1], [], []>} : vector<8x32xf32>, vector<32x16xf32>, vector<8x16xf32> -> vector<8x16xf32>
    %c0_15 = arith.constant 0 : index
    %c0_16 = arith.constant 0 : index
    %17 = vector.load %arg7[%c0_15, %c0_16] : memref<1x16xf32, #tpu.memory_space<vmem>>, vector<1x16xf32>
    %18 = vector.broadcast %17 : vector<1x16xf32> to vector<8x16xf32>
    %19 = arith.addf %16, %18 : vector<8x16xf32>
    %c0_17 = arith.constant 0 : index
    %c0_18 = arith.constant 0 : index
    %20 = vector.load %arg8[%c0_17, %c0_18] : memref<8x16xf32, #tpu.memory_space<vmem>>, vector<8x16xf32>
    tpu.vector_store %arg8[%c0_17, %c0_18], %19 {strides = array<i32>} : memref<8x16xf32, #tpu.memory_space<vmem>>, vector<8x16xf32>,
    return
  }
  func.func @transform_0(%arg0: i32) -> (i32, i32) {
    %c0_i32 = arith.constant 0 : i32
    %c0_i32_0 = arith.constant 0 : i32
    %c0_i32_1 = arith.constant 0 : i32
    return %c0_i32, %c0_i32_0 : i32, i32
  }
  func.func @transform_1(%arg0: i32) -> (i32, i32) {
    %c0_i32 = arith.constant 0 : i32
    %c0_i32_0 = arith.constant 0 : i32
    %c0_i32_1 = arith.constant 0 : i32
    return %c0_i32, %c0_i32_0 : i32, i32
  }
  func.func @transform_2(%arg0: i32) -> (i32, i32) {
    %c0_i32 = arith.constant 0 : i32
    %c0_i32_0 = arith.constant 0 : i32
    %c0_i32_1 = arith.constant 0 : i32
    return %c0_i32, %c0_i32_0 : i32, i32
  }
  func.func @transform_3(%arg0: i32) -> (i32, i32) {
    %c0_i32 = arith.constant 0 : i32
    %c0_i32_0 = arith.constant 0 : i32
    %c0_i32_1 = arith.constant 0 : i32
    return %c0_i32, %c0_i32_0 : i32, i32
  }
  func.func @transform_4(%arg0: i32) -> (i32, i32) {
    %c0_i32 = arith.constant 0 : i32
    %c0_i32_0 = arith.constant 0 : i32
    %c0_i32_1 = arith.constant 0 : i32
    return %c0_i32, %c0_i32_0 : i32, i32
  }
  func.func @transform_5(%arg0: i32) -> (i32, i32) {
    %c0_i32 = arith.constant 0 : i32
    %c0_i32_0 = arith.constant 0 : i32
    %c0_i32_1 = arith.constant 0 : i32
    return %c0_i32, %c0_i32_0 : i32, i32
  }
  func.func @transform_6(%arg0: i32) -> (i32, i32) {
    %c0_i32 = arith.constant 0 : i32
    %c0_i32_0 = arith.constant 0 : i32
    %c0_i32_1 = arith.constant 0 : i32
    return %c0_i32, %c0_i32_0 : i32, i32
  }
  func.func @transform_7(%arg0: i32) -> (i32, i32) {
    %c0_i32 = arith.constant 0 : i32
    %c0_i32_0 = arith.constant 0 : i32
    %c0_i32_1 = arith.constant 0 : i32
    return %c0_i32, %c0_i32_0 : i32, i32
  }
}

module attributes {stable_mosaic.version = 11 : i64} {
  func.func @_linear_kernel(%arg0: i32, %arg1: memref<8x32xf32, #tpu.memory_space<vmem>>, %arg2: memref<32x32xf32, #tpu.memory_space<vmem>>, %arg3: memref<1x32xf32, #tpu.memory_space<vmem>>, %arg4: memref<8x32xf32, #tpu.memory_space<vmem>>) attributes {dimension_semantics = [#tpu.dimension_semantics<parallel>], iteration_bounds = array<i64: 1>, scalar_prefetch = 0 : i64, scratch_operands = 0 : i64, tpu.core_type = #tpu.core_type<tc>, window_params = [{transform_indices = @transform_0, window_bounds = array<i64: 8, 32>}, {pipeline_mode = #tpu.pipeline_mode<synchronous>, transform_indices = @transform_1, window_bounds = array<i64: 32, 32>}, {pipeline_mode = #tpu.pipeline_mode<synchronous>, transform_indices = @transform_2, window_bounds = array<i64: 1, 32>}, {transform_indices = @transform_3, window_bounds = array<i64: 8, 32>}]} {
    %c0 = arith.constant 0 : index
    %c0_0 = arith.constant 0 : index
    %0 = vector.load %arg1[%c0, %c0_0] : memref<8x32xf32, #tpu.memory_space<vmem>>, vector<8x32xf32>
    %c0_1 = arith.constant 0 : index
    %c0_2 = arith.constant 0 : index
    %1 = vector.load %arg2[%c0_1, %c0_2] : memref<32x32xf32, #tpu.memory_space<vmem>>, vector<32x32xf32>
    %cst = arith.constant dense<0.000000e+00> : vector<8x32xf32>
    %2 = tpu.matmul %0, %1, %cst {dimension_numbers = #tpu.dot_dimension_numbers<[1], [0], [0], [1], [0, 0, 1, 1], [], []>} : vector<8x32xf32>, vector<32x32xf32>, vector<8x32xf32> -> vector<8x32xf32>
    %c0_3 = arith.constant 0 : index
    %c0_4 = arith.constant 0 : index
    %3 = vector.load %arg3[%c0_3, %c0_4] : memref<1x32xf32, #tpu.memory_space<vmem>>, vector<1x32xf32>
    %4 = vector.broadcast %3 : vector<1x32xf32> to vector<8x32xf32>
    %5 = arith.addf %2, %4 : vector<8x32xf32>
    %c0_5 = arith.constant 0 : index
    %c0_6 = arith.constant 0 : index
    %6 = vector.load %arg4[%c0_5, %c0_6] : memref<8x32xf32, #tpu.memory_space<vmem>>, vector<8x32xf32>
    tpu.vector_store %arg4[%c0_5, %c0_6], %5 {strides = array<i32>} : memref<8x32xf32, #tpu.memory_space<vmem>>, vector<8x32xf32>,
    return
  }
  func.func @transform_0(%arg0: i32) -> (i32, i32) {
    %c0_i32 = arith.constant 0 : i32
    %c0_i32_0 = arith.constant 0 : i32
    return %arg0, %c0_i32 : i32, i32
  }
  func.func @transform_1(%arg0: i32) -> (i32, i32) {
    %c0_i32 = arith.constant 0 : i32
    %c0_i32_0 = arith.constant 0 : i32
    %c0_i32_1 = arith.constant 0 : i32
    return %c0_i32, %c0_i32_0 : i32, i32
  }
  func.func @transform_2(%arg0: i32) -> (i32, i32) {
    %c0_i32 = arith.constant 0 : i32
    %c0_i32_0 = arith.constant 0 : i32
    %c0_i32_1 = arith.constant 0 : i32
    return %c0_i32, %c0_i32_0 : i32, i32
  }
  func.func @transform_3(%arg0: i32) -> (i32, i32) {
    %c0_i32 = arith.constant 0 : i32
    %c0_i32_0 = arith.constant 0 : i32
    return %arg0, %c0_i32 : i32, i32
  }
}

module attributes {stable_mosaic.version = 11 : i64} {
  func.func @_linear_kernel(%arg0: i32, %arg1: memref<32x32xf32, #tpu.memory_space<vmem>>, %arg2: memref<32x32xf32, #tpu.memory_space<vmem>>, %arg3: memref<1x32xf32, #tpu.memory_space<vmem>>, %arg4: memref<32x32xf32, #tpu.memory_space<vmem>>) attributes {dimension_semantics = [#tpu.dimension_semantics<parallel>], iteration_bounds = array<i64: 1>, scalar_prefetch = 0 : i64, scratch_operands = 0 : i64, tpu.core_type = #tpu.core_type<tc>, window_params = [{transform_indices = @transform_0, window_bounds = array<i64: 32, 32>}, {pipeline_mode = #tpu.pipeline_mode<synchronous>, transform_indices = @transform_1, window_bounds = array<i64: 32, 32>}, {pipeline_mode = #tpu.pipeline_mode<synchronous>, transform_indices = @transform_2, window_bounds = array<i64: 1, 32>}, {transform_indices = @transform_3, window_bounds = array<i64: 32, 32>}]} {
    %c0 = arith.constant 0 : index
    %c0_0 = arith.constant 0 : index
    %0 = vector.load %arg1[%c0, %c0_0] : memref<32x32xf32, #tpu.memory_space<vmem>>, vector<32x32xf32>
    %c0_1 = arith.constant 0 : index
    %c0_2 = arith.constant 0 : index
    %1 = vector.load %arg2[%c0_1, %c0_2] : memref<32x32xf32, #tpu.memory_space<vmem>>, vector<32x32xf32>
    %cst = arith.constant dense<0.000000e+00> : vector<32x32xf32>
    %2 = tpu.matmul %0, %1, %cst {dimension_numbers = #tpu.dot_dimension_numbers<[1], [0], [0], [1], [0, 0, 1, 1], [], []>} : vector<32x32xf32>, vector<32x32xf32>, vector<32x32xf32> -> vector<32x32xf32>
    %c0_3 = arith.constant 0 : index
    %c0_4 = arith.constant 0 : index
    %3 = vector.load %arg3[%c0_3, %c0_4] : memref<1x32xf32, #tpu.memory_space<vmem>>, vector<1x32xf32>
    %4 = vector.broadcast %3 : vector<1x32xf32> to vector<32x32xf32>
    %5 = arith.addf %2, %4 : vector<32x32xf32>
    %c0_5 = arith.constant 0 : index
    %c0_6 = arith.constant 0 : index
    %6 = vector.load %arg4[%c0_5, %c0_6] : memref<32x32xf32, #tpu.memory_space<vmem>>, vector<32x32xf32>
    tpu.vector_store %arg4[%c0_5, %c0_6], %5 {strides = array<i32>} : memref<32x32xf32, #tpu.memory_space<vmem>>, vector<32x32xf32>,
    return
  }
  func.func @transform_0(%arg0: i32) -> (i32, i32) {
    %c0_i32 = arith.constant 0 : i32
    %c0_i32_0 = arith.constant 0 : i32
    return %arg0, %c0_i32 : i32, i32
  }
  func.func @transform_1(%arg0: i32) -> (i32, i32) {
    %c0_i32 = arith.constant 0 : i32
    %c0_i32_0 = arith.constant 0 : i32
    %c0_i32_1 = arith.constant 0 : i32
    return %c0_i32, %c0_i32_0 : i32, i32
  }
  func.func @transform_2(%arg0: i32) -> (i32, i32) {
    %c0_i32 = arith.constant 0 : i32
    %c0_i32_0 = arith.constant 0 : i32
    %c0_i32_1 = arith.constant 0 : i32
    return %c0_i32, %c0_i32_0 : i32, i32
  }
  func.func @transform_3(%arg0: i32) -> (i32, i32) {
    %c0_i32 = arith.constant 0 : i32
    %c0_i32_0 = arith.constant 0 : i32
    return %arg0, %c0_i32 : i32, i32
  }
}

</mosaic_0001>

<llo_original>
// kernel: _ssa_core.18
$region0: #{_ssa_core.18}
  #allocation0 [shape = 'u32[]', space=smem, size = 0x4, offset = 0x4, fixed_abs, tag = 'smem constant byte address 0x4 - core index']
  #allocation1 [shape = 'u32[144,128]{1,0:T(1,128)}', space=vmem, size = 0x12000, scoped, tag = 'internal scratch']
  %s0 = inlined_call_operand.vmem [shape: f32[32,160], index: 0, kind: input, shape index: {}]
  %s1 = inlined_call_operand.vmem [shape: f32[160,32], index: 1, kind: input, shape index: {}]
  %s2 = inlined_call_operand.vmem [shape: f32[1,32], index: 2, kind: input, shape index: {}]
  %s3 = inlined_call_operand.vmem [shape: f32[32,32], index: 3, kind: output, shape index: {}]
  %s4 = sld [smem:[#allocation0]]
  $region22: #{_ssa_core.18} parent=0
    _
  %s6 = ssub.s32 1, %s4
  %s7 = scalar_select 0, %s6, %s4
  // Predicated region
  $region2: #{_ssa_core.18} parent=0 // pred_check
    _
  $region3: #{_ssa_core.18} parent=0 // pred_check_branch
    %9 = sbr.rel (0) target = $region5
  $region4: #{_ssa_core.18} parent=0 // pred_region
    _
  $region5: #{_ssa_core.18} parent=0 // pred_fallthru
    _
  // Predicated region
  $region6: #{_ssa_core.18} parent=0 // pred_check
    _
  $region7: #{_ssa_core.18} parent=0 // pred_check_branch
    %11 = sbr.rel (0) target = $region9
  $region8: #{_ssa_core.18} parent=0 // pred_region
    _
  $region9: #{_ssa_core.18} parent=0 // pred_fallthru
    _
  // Predicated region
  $region10: #{_ssa_core.18} parent=0 // pred_check
    _
  $region11: #{_ssa_core.18} parent=0 // pred_check_branch
    %13 = sbr.rel (0) target = $region13
  $region12: #{_ssa_core.18} parent=0 // pred_region
    _
  $region13: #{_ssa_core.18} parent=0 // pred_fallthru
    _
  %v14 = vld [vmem:[%s0] sm:$0xff]
  %v15 = vld [vmem:[%s0 + $0x8] sm:$0xff]
  %v16 = vld [vmem:[%s0 + $0x10] sm:$0xff]
  %v17 = vld [vmem:[%s0 + $0x18] sm:$0xff]
  %v18 = vld [vmem:[%s0 + $0x20] sm:$0xff]
  %v19 = vld [vmem:[%s0 + $0x28] sm:$0xff]
  %v20 = vld [vmem:[%s0 + $0x30] sm:$0xff]
  %v21 = vld [vmem:[%s0 + $0x38] sm:$0xff]
  %v22 = vld [vmem:[%s1] sm:$0xff]
  %v23 = vld [vmem:[%s1 + $0x8] sm:$0xff]
  %v24 = vld [vmem:[%s1 + $0x10] sm:$0xff]
  %v25 = vld [vmem:[%s1 + $0x18] sm:$0xff]
  %v26 = vld [vmem:[%s1 + $0x20] sm:$0xff]
  %v27 = vld [vmem:[%s1 + $0x28] sm:$0xff]
  %v28 = vld [vmem:[%s1 + $0x30] sm:$0xff]
  %v29 = vld [vmem:[%s1 + $0x38] sm:$0xff]
  %v30 = vld [vmem:[%s1 + $0x40] sm:$0xff]
  %v31 = vld [vmem:[%s1 + $0x48] sm:$0xff]
  %v32 = vld [vmem:[%s1 + $0x50] sm:$0xff]
  %v33 = vld [vmem:[%s1 + $0x58] sm:$0xff]
  %v34 = vld [vmem:[%s1 + $0x60] sm:$0xff]
  %v35 = vld [vmem:[%s1 + $0x68] sm:$0xff]
  %v36 = vld [vmem:[%s1 + $0x70] sm:$0xff]
  %v37 = vld [vmem:[%s1 + $0x78] sm:$0xff]
  %v38 = vld [vmem:[%s1 + $0x80] sm:$0xff]
  %v39 = vld [vmem:[%s1 + $0x88] sm:$0xff]
  %v40 = vld [vmem:[%s1 + $0x90] sm:$0xff]
  %v41 = vld [vmem:[%s1 + $0x98] sm:$0xff]
  %v42 = vld [vmem:[%s2] sm:$0x1]
  %v44 = vlaneseq
  %v45 = vshrl.u32 %v44, 7
  %v46 = vsub.s32 0, %v45
  %v47 = vrot.slane %v42, %v46
  %vm49 = vcmask 261120
  %v51 = vsel %vm49, %v15, 0
  %v54 = vsel %vm49, %v17, 0
  %v57 = vsel %vm49, %v19, 0
  %v60 = vsel %vm49, %v21, 0
  %62 = vmatprep.subr.mxu0 0.0
  %63 = vmatpush1.msra.mxu0 %v22
  %64 = vmatprep.subr.mxu0 0.0
  %65 = vmatpush1.msra.mxu0 %v23
  %66 = vmatprep.subr.mxu0 0.0
  %67 = vmatpush1.msra.mxu0 %v24
  %68 = vmatprep.subr.mxu0 0.0
  %69 = vmatpush1.msra.mxu0 %v25
  %70 = vmatprep.subr.mxu0 0.0
  %71 = vmatpush1.msra.mxu0 %v26
  %72 = vmatprep.subr.mxu0 0.0
  %73 = vmatpush1.msra.mxu0 %v27
  %74 = vmatprep.subr.mxu0 0.0
  %75 = vmatpush1.msra.mxu0 %v28
  %76 = vmatprep.subr.mxu0 0.0
  %77 = vmatpush1.msra.mxu0 %v29
  %78 = vmatprep.subr.mxu0 0.0
  %79 = vmatpush1.msra.mxu0 %v30
  %80 = vmatprep.subr.mxu0 0.0
  %81 = vmatpush1.msra.mxu0 %v31
  %82 = vmatprep.subr.mxu0 0.0
  %83 = vmatpush1.msra.mxu0 %v32
  %84 = vmatprep.subr.mxu0 0.0
  %85 = vmatpush1.msra.mxu0 %v33
  %86 = vmatprep.subr.mxu0 0.0
  %87 = vmatpush1.msra.mxu0 %v34
  %88 = vmatprep.subr.mxu0 0.0
  %89 = vmatpush1.msra.mxu0 %v35
  %90 = vmatprep.subr.mxu0 0.0
  %91 = vmatpush1.msra.mxu0 %v36
  %92 = vmatprep.subr.mxu0 0.0
  %93 = vmatpush1.msra.mxu0 %v37
  %94 = vmatprep.subr.mxu0 0.0
  %95 = vmatpush1.msra.mxu0 %v38
  %96 = vmatprep.subr.mxu0 0.0
  %97 = vmatpush1.msra.mxu0 %v39
  %98 = vmatprep.subr.mxu0 0.0
  %99 = vmatpush1.msra.mxu0 %v40
  %100 = vmatprep.subr.mxu0 0.0
  %101 = vmatpush1.msra.mxu0 %v41
  %102 = vmatprep.subr.mxu0 0.0
  %103 = vmatpush1.msra.mxu0 0.0
  %104 = vmatprep.subr.mxu0 0.0
  %105 = vmatpush1.msra.mxu0 0.0
  %106 = vmatprep.subr.mxu0 0.0
  %107 = vmatpush1.msra.mxu0 0.0
  %108 = vmatprep.subr.mxu0 0.0
  %109 = vmatpush1.msra.mxu0 0.0
  %110 = vmatprep.subr.mxu0 0.0
  %111 = vmatpush1.msra.mxu0 0.0
  %112 = vmatprep.subr.mxu0 0.0
  %113 = vmatpush1.msra.mxu0 0.0
  %114 = vmatprep.subr.mxu0 0.0
  %115 = vmatpush1.msra.mxu0 0.0
  %116 = vmatprep.subr.mxu0 0.0
  %117 = vmatpush1.msra.mxu0 0.0
  %118 = vmatprep.subr.mxu0 0.0
  %119 = vmatpush1.msra.mxu0 0.0
  %120 = vmatprep.subr.mxu0 0.0
  %121 = vmatpush1.msra.mxu0 0.0
  %122 = vmatprep.subr.mxu0 0.0
  %123 = vmatpush1.msra.mxu0 0.0
  %124 = vmatprep.subr.mxu0 0.0
  %125 = vmatpush1.msra.mxu0 0.0
  %126 = vmatprep.mubr.f32.mxu0 %v51
  %127 = vmatmul.mubr.f32.gmra.mrb[0].mxu0 %v14
  %v128 = vpop.f32.mrb[0].mxu0
  %v129 = vadd.f32 %v47, %v128
  %v130 = vpop.f32.mrb[0].mxu0
  %131 = vmatprep.mubr.f32.mxu0 %v54
  %132 = vmatmul.mubr.f32.gmra.mrb[0].mxu0 %v16
  %v133 = vpop.f32.mrb[0].mxu0
  %v134 = vadd.f32 %v47, %v133
  %v135 = vpop.f32.mrb[0].mxu0
  %136 = vmatprep.mubr.f32.mxu0 %v57
  %137 = vmatmul.mubr.f32.gmra.mrb[0].mxu0 %v18
  %v138 = vpop.f32.mrb[0].mxu0
  %v139 = vadd.f32 %v47, %v138
  %v140 = vpop.f32.mrb[0].mxu0
  %141 = vmatprep.mubr.f32.mxu0 %v60
  %142 = vmatmul.mubr.f32.gmra.mrb[0].mxu0 %v20
  %v143 = vpop.f32.mrb[0].mxu0
  %v144 = vadd.f32 %v47, %v143
  %v145 = vpop.f32.mrb[0].mxu0
  %146 = vdwg.mxu0
  %v147 = vmax.f32 %v129, 0.0
  %v148 = vmax.f32 %v134, 0.0
  %v149 = vmax.f32 %v139, 0.0
  %v150 = vmax.f32 %v144, 0.0
  %151 = vst.msk [vmem:[%s3] sm:$0xff] %vm49, %v147
  %152 = vst.msk [vmem:[%s3 + $0x8] sm:$0xff] %vm49, %v148
  %153 = vst.msk [vmem:[%s3 + $0x10] sm:$0xff] %vm49, %v149
  %154 = vst.msk [vmem:[%s3 + $0x18] sm:$0xff] %vm49, %v150
  // Predicated region
  $region14: #{_ssa_core.18} parent=0 // pred_check
    _
  $region15: #{_ssa_core.18} parent=0 // pred_check_branch
    %156 = sbr.rel (0) target = $region17
  $region16: #{_ssa_core.18} parent=0 // pred_region
    _
  $region17: #{_ssa_core.18} parent=0 // pred_fallthru
    _
  // Predicated region
  $region18: #{_ssa_core.18} parent=0 // pred_check
    _
  $region19: #{_ssa_core.18} parent=0 // pred_check_branch
    %158 = sbr.rel (0) target = $region21
  $region20: #{_ssa_core.18} parent=0 // pred_region
    _
  $region21: #{_ssa_core.18} parent=0 // pred_fallthru
    _

// kernel: _ssa_core.20
$region0: #{_ssa_core.20}
  #allocation0 [shape = 'u32[]', space=smem, size = 0x4, offset = 0x4, fixed_abs, tag = 'smem constant byte address 0x4 - core index']
  #allocation1 [shape = 'u32[144,128]{1,0:T(1,128)}', space=vmem, size = 0x12000, scoped, tag = 'internal scratch']
  %s0 = inlined_call_operand.vmem [shape: f32[32,32], index: 0, kind: input, shape index: {}]
  %s1 = inlined_call_operand.vmem [shape: f32[32,32], index: 1, kind: input, shape index: {}]
  %s2 = inlined_call_operand.vmem [shape: f32[1,32], index: 2, kind: input, shape index: {}]
  %s3 = inlined_call_operand.vmem [shape: f32[1,32], index: 3, kind: input, shape index: {}]
  %s4 = inlined_call_operand.vmem [shape: f32[32,32], index: 4, kind: output, shape index: {}]
  %s5 = sld [smem:[#allocation0]]
  $region26: #{_ssa_core.20} parent=0
    _
  %s7 = ssub.s32 1, %s5
  %s8 = scalar_select 0, %s7, %s5
  // Predicated region
  $region2: #{_ssa_core.20} parent=0 // pred_check
    _
  $region3: #{_ssa_core.20} parent=0 // pred_check_branch
    %10 = sbr.rel (0) target = $region5
  $region4: #{_ssa_core.20} parent=0 // pred_region
    _
  $region5: #{_ssa_core.20} parent=0 // pred_fallthru
    _
  // Predicated region
  $region6: #{_ssa_core.20} parent=0 // pred_check
    _
  $region7: #{_ssa_core.20} parent=0 // pred_check_branch
    %12 = sbr.rel (0) target = $region9
  $region8: #{_ssa_core.20} parent=0 // pred_region
    _
  $region9: #{_ssa_core.20} parent=0 // pred_fallthru
    _
  // Predicated region
  $region10: #{_ssa_core.20} parent=0 // pred_check
    _
  $region11: #{_ssa_core.20} parent=0 // pred_check_branch
    %14 = sbr.rel (0) target = $region13
  $region12: #{_ssa_core.20} parent=0 // pred_region
    _
  $region13: #{_ssa_core.20} parent=0 // pred_fallthru
    _
  // Predicated region
  $region14: #{_ssa_core.20} parent=0 // pred_check
    _
  $region15: #{_ssa_core.20} parent=0 // pred_check_branch
    %16 = sbr.rel (0) target = $region17
  $region16: #{_ssa_core.20} parent=0 // pred_region
    _
  $region17: #{_ssa_core.20} parent=0 // pred_fallthru
    _
  %v17 = vld [vmem:[%s0] sm:$0xff]
  %v18 = vld [vmem:[%s0 + $0x8] sm:$0xff]
  %v19 = vld [vmem:[%s0 + $0x10] sm:$0xff]
  %v20 = vld [vmem:[%s0 + $0x18] sm:$0xff]
  %v21 = vld [vmem:[%s1] sm:$0xff]
  %v22 = vld [vmem:[%s1 + $0x8] sm:$0xff]
  %v23 = vld [vmem:[%s1 + $0x10] sm:$0xff]
  %v24 = vld [vmem:[%s1 + $0x18] sm:$0xff]
  %v25 = vadd.f32 %v17, %v21
  %v26 = vadd.f32 %v18, %v22
  %v27 = vadd.f32 %v19, %v23
  %v28 = vadd.f32 %v20, %v24
  %vm29 = vcmask 261120
  %v30 = vsel %vm29, %v25, 0.0
  %31 = vadd.xlane.f32.xlu0 %v30
  %v32 = vpop.xlane.xlu0 %31
  %v33 = vsel %vm29, %v26, 0.0
  %34 = vadd.xlane.f32.xlu0 %v33
  %v35 = vpop.xlane.xlu0 %34
  %v36 = vsel %vm29, %v27, 0.0
  %37 = vadd.xlane.f32.xlu0 %v36
  %v38 = vpop.xlane.xlu0 %37
  %v39 = vsel %vm29, %v28, 0.0
  %40 = vadd.xlane.f32.xlu0 %v39
  %v41 = vpop.xlane.xlu0 %40
  %v42 = vrcp.pop 32.0
  %v43 = vmul.f32 %v32, %v42
  %v44 = vmul.f32 %v35, %v42
  %v45 = vmul.f32 %v38, %v42
  %v46 = vmul.f32 %v41, %v42
  %v47 = vsub.f32 %v25, %v43
  %v48 = vsub.f32 %v26, %v44
  %v49 = vsub.f32 %v27, %v45
  %v50 = vsub.f32 %v28, %v46
  %v51 = vmul.f32 %v47, %v47
  %v52 = vmul.f32 %v48, %v48
  %v53 = vmul.f32 %v49, %v49
  %v54 = vmul.f32 %v50, %v50
  %v55 = vsel %vm29, %v51, 0.0
  %56 = vadd.xlane.f32.xlu0 %v55
  %v57 = vpop.xlane.xlu0 %56
  %v58 = vsel %vm29, %v52, 0.0
  %59 = vadd.xlane.f32.xlu0 %v58
  %v60 = vpop.xlane.xlu0 %59
  %v61 = vsel %vm29, %v53, 0.0
  %62 = vadd.xlane.f32.xlu0 %v61
  %v63 = vpop.xlane.xlu0 %62
  %v64 = vsel %vm29, %v54, 0.0
  %65 = vadd.xlane.f32.xlu0 %v64
  %v66 = vpop.xlane.xlu0 %65
  %v67 = vmul.f32 %v57, %v42
  %v68 = vmul.f32 %v60, %v42
  %v69 = vmul.f32 %v63, %v42
  %v70 = vmul.f32 %v66, %v42
  %v71 = vadd.f32 %v67, 1e-05
  %v72 = vadd.f32 %v68, 1e-05
  %v73 = vadd.f32 %v69, 1e-05
  %v74 = vadd.f32 %v70, 1e-05
  %v75 = vrsqrt.pop %v71
  %v76 = vrsqrt.pop %v72
  %v77 = vrsqrt.pop %v73
  %v78 = vrsqrt.pop %v74
  %v79 = vmul.f32 %v47, %v75
  %v80 = vmul.f32 %v48, %v76
  %v81 = vmul.f32 %v49, %v77
  %v82 = vmul.f32 %v50, %v78
  %v83 = vld [vmem:[%s2] sm:$0x1]
  %v85 = vlaneseq
  %v86 = vshrl.u32 %v85, 7
  %v87 = vsub.s32 0, %v86
  %v88 = vrot.slane %v83, %v87
  %v90 = vmul.f32 %v79, %v88
  %v91 = vmul.f32 %v80, %v88
  %v92 = vmul.f32 %v81, %v88
  %v93 = vmul.f32 %v82, %v88
  %v94 = vld [vmem:[%s3] sm:$0x1]
  %v96 = vlaneseq
  %v97 = vshrl.u32 %v96, 7
  %v98 = vsub.s32 0, %v97
  %v99 = vrot.slane %v94, %v98
  %v101 = vadd.f32 %v90, %v99
  %v102 = vadd.f32 %v91, %v99
  %v103 = vadd.f32 %v92, %v99
  %v104 = vadd.f32 %v93, %v99
  %105 = vst.msk [vmem:[%s4] sm:$0xff] %vm29, %v101
  %106 = vst.msk [vmem:[%s4 + $0x8] sm:$0xff] %vm29, %v102
  %107 = vst.msk [vmem:[%s4 + $0x10] sm:$0xff] %vm29, %v103
  %108 = vst.msk [vmem:[%s4 + $0x18] sm:$0xff] %vm29, %v104
  // Predicated region
  $region18: #{_ssa_core.20} parent=0 // pred_check
    _
  $region19: #{_ssa_core.20} parent=0 // pred_check_branch
    %110 = sbr.rel (0) target = $region21
  $region20: #{_ssa_core.20} parent=0 // pred_region
    _
  $region21: #{_ssa_core.20} parent=0 // pred_fallthru
    _
  // Predicated region
  $region22: #{_ssa_core.20} parent=0 // pred_check
    _
  $region23: #{_ssa_core.20} parent=0 // pred_check_branch
    %112 = sbr.rel (0) target = $region25
  $region24: #{_ssa_core.20} parent=0 // pred_region
    _
  $region25: #{_ssa_core.20} parent=0 // pred_fallthru
    _

// kernel: _ssa_core.19
$region0: #{_ssa_core.19}
  #allocation0 [shape = 'u32[]', space=smem, size = 0x4, offset = 0x4, fixed_abs, tag = 'smem constant byte address 0x4 - core index']
  #allocation1 [shape = 'u32[144,128]{1,0:T(1,128)}', space=vmem, size = 0x12000, scoped, tag = 'internal scratch']
  %s0 = inlined_call_operand.vmem [shape: f32[32,96], index: 0, kind: input, shape index: {}]
  %s1 = inlined_call_operand.vmem [shape: f32[96,32], index: 1, kind: input, shape index: {}]
  %s2 = inlined_call_operand.vmem [shape: f32[1,32], index: 2, kind: input, shape index: {}]
  %s3 = inlined_call_operand.vmem [shape: f32[32,32], index: 3, kind: output, shape index: {}]
  %s4 = sld [smem:[#allocation0]]
  $region22: #{_ssa_core.19} parent=0
    _
  %s6 = ssub.s32 1, %s4
  %s7 = scalar_select 0, %s6, %s4
  // Predicated region
  $region2: #{_ssa_core.19} parent=0 // pred_check
    _
  $region3: #{_ssa_core.19} parent=0 // pred_check_branch
    %9 = sbr.rel (0) target = $region5
  $region4: #{_ssa_core.19} parent=0 // pred_region
    _
  $region5: #{_ssa_core.19} parent=0 // pred_fallthru
    _
  // Predicated region
  $region6: #{_ssa_core.19} parent=0 // pred_check
    _
  $region7: #{_ssa_core.19} parent=0 // pred_check_branch
    %11 = sbr.rel (0) target = $region9
  $region8: #{_ssa_core.19} parent=0 // pred_region
    _
  $region9: #{_ssa_core.19} parent=0 // pred_fallthru
    _
  // Predicated region
  $region10: #{_ssa_core.19} parent=0 // pred_check
    _
  $region11: #{_ssa_core.19} parent=0 // pred_check_branch
    %13 = sbr.rel (0) target = $region13
  $region12: #{_ssa_core.19} parent=0 // pred_region
    _
  $region13: #{_ssa_core.19} parent=0 // pred_fallthru
    _
  %v14 = vld [vmem:[%s0] sm:$0xff]
  %v15 = vld [vmem:[%s0 + $0x8] sm:$0xff]
  %v16 = vld [vmem:[%s0 + $0x10] sm:$0xff]
  %v17 = vld [vmem:[%s0 + $0x18] sm:$0xff]
  %v18 = vld [vmem:[%s1] sm:$0xff]
  %v19 = vld [vmem:[%s1 + $0x8] sm:$0xff]
  %v20 = vld [vmem:[%s1 + $0x10] sm:$0xff]
  %v21 = vld [vmem:[%s1 + $0x18] sm:$0xff]
  %v22 = vld [vmem:[%s1 + $0x20] sm:$0xff]
  %v23 = vld [vmem:[%s1 + $0x28] sm:$0xff]
  %v24 = vld [vmem:[%s1 + $0x30] sm:$0xff]
  %v25 = vld [vmem:[%s1 + $0x38] sm:$0xff]
  %v26 = vld [vmem:[%s1 + $0x40] sm:$0xff]
  %v27 = vld [vmem:[%s1 + $0x48] sm:$0xff]
  %v28 = vld [vmem:[%s1 + $0x50] sm:$0xff]
  %v29 = vld [vmem:[%s1 + $0x58] sm:$0xff]
  %v30 = vld [vmem:[%s2] sm:$0x1]
  %v32 = vlaneseq
  %v33 = vshrl.u32 %v32, 7
  %v34 = vsub.s32 0, %v33
  %v35 = vrot.slane %v30, %v34
  %vm37 = vcmask 785408
  %v39 = vsel %vm37, %v14, 0
  %v42 = vsel %vm37, %v15, 0
  %v45 = vsel %vm37, %v16, 0
  %v48 = vsel %vm37, %v17, 0
  %50 = vmatprep.subr.mxu0 0.0
  %51 = vmatpush1.msra.mxu0 %v18
  %52 = vmatprep.subr.mxu0 0.0
  %53 = vmatpush1.msra.mxu0 %v19
  %54 = vmatprep.subr.mxu0 0.0
  %55 = vmatpush1.msra.mxu0 %v20
  %56 = vmatprep.subr.mxu0 0.0
  %57 = vmatpush1.msra.mxu0 %v21
  %58 = vmatprep.subr.mxu0 0.0
  %59 = vmatpush1.msra.mxu0 %v22
  %60 = vmatprep.subr.mxu0 0.0
  %61 = vmatpush1.msra.mxu0 %v23
  %62 = vmatprep.subr.mxu0 0.0
  %63 = vmatpush1.msra.mxu0 %v24
  %64 = vmatprep.subr.mxu0 0.0
  %65 = vmatpush1.msra.mxu0 %v25
  %66 = vmatprep.subr.mxu0 0.0
  %67 = vmatpush1.msra.mxu0 %v26
  %68 = vmatprep.subr.mxu0 0.0
  %69 = vmatpush1.msra.mxu0 %v27
  %70 = vmatprep.subr.mxu0 0.0
  %71 = vmatpush1.msra.mxu0 %v28
  %72 = vmatprep.subr.mxu0 0.0
  %73 = vmatpush1.msra.mxu0 %v29
  %74 = vmatprep.subr.mxu0 0.0
  %75 = vmatpush1.msra.mxu0 0.0
  %76 = vmatprep.subr.mxu0 0.0
  %77 = vmatpush1.msra.mxu0 0.0
  %78 = vmatprep.subr.mxu0 0.0
  %79 = vmatpush1.msra.mxu0 0.0
  %80 = vmatprep.subr.mxu0 0.0
  %81 = vmatpush1.msra.mxu0 0.0
  %82 = vmatprep.subr.mxu0 0.0
  %83 = vmatpush1.msra.mxu0 0.0
  %84 = vmatprep.subr.mxu0 0.0
  %85 = vmatpush1.msra.mxu0 0.0
  %86 = vmatprep.subr.mxu0 0.0
  %87 = vmatpush1.msra.mxu0 0.0
  %88 = vmatprep.subr.mxu0 0.0
  %89 = vmatpush1.msra.mxu0 0.0
  %90 = vmatprep.subr.mxu0 0.0
  %91 = vmatpush1.msra.mxu0 0.0
  %92 = vmatprep.subr.mxu0 0.0
  %93 = vmatpush1.msra.mxu0 0.0
  %94 = vmatprep.subr.mxu0 0.0
  %95 = vmatpush1.msra.mxu0 0.0
  %96 = vmatprep.subr.mxu0 0.0
  %97 = vmatpush1.msra.mxu0 0.0
  %98 = vmatprep.subr.mxu0 0.0
  %99 = vmatpush1.msra.mxu0 0.0
  %100 = vmatprep.subr.mxu0 0.0
  %101 = vmatpush1.msra.mxu0 0.0
  %102 = vmatprep.subr.mxu0 0.0
  %103 = vmatpush1.msra.mxu0 0.0
  %104 = vmatprep.subr.mxu0 0.0
  %105 = vmatpush1.msra.mxu0 0.0
  %106 = vmatprep.subr.mxu0 0.0
  %107 = vmatpush1.msra.mxu0 0.0
  %108 = vmatprep.subr.mxu0 0.0
  %109 = vmatpush1.msra.mxu0 0.0
  %110 = vmatprep.subr.mxu0 0.0
  %111 = vmatpush1.msra.mxu0 0.0
  %112 = vmatprep.subr.mxu0 0.0
  %113 = vmatpush1.msra.mxu0 0.0
  %114 = vmatprep.mubr.f32.mxu0 0.0
  %115 = vmatmul.mubr.f32.gmra.mrb[0].mxu0 %v39
  %v116 = vpop.f32.mrb[0].mxu0
  %v117 = vadd.f32 %v35, %v116
  %v118 = vpop.f32.mrb[0].mxu0
  %119 = vmatprep.mubr.f32.mxu0 0.0
  %120 = vmatmul.mubr.f32.gmra.mrb[0].mxu0 %v42
  %v121 = vpop.f32.mrb[0].mxu0
  %v122 = vadd.f32 %v35, %v121
  %v123 = vpop.f32.mrb[0].mxu0
  %124 = vmatprep.mubr.f32.mxu0 0.0
  %125 = vmatmul.mubr.f32.gmra.mrb[0].mxu0 %v45
  %v126 = vpop.f32.mrb[0].mxu0
  %v127 = vadd.f32 %v35, %v126
  %v128 = vpop.f32.mrb[0].mxu0
  %129 = vmatprep.mubr.f32.mxu0 0.0
  %130 = vmatmul.mubr.f32.gmra.mrb[0].mxu0 %v48
  %v131 = vpop.f32.mrb[0].mxu0
  %v132 = vadd.f32 %v35, %v131
  %v133 = vpop.f32.mrb[0].mxu0
  %134 = vdwg.mxu0
  %vm135 = vcmask 261120
  %136 = vst.msk [vmem:[%s3] sm:$0xff] %vm135, %v117
  %137 = vst.msk [vmem:[%s3 + $0x8] sm:$0xff] %vm135, %v122
  %138 = vst.msk [vmem:[%s3 + $0x10] sm:$0xff] %vm135, %v127
  %139 = vst.msk [vmem:[%s3 + $0x18] sm:$0xff] %vm135, %v132
  // Predicated region
  $region14: #{_ssa_core.19} parent=0 // pred_check
    _
  $region15: #{_ssa_core.19} parent=0 // pred_check_branch
    %141 = sbr.rel (0) target = $region17
  $region16: #{_ssa_core.19} parent=0 // pred_region
    _
  $region17: #{_ssa_core.19} parent=0 // pred_fallthru
    _
  // Predicated region
  $region18: #{_ssa_core.19} parent=0 // pred_check
    _
  $region19: #{_ssa_core.19} parent=0 // pred_check_branch
    %143 = sbr.rel (0) target = $region21
  $region20: #{_ssa_core.19} parent=0 // pred_region
    _
  $region21: #{_ssa_core.19} parent=0 // pred_fallthru
    _

// kernel: _ssa_core.22
$region0: #{_ssa_core.22}
  #allocation0 [shape = 'u32[]', space=smem, size = 0x4, offset = 0x4, fixed_abs, tag = 'smem constant byte address 0x4 - core index']
  #allocation1 [shape = 'u32[144,128]{1,0:T(1,128)}', space=vmem, size = 0x12000, scoped, tag = 'internal scratch']
  #allocation2 [shape = 'f32[1,1]{1,0:T(1,128)S(1)}', space=vmem, size = 0x200, scoped, tag = 'scoped memory for _ssa_core.22']
  %s0 = inlined_call_operand.vmem [shape: f32[4,8,32], index: 0, kind: input, shape index: {}]
  %s1 = inlined_call_operand.vmem [shape: f32[1,32], index: 1, kind: input, shape index: {}]
  %s2 = inlined_call_operand.<no memory space> [shape: f32[1,1], index: 2, kind: input, shape index: {}]
  %s3 = inlined_call_operand.vmem [shape: f32[8,32], index: 3, kind: output, shape index: {}]
  %s4 = sld [smem:[#allocation0]]
  $region22: #{_ssa_core.22} parent=0
    _
  %s6 = ssub.s32 1, %s4
  %s7 = scalar_select 0, %s6, %s4
  %v8 = vstv %s2
  %9 = vst [vmem:[#allocation2] sm:$0x1] %v8
  // Predicated region
  $region2: #{_ssa_core.22} parent=0 // pred_check
    _
  $region3: #{_ssa_core.22} parent=0 // pred_check_branch
    %11 = sbr.rel (0) target = $region5
  $region4: #{_ssa_core.22} parent=0 // pred_region
    _
  $region5: #{_ssa_core.22} parent=0 // pred_fallthru
    _
  // Predicated region
  $region6: #{_ssa_core.22} parent=0 // pred_check
    _
  $region7: #{_ssa_core.22} parent=0 // pred_check_branch
    %13 = sbr.rel (0) target = $region9
  $region8: #{_ssa_core.22} parent=0 // pred_region
    _
  $region9: #{_ssa_core.22} parent=0 // pred_fallthru
    _
  // Predicated region
  $region10: #{_ssa_core.22} parent=0 // pred_check
    _
  $region11: #{_ssa_core.22} parent=0 // pred_check_branch
    %15 = sbr.rel (0) target = $region13
  $region12: #{_ssa_core.22} parent=0 // pred_region
    _
  $region13: #{_ssa_core.22} parent=0 // pred_fallthru
    _
  %v16 = vld [vmem:[%s0] sm:$0xff]
  %v17 = vld [vmem:[%s0 + $0x8] sm:$0xff]
  %v18 = vld [vmem:[%s0 + $0x10] sm:$0xff]
  %v19 = vld [vmem:[%s0 + $0x18] sm:$0xff]
  %v20 = vld [vmem:[%s1] sm:$0x1]
  %v22 = vlaneseq
  %v23 = vshrl.u32 %v22, 7
  %v24 = vsub.s32 0, %v23
  %v25 = vrot.slane %v20, %v24
  %v27 = vmul.f32 %v16, %v25
  %v28 = vmul.f32 %v17, %v25
  %v29 = vmul.f32 %v18, %v25
  %v30 = vmul.f32 %v19, %v25
  %vm31 = vcmask 261120
  %v32 = vsel %vm31, %v27, 0.0
  %33 = vadd.xlane.f32.xlu0 %v32
  %v34 = vpop.xlane.xlu0 %33
  %v35 = vsel %vm31, %v28, 0.0
  %36 = vadd.xlane.f32.xlu0 %v35
  %v37 = vpop.xlane.xlu0 %36
  %v38 = vsel %vm31, %v29, 0.0
  %39 = vadd.xlane.f32.xlu0 %v38
  %v40 = vpop.xlane.xlu0 %39
  %v41 = vsel %vm31, %v30, 0.0
  %42 = vadd.xlane.f32.xlu0 %v41
  %v43 = vpop.xlane.xlu0 %42
  %v44 = vld [vmem:[#allocation2] sm:$0x1]
  %v46 = vlaneseq
  %v47 = vshrl.u32 %v46, 7
  %v48 = vsub.s32 0, %v47
  %v49 = vrot.slane %v44, %v48
  %v51 = vadd.f32 %v34, %v49
  %v52 = vadd.f32 %v37, %v49
  %v53 = vadd.f32 %v40, %v49
  %v54 = vadd.f32 %v43, %v49
  %vm55 = vcmask 7168
  %v56 = vsel %vm55, %v51, -inf
  %v57 = vsel %vm55, %v52, -inf
  %v58 = vsel %vm55, %v53, -inf
  %v59 = vsel %vm55, %v54, -inf
  %v60 = vmax.f32 %v56, %v57
  %v61 = vmax.f32 %v58, %v59
  %v62 = vmax.f32 %v60, %v61
  %v63 = vsub.f32 %v51, %v62
  %v64 = vsub.f32 %v52, %v62
  %v65 = vsub.f32 %v53, %v62
  %v66 = vsub.f32 %v54, %v62
  %v67 = vmul.f32 %v63, 1.442695
  %v68 = vpow.pop %v67
  %v69 = vmul.f32 %v64, 1.442695
  %v70 = vpow.pop %v69
  %v71 = vmul.f32 %v65, 1.442695
  %v72 = vpow.pop %v71
  %v73 = vmul.f32 %v66, 1.442695
  %v74 = vpow.pop %v73
  %v75 = vsel %vm55, %v68, 0.0
  %v76 = vsel %vm55, %v70, 0.0
  %v77 = vadd.f32 %v75, %v76
  %v78 = vsel %vm55, %v72, 0.0
  %v79 = vadd.f32 %v77, %v78
  %v80 = vsel %vm55, %v74, 0.0
  %v81 = vadd.f32 %v79, %v80
  %v82 = vrcp.pop %v81
  %v83 = vmul.f32 %v68, %v82
  %v84 = vmul.f32 %v70, %v82
  %v85 = vmul.f32 %v72, %v82
  %v86 = vmul.f32 %v74, %v82
  %88 = vset.pattern.permute.xlu0 0
  %89 = vperm.xlu0 %88, %v83
  %v90 = vpop.permute.xlu0 %89
  %93 = vset.pattern.permute.xlu0 0
  %94 = vperm.xlu0 %93, %v84
  %v95 = vpop.permute.xlu0 %94
  %98 = vset.pattern.permute.xlu0 0
  %99 = vperm.xlu0 %98, %v85
  %v100 = vpop.permute.xlu0 %99
  %103 = vset.pattern.permute.xlu0 0
  %104 = vperm.xlu0 %103, %v86
  %v105 = vpop.permute.xlu0 %104
  %v107 = vmul.f32 %v16, %v90
  %v108 = vmul.f32 %v17, %v95
  %v109 = vmul.f32 %v18, %v100
  %v110 = vmul.f32 %v19, %v105
  %v111 = vsel %vm31, %v107, 0.0
  %v112 = vsel %vm31, %v108, 0.0
  %v113 = vadd.f32 %v111, %v112
  %v114 = vsel %vm31, %v109, 0.0
  %v115 = vadd.f32 %v113, %v114
  %v116 = vsel %vm31, %v110, 0.0
  %v117 = vadd.f32 %v115, %v116
  %118 = vst.msk [vmem:[%s3] sm:$0xff] %vm31, %v117
  // Predicated region
  $region14: #{_ssa_core.22} parent=0 // pred_check
    _
  $region15: #{_ssa_core.22} parent=0 // pred_check_branch
    %120 = sbr.rel (0) target = $region17
  $region16: #{_ssa_core.22} parent=0 // pred_region
    _
  $region17: #{_ssa_core.22} parent=0 // pred_fallthru
    _
  // Predicated region
  $region18: #{_ssa_core.22} parent=0 // pred_check
    _
  $region19: #{_ssa_core.22} parent=0 // pred_check_branch
    %122 = sbr.rel (0) target = $region21
  $region20: #{_ssa_core.22} parent=0 // pred_region
    _
  $region21: #{_ssa_core.22} parent=0 // pred_fallthru
    _

// kernel: _ssa_core.21
$region0: #{_ssa_core.21}
  #allocation0 [shape = 'u32[]', space=smem, size = 0x4, offset = 0x4, fixed_abs, tag = 'smem constant byte address 0x4 - core index']
  #allocation1 [shape = 'u32[144,128]{1,0:T(1,128)}', space=vmem, size = 0x12000, scoped, tag = 'internal scratch']
  %s0 = inlined_call_operand.vmem [shape: f32[8,4,32], index: 0, kind: input, shape index: {}, may-alias: {0,1}]
  %s1 = inlined_call_operand.vmem [shape: f32[8,4,32], index: 1, kind: input, shape index: {}, may-alias: {0,1}]
  %s2 = inlined_call_operand.vmem [shape: f32[8,4,32], index: 2, kind: input, shape index: {}, may-alias: {2,3}]
  %s3 = inlined_call_operand.vmem [shape: f32[8,4,32], index: 3, kind: input, shape index: {}, may-alias: {2,3}]
  %s4 = inlined_call_operand.vmem [shape: f32[3,32,32], index: 4, kind: input, shape index: {}]
  %s5 = inlined_call_operand.vmem [shape: f32[3,1,32], index: 5, kind: input, shape index: {}]
  %s6 = inlined_call_operand.vmem [shape: f32[32,32], index: 6, kind: input, shape index: {}]
  %s7 = inlined_call_operand.vmem [shape: f32[1,32], index: 7, kind: input, shape index: {}]
  %s8 = inlined_call_operand.vmem [shape: f32[1,32], index: 8, kind: input, shape index: {}]
  %s9 = inlined_call_operand.vmem [shape: f32[1,32], index: 9, kind: input, shape index: {}]
  %s10 = inlined_call_operand.vmem [shape: f32[8,4,32], index: 10, kind: output, shape index: {}]
  %s11 = sld [smem:[#allocation0]]
  $region73: #{_ssa_core.21} parent=0
    _
  %s13 = ssub.s32 1, %s11
  %s14 = scalar_select 0, %s13, %s11
  loop: start=0, step=1, limit=10
  $region2: #{_ssa_core.21} parent=0 // loop_pre_header
    _
  $region3: #{_ssa_core.21} parent=0 // loop_header
    %s16 = sphi 0, %s20
    %p17 = scmp.ge.s32.totalorder %s16, 10
    %s26 = sphi 0, %s28
    %s29 = sphi 0, %s26
    %s30 = sphi 0, %s29
    %s46 = sphi 0, %s30
    %s52 = sphi 0, %s54
    %s55 = sphi 0, %s52
    %s56 = sphi 0, %s55
    %s72 = sphi 0, %s56
    %s78 = sphi 0, %s80
    %s81 = sphi 0, %s78
    %s82 = sphi 0, %s81
    %s98 = sphi 0, %s82
    %s104 = sphi 0, %s106
    %s107 = sphi 0, %s104
    %s108 = sphi 0, %s107
    %s124 = sphi 0, %s108
    %s128 = sphi 0, %s128
    %s130 = sphi 0, %s128
    %s131 = sphi 0, %s130
    %s145 = sphi 0, %s131
    %s149 = sphi 0, %s149
    %s151 = sphi 0, %s149
    %s152 = sphi 0, %s151
    %s166 = sphi 0, %s152
    %s170 = sphi 0, %s170
    %s172 = sphi 0, %s170
    %s173 = sphi 0, %s172
    %s187 = sphi 0, %s173
    %s191 = sphi 0, %s191
    %s193 = sphi 0, %s191
    %s194 = sphi 0, %s193
    %s208 = sphi 0, %s194
    %s212 = sphi 0, %s212
    %s214 = sphi 0, %s212
    %s215 = sphi 0, %s214
    %s229 = sphi 0, %s215
    %s233 = sphi 0, %s233
    %s235 = sphi 0, %s233
    %s236 = sphi 0, %s235
    %s250 = sphi 0, %s236
    %s256 = sphi 0, %s258
    %s259 = sphi 0, %s256
    %s260 = sphi 0, %s259
    %s276 = sphi 0, %s260
  $region4: #{_ssa_core.21} parent=0 // loop_header_branch
    %19 = sbr.rel (%p17) target = $region8
  $region5: #{_ssa_core.21} parent=0 // loop_body
    %s21 = ssub.s32 %s16, 1
    %s22 = ssub.s32 %s16, 2
    %s23 = sadd.s32 %s16, 1
    %s24 = ssub.s32 %s16, %s23
    %p25 = scmp.eq.s32.totalorder %s24, 0
    %s27 = sadd.s32 %s26, 1
    %s28 = scalar_select %p25, %s26, %s27
    %p31 = pneg %p25
    %p32 = scmp.eq.s32.totalorder %s16, 7
    %p33 = por %p31, %p32
    %p34 = scmp.ne.s32.totalorder %s26, %s29
    %p35 = scmp.eq.s32.totalorder %s16, 0
    %p36 = por %p34, %p35
    %p37 = scmp.ne.s32.totalorder %s26, %s29
    %p38 = scmp.eq.s32.totalorder %s21, 7
    %p39 = por %p37, %p38
    %p40 = scmp.ne.s32.totalorder %s29, %s30
    %p41 = scmp.eq.s32.totalorder %s21, 0
    %p42 = por %p40, %p41
    %p43 = scmp.ne.s32.totalorder %s29, %s30
    %p44 = scmp.eq.s32.totalorder %s22, 7
    %p45 = por %p43, %p44
    %p47 = scmp.ne.s32.totalorder %s30, %s46
    %p48 = scmp.eq.s32.totalorder %s22, 0
    %p49 = por %p47, %p48
    %s50 = ssub.s32 %s16, %s23
    %p51 = scmp.eq.s32.totalorder %s50, 0
    %s53 = sadd.s32 %s52, 1
    %s54 = scalar_select %p51, %s52, %s53
    %p57 = pneg %p51
    %p58 = scmp.eq.s32.totalorder %s16, 7
    %p59 = por %p57, %p58
    %p60 = scmp.ne.s32.totalorder %s52, %s55
    %p61 = scmp.eq.s32.totalorder %s16, 0
    %p62 = por %p60, %p61
    %p63 = scmp.ne.s32.totalorder %s52, %s55
    %p64 = scmp.eq.s32.totalorder %s21, 7
    %p65 = por %p63, %p64
    %p66 = scmp.ne.s32.totalorder %s55, %s56
    %p67 = scmp.eq.s32.totalorder %s21, 0
    %p68 = por %p66, %p67
    %p69 = scmp.ne.s32.totalorder %s55, %s56
    %p70 = scmp.eq.s32.totalorder %s22, 7
    %p71 = por %p69, %p70
    %p73 = scmp.ne.s32.totalorder %s56, %s72
    %p74 = scmp.eq.s32.totalorder %s22, 0
    %p75 = por %p73, %p74
    %s76 = ssub.s32 %s16, %s23
    %p77 = scmp.eq.s32.totalorder %s76, 0
    %s79 = sadd.s32 %s78, 1
    %s80 = scalar_select %p77, %s78, %s79
    %p83 = pneg %p77
    %p84 = scmp.eq.s32.totalorder %s16, 7
    %p85 = por %p83, %p84
    %p86 = scmp.ne.s32.totalorder %s78, %s81
    %p87 = scmp.eq.s32.totalorder %s16, 0
    %p88 = por %p86, %p87
    %p89 = scmp.ne.s32.totalorder %s78, %s81
    %p90 = scmp.eq.s32.totalorder %s21, 7
    %p91 = por %p89, %p90
    %p92 = scmp.ne.s32.totalorder %s81, %s82
    %p93 = scmp.eq.s32.totalorder %s21, 0
    %p94 = por %p92, %p93
    %p95 = scmp.ne.s32.totalorder %s81, %s82
    %p96 = scmp.eq.s32.totalorder %s22, 7
    %p97 = por %p95, %p96
    %p99 = scmp.ne.s32.totalorder %s82, %s98
    %p100 = scmp.eq.s32.totalorder %s22, 0
    %p101 = por %p99, %p100
    %s102 = ssub.s32 %s16, %s23
    %p103 = scmp.eq.s32.totalorder %s102, 0
    %s105 = sadd.s32 %s104, 1
    %s106 = scalar_select %p103, %s104, %s105
    %p109 = pneg %p103
    %p110 = scmp.eq.s32.totalorder %s16, 7
    %p111 = por %p109, %p110
    %p112 = scmp.ne.s32.totalorder %s104, %s107
    %p113 = scmp.eq.s32.totalorder %s16, 0
    %p114 = por %p112, %p113
    %p115 = scmp.ne.s32.totalorder %s104, %s107
    %p116 = scmp.eq.s32.totalorder %s21, 7
    %p117 = por %p115, %p116
    %p118 = scmp.ne.s32.totalorder %s107, %s108
    %p119 = scmp.eq.s32.totalorder %s21, 0
    %p120 = por %p118, %p119
    %p121 = scmp.ne.s32.totalorder %s107, %s108
    %p122 = scmp.eq.s32.totalorder %s22, 7
    %p123 = por %p121, %p122
    %p125 = scmp.ne.s32.totalorder %s108, %s124
    %p126 = scmp.eq.s32.totalorder %s22, 0
    %p127 = por %p125, %p126
    %s129 = sadd.s32 %s128, 1
    %p132 = scmp.eq.s32.totalorder %s16, 7
    %p133 = scmp.ne.s32.totalorder %s128, %s130
    %p134 = scmp.eq.s32.totalorder %s16, 0
    %p135 = por %p133, %p134
    %p136 = scmp.ne.s32.totalorder %s128, %s130
    %p137 = scmp.eq.s32.totalorder %s21, 7
    %p138 = por %p136, %p137
    %p139 = scmp.ne.s32.totalorder %s130, %s131
    %p140 = scmp.eq.s32.totalorder %s21, 0
    %p141 = por %p139, %p140
    %p142 = scmp.ne.s32.totalorder %s130, %s131
    %p143 = scmp.eq.s32.totalorder %s22, 7
    %p144 = por %p142, %p143
    %p146 = scmp.ne.s32.totalorder %s131, %s145
    %p147 = scmp.eq.s32.totalorder %s22, 0
    %p148 = por %p146, %p147
    %s150 = sadd.s32 %s149, 1
    %p153 = scmp.eq.s32.totalorder %s16, 7
    %p154 = scmp.ne.s32.totalorder %s149, %s151
    %p155 = scmp.eq.s32.totalorder %s16, 0
    %p156 = por %p154, %p155
    %p157 = scmp.ne.s32.totalorder %s149, %s151
    %p158 = scmp.eq.s32.totalorder %s21, 7
    %p159 = por %p157, %p158
    %p160 = scmp.ne.s32.totalorder %s151, %s152
    %p161 = scmp.eq.s32.totalorder %s21, 0
    %p162 = por %p160, %p161
    %p163 = scmp.ne.s32.totalorder %s151, %s152
    %p164 = scmp.eq.s32.totalorder %s22, 7
    %p165 = por %p163, %p164
    %p167 = scmp.ne.s32.totalorder %s152, %s166
    %p168 = scmp.eq.s32.totalorder %s22, 0
    %p169 = por %p167, %p168
    %s171 = sadd.s32 %s170, 1
    %p174 = scmp.eq.s32.totalorder %s16, 7
    %p175 = scmp.ne.s32.totalorder %s170, %s172
    %p176 = scmp.eq.s32.totalorder %s16, 0
    %p177 = por %p175, %p176
    %p178 = scmp.ne.s32.totalorder %s170, %s172
    %p179 = scmp.eq.s32.totalorder %s21, 7
    %p180 = por %p178, %p179
    %p181 = scmp.ne.s32.totalorder %s172, %s173
    %p182 = scmp.eq.s32.totalorder %s21, 0
    %p183 = por %p181, %p182
    %p184 = scmp.ne.s32.totalorder %s172, %s173
    %p185 = scmp.eq.s32.totalorder %s22, 7
    %p186 = por %p184, %p185
    %p188 = scmp.ne.s32.totalorder %s173, %s187
    %p189 = scmp.eq.s32.totalorder %s22, 0
    %p190 = por %p188, %p189
    %s192 = sadd.s32 %s191, 1
    %p195 = scmp.eq.s32.totalorder %s16, 7
    %p196 = scmp.ne.s32.totalorder %s191, %s193
    %p197 = scmp.eq.s32.totalorder %s16, 0
    %p198 = por %p196, %p197
    %p199 = scmp.ne.s32.totalorder %s191, %s193
    %p200 = scmp.eq.s32.totalorder %s21, 7
    %p201 = por %p199, %p200
    %p202 = scmp.ne.s32.totalorder %s193, %s194
    %p203 = scmp.eq.s32.totalorder %s21, 0
    %p204 = por %p202, %p203
    %p205 = scmp.ne.s32.totalorder %s193, %s194
    %p206 = scmp.eq.s32.totalorder %s22, 7
    %p207 = por %p205, %p206
    %p209 = scmp.ne.s32.totalorder %s194, %s208
    %p210 = scmp.eq.s32.totalorder %s22, 0
    %p211 = por %p209, %p210
    %s213 = sadd.s32 %s212, 1
    %p216 = scmp.eq.s32.totalorder %s16, 7
    %p217 = scmp.ne.s32.totalorder %s212, %s214
    %p218 = scmp.eq.s32.totalorder %s16, 0
    %p219 = por %p217, %p218
    %p220 = scmp.ne.s32.totalorder %s212, %s214
    %p221 = scmp.eq.s32.totalorder %s21, 7
    %p222 = por %p220, %p221
    %p223 = scmp.ne.s32.totalorder %s214, %s215
    %p224 = scmp.eq.s32.totalorder %s21, 0
    %p225 = por %p223, %p224
    %p226 = scmp.ne.s32.totalorder %s214, %s215
    %p227 = scmp.eq.s32.totalorder %s22, 7
    %p228 = por %p226, %p227
    %p230 = scmp.ne.s32.totalorder %s215, %s229
    %p231 = scmp.eq.s32.totalorder %s22, 0
    %p232 = por %p230, %p231
    %s234 = sadd.s32 %s233, 1
    %p237 = scmp.eq.s32.totalorder %s16, 7
    %p238 = scmp.ne.s32.totalorder %s233, %s235
    %p239 = scmp.eq.s32.totalorder %s16, 0
    %p240 = por %p238, %p239
    %p241 = scmp.ne.s32.totalorder %s233, %s235
    %p242 = scmp.eq.s32.totalorder %s21, 7
    %p243 = por %p241, %p242
    %p244 = scmp.ne.s32.totalorder %s235, %s236
    %p245 = scmp.eq.s32.totalorder %s21, 0
    %p246 = por %p244, %p245
    %p247 = scmp.ne.s32.totalorder %s235, %s236
    %p248 = scmp.eq.s32.totalorder %s22, 7
    %p249 = por %p247, %p248
    %p251 = scmp.ne.s32.totalorder %s236, %s250
    %p252 = scmp.eq.s32.totalorder %s22, 0
    %p253 = por %p251, %p252
    %s254 = ssub.s32 %s16, %s23
    %p255 = scmp.eq.s32.totalorder %s254, 0
    %s257 = sadd.s32 %s256, 1
    %s258 = scalar_select %p255, %s256, %s257
    %p261 = pneg %p255
    %p262 = scmp.eq.s32.totalorder %s16, 7
    %p263 = por %p261, %p262
    %p264 = scmp.ne.s32.totalorder %s256, %s259
    %p265 = scmp.eq.s32.totalorder %s16, 0
    %p266 = por %p264, %p265
    %p267 = scmp.ne.s32.totalorder %s256, %s259
    %p268 = scmp.eq.s32.totalorder %s21, 7
    %p269 = por %p267, %p268
    %p270 = scmp.ne.s32.totalorder %s259, %s260
    %p271 = scmp.eq.s32.totalorder %s21, 0
    %p272 = por %p270, %p271
    %p273 = scmp.ne.s32.totalorder %s259, %s260
    %p274 = scmp.eq.s32.totalorder %s22, 7
    %p275 = por %p273, %p274
    %p277 = scmp.ne.s32.totalorder %s260, %s276
    %p278 = scmp.eq.s32.totalorder %s22, 0
    %p279 = por %p277, %p278
    %p280 = scmp.le.s32.totalorder 1, %s16
    %p281 = scmp.lt.s32.totalorder %s16, 9
    %p282 = pnand %p280, %p281
    %p283 = pneg %p282
    // Predicated region
    $region9: #{_ssa_core.21} parent=5 // pred_check
      _
    $region10: #{_ssa_core.21} parent=5 // pred_check_branch
      %285 = sbr.rel (%p282) target = $region12
    $region11: #{_ssa_core.21} parent=5 // pred_region
      %s286 = ssub.s32 %s16, 1
      // Predicated region
      $region13: #{_ssa_core.21} parent=11 // pred_check
        %p287 = pneg %p141
      $region14: #{_ssa_core.21} parent=11 // pred_check_branch
        %289 = sbr.rel (%p287) target = $region16
      $region15: #{_ssa_core.21} parent=11 // pred_region
        _
      $region16: #{_ssa_core.21} parent=11 // pred_fallthru
        _
      // Predicated region
      $region17: #{_ssa_core.21} parent=11 // pred_check
        %p290 = pneg %p162
      $region18: #{_ssa_core.21} parent=11 // pred_check_branch
        %292 = sbr.rel (%p290) target = $region20
      $region19: #{_ssa_core.21} parent=11 // pred_region
        _
      $region20: #{_ssa_core.21} parent=11 // pred_fallthru
        _
      // Predicated region
      $region21: #{_ssa_core.21} parent=11 // pred_check
        %p293 = pneg %p183
      $region22: #{_ssa_core.21} parent=11 // pred_check_branch
        %295 = sbr.rel (%p293) target = $region24
      $region23: #{_ssa_core.21} parent=11 // pred_region
        _
      $region24: #{_ssa_core.21} parent=11 // pred_fallthru
        _
      // Predicated region
      $region25: #{_ssa_core.21} parent=11 // pred_check
        %p296 = pneg %p204
      $region26: #{_ssa_core.21} parent=11 // pred_check_branch
        %298 = sbr.rel (%p296) target = $region28
      $region27: #{_ssa_core.21} parent=11 // pred_region
        _
      $region28: #{_ssa_core.21} parent=11 // pred_fallthru
        _
      // Predicated region
      $region29: #{_ssa_core.21} parent=11 // pred_check
        %p299 = pneg %p225
      $region30: #{_ssa_core.21} parent=11 // pred_check_branch
        %301 = sbr.rel (%p299) target = $region32
      $region31: #{_ssa_core.21} parent=11 // pred_region
        _
      $region32: #{_ssa_core.21} parent=11 // pred_fallthru
        _
      // Predicated region
      $region33: #{_ssa_core.21} parent=11 // pred_check
        %p302 = pneg %p246
      $region34: #{_ssa_core.21} parent=11 // pred_check_branch
        %304 = sbr.rel (%p302) target = $region36
      $region35: #{_ssa_core.21} parent=11 // pred_region
        _
      $region36: #{_ssa_core.21} parent=11 // pred_fallthru
        _
    $region12: #{_ssa_core.21} parent=5 // pred_fallthru
      _
    %p305 = scmp.lt.s32.totalorder %s16, 8
    // Predicated region
    $region37: #{_ssa_core.21} parent=5 // pred_check
      %p306 = pneg %p305
    $region38: #{_ssa_core.21} parent=5 // pred_check_branch
      %308 = sbr.rel (%p306) target = $region40
    $region39: #{_ssa_core.21} parent=5 // pred_region
      // Predicated region
      $region41: #{_ssa_core.21} parent=39 // pred_check
        %p309 = pneg %p36
      $region42: #{_ssa_core.21} parent=39 // pred_check_branch
        %311 = sbr.rel (%p309) target = $region44
      $region43: #{_ssa_core.21} parent=39 // pred_region
        %p312 = scmp.lt.s32.totalorder %s16, 7
        %s313 = scalar_select %p312, %s16, 7
        %s314 = smul.addr %s313, 4
        %s315 = scalar_lea.vmem %s0, %s314
      $region44: #{_ssa_core.21} parent=39 // pred_fallthru
        _
      // Predicated region
      $region45: #{_ssa_core.21} parent=39 // pred_check
        %p316 = pneg %p62
      $region46: #{_ssa_core.21} parent=39 // pred_check_branch
        %318 = sbr.rel (%p316) target = $region48
      $region47: #{_ssa_core.21} parent=39 // pred_region
        %p319 = scmp.lt.s32.totalorder %s16, 7
        %s320 = scalar_select %p319, %s16, 7
        %s321 = smul.addr %s320, 4
        %s322 = scalar_lea.vmem %s1, %s321
      $region48: #{_ssa_core.21} parent=39 // pred_fallthru
        _
      // Predicated region
      $region49: #{_ssa_core.21} parent=39 // pred_check
        %p323 = pneg %p88
      $region50: #{_ssa_core.21} parent=39 // pred_check_branch
        %325 = sbr.rel (%p323) target = $region52
      $region51: #{_ssa_core.21} parent=39 // pred_region
        %p326 = scmp.lt.s32.totalorder %s16, 7
        %s327 = scalar_select %p326, %s16, 7
        %s328 = smul.addr %s327, 4
        %s329 = scalar_lea.vmem %s2, %s328
      $region52: #{_ssa_core.21} parent=39 // pred_fallthru
        _
      // Predicated region
      $region53: #{_ssa_core.21} parent=39 // pred_check
        %p330 = pneg %p114
      $region54: #{_ssa_core.21} parent=39 // pred_check_branch
        %332 = sbr.rel (%p330) target = $region56
      $region55: #{_ssa_core.21} parent=39 // pred_region
        %p333 = scmp.lt.s32.totalorder %s16, 7
        %s334 = scalar_select %p333, %s16, 7
        %s335 = smul.addr %s334, 4
        %s336 = scalar_lea.vmem %s3, %s335
      $region56: #{_ssa_core.21} parent=39 // pred_fallthru
        _
    $region40: #{_ssa_core.21} parent=5 // pred_fallthru
      _
    %p337 = scmp.le.s32.totalorder 1, %s16
    %p338 = scmp.lt.s32.totalorder %s16, 9
    %p339 = pnand %p337, %p338
    %p340 = pneg %p339
    // Predicated region
    $region57: #{_ssa_core.21} parent=5 // pred_check
      _
    $region58: #{_ssa_core.21} parent=5 // pred_check_branch
      %342 = sbr.rel (%p339) target = $region60
    $region59: #{_ssa_core.21} parent=5 // pred_region
      %s343 = ssub.s32 %s16, 1
      %p344 = scmp.lt.s32.totalorder %s21, 7
      %s345 = scalar_select %p344, %s21, 7
      %s346 = smul.addr %s345, 4
      %s347 = scalar_lea.vmem %s0, %s346
      %p348 = pneg %p42
      %p349 = pneg %p39
      %p350 = scmp.lt.s32.totalorder %s21, 7
      %s351 = scalar_select %p350, %s21, 7
      %s352 = smul.addr %s351, 4
      %s353 = scalar_lea.vmem %s1, %s352
      %p354 = pneg %p68
      %p355 = pneg %p65
      %p356 = scmp.lt.s32.totalorder %s21, 7
      %s357 = scalar_select %p356, %s21, 7
      %s358 = smul.addr %s357, 4
      %s359 = scalar_lea.vmem %s2, %s358
      %p360 = pneg %p94
      %p361 = pneg %p91
      %p362 = scmp.lt.s32.totalorder %s21, 7
      %s363 = scalar_select %p362, %s21, 7
      %s364 = smul.addr %s363, 4
      %s365 = scalar_lea.vmem %s3, %s364
      %p366 = pneg %p120
      %p367 = pneg %p117
      %p368 = pneg %p141
      %p369 = pneg %p138
      %p370 = pneg %p162
      %p371 = pneg %p159
      %p372 = pneg %p183
      %p373 = pneg %p180
      %p374 = pneg %p204
      %p375 = pneg %p201
      %p376 = pneg %p225
      %p377 = pneg %p222
      %p378 = pneg %p246
      %p379 = pneg %p243
      %p380 = pneg %p272
      %p381 = pneg %p269
      %p382 = scmp.lt.s32.totalorder %s21, 7
      %s383 = scalar_select %p382, %s21, 7
      %s384 = smul.addr %s383, 4
      %s385 = scalar_lea.vmem %s10, %s384
      %p386 = scmp.lt.s32.totalorder %s21, 7
      %s387 = scalar_select %p386, %s21, 7
      %s388 = smul.addr %s387, 4
      %s389 = scalar_lea.vmem %s0, %s388
      %p390 = scmp.lt.s32.totalorder %s21, 7
      %s391 = scalar_select %p390, %s21, 7
      %s392 = smul.addr %s391, 4
      %s393 = scalar_lea.vmem %s1, %s392
      %p394 = scmp.lt.s32.totalorder %s21, 7
      %s395 = scalar_select %p394, %s21, 7
      %s396 = smul.addr %s395, 4
      %s397 = scalar_lea.vmem %s2, %s396
      %p398 = scmp.lt.s32.totalorder %s21, 7
      %s399 = scalar_select %p398, %s21, 7
      %s400 = smul.addr %s399, 4
      %s401 = scalar_lea.vmem %s3, %s400
      %p402 = scmp.lt.s32.totalorder %s21, 7
      %s403 = scalar_select %p402, %s21, 7
      %s404 = smul.addr %s403, 4
      %s405 = scalar_lea.vmem %s10, %s404
      %v406 = vld [vmem:[%s389] sm:$0xf]
      %v407 = vld [vmem:[%s393] sm:$0xf]
      %v408 = vld [vmem:[%s397] sm:$0xf]
      %v409 = vld [vmem:[%s4] sm:$0xff]
      %v410 = vld [vmem:[%s4 + $0x8] sm:$0xff]
      %v411 = vld [vmem:[%s4 + $0x10] sm:$0xff]
      %v412 = vld [vmem:[%s4 + $0x18] sm:$0xff]
      %v413 = vld [vmem:[%s5] sm:$0x1]
      %v415 = vlaneseq
      %v416 = vshrl.u32 %v415, 7
      %v417 = vsub.s32 0, %v416
      %v418 = vrot.slane %v413, %v417
      %vm420 = vcmask 261120
      %v422 = vsel %vm420, %v406, 0
      %424 = vmatprep.subr.mxu0 0.0
      %425 = vmatpush1.msra.mxu0 %v409
      %426 = vmatprep.subr.mxu0 0.0
      %427 = vmatpush1.msra.mxu0 %v410
      %428 = vmatprep.subr.mxu0 0.0
      %429 = vmatpush1.msra.mxu0 %v411
      %430 = vmatprep.subr.mxu0 0.0
      %431 = vmatpush1.msra.mxu0 %v412
      %432 = vmatprep.subr.mxu0 0.0
      %433 = vmatpush1.msra.mxu0 0.0
      %434 = vmatprep.subr.mxu0 0.0
      %435 = vmatpush1.msra.mxu0 0.0
      %436 = vmatprep.subr.mxu0 0.0
      %437 = vmatpush1.msra.mxu0 0.0
      %438 = vmatprep.subr.mxu0 0.0
      %439 = vmatpush1.msra.mxu0 0.0
      %440 = vmatprep.subr.mxu0 0.0
      %441 = vmatpush1.msra.mxu0 0.0
      %442 = vmatprep.subr.mxu0 0.0
      %443 = vmatpush1.msra.mxu0 0.0
      %444 = vmatprep.subr.mxu0 0.0
      %445 = vmatpush1.msra.mxu0 0.0
      %446 = vmatprep.subr.mxu0 0.0
      %447 = vmatpush1.msra.mxu0 0.0
      %448 = vmatprep.subr.mxu0 0.0
      %449 = vmatpush1.msra.mxu0 0.0
      %450 = vmatprep.subr.mxu0 0.0
      %451 = vmatpush1.msra.mxu0 0.0
      %452 = vmatprep.subr.mxu0 0.0
      %453 = vmatpush1.msra.mxu0 0.0
      %454 = vmatprep.subr.mxu0 0.0
      %455 = vmatpush1.msra.mxu0 0.0
      %456 = vmatprep.subr.mxu0 0.0
      %457 = vmatpush1.msra.mxu0 0.0
      %458 = vmatprep.subr.mxu0 0.0
      %459 = vmatpush1.msra.mxu0 0.0
      %460 = vmatprep.subr.mxu0 0.0
      %461 = vmatpush1.msra.mxu0 0.0
      %462 = vmatprep.subr.mxu0 0.0
      %463 = vmatpush1.msra.mxu0 0.0
      %464 = vmatprep.subr.mxu0 0.0
      %465 = vmatpush1.msra.mxu0 0.0
      %466 = vmatprep.subr.mxu0 0.0
      %467 = vmatpush1.msra.mxu0 0.0
      %468 = vmatprep.subr.mxu0 0.0
      %469 = vmatpush1.msra.mxu0 0.0
      %470 = vmatprep.subr.mxu0 0.0
      %471 = vmatpush1.msra.mxu0 0.0
      %472 = vmatprep.subr.mxu0 0.0
      %473 = vmatpush1.msra.mxu0 0.0
      %474 = vmatprep.subr.mxu0 0.0
      %475 = vmatpush1.msra.mxu0 0.0
      %476 = vmatprep.subr.mxu0 0.0
      %477 = vmatpush1.msra.mxu0 0.0
      %478 = vmatprep.subr.mxu0 0.0
      %479 = vmatpush1.msra.mxu0 0.0
      %480 = vmatprep.subr.mxu0 0.0
      %481 = vmatpush1.msra.mxu0 0.0
      %482 = vmatprep.subr.mxu0 0.0
      %483 = vmatpush1.msra.mxu0 0.0
      %484 = vmatprep.subr.mxu0 0.0
      %485 = vmatpush1.msra.mxu0 0.0
      %486 = vmatprep.subr.mxu0 0.0
      %487 = vmatpush1.msra.mxu0 0.0
      %488 = vmatprep.mubr.f32.mxu0 0.0
      %489 = vmatmul.mubr.f32.gmra.mrb[0].mxu0 %v422
      %v490 = vpop.f32.mrb[0].mxu0
      %v491 = vadd.f32 %v418, %v490
      %v492 = vpop.f32.mrb[0].mxu0
      %493 = vdwg.mxu0
      %s494 = scalar_lea.vmem %s4, 32
      %v495 = vld [vmem:[%s494] sm:$0xff]
      %v496 = vld [vmem:[%s494 + $0x8] sm:$0xff]
      %v497 = vld [vmem:[%s494 + $0x10] sm:$0xff]
      %v498 = vld [vmem:[%s494 + $0x18] sm:$0xff]
      %s499 = scalar_lea.vmem %s5, 1
      %v500 = vld [vmem:[%s499] sm:$0x1]
      %v502 = vlaneseq
      %v503 = vshrl.u32 %v502, 7
      %v504 = vsub.s32 0, %v503
      %v505 = vrot.slane %v500, %v504
      %v508 = vsel %vm420, %v407, 0
      %510 = vmatprep.subr.mxu0 0.0
      %511 = vmatpush1.msra.mxu0 %v495
      %512 = vmatprep.subr.mxu0 0.0
      %513 = vmatpush1.msra.mxu0 %v496
      %514 = vmatprep.subr.mxu0 0.0
      %515 = vmatpush1.msra.mxu0 %v497
      %516 = vmatprep.subr.mxu0 0.0
      %517 = vmatpush1.msra.mxu0 %v498
      %518 = vmatprep.subr.mxu0 0.0
      %519 = vmatpush1.msra.mxu0 0.0
      %520 = vmatprep.subr.mxu0 0.0
      %521 = vmatpush1.msra.mxu0 0.0
      %522 = vmatprep.subr.mxu0 0.0
      %523 = vmatpush1.msra.mxu0 0.0
      %524 = vmatprep.subr.mxu0 0.0
      %525 = vmatpush1.msra.mxu0 0.0
      %526 = vmatprep.subr.mxu0 0.0
      %527 = vmatpush1.msra.mxu0 0.0
      %528 = vmatprep.subr.mxu0 0.0
      %529 = vmatpush1.msra.mxu0 0.0
      %530 = vmatprep.subr.mxu0 0.0
      %531 = vmatpush1.msra.mxu0 0.0
      %532 = vmatprep.subr.mxu0 0.0
      %533 = vmatpush1.msra.mxu0 0.0
      %534 = vmatprep.subr.mxu0 0.0
      %535 = vmatpush1.msra.mxu0 0.0
      %536 = vmatprep.subr.mxu0 0.0
      %537 = vmatpush1.msra.mxu0 0.0
      %538 = vmatprep.subr.mxu0 0.0
      %539 = vmatpush1.msra.mxu0 0.0
      %540 = vmatprep.subr.mxu0 0.0
      %541 = vmatpush1.msra.mxu0 0.0
      %542 = vmatprep.subr.mxu0 0.0
      %543 = vmatpush1.msra.mxu0 0.0
      %544 = vmatprep.subr.mxu0 0.0
      %545 = vmatpush1.msra.mxu0 0.0
      %546 = vmatprep.subr.mxu0 0.0
      %547 = vmatpush1.msra.mxu0 0.0
      %548 = vmatprep.subr.mxu0 0.0
      %549 = vmatpush1.msra.mxu0 0.0
      %550 = vmatprep.subr.mxu0 0.0
      %551 = vmatpush1.msra.mxu0 0.0
      %552 = vmatprep.subr.mxu0 0.0
      %553 = vmatpush1.msra.mxu0 0.0
      %554 = vmatprep.subr.mxu0 0.0
      %555 = vmatpush1.msra.mxu0 0.0
      %556 = vmatprep.subr.mxu0 0.0
      %557 = vmatpush1.msra.mxu0 0.0
      %558 = vmatprep.subr.mxu0 0.0
      %559 = vmatpush1.msra.mxu0 0.0
      %560 = vmatprep.subr.mxu0 0.0
      %561 = vmatpush1.msra.mxu0 0.0
      %562 = vmatprep.subr.mxu0 0.0
      %563 = vmatpush1.msra.mxu0 0.0
      %564 = vmatprep.subr.mxu0 0.0
      %565 = vmatpush1.msra.mxu0 0.0
      %566 = vmatprep.subr.mxu0 0.0
      %567 = vmatpush1.msra.mxu0 0.0
      %568 = vmatprep.subr.mxu0 0.0
      %569 = vmatpush1.msra.mxu0 0.0
      %570 = vmatprep.subr.mxu0 0.0
      %571 = vmatpush1.msra.mxu0 0.0
      %572 = vmatprep.subr.mxu0 0.0
      %573 = vmatpush1.msra.mxu0 0.0
      %574 = vmatprep.mubr.f32.mxu0 0.0
      %575 = vmatmul.mubr.f32.gmra.mrb[0].mxu0 %v508
      %v576 = vpop.f32.mrb[0].mxu0
      %v577 = vadd.f32 %v505, %v576
      %v578 = vpop.f32.mrb[0].mxu0
      %579 = vdwg.mxu0
      %s580 = scalar_lea.vmem %s4, 64
      %v581 = vld [vmem:[%s580] sm:$0xff]
      %v582 = vld [vmem:[%s580 + $0x8] sm:$0xff]
      %v583 = vld [vmem:[%s580 + $0x10] sm:$0xff]
      %v584 = vld [vmem:[%s580 + $0x18] sm:$0xff]
      %s585 = scalar_lea.vmem %s5, 2
      %v586 = vld [vmem:[%s585] sm:$0x1]
      %v588 = vlaneseq
      %v589 = vshrl.u32 %v588, 7
      %v590 = vsub.s32 0, %v589
      %v591 = vrot.slane %v586, %v590
      %v594 = vsel %vm420, %v408, 0
      %596 = vmatprep.subr.mxu0 0.0
      %597 = vmatpush1.msra.mxu0 %v581
      %598 = vmatprep.subr.mxu0 0.0
      %599 = vmatpush1.msra.mxu0 %v582
      %600 = vmatprep.subr.mxu0 0.0
      %601 = vmatpush1.msra.mxu0 %v583
      %602 = vmatprep.subr.mxu0 0.0
      %603 = vmatpush1.msra.mxu0 %v584
      %604 = vmatprep.subr.mxu0 0.0
      %605 = vmatpush1.msra.mxu0 0.0
      %606 = vmatprep.subr.mxu0 0.0
      %607 = vmatpush1.msra.mxu0 0.0
      %608 = vmatprep.subr.mxu0 0.0
      %609 = vmatpush1.msra.mxu0 0.0
      %610 = vmatprep.subr.mxu0 0.0
      %611 = vmatpush1.msra.mxu0 0.0
      %612 = vmatprep.subr.mxu0 0.0
      %613 = vmatpush1.msra.mxu0 0.0
      %614 = vmatprep.subr.mxu0 0.0
      %615 = vmatpush1.msra.mxu0 0.0
      %616 = vmatprep.subr.mxu0 0.0
      %617 = vmatpush1.msra.mxu0 0.0
      %618 = vmatprep.subr.mxu0 0.0
      %619 = vmatpush1.msra.mxu0 0.0
      %620 = vmatprep.subr.mxu0 0.0
      %621 = vmatpush1.msra.mxu0 0.0
      %622 = vmatprep.subr.mxu0 0.0
      %623 = vmatpush1.msra.mxu0 0.0
      %624 = vmatprep.subr.mxu0 0.0
      %625 = vmatpush1.msra.mxu0 0.0
      %626 = vmatprep.subr.mxu0 0.0
      %627 = vmatpush1.msra.mxu0 0.0
      %628 = vmatprep.subr.mxu0 0.0
      %629 = vmatpush1.msra.mxu0 0.0
      %630 = vmatprep.subr.mxu0 0.0
      %631 = vmatpush1.msra.mxu0 0.0
      %632 = vmatprep.subr.mxu0 0.0
      %633 = vmatpush1.msra.mxu0 0.0
      %634 = vmatprep.subr.mxu0 0.0
      %635 = vmatpush1.msra.mxu0 0.0
      %636 = vmatprep.subr.mxu0 0.0
      %637 = vmatpush1.msra.mxu0 0.0
      %638 = vmatprep.subr.mxu0 0.0
      %639 = vmatpush1.msra.mxu0 0.0
      %640 = vmatprep.subr.mxu0 0.0
      %641 = vmatpush1.msra.mxu0 0.0
      %642 = vmatprep.subr.mxu0 0.0
      %643 = vmatpush1.msra.mxu0 0.0
      %644 = vmatprep.subr.mxu0 0.0
      %645 = vmatpush1.msra.mxu0 0.0
      %646 = vmatprep.subr.mxu0 0.0
      %647 = vmatpush1.msra.mxu0 0.0
      %648 = vmatprep.subr.mxu0 0.0
      %649 = vmatpush1.msra.mxu0 0.0
      %650 = vmatprep.subr.mxu0 0.0
      %651 = vmatpush1.msra.mxu0 0.0
      %652 = vmatprep.subr.mxu0 0.0
      %653 = vmatpush1.msra.mxu0 0.0
      %654 = vmatprep.subr.mxu0 0.0
      %655 = vmatpush1.msra.mxu0 0.0
      %656 = vmatprep.subr.mxu0 0.0
      %657 = vmatpush1.msra.mxu0 0.0
      %658 = vmatprep.subr.mxu0 0.0
      %659 = vmatpush1.msra.mxu0 0.0
      %660 = vmatprep.mubr.f32.mxu0 0.0
      %661 = vmatmul.mubr.f32.gmra.mrb[0].mxu0 %v594
      %v662 = vpop.f32.mrb[0].mxu0
      %v663 = vadd.f32 %v591, %v662
      %v664 = vpop.f32.mrb[0].mxu0
      %665 = vdwg.mxu0
      %vm666 = vcmask 64512
      %v668 = vsel %vm666, %v491, 0
      %v671 = vsel %vm666, %v577, 0
      %673 = vmatprep.subr.mxu0 0.0
      %674 = vmatpush1.xpose.msra.mxu0 %v671
      %675 = vmatprep.subr.mxu0 0.0
      %676 = vmatpush1.xpose.msra.mxu0 0.0
      %677 = vmatprep.subr.mxu0 0.0
      %678 = vmatpush1.xpose.msra.mxu0 0.0
      %679 = vmatprep.subr.mxu0 0.0
      %680 = vmatpush1.xpose.msra.mxu0 0.0
      %681 = vmatprep.subr.mxu0 0.0
      %682 = vmatpush1.xpose.msra.mxu0 0.0
      %683 = vmatprep.subr.mxu0 0.0
      %684 = vmatpush1.xpose.msra.mxu0 0.0
      %685 = vmatprep.subr.mxu0 0.0
      %686 = vmatpush1.xpose.msra.mxu0 0.0
      %687 = vmatprep.subr.mxu0 0.0
      %688 = vmatpush1.xpose.msra.mxu0 0.0
      %689 = vmatprep.subr.mxu0 0.0
      %690 = vmatpush1.xpose.msra.mxu0 0.0
      %691 = vmatprep.subr.mxu0 0.0
      %692 = vmatpush1.xpose.msra.mxu0 0.0
      %693 = vmatprep.subr.mxu0 0.0
      %694 = vmatpush1.xpose.msra.mxu0 0.0
      %695 = vmatprep.subr.mxu0 0.0
      %696 = vmatpush1.xpose.msra.mxu0 0.0
      %697 = vmatprep.subr.mxu0 0.0
      %698 = vmatpush1.xpose.msra.mxu0 0.0
      %699 = vmatprep.subr.mxu0 0.0
      %700 = vmatpush1.xpose.msra.mxu0 0.0
      %701 = vmatprep.subr.mxu0 0.0
      %702 = vmatpush1.xpose.msra.mxu0 0.0
      %703 = vmatprep.subr.mxu0 0.0
      %704 = vmatpush1.xpose.msra.mxu0 0.0
      %705 = vmatprep.subr.mxu0 0.0
      %706 = vmatpush1.xpose.msra.mxu0 0.0
      %707 = vmatprep.subr.mxu0 0.0
      %708 = vmatpush1.xpose.msra.mxu0 0.0
      %709 = vmatprep.subr.mxu0 0.0
      %710 = vmatpush1.xpose.msra.mxu0 0.0
      %711 = vmatprep.subr.mxu0 0.0
      %712 = vmatpush1.xpose.msra.mxu0 0.0
      %713 = vmatprep.subr.mxu0 0.0
      %714 = vmatpush1.xpose.msra.mxu0 0.0
      %715 = vmatprep.subr.mxu0 0.0
      %716 = vmatpush1.xpose.msra.mxu0 0.0
      %717 = vmatprep.subr.mxu0 0.0
      %718 = vmatpush1.xpose.msra.mxu0 0.0
      %719 = vmatprep.subr.mxu0 0.0
      %720 = vmatpush1.xpose.msra.mxu0 0.0
      %721 = vmatprep.subr.mxu0 0.0
      %722 = vmatpush1.xpose.msra.mxu0 0.0
      %723 = vmatprep.subr.mxu0 0.0
      %724 = vmatpush1.xpose.msra.mxu0 0.0
      %725 = vmatprep.subr.mxu0 0.0
      %726 = vmatpush1.xpose.msra.mxu0 0.0
      %727 = vmatprep.subr.mxu0 0.0
      %728 = vmatpush1.xpose.msra.mxu0 0.0
      %729 = vmatprep.subr.mxu0 0.0
      %730 = vmatpush1.xpose.msra.mxu0 0.0
      %731 = vmatprep.subr.mxu0 0.0
      %732 = vmatpush1.xpose.msra.mxu0 0.0
      %733 = vmatprep.subr.mxu0 0.0
      %734 = vmatpush1.xpose.msra.mxu0 0.0
      %735 = vmatprep.subr.mxu0 0.0
      %736 = vmatpush1.xpose.msra.mxu0 0.0
      %737 = vmatprep.mubr.f32.mxu0 0.0
      %738 = vmatmul.mubr.f32.gmra.mrb[0].mxu0 %v668
      %v739 = vpop.f32.mrb[0].mxu0
      %v740 = vadd.f32 0.0, %v739
      %v741 = vpop.f32.mrb[0].mxu0
      %742 = vdwg.mxu0
      %v743 = vmul.f32 %v740, 0.35355338
      %vm744 = vcmask 27648
      %v745 = vsel %vm744, %v743, -inf
      %746 = vmax.xlane.f32.xlu0 %v745
      %v747 = vpop.xlane.xlu0 %746
      %v748 = vsub.f32 %v743, %v747
      %v749 = vmul.f32 %v748, 1.442695
      %v750 = vpow.pop %v749
      %v751 = vsel %vm744, %v750, 0.0
      %752 = vadd.xlane.f32.xlu0 %v751
      %v753 = vpop.xlane.xlu0 %752
      %v754 = vrcp.pop %v753
      %v755 = vmul.f32 %v750, %v754
      %vm756 = vcmask 31744
      %v758 = vsel %vm756, %v755, 0
      %vm760 = vcmask 1043456
      %v762 = vsel %vm760, %v663, 0
      %764 = vmatprep.subr.mxu0 0.0
      %765 = vmatpush1.msra.mxu0 %v762
      %766 = vmatprep.subr.mxu0 0.0
      %767 = vmatpush1.msra.mxu0 0.0
      %768 = vmatprep.subr.mxu0 0.0
      %769 = vmatpush1.msra.mxu0 0.0
      %770 = vmatprep.subr.mxu0 0.0
      %771 = vmatpush1.msra.mxu0 0.0
      %772 = vmatprep.subr.mxu0 0.0
      %773 = vmatpush1.msra.mxu0 0.0
      %774 = vmatprep.subr.mxu0 0.0
      %775 = vmatpush1.msra.mxu0 0.0
      %776 = vmatprep.subr.mxu0 0.0
      %777 = vmatpush1.msra.mxu0 0.0
      %778 = vmatprep.subr.mxu0 0.0
      %779 = vmatpush1.msra.mxu0 0.0
      %780 = vmatprep.subr.mxu0 0.0
      %781 = vmatpush1.msra.mxu0 0.0
      %782 = vmatprep.subr.mxu0 0.0
      %783 = vmatpush1.msra.mxu0 0.0
      %784 = vmatprep.subr.mxu0 0.0
      %785 = vmatpush1.msra.mxu0 0.0
      %786 = vmatprep.subr.mxu0 0.0
      %787 = vmatpush1.msra.mxu0 0.0
      %788 = vmatprep.subr.mxu0 0.0
      %789 = vmatpush1.msra.mxu0 0.0
      %790 = vmatprep.subr.mxu0 0.0
      %791 = vmatpush1.msra.mxu0 0.0
      %792 = vmatprep.subr.mxu0 0.0
      %793 = vmatpush1.msra.mxu0 0.0
      %794 = vmatprep.subr.mxu0 0.0
      %795 = vmatpush1.msra.mxu0 0.0
      %796 = vmatprep.subr.mxu0 0.0
      %797 = vmatpush1.msra.mxu0 0.0
      %798 = vmatprep.subr.mxu0 0.0
      %799 = vmatpush1.msra.mxu0 0.0
      %800 = vmatprep.subr.mxu0 0.0
      %801 = vmatpush1.msra.mxu0 0.0
      %802 = vmatprep.subr.mxu0 0.0
      %803 = vmatpush1.msra.mxu0 0.0
      %804 = vmatprep.subr.mxu0 0.0
      %805 = vmatpush1.msra.mxu0 0.0
      %806 = vmatprep.subr.mxu0 0.0
      %807 = vmatpush1.msra.mxu0 0.0
      %808 = vmatprep.subr.mxu0 0.0
      %809 = vmatpush1.msra.mxu0 0.0
      %810 = vmatprep.subr.mxu0 0.0
      %811 = vmatpush1.msra.mxu0 0.0
      %812 = vmatprep.subr.mxu0 0.0
      %813 = vmatpush1.msra.mxu0 0.0
      %814 = vmatprep.subr.mxu0 0.0
      %815 = vmatpush1.msra.mxu0 0.0
      %816 = vmatprep.subr.mxu0 0.0
      %817 = vmatpush1.msra.mxu0 0.0
      %818 = vmatprep.subr.mxu0 0.0
      %819 = vmatpush1.msra.mxu0 0.0
      %820 = vmatprep.subr.mxu0 0.0
      %821 = vmatpush1.msra.mxu0 0.0
      %822 = vmatprep.subr.mxu0 0.0
      %823 = vmatpush1.msra.mxu0 0.0
      %824 = vmatprep.subr.mxu0 0.0
      %825 = vmatpush1.msra.mxu0 0.0
      %826 = vmatprep.subr.mxu0 0.0
      %827 = vmatpush1.msra.mxu0 0.0
      %828 = vmatprep.mubr.f32.mxu0 0.0
      %829 = vmatmul.mubr.f32.gmra.mrb[0].mxu0 %v758
      %v830 = vpop.f32.mrb[0].mxu0
      %v831 = vadd.f32 0.0, %v830
      %v832 = vpop.f32.mrb[0].mxu0
      %833 = vdwg.mxu0
      %834 = vrot.lane.b32.xlu0 %v491, 120
      %v835 = vpop.permute.xlu0 %834
      %836 = vrot.lane.b32.xlu0 %v577, 120
      %v837 = vpop.permute.xlu0 %836
      %v838 = vsel %vm666, %v835, 0
      %v840 = vsel %vm666, %v837, 0
      %842 = vmatprep.subr.mxu0 0.0
      %843 = vmatpush1.xpose.msra.mxu0 %v840
      %844 = vmatprep.subr.mxu0 0.0
      %845 = vmatpush1.xpose.msra.mxu0 0.0
      %846 = vmatprep.subr.mxu0 0.0
      %847 = vmatpush1.xpose.msra.mxu0 0.0
      %848 = vmatprep.subr.mxu0 0.0
      %849 = vmatpush1.xpose.msra.mxu0 0.0
      %850 = vmatprep.subr.mxu0 0.0
      %851 = vmatpush1.xpose.msra.mxu0 0.0
      %852 = vmatprep.subr.mxu0 0.0
      %853 = vmatpush1.xpose.msra.mxu0 0.0
      %854 = vmatprep.subr.mxu0 0.0
      %855 = vmatpush1.xpose.msra.mxu0 0.0
      %856 = vmatprep.subr.mxu0 0.0
      %857 = vmatpush1.xpose.msra.mxu0 0.0
      %858 = vmatprep.subr.mxu0 0.0
      %859 = vmatpush1.xpose.msra.mxu0 0.0
      %860 = vmatprep.subr.mxu0 0.0
      %861 = vmatpush1.xpose.msra.mxu0 0.0
      %862 = vmatprep.subr.mxu0 0.0
      %863 = vmatpush1.xpose.msra.mxu0 0.0
      %864 = vmatprep.subr.mxu0 0.0
      %865 = vmatpush1.xpose.msra.mxu0 0.0
      %866 = vmatprep.subr.mxu0 0.0
      %867 = vmatpush1.xpose.msra.mxu0 0.0
      %868 = vmatprep.subr.mxu0 0.0
      %869 = vmatpush1.xpose.msra.mxu0 0.0
      %870 = vmatprep.subr.mxu0 0.0
      %871 = vmatpush1.xpose.msra.mxu0 0.0
      %872 = vmatprep.subr.mxu0 0.0
      %873 = vmatpush1.xpose.msra.mxu0 0.0
      %874 = vmatprep.subr.mxu0 0.0
      %875 = vmatpush1.xpose.msra.mxu0 0.0
      %876 = vmatprep.subr.mxu0 0.0
      %877 = vmatpush1.xpose.msra.mxu0 0.0
      %878 = vmatprep.subr.mxu0 0.0
      %879 = vmatpush1.xpose.msra.mxu0 0.0
      %880 = vmatprep.subr.mxu0 0.0
      %881 = vmatpush1.xpose.msra.mxu0 0.0
      %882 = vmatprep.subr.mxu0 0.0
      %883 = vmatpush1.xpose.msra.mxu0 0.0
      %884 = vmatprep.subr.mxu0 0.0
      %885 = vmatpush1.xpose.msra.mxu0 0.0
      %886 = vmatprep.subr.mxu0 0.0
      %887 = vmatpush1.xpose.msra.mxu0 0.0
      %888 = vmatprep.subr.mxu0 0.0
      %889 = vmatpush1.xpose.msra.mxu0 0.0
      %890 = vmatprep.subr.mxu0 0.0
      %891 = vmatpush1.xpose.msra.mxu0 0.0
      %892 = vmatprep.subr.mxu0 0.0
      %893 = vmatpush1.xpose.msra.mxu0 0.0
      %894 = vmatprep.subr.mxu0 0.0
      %895 = vmatpush1.xpose.msra.mxu0 0.0
      %896 = vmatprep.subr.mxu0 0.0
      %897 = vmatpush1.xpose.msra.mxu0 0.0
      %898 = vmatprep.subr.mxu0 0.0
      %899 = vmatpush1.xpose.msra.mxu0 0.0
      %900 = vmatprep.subr.mxu0 0.0
      %901 = vmatpush1.xpose.msra.mxu0 0.0
      %902 = vmatprep.subr.mxu0 0.0
      %903 = vmatpush1.xpose.msra.mxu0 0.0
      %904 = vmatprep.subr.mxu0 0.0
      %905 = vmatpush1.xpose.msra.mxu0 0.0
      %906 = vmatprep.mubr.f32.mxu0 0.0
      %907 = vmatmul.mubr.f32.gmra.mrb[0].mxu0 %v838
      %v908 = vpop.f32.mrb[0].mxu0
      %v909 = vadd.f32 0.0, %v908
      %v910 = vpop.f32.mrb[0].mxu0
      %911 = vdwg.mxu0
      %v912 = vmul.f32 %v909, 0.35355338
      %v913 = vsel %vm744, %v912, -inf
      %914 = vmax.xlane.f32.xlu0 %v913
      %v915 = vpop.xlane.xlu0 %914
      %v916 = vsub.f32 %v912, %v915
      %v917 = vmul.f32 %v916, 1.442695
      %v918 = vpow.pop %v917
      %v919 = vsel %vm744, %v918, 0.0
      %920 = vadd.xlane.f32.xlu0 %v919
      %v921 = vpop.xlane.xlu0 %920
      %v922 = vrcp.pop %v921
      %v923 = vmul.f32 %v918, %v922
      %924 = vrot.lane.b32.xlu0 %v663, 120
      %v925 = vpop.permute.xlu0 %924
      %v927 = vsel %vm756, %v923, 0
      %v929 = vsel %vm760, %v925, 0
      %931 = vmatprep.subr.mxu0 0.0
      %932 = vmatpush1.msra.mxu0 %v929
      %933 = vmatprep.subr.mxu0 0.0
      %934 = vmatpush1.msra.mxu0 0.0
      %935 = vmatprep.subr.mxu0 0.0
      %936 = vmatpush1.msra.mxu0 0.0
      %937 = vmatprep.subr.mxu0 0.0
      %938 = vmatpush1.msra.mxu0 0.0
      %939 = vmatprep.subr.mxu0 0.0
      %940 = vmatpush1.msra.mxu0 0.0
      %941 = vmatprep.subr.mxu0 0.0
      %942 = vmatpush1.msra.mxu0 0.0
      %943 = vmatprep.subr.mxu0 0.0
      %944 = vmatpush1.msra.mxu0 0.0
      %945 = vmatprep.subr.mxu0 0.0
      %946 = vmatpush1.msra.mxu0 0.0
      %947 = vmatprep.subr.mxu0 0.0
      %948 = vmatpush1.msra.mxu0 0.0
      %949 = vmatprep.subr.mxu0 0.0
      %950 = vmatpush1.msra.mxu0 0.0
      %951 = vmatprep.subr.mxu0 0.0
      %952 = vmatpush1.msra.mxu0 0.0
      %953 = vmatprep.subr.mxu0 0.0
      %954 = vmatpush1.msra.mxu0 0.0
      %955 = vmatprep.subr.mxu0 0.0
      %956 = vmatpush1.msra.mxu0 0.0
      %957 = vmatprep.subr.mxu0 0.0
      %958 = vmatpush1.msra.mxu0 0.0
      %959 = vmatprep.subr.mxu0 0.0
      %960 = vmatpush1.msra.mxu0 0.0
      %961 = vmatprep.subr.mxu0 0.0
      %962 = vmatpush1.msra.mxu0 0.0
      %963 = vmatprep.subr.mxu0 0.0
      %964 = vmatpush1.msra.mxu0 0.0
      %965 = vmatprep.subr.mxu0 0.0
      %966 = vmatpush1.msra.mxu0 0.0
      %967 = vmatprep.subr.mxu0 0.0
      %968 = vmatpush1.msra.mxu0 0.0
      %969 = vmatprep.subr.mxu0 0.0
      %970 = vmatpush1.msra.mxu0 0.0
      %971 = vmatprep.subr.mxu0 0.0
      %972 = vmatpush1.msra.mxu0 0.0
      %973 = vmatprep.subr.mxu0 0.0
      %974 = vmatpush1.msra.mxu0 0.0
      %975 = vmatprep.subr.mxu0 0.0
      %976 = vmatpush1.msra.mxu0 0.0
      %977 = vmatprep.subr.mxu0 0.0
      %978 = vmatpush1.msra.mxu0 0.0
      %979 = vmatprep.subr.mxu0 0.0
      %980 = vmatpush1.msra.mxu0 0.0
      %981 = vmatprep.subr.mxu0 0.0
      %982 = vmatpush1.msra.mxu0 0.0
      %983 = vmatprep.subr.mxu0 0.0
      %984 = vmatpush1.msra.mxu0 0.0
      %985 = vmatprep.subr.mxu0 0.0
      %986 = vmatpush1.msra.mxu0 0.0
      %987 = vmatprep.subr.mxu0 0.0
      %988 = vmatpush1.msra.mxu0 0.0
      %989 = vmatprep.subr.mxu0 0.0
      %990 = vmatpush1.msra.mxu0 0.0
      %991 = vmatprep.subr.mxu0 0.0
      %992 = vmatpush1.msra.mxu0 0.0
      %993 = vmatprep.subr.mxu0 0.0
      %994 = vmatpush1.msra.mxu0 0.0
      %995 = vmatprep.mubr.f32.mxu0 0.0
      %996 = vmatmul.mubr.f32.gmra.mrb[0].mxu0 %v927
      %v997 = vpop.f32.mrb[0].mxu0
      %v998 = vadd.f32 0.0, %v997
      %v999 = vpop.f32.mrb[0].mxu0
      %1000 = vdwg.mxu0
      %1001 = vrot.lane.b32.xlu0 %v491, 112
      %v1002 = vpop.permute.xlu0 %1001
      %1003 = vrot.lane.b32.xlu0 %v577, 112
      %v1004 = vpop.permute.xlu0 %1003
      %v1005 = vsel %vm666, %v1002, 0
      %v1007 = vsel %vm666, %v1004, 0
      %1009 = vmatprep.subr.mxu0 0.0
      %1010 = vmatpush1.xpose.msra.mxu0 %v1007
      %1011 = vmatprep.subr.mxu0 0.0
      %1012 = vmatpush1.xpose.msra.mxu0 0.0
      %1013 = vmatprep.subr.mxu0 0.0
      %1014 = vmatpush1.xpose.msra.mxu0 0.0
      %1015 = vmatprep.subr.mxu0 0.0
      %1016 = vmatpush1.xpose.msra.mxu0 0.0
      %1017 = vmatprep.subr.mxu0 0.0
      %1018 = vmatpush1.xpose.msra.mxu0 0.0
      %1019 = vmatprep.subr.mxu0 0.0
      %1020 = vmatpush1.xpose.msra.mxu0 0.0
      %1021 = vmatprep.subr.mxu0 0.0
      %1022 = vmatpush1.xpose.msra.mxu0 0.0
      %1023 = vmatprep.subr.mxu0 0.0
      %1024 = vmatpush1.xpose.msra.mxu0 0.0
      %1025 = vmatprep.subr.mxu0 0.0
      %1026 = vmatpush1.xpose.msra.mxu0 0.0
      %1027 = vmatprep.subr.mxu0 0.0
      %1028 = vmatpush1.xpose.msra.mxu0 0.0
      %1029 = vmatprep.subr.mxu0 0.0
      %1030 = vmatpush1.xpose.msra.mxu0 0.0
      %1031 = vmatprep.subr.mxu0 0.0
      %1032 = vmatpush1.xpose.msra.mxu0 0.0
      %1033 = vmatprep.subr.mxu0 0.0
      %1034 = vmatpush1.xpose.msra.mxu0 0.0
      %1035 = vmatprep.subr.mxu0 0.0
      %1036 = vmatpush1.xpose.msra.mxu0 0.0
      %1037 = vmatprep.subr.mxu0 0.0
      %1038 = vmatpush1.xpose.msra.mxu0 0.0
      %1039 = vmatprep.subr.mxu0 0.0
      %1040 = vmatpush1.xpose.msra.mxu0 0.0
      %1041 = vmatprep.subr.mxu0 0.0
      %1042 = vmatpush1.xpose.msra.mxu0 0.0
      %1043 = vmatprep.subr.mxu0 0.0
      %1044 = vmatpush1.xpose.msra.mxu0 0.0
      %1045 = vmatprep.subr.mxu0 0.0
      %1046 = vmatpush1.xpose.msra.mxu0 0.0
      %1047 = vmatprep.subr.mxu0 0.0
      %1048 = vmatpush1.xpose.msra.mxu0 0.0
      %1049 = vmatprep.subr.mxu0 0.0
      %1050 = vmatpush1.xpose.msra.mxu0 0.0
      %1051 = vmatprep.subr.mxu0 0.0
      %1052 = vmatpush1.xpose.msra.mxu0 0.0
      %1053 = vmatprep.subr.mxu0 0.0
      %1054 = vmatpush1.xpose.msra.mxu0 0.0
      %1055 = vmatprep.subr.mxu0 0.0
      %1056 = vmatpush1.xpose.msra.mxu0 0.0
      %1057 = vmatprep.subr.mxu0 0.0
      %1058 = vmatpush1.xpose.msra.mxu0 0.0
      %1059 = vmatprep.subr.mxu0 0.0
      %1060 = vmatpush1.xpose.msra.mxu0 0.0
      %1061 = vmatprep.subr.mxu0 0.0
      %1062 = vmatpush1.xpose.msra.mxu0 0.0
      %1063 = vmatprep.subr.mxu0 0.0
      %1064 = vmatpush1.xpose.msra.mxu0 0.0
      %1065 = vmatprep.subr.mxu0 0.0
      %1066 = vmatpush1.xpose.msra.mxu0 0.0
      %1067 = vmatprep.subr.mxu0 0.0
      %1068 = vmatpush1.xpose.msra.mxu0 0.0
      %1069 = vmatprep.subr.mxu0 0.0
      %1070 = vmatpush1.xpose.msra.mxu0 0.0
      %1071 = vmatprep.subr.mxu0 0.0
      %1072 = vmatpush1.xpose.msra.mxu0 0.0
      %1073 = vmatprep.mubr.f32.mxu0 0.0
      %1074 = vmatmul.mubr.f32.gmra.mrb[0].mxu0 %v1005
      %v1075 = vpop.f32.mrb[0].mxu0
      %v1076 = vadd.f32 0.0, %v1075
      %v1077 = vpop.f32.mrb[0].mxu0
      %1078 = vdwg.mxu0
      %v1079 = vmul.f32 %v1076, 0.35355338
      %v1080 = vsel %vm744, %v1079, -inf
      %1081 = vmax.xlane.f32.xlu0 %v1080
      %v1082 = vpop.xlane.xlu0 %1081
      %v1083 = vsub.f32 %v1079, %v1082
      %v1084 = vmul.f32 %v1083, 1.442695
      %v1085 = vpow.pop %v1084
      %v1086 = vsel %vm744, %v1085, 0.0
      %1087 = vadd.xlane.f32.xlu0 %v1086
      %v1088 = vpop.xlane.xlu0 %1087
      %v1089 = vrcp.pop %v1088
      %v1090 = vmul.f32 %v1085, %v1089
      %1091 = vrot.lane.b32.xlu0 %v663, 112
      %v1092 = vpop.permute.xlu0 %1091
      %v1094 = vsel %vm756, %v1090, 0
      %v1096 = vsel %vm760, %v1092, 0
      %1098 = vmatprep.subr.mxu0 0.0
      %1099 = vmatpush1.msra.mxu0 %v1096
      %1100 = vmatprep.subr.mxu0 0.0
      %1101 = vmatpush1.msra.mxu0 0.0
      %1102 = vmatprep.subr.mxu0 0.0
      %1103 = vmatpush1.msra.mxu0 0.0
      %1104 = vmatprep.subr.mxu0 0.0
      %1105 = vmatpush1.msra.mxu0 0.0
      %1106 = vmatprep.subr.mxu0 0.0
      %1107 = vmatpush1.msra.mxu0 0.0
      %1108 = vmatprep.subr.mxu0 0.0
      %1109 = vmatpush1.msra.mxu0 0.0
      %1110 = vmatprep.subr.mxu0 0.0
      %1111 = vmatpush1.msra.mxu0 0.0
      %1112 = vmatprep.subr.mxu0 0.0
      %1113 = vmatpush1.msra.mxu0 0.0
      %1114 = vmatprep.subr.mxu0 0.0
      %1115 = vmatpush1.msra.mxu0 0.0
      %1116 = vmatprep.subr.mxu0 0.0
      %1117 = vmatpush1.msra.mxu0 0.0
      %1118 = vmatprep.subr.mxu0 0.0
      %1119 = vmatpush1.msra.mxu0 0.0
      %1120 = vmatprep.subr.mxu0 0.0
      %1121 = vmatpush1.msra.mxu0 0.0
      %1122 = vmatprep.subr.mxu0 0.0
      %1123 = vmatpush1.msra.mxu0 0.0
      %1124 = vmatprep.subr.mxu0 0.0
      %1125 = vmatpush1.msra.mxu0 0.0
      %1126 = vmatprep.subr.mxu0 0.0
      %1127 = vmatpush1.msra.mxu0 0.0
      %1128 = vmatprep.subr.mxu0 0.0
      %1129 = vmatpush1.msra.mxu0 0.0
      %1130 = vmatprep.subr.mxu0 0.0
      %1131 = vmatpush1.msra.mxu0 0.0
      %1132 = vmatprep.subr.mxu0 0.0
      %1133 = vmatpush1.msra.mxu0 0.0
      %1134 = vmatprep.subr.mxu0 0.0
      %1135 = vmatpush1.msra.mxu0 0.0
      %1136 = vmatprep.subr.mxu0 0.0
      %1137 = vmatpush1.msra.mxu0 0.0
      %1138 = vmatprep.subr.mxu0 0.0
      %1139 = vmatpush1.msra.mxu0 0.0
      %1140 = vmatprep.subr.mxu0 0.0
      %1141 = vmatpush1.msra.mxu0 0.0
      %1142 = vmatprep.subr.mxu0 0.0
      %1143 = vmatpush1.msra.mxu0 0.0
      %1144 = vmatprep.subr.mxu0 0.0
      %1145 = vmatpush1.msra.mxu0 0.0
      %1146 = vmatprep.subr.mxu0 0.0
      %1147 = vmatpush1.msra.mxu0 0.0
      %1148 = vmatprep.subr.mxu0 0.0
      %1149 = vmatpush1.msra.mxu0 0.0
      %1150 = vmatprep.subr.mxu0 0.0
      %1151 = vmatpush1.msra.mxu0 0.0
      %1152 = vmatprep.subr.mxu0 0.0
      %1153 = vmatpush1.msra.mxu0 0.0
      %1154 = vmatprep.subr.mxu0 0.0
      %1155 = vmatpush1.msra.mxu0 0.0
      %1156 = vmatprep.subr.mxu0 0.0
      %1157 = vmatpush1.msra.mxu0 0.0
      %1158 = vmatprep.subr.mxu0 0.0
      %1159 = vmatpush1.msra.mxu0 0.0
      %1160 = vmatprep.subr.mxu0 0.0
      %1161 = vmatpush1.msra.mxu0 0.0
      %1162 = vmatprep.mubr.f32.mxu0 0.0
      %1163 = vmatmul.mubr.f32.gmra.mrb[0].mxu0 %v1094
      %v1164 = vpop.f32.mrb[0].mxu0
      %v1165 = vadd.f32 0.0, %v1164
      %v1166 = vpop.f32.mrb[0].mxu0
      %1167 = vdwg.mxu0
      %1168 = vrot.lane.b32.xlu0 %v491, 104
      %v1169 = vpop.permute.xlu0 %1168
      %1170 = vrot.lane.b32.xlu0 %v577, 104
      %v1171 = vpop.permute.xlu0 %1170
      %v1172 = vsel %vm666, %v1169, 0
      %v1174 = vsel %vm666, %v1171, 0
      %1176 = vmatprep.subr.mxu0 0.0
      %1177 = vmatpush1.xpose.msra.mxu0 %v1174
      %1178 = vmatprep.subr.mxu0 0.0
      %1179 = vmatpush1.xpose.msra.mxu0 0.0
      %1180 = vmatprep.subr.mxu0 0.0
      %1181 = vmatpush1.xpose.msra.mxu0 0.0
      %1182 = vmatprep.subr.mxu0 0.0
      %1183 = vmatpush1.xpose.msra.mxu0 0.0
      %1184 = vmatprep.subr.mxu0 0.0
      %1185 = vmatpush1.xpose.msra.mxu0 0.0
      %1186 = vmatprep.subr.mxu0 0.0
      %1187 = vmatpush1.xpose.msra.mxu0 0.0
      %1188 = vmatprep.subr.mxu0 0.0
      %1189 = vmatpush1.xpose.msra.mxu0 0.0
      %1190 = vmatprep.subr.mxu0 0.0
      %1191 = vmatpush1.xpose.msra.mxu0 0.0
      %1192 = vmatprep.subr.mxu0 0.0
      %1193 = vmatpush1.xpose.msra.mxu0 0.0
      %1194 = vmatprep.subr.mxu0 0.0
      %1195 = vmatpush1.xpose.msra.mxu0 0.0
      %1196 = vmatprep.subr.mxu0 0.0
      %1197 = vmatpush1.xpose.msra.mxu0 0.0
      %1198 = vmatprep.subr.mxu0 0.0
      %1199 = vmatpush1.xpose.msra.mxu0 0.0
      %1200 = vmatprep.subr.mxu0 0.0
      %1201 = vmatpush1.xpose.msra.mxu0 0.0
      %1202 = vmatprep.subr.mxu0 0.0
      %1203 = vmatpush1.xpose.msra.mxu0 0.0
      %1204 = vmatprep.subr.mxu0 0.0
      %1205 = vmatpush1.xpose.msra.mxu0 0.0
      %1206 = vmatprep.subr.mxu0 0.0
      %1207 = vmatpush1.xpose.msra.mxu0 0.0
      %1208 = vmatprep.subr.mxu0 0.0
      %1209 = vmatpush1.xpose.msra.mxu0 0.0
      %1210 = vmatprep.subr.mxu0 0.0
      %1211 = vmatpush1.xpose.msra.mxu0 0.0
      %1212 = vmatprep.subr.mxu0 0.0
      %1213 = vmatpush1.xpose.msra.mxu0 0.0
      %1214 = vmatprep.subr.mxu0 0.0
      %1215 = vmatpush1.xpose.msra.mxu0 0.0
      %1216 = vmatprep.subr.mxu0 0.0
      %1217 = vmatpush1.xpose.msra.mxu0 0.0
      %1218 = vmatprep.subr.mxu0 0.0
      %1219 = vmatpush1.xpose.msra.mxu0 0.0
      %1220 = vmatprep.subr.mxu0 0.0
      %1221 = vmatpush1.xpose.msra.mxu0 0.0
      %1222 = vmatprep.subr.mxu0 0.0
      %1223 = vmatpush1.xpose.msra.mxu0 0.0
      %1224 = vmatprep.subr.mxu0 0.0
      %1225 = vmatpush1.xpose.msra.mxu0 0.0
      %1226 = vmatprep.subr.mxu0 0.0
      %1227 = vmatpush1.xpose.msra.mxu0 0.0
      %1228 = vmatprep.subr.mxu0 0.0
      %1229 = vmatpush1.xpose.msra.mxu0 0.0
      %1230 = vmatprep.subr.mxu0 0.0
      %1231 = vmatpush1.xpose.msra.mxu0 0.0
      %1232 = vmatprep.subr.mxu0 0.0
      %1233 = vmatpush1.xpose.msra.mxu0 0.0
      %1234 = vmatprep.subr.mxu0 0.0
      %1235 = vmatpush1.xpose.msra.mxu0 0.0
      %1236 = vmatprep.subr.mxu0 0.0
      %1237 = vmatpush1.xpose.msra.mxu0 0.0
      %1238 = vmatprep.subr.mxu0 0.0
      %1239 = vmatpush1.xpose.msra.mxu0 0.0
      %1240 = vmatprep.mubr.f32.mxu0 0.0
      %1241 = vmatmul.mubr.f32.gmra.mrb[0].mxu0 %v1172
      %v1242 = vpop.f32.mrb[0].mxu0
      %v1243 = vadd.f32 0.0, %v1242
      %v1244 = vpop.f32.mrb[0].mxu0
      %1245 = vdwg.mxu0
      %v1246 = vmul.f32 %v1243, 0.35355338
      %v1247 = vsel %vm744, %v1246, -inf
      %1248 = vmax.xlane.f32.xlu0 %v1247
      %v1249 = vpop.xlane.xlu0 %1248
      %v1250 = vsub.f32 %v1246, %v1249
      %v1251 = vmul.f32 %v1250, 1.442695
      %v1252 = vpow.pop %v1251
      %v1253 = vsel %vm744, %v1252, 0.0
      %1254 = vadd.xlane.f32.xlu0 %v1253
      %v1255 = vpop.xlane.xlu0 %1254
      %v1256 = vrcp.pop %v1255
      %v1257 = vmul.f32 %v1252, %v1256
      %1258 = vrot.lane.b32.xlu0 %v663, 104
      %v1259 = vpop.permute.xlu0 %1258
      %v1261 = vsel %vm756, %v1257, 0
      %v1263 = vsel %vm760, %v1259, 0
      %1265 = vmatprep.subr.mxu0 0.0
      %1266 = vmatpush1.msra.mxu0 %v1263
      %1267 = vmatprep.subr.mxu0 0.0
      %1268 = vmatpush1.msra.mxu0 0.0
      %1269 = vmatprep.subr.mxu0 0.0
      %1270 = vmatpush1.msra.mxu0 0.0
      %1271 = vmatprep.subr.mxu0 0.0
      %1272 = vmatpush1.msra.mxu0 0.0
      %1273 = vmatprep.subr.mxu0 0.0
      %1274 = vmatpush1.msra.mxu0 0.0
      %1275 = vmatprep.subr.mxu0 0.0
      %1276 = vmatpush1.msra.mxu0 0.0
      %1277 = vmatprep.subr.mxu0 0.0
      %1278 = vmatpush1.msra.mxu0 0.0
      %1279 = vmatprep.subr.mxu0 0.0
      %1280 = vmatpush1.msra.mxu0 0.0
      %1281 = vmatprep.subr.mxu0 0.0
      %1282 = vmatpush1.msra.mxu0 0.0
      %1283 = vmatprep.subr.mxu0 0.0
      %1284 = vmatpush1.msra.mxu0 0.0
      %1285 = vmatprep.subr.mxu0 0.0
      %1286 = vmatpush1.msra.mxu0 0.0
      %1287 = vmatprep.subr.mxu0 0.0
      %1288 = vmatpush1.msra.mxu0 0.0
      %1289 = vmatprep.subr.mxu0 0.0
      %1290 = vmatpush1.msra.mxu0 0.0
      %1291 = vmatprep.subr.mxu0 0.0
      %1292 = vmatpush1.msra.mxu0 0.0
      %1293 = vmatprep.subr.mxu0 0.0
      %1294 = vmatpush1.msra.mxu0 0.0
      %1295 = vmatprep.subr.mxu0 0.0
      %1296 = vmatpush1.msra.mxu0 0.0
      %1297 = vmatprep.subr.mxu0 0.0
      %1298 = vmatpush1.msra.mxu0 0.0
      %1299 = vmatprep.subr.mxu0 0.0
      %1300 = vmatpush1.msra.mxu0 0.0
      %1301 = vmatprep.subr.mxu0 0.0
      %1302 = vmatpush1.msra.mxu0 0.0
      %1303 = vmatprep.subr.mxu0 0.0
      %1304 = vmatpush1.msra.mxu0 0.0
      %1305 = vmatprep.subr.mxu0 0.0
      %1306 = vmatpush1.msra.mxu0 0.0
      %1307 = vmatprep.subr.mxu0 0.0
      %1308 = vmatpush1.msra.mxu0 0.0
      %1309 = vmatprep.subr.mxu0 0.0
      %1310 = vmatpush1.msra.mxu0 0.0
      %1311 = vmatprep.subr.mxu0 0.0
      %1312 = vmatpush1.msra.mxu0 0.0
      %1313 = vmatprep.subr.mxu0 0.0
      %1314 = vmatpush1.msra.mxu0 0.0
      %1315 = vmatprep.subr.mxu0 0.0
      %1316 = vmatpush1.msra.mxu0 0.0
      %1317 = vmatprep.subr.mxu0 0.0
      %1318 = vmatpush1.msra.mxu0 0.0
      %1319 = vmatprep.subr.mxu0 0.0
      %1320 = vmatpush1.msra.mxu0 0.0
      %1321 = vmatprep.subr.mxu0 0.0
      %1322 = vmatpush1.msra.mxu0 0.0
      %1323 = vmatprep.subr.mxu0 0.0
      %1324 = vmatpush1.msra.mxu0 0.0
      %1325 = vmatprep.subr.mxu0 0.0
      %1326 = vmatpush1.msra.mxu0 0.0
      %1327 = vmatprep.subr.mxu0 0.0
      %1328 = vmatpush1.msra.mxu0 0.0
      %1329 = vmatprep.mubr.f32.mxu0 0.0
      %1330 = vmatmul.mubr.f32.gmra.mrb[0].mxu0 %v1261
      %v1331 = vpop.f32.mrb[0].mxu0
      %v1332 = vadd.f32 0.0, %v1331
      %v1333 = vpop.f32.mrb[0].mxu0
      %1334 = vdwg.mxu0
      %1336 = vrot.lane.b32.xlu0 %v998, 8
      %v1337 = vpop.permute.xlu0 %1336
      %1340 = vrot.lane.b32.xlu0 %v1165, 16
      %v1341 = vpop.permute.xlu0 %1340
      %1344 = vrot.lane.b32.xlu0 %v1332, 24
      %v1345 = vpop.permute.xlu0 %1344
      %v1347 = vsel %vm666, %v831, %v1337
      %vm1348 = vcmask 130048
      %v1349 = vsel %vm1348, %v1347, %v1341
      %vm1350 = vcmask 195584
      %v1351 = vsel %vm1350, %v1349, %v1345
      %v1352 = vld [vmem:[%s6] sm:$0xff]
      %v1353 = vld [vmem:[%s6 + $0x8] sm:$0xff]
      %v1354 = vld [vmem:[%s6 + $0x10] sm:$0xff]
      %v1355 = vld [vmem:[%s6 + $0x18] sm:$0xff]
      %v1356 = vld [vmem:[%s7] sm:$0x1]
      %v1358 = vlaneseq
      %v1359 = vshrl.u32 %v1358, 7
      %v1360 = vsub.s32 0, %v1359
      %v1361 = vrot.slane %v1356, %v1360
      %v1364 = vsel %vm420, %v1351, 0
      %1366 = vmatprep.subr.mxu0 0.0
      %1367 = vmatpush1.msra.mxu0 %v1352
      %1368 = vmatprep.subr.mxu0 0.0
      %1369 = vmatpush1.msra.mxu0 %v1353
      %1370 = vmatprep.subr.mxu0 0.0
      %1371 = vmatpush1.msra.mxu0 %v1354
      %1372 = vmatprep.subr.mxu0 0.0
      %1373 = vmatpush1.msra.mxu0 %v1355
      %1374 = vmatprep.subr.mxu0 0.0
      %1375 = vmatpush1.msra.mxu0 0.0
      %1376 = vmatprep.subr.mxu0 0.0
      %1377 = vmatpush1.msra.mxu0 0.0
      %1378 = vmatprep.subr.mxu0 0.0
      %1379 = vmatpush1.msra.mxu0 0.0
      %1380 = vmatprep.subr.mxu0 0.0
      %1381 = vmatpush1.msra.mxu0 0.0
      %1382 = vmatprep.subr.mxu0 0.0
      %1383 = vmatpush1.msra.mxu0 0.0
      %1384 = vmatprep.subr.mxu0 0.0
      %1385 = vmatpush1.msra.mxu0 0.0
      %1386 = vmatprep.subr.mxu0 0.0
      %1387 = vmatpush1.msra.mxu0 0.0
      %1388 = vmatprep.subr.mxu0 0.0
      %1389 = vmatpush1.msra.mxu0 0.0
      %1390 = vmatprep.subr.mxu0 0.0
      %1391 = vmatpush1.msra.mxu0 0.0
      %1392 = vmatprep.subr.mxu0 0.0
      %1393 = vmatpush1.msra.mxu0 0.0
      %1394 = vmatprep.subr.mxu0 0.0
      %1395 = vmatpush1.msra.mxu0 0.0
      %1396 = vmatprep.subr.mxu0 0.0
      %1397 = vmatpush1.msra.mxu0 0.0
      %1398 = vmatprep.subr.mxu0 0.0
      %1399 = vmatpush1.msra.mxu0 0.0
      %1400 = vmatprep.subr.mxu0 0.0
      %1401 = vmatpush1.msra.mxu0 0.0
      %1402 = vmatprep.subr.mxu0 0.0
      %1403 = vmatpush1.msra.mxu0 0.0
      %1404 = vmatprep.subr.mxu0 0.0
      %1405 = vmatpush1.msra.mxu0 0.0
      %1406 = vmatprep.subr.mxu0 0.0
      %1407 = vmatpush1.msra.mxu0 0.0
      %1408 = vmatprep.subr.mxu0 0.0
      %1409 = vmatpush1.msra.mxu0 0.0
      %1410 = vmatprep.subr.mxu0 0.0
      %1411 = vmatpush1.msra.mxu0 0.0
      %1412 = vmatprep.subr.mxu0 0.0
      %1413 = vmatpush1.msra.mxu0 0.0
      %1414 = vmatprep.subr.mxu0 0.0
      %1415 = vmatpush1.msra.mxu0 0.0
      %1416 = vmatprep.subr.mxu0 0.0
      %1417 = vmatpush1.msra.mxu0 0.0
      %1418 = vmatprep.subr.mxu0 0.0
      %1419 = vmatpush1.msra.mxu0 0.0
      %1420 = vmatprep.subr.mxu0 0.0
      %1421 = vmatpush1.msra.mxu0 0.0
      %1422 = vmatprep.subr.mxu0 0.0
      %1423 = vmatpush1.msra.mxu0 0.0
      %1424 = vmatprep.subr.mxu0 0.0
      %1425 = vmatpush1.msra.mxu0 0.0
      %1426 = vmatprep.subr.mxu0 0.0
      %1427 = vmatpush1.msra.mxu0 0.0
      %1428 = vmatprep.subr.mxu0 0.0
      %1429 = vmatpush1.msra.mxu0 0.0
      %1430 = vmatprep.mubr.f32.mxu0 0.0
      %1431 = vmatmul.mubr.f32.gmra.mrb[0].mxu0 %v1364
      %v1432 = vpop.f32.mrb[0].mxu0
      %v1433 = vadd.f32 %v1361, %v1432
      %v1434 = vpop.f32.mrb[0].mxu0
      %1435 = vdwg.mxu0
      %v1436 = vld [vmem:[%s401] sm:$0xf]
      %v1437 = vadd.f32 %v1436, %v1433
      %vm1438 = vcmask 257024
      %v1439 = vsel %vm1438, %v1437, 0.0
      %1440 = vadd.xlane.f32.xlu0 %v1439
      %v1441 = vpop.xlane.xlu0 %1440
      %v1442 = vrcp.pop 32.0
      %v1443 = vmul.f32 %v1441, %v1442
      %v1444 = vsub.f32 %v1437, %v1443
      %v1445 = vmul.f32 %v1444, %v1444
      %v1446 = vsel %vm1438, %v1445, 0.0
      %1447 = vadd.xlane.f32.xlu0 %v1446
      %v1448 = vpop.xlane.xlu0 %1447
      %v1449 = vmul.f32 %v1448, %v1442
      %v1450 = vadd.f32 %v1449, 1e-05
      %v1451 = vrsqrt.pop %v1450
      %v1452 = vmul.f32 %v1444, %v1451
      %v1453 = vld [vmem:[%s8] sm:$0x1]
      %v1455 = vlaneseq
      %v1456 = vshrl.u32 %v1455, 7
      %v1457 = vsub.s32 0, %v1456
      %v1458 = vrot.slane %v1453, %v1457
      %v1460 = vmul.f32 %v1452, %v1458
      %v1461 = vld [vmem:[%s9] sm:$0x1]
      %v1463 = vlaneseq
      %v1464 = vshrl.u32 %v1463, 7
      %v1465 = vsub.s32 0, %v1464
      %v1466 = vrot.slane %v1461, %v1465
      %v1468 = vadd.f32 %v1460, %v1466
      %1469 = vst.msk [vmem:[%s405] sm:$0xf] %vm1438, %v1468
      %p1470 = scmp.lt.s32.totalorder %s21, 7
      %s1471 = scalar_select %p1470, %s21, 7
      %s1472 = smul.addr %s1471, 4
      %s1473 = scalar_lea.vmem %s10, %s1472
      // Predicated region
      $region61: #{_ssa_core.21} parent=59 // pred_check
        %p1474 = pneg %p269
      $region62: #{_ssa_core.21} parent=59 // pred_check_branch
        %1476 = sbr.rel (%p1474) target = $region64
      $region63: #{_ssa_core.21} parent=59 // pred_region
        _
      $region64: #{_ssa_core.21} parent=59 // pred_fallthru
        _
    $region60: #{_ssa_core.21} parent=5 // pred_fallthru
      _
    %p1477 = scmp.le.s32.totalorder 2, %s16
    // Predicated region
    $region65: #{_ssa_core.21} parent=5 // pred_check
      %p1478 = pneg %p1477
    $region66: #{_ssa_core.21} parent=5 // pred_check_branch
      %1480 = sbr.rel (%p1478) target = $region68
    $region67: #{_ssa_core.21} parent=5 // pred_region
      %s1481 = ssub.s32 %s16, 2
      // Predicated region
      $region69: #{_ssa_core.21} parent=67 // pred_check
        %p1482 = pneg %p275
      $region70: #{_ssa_core.21} parent=67 // pred_check_branch
        %1484 = sbr.rel (%p1482) target = $region72
      $region71: #{_ssa_core.21} parent=67 // pred_region
        %p1485 = scmp.lt.s32.totalorder %s22, 7
        %s1486 = scalar_select %p1485, %s22, 7
        %s1487 = smul.addr %s1486, 4
        %s1488 = scalar_lea.vmem %s10, %s1487
      $region72: #{_ssa_core.21} parent=67 // pred_fallthru
        _
    $region68: #{_ssa_core.21} parent=5 // pred_fallthru
      _
  $region6: #{_ssa_core.21} parent=0 // loop_footer
    %s20 = sadd.s32 1, %s16
  $region7: #{_ssa_core.21} parent=0 // loop_footer_branch
    %15 = sbr.rel target = $region3
  $region8: #{_ssa_core.21} parent=0 // loop_exit
    _

// kernel: _ssa_core.24
$region0: #{_ssa_core.24}
  #allocation0 [shape = 'u32[]', space=smem, size = 0x4, offset = 0x4, fixed_abs, tag = 'smem constant byte address 0x4 - core index']
  #allocation1 [shape = 'u32[144,128]{1,0:T(1,128)}', space=vmem, size = 0x12000, scoped, tag = 'internal scratch']
  %s0 = inlined_call_operand.vmem [shape: f32[1,8,32], index: 0, kind: input, shape index: {}]
  %s1 = inlined_call_operand.vmem [shape: f32[1,4,32], index: 1, kind: input, shape index: {}, may-alias: {1,2}]
  %s2 = inlined_call_operand.vmem [shape: f32[1,4,32], index: 2, kind: input, shape index: {}, may-alias: {1,2}]
  %s3 = inlined_call_operand.vmem [shape: f32[1,8,32], index: 3, kind: input, shape index: {}]
  %s4 = inlined_call_operand.vmem [shape: f32[3,32,32], index: 4, kind: input, shape index: {}]
  %s5 = inlined_call_operand.vmem [shape: f32[3,1,32], index: 5, kind: input, shape index: {}]
  %s6 = inlined_call_operand.vmem [shape: f32[32,32], index: 6, kind: input, shape index: {}]
  %s7 = inlined_call_operand.vmem [shape: f32[1,32], index: 7, kind: input, shape index: {}]
  %s8 = inlined_call_operand.vmem [shape: f32[1,32], index: 8, kind: input, shape index: {}]
  %s9 = inlined_call_operand.vmem [shape: f32[1,32], index: 9, kind: input, shape index: {}]
  %s10 = inlined_call_operand.vmem [shape: f32[1,8,32], index: 10, kind: output, shape index: {}]
  %s11 = sld [smem:[#allocation0]]
  $region50: #{_ssa_core.24} parent=0
    _
  %s13 = ssub.s32 1, %s11
  %s14 = scalar_select 0, %s13, %s11
  // Predicated region
  $region2: #{_ssa_core.24} parent=0 // pred_check
    _
  $region3: #{_ssa_core.24} parent=0 // pred_check_branch
    %16 = sbr.rel (0) target = $region5
  $region4: #{_ssa_core.24} parent=0 // pred_region
    _
  $region5: #{_ssa_core.24} parent=0 // pred_fallthru
    _
  // Predicated region
  $region6: #{_ssa_core.24} parent=0 // pred_check
    _
  $region7: #{_ssa_core.24} parent=0 // pred_check_branch
    %18 = sbr.rel (0) target = $region9
  $region8: #{_ssa_core.24} parent=0 // pred_region
    _
  $region9: #{_ssa_core.24} parent=0 // pred_fallthru
    _
  // Predicated region
  $region10: #{_ssa_core.24} parent=0 // pred_check
    _
  $region11: #{_ssa_core.24} parent=0 // pred_check_branch
    %20 = sbr.rel (0) target = $region13
  $region12: #{_ssa_core.24} parent=0 // pred_region
    _
  $region13: #{_ssa_core.24} parent=0 // pred_fallthru
    _
  // Predicated region
  $region14: #{_ssa_core.24} parent=0 // pred_check
    _
  $region15: #{_ssa_core.24} parent=0 // pred_check_branch
    %22 = sbr.rel (0) target = $region17
  $region16: #{_ssa_core.24} parent=0 // pred_region
    _
  $region17: #{_ssa_core.24} parent=0 // pred_fallthru
    _
  // Predicated region
  $region18: #{_ssa_core.24} parent=0 // pred_check
    _
  $region19: #{_ssa_core.24} parent=0 // pred_check_branch
    %24 = sbr.rel (0) target = $region21
  $region20: #{_ssa_core.24} parent=0 // pred_region
    _
  $region21: #{_ssa_core.24} parent=0 // pred_fallthru
    _
  // Predicated region
  $region22: #{_ssa_core.24} parent=0 // pred_check
    _
  $region23: #{_ssa_core.24} parent=0 // pred_check_branch
    %26 = sbr.rel (0) target = $region25
  $region24: #{_ssa_core.24} parent=0 // pred_region
    _
  $region25: #{_ssa_core.24} parent=0 // pred_fallthru
    _
  // Predicated region
  $region26: #{_ssa_core.24} parent=0 // pred_check
    _
  $region27: #{_ssa_core.24} parent=0 // pred_check_branch
    %28 = sbr.rel (0) target = $region29
  $region28: #{_ssa_core.24} parent=0 // pred_region
    _
  $region29: #{_ssa_core.24} parent=0 // pred_fallthru
    _
  // Predicated region
  $region30: #{_ssa_core.24} parent=0 // pred_check
    _
  $region31: #{_ssa_core.24} parent=0 // pred_check_branch
    %30 = sbr.rel (0) target = $region33
  $region32: #{_ssa_core.24} parent=0 // pred_region
    _
  $region33: #{_ssa_core.24} parent=0 // pred_fallthru
    _
  // Predicated region
  $region34: #{_ssa_core.24} parent=0 // pred_check
    _
  $region35: #{_ssa_core.24} parent=0 // pred_check_branch
    %32 = sbr.rel (0) target = $region37
  $region36: #{_ssa_core.24} parent=0 // pred_region
    _
  $region37: #{_ssa_core.24} parent=0 // pred_fallthru
    _
  // Predicated region
  $region38: #{_ssa_core.24} parent=0 // pred_check
    _
  $region39: #{_ssa_core.24} parent=0 // pred_check_branch
    %34 = sbr.rel (0) target = $region41
  $region40: #{_ssa_core.24} parent=0 // pred_region
    _
  $region41: #{_ssa_core.24} parent=0 // pred_fallthru
    _
  %v35 = vld [vmem:[%s0] sm:$0xff]
  %v36 = vld [vmem:[%s1] sm:$0xf]
  %v37 = vld [vmem:[%s2] sm:$0xf]
  %v38 = vld [vmem:[%s4] sm:$0xff]
  %v39 = vld [vmem:[%s4 + $0x8] sm:$0xff]
  %v40 = vld [vmem:[%s4 + $0x10] sm:$0xff]
  %v41 = vld [vmem:[%s4 + $0x18] sm:$0xff]
  %v42 = vld [vmem:[%s5] sm:$0x1]
  %v44 = vlaneseq
  %v45 = vshrl.u32 %v44, 7
  %v46 = vsub.s32 0, %v45
  %v47 = vrot.slane %v42, %v46
  %vm49 = vcmask 261120
  %v51 = vsel %vm49, %v35, 0
  %53 = vmatprep.subr.mxu0 0.0
  %54 = vmatpush1.msra.mxu0 %v38
  %55 = vmatprep.subr.mxu0 0.0
  %56 = vmatpush1.msra.mxu0 %v39
  %57 = vmatprep.subr.mxu0 0.0
  %58 = vmatpush1.msra.mxu0 %v40
  %59 = vmatprep.subr.mxu0 0.0
  %60 = vmatpush1.msra.mxu0 %v41
  %61 = vmatprep.subr.mxu0 0.0
  %62 = vmatpush1.msra.mxu0 0.0
  %63 = vmatprep.subr.mxu0 0.0
  %64 = vmatpush1.msra.mxu0 0.0
  %65 = vmatprep.subr.mxu0 0.0
  %66 = vmatpush1.msra.mxu0 0.0
  %67 = vmatprep.subr.mxu0 0.0
  %68 = vmatpush1.msra.mxu0 0.0
  %69 = vmatprep.subr.mxu0 0.0
  %70 = vmatpush1.msra.mxu0 0.0
  %71 = vmatprep.subr.mxu0 0.0
  %72 = vmatpush1.msra.mxu0 0.0
  %73 = vmatprep.subr.mxu0 0.0
  %74 = vmatpush1.msra.mxu0 0.0
  %75 = vmatprep.subr.mxu0 0.0
  %76 = vmatpush1.msra.mxu0 0.0
  %77 = vmatprep.subr.mxu0 0.0
  %78 = vmatpush1.msra.mxu0 0.0
  %79 = vmatprep.subr.mxu0 0.0
  %80 = vmatpush1.msra.mxu0 0.0
  %81 = vmatprep.subr.mxu0 0.0
  %82 = vmatpush1.msra.mxu0 0.0
  %83 = vmatprep.subr.mxu0 0.0
  %84 = vmatpush1.msra.mxu0 0.0
  %85 = vmatprep.subr.mxu0 0.0
  %86 = vmatpush1.msra.mxu0 0.0
  %87 = vmatprep.subr.mxu0 0.0
  %88 = vmatpush1.msra.mxu0 0.0
  %89 = vmatprep.subr.mxu0 0.0
  %90 = vmatpush1.msra.mxu0 0.0
  %91 = vmatprep.subr.mxu0 0.0
  %92 = vmatpush1.msra.mxu0 0.0
  %93 = vmatprep.subr.mxu0 0.0
  %94 = vmatpush1.msra.mxu0 0.0
  %95 = vmatprep.subr.mxu0 0.0
  %96 = vmatpush1.msra.mxu0 0.0
  %97 = vmatprep.subr.mxu0 0.0
  %98 = vmatpush1.msra.mxu0 0.0
  %99 = vmatprep.subr.mxu0 0.0
  %100 = vmatpush1.msra.mxu0 0.0
  %101 = vmatprep.subr.mxu0 0.0
  %102 = vmatpush1.msra.mxu0 0.0
  %103 = vmatprep.subr.mxu0 0.0
  %104 = vmatpush1.msra.mxu0 0.0
  %105 = vmatprep.subr.mxu0 0.0
  %106 = vmatpush1.msra.mxu0 0.0
  %107 = vmatprep.subr.mxu0 0.0
  %108 = vmatpush1.msra.mxu0 0.0
  %109 = vmatprep.subr.mxu0 0.0
  %110 = vmatpush1.msra.mxu0 0.0
  %111 = vmatprep.subr.mxu0 0.0
  %112 = vmatpush1.msra.mxu0 0.0
  %113 = vmatprep.subr.mxu0 0.0
  %114 = vmatpush1.msra.mxu0 0.0
  %115 = vmatprep.subr.mxu0 0.0
  %116 = vmatpush1.msra.mxu0 0.0
  %117 = vmatprep.mubr.f32.mxu0 0.0
  %118 = vmatmul.mubr.f32.gmra.mrb[0].mxu0 %v51
  %v119 = vpop.f32.mrb[0].mxu0
  %v120 = vadd.f32 %v47, %v119
  %v121 = vpop.f32.mrb[0].mxu0
  %122 = vdwg.mxu0
  %s123 = scalar_lea.vmem %s4, 32
  %v124 = vld [vmem:[%s123] sm:$0xff]
  %v125 = vld [vmem:[%s123 + $0x8] sm:$0xff]
  %v126 = vld [vmem:[%s123 + $0x10] sm:$0xff]
  %v127 = vld [vmem:[%s123 + $0x18] sm:$0xff]
  %s128 = scalar_lea.vmem %s5, 1
  %v129 = vld [vmem:[%s128] sm:$0x1]
  %v131 = vlaneseq
  %v132 = vshrl.u32 %v131, 7
  %v133 = vsub.s32 0, %v132
  %v134 = vrot.slane %v129, %v133
  %v137 = vsel %vm49, %v36, 0
  %139 = vmatprep.subr.mxu0 0.0
  %140 = vmatpush1.msra.mxu0 %v124
  %141 = vmatprep.subr.mxu0 0.0
  %142 = vmatpush1.msra.mxu0 %v125
  %143 = vmatprep.subr.mxu0 0.0
  %144 = vmatpush1.msra.mxu0 %v126
  %145 = vmatprep.subr.mxu0 0.0
  %146 = vmatpush1.msra.mxu0 %v127
  %147 = vmatprep.subr.mxu0 0.0
  %148 = vmatpush1.msra.mxu0 0.0
  %149 = vmatprep.subr.mxu0 0.0
  %150 = vmatpush1.msra.mxu0 0.0
  %151 = vmatprep.subr.mxu0 0.0
  %152 = vmatpush1.msra.mxu0 0.0
  %153 = vmatprep.subr.mxu0 0.0
  %154 = vmatpush1.msra.mxu0 0.0
  %155 = vmatprep.subr.mxu0 0.0
  %156 = vmatpush1.msra.mxu0 0.0
  %157 = vmatprep.subr.mxu0 0.0
  %158 = vmatpush1.msra.mxu0 0.0
  %159 = vmatprep.subr.mxu0 0.0
  %160 = vmatpush1.msra.mxu0 0.0
  %161 = vmatprep.subr.mxu0 0.0
  %162 = vmatpush1.msra.mxu0 0.0
  %163 = vmatprep.subr.mxu0 0.0
  %164 = vmatpush1.msra.mxu0 0.0
  %165 = vmatprep.subr.mxu0 0.0
  %166 = vmatpush1.msra.mxu0 0.0
  %167 = vmatprep.subr.mxu0 0.0
  %168 = vmatpush1.msra.mxu0 0.0
  %169 = vmatprep.subr.mxu0 0.0
  %170 = vmatpush1.msra.mxu0 0.0
  %171 = vmatprep.subr.mxu0 0.0
  %172 = vmatpush1.msra.mxu0 0.0
  %173 = vmatprep.subr.mxu0 0.0
  %174 = vmatpush1.msra.mxu0 0.0
  %175 = vmatprep.subr.mxu0 0.0
  %176 = vmatpush1.msra.mxu0 0.0
  %177 = vmatprep.subr.mxu0 0.0
  %178 = vmatpush1.msra.mxu0 0.0
  %179 = vmatprep.subr.mxu0 0.0
  %180 = vmatpush1.msra.mxu0 0.0
  %181 = vmatprep.subr.mxu0 0.0
  %182 = vmatpush1.msra.mxu0 0.0
  %183 = vmatprep.subr.mxu0 0.0
  %184 = vmatpush1.msra.mxu0 0.0
  %185 = vmatprep.subr.mxu0 0.0
  %186 = vmatpush1.msra.mxu0 0.0
  %187 = vmatprep.subr.mxu0 0.0
  %188 = vmatpush1.msra.mxu0 0.0
  %189 = vmatprep.subr.mxu0 0.0
  %190 = vmatpush1.msra.mxu0 0.0
  %191 = vmatprep.subr.mxu0 0.0
  %192 = vmatpush1.msra.mxu0 0.0
  %193 = vmatprep.subr.mxu0 0.0
  %194 = vmatpush1.msra.mxu0 0.0
  %195 = vmatprep.subr.mxu0 0.0
  %196 = vmatpush1.msra.mxu0 0.0
  %197 = vmatprep.subr.mxu0 0.0
  %198 = vmatpush1.msra.mxu0 0.0
  %199 = vmatprep.subr.mxu0 0.0
  %200 = vmatpush1.msra.mxu0 0.0
  %201 = vmatprep.subr.mxu0 0.0
  %202 = vmatpush1.msra.mxu0 0.0
  %203 = vmatprep.mubr.f32.mxu0 0.0
  %204 = vmatmul.mubr.f32.gmra.mrb[0].mxu0 %v137
  %v205 = vpop.f32.mrb[0].mxu0
  %v206 = vadd.f32 %v134, %v205
  %v207 = vpop.f32.mrb[0].mxu0
  %208 = vdwg.mxu0
  %s209 = scalar_lea.vmem %s4, 64
  %v210 = vld [vmem:[%s209] sm:$0xff]
  %v211 = vld [vmem:[%s209 + $0x8] sm:$0xff]
  %v212 = vld [vmem:[%s209 + $0x10] sm:$0xff]
  %v213 = vld [vmem:[%s209 + $0x18] sm:$0xff]
  %s214 = scalar_lea.vmem %s5, 2
  %v215 = vld [vmem:[%s214] sm:$0x1]
  %v217 = vlaneseq
  %v218 = vshrl.u32 %v217, 7
  %v219 = vsub.s32 0, %v218
  %v220 = vrot.slane %v215, %v219
  %v223 = vsel %vm49, %v37, 0
  %225 = vmatprep.subr.mxu0 0.0
  %226 = vmatpush1.msra.mxu0 %v210
  %227 = vmatprep.subr.mxu0 0.0
  %228 = vmatpush1.msra.mxu0 %v211
  %229 = vmatprep.subr.mxu0 0.0
  %230 = vmatpush1.msra.mxu0 %v212
  %231 = vmatprep.subr.mxu0 0.0
  %232 = vmatpush1.msra.mxu0 %v213
  %233 = vmatprep.subr.mxu0 0.0
  %234 = vmatpush1.msra.mxu0 0.0
  %235 = vmatprep.subr.mxu0 0.0
  %236 = vmatpush1.msra.mxu0 0.0
  %237 = vmatprep.subr.mxu0 0.0
  %238 = vmatpush1.msra.mxu0 0.0
  %239 = vmatprep.subr.mxu0 0.0
  %240 = vmatpush1.msra.mxu0 0.0
  %241 = vmatprep.subr.mxu0 0.0
  %242 = vmatpush1.msra.mxu0 0.0
  %243 = vmatprep.subr.mxu0 0.0
  %244 = vmatpush1.msra.mxu0 0.0
  %245 = vmatprep.subr.mxu0 0.0
  %246 = vmatpush1.msra.mxu0 0.0
  %247 = vmatprep.subr.mxu0 0.0
  %248 = vmatpush1.msra.mxu0 0.0
  %249 = vmatprep.subr.mxu0 0.0
  %250 = vmatpush1.msra.mxu0 0.0
  %251 = vmatprep.subr.mxu0 0.0
  %252 = vmatpush1.msra.mxu0 0.0
  %253 = vmatprep.subr.mxu0 0.0
  %254 = vmatpush1.msra.mxu0 0.0
  %255 = vmatprep.subr.mxu0 0.0
  %256 = vmatpush1.msra.mxu0 0.0
  %257 = vmatprep.subr.mxu0 0.0
  %258 = vmatpush1.msra.mxu0 0.0
  %259 = vmatprep.subr.mxu0 0.0
  %260 = vmatpush1.msra.mxu0 0.0
  %261 = vmatprep.subr.mxu0 0.0
  %262 = vmatpush1.msra.mxu0 0.0
  %263 = vmatprep.subr.mxu0 0.0
  %264 = vmatpush1.msra.mxu0 0.0
  %265 = vmatprep.subr.mxu0 0.0
  %266 = vmatpush1.msra.mxu0 0.0
  %267 = vmatprep.subr.mxu0 0.0
  %268 = vmatpush1.msra.mxu0 0.0
  %269 = vmatprep.subr.mxu0 0.0
  %270 = vmatpush1.msra.mxu0 0.0
  %271 = vmatprep.subr.mxu0 0.0
  %272 = vmatpush1.msra.mxu0 0.0
  %273 = vmatprep.subr.mxu0 0.0
  %274 = vmatpush1.msra.mxu0 0.0
  %275 = vmatprep.subr.mxu0 0.0
  %276 = vmatpush1.msra.mxu0 0.0
  %277 = vmatprep.subr.mxu0 0.0
  %278 = vmatpush1.msra.mxu0 0.0
  %279 = vmatprep.subr.mxu0 0.0
  %280 = vmatpush1.msra.mxu0 0.0
  %281 = vmatprep.subr.mxu0 0.0
  %282 = vmatpush1.msra.mxu0 0.0
  %283 = vmatprep.subr.mxu0 0.0
  %284 = vmatpush1.msra.mxu0 0.0
  %285 = vmatprep.subr.mxu0 0.0
  %286 = vmatpush1.msra.mxu0 0.0
  %287 = vmatprep.subr.mxu0 0.0
  %288 = vmatpush1.msra.mxu0 0.0
  %289 = vmatprep.mubr.f32.mxu0 0.0
  %290 = vmatmul.mubr.f32.gmra.mrb[0].mxu0 %v223
  %v291 = vpop.f32.mrb[0].mxu0
  %v292 = vadd.f32 %v220, %v291
  %v293 = vpop.f32.mrb[0].mxu0
  %294 = vdwg.mxu0
  %vm295 = vcmask 64512
  %v297 = vsel %vm295, %v120, 0
  %v300 = vsel %vm295, %v206, 0
  %302 = vmatprep.subr.mxu0 0.0
  %303 = vmatpush1.xpose.msra.mxu0 %v300
  %304 = vmatprep.subr.mxu0 0.0
  %305 = vmatpush1.xpose.msra.mxu0 0.0
  %306 = vmatprep.subr.mxu0 0.0
  %307 = vmatpush1.xpose.msra.mxu0 0.0
  %308 = vmatprep.subr.mxu0 0.0
  %309 = vmatpush1.xpose.msra.mxu0 0.0
  %310 = vmatprep.subr.mxu0 0.0
  %311 = vmatpush1.xpose.msra.mxu0 0.0
  %312 = vmatprep.subr.mxu0 0.0
  %313 = vmatpush1.xpose.msra.mxu0 0.0
  %314 = vmatprep.subr.mxu0 0.0
  %315 = vmatpush1.xpose.msra.mxu0 0.0
  %316 = vmatprep.subr.mxu0 0.0
  %317 = vmatpush1.xpose.msra.mxu0 0.0
  %318 = vmatprep.subr.mxu0 0.0
  %319 = vmatpush1.xpose.msra.mxu0 0.0
  %320 = vmatprep.subr.mxu0 0.0
  %321 = vmatpush1.xpose.msra.mxu0 0.0
  %322 = vmatprep.subr.mxu0 0.0
  %323 = vmatpush1.xpose.msra.mxu0 0.0
  %324 = vmatprep.subr.mxu0 0.0
  %325 = vmatpush1.xpose.msra.mxu0 0.0
  %326 = vmatprep.subr.mxu0 0.0
  %327 = vmatpush1.xpose.msra.mxu0 0.0
  %328 = vmatprep.subr.mxu0 0.0
  %329 = vmatpush1.xpose.msra.mxu0 0.0
  %330 = vmatprep.subr.mxu0 0.0
  %331 = vmatpush1.xpose.msra.mxu0 0.0
  %332 = vmatprep.subr.mxu0 0.0
  %333 = vmatpush1.xpose.msra.mxu0 0.0
  %334 = vmatprep.subr.mxu0 0.0
  %335 = vmatpush1.xpose.msra.mxu0 0.0
  %336 = vmatprep.subr.mxu0 0.0
  %337 = vmatpush1.xpose.msra.mxu0 0.0
  %338 = vmatprep.subr.mxu0 0.0
  %339 = vmatpush1.xpose.msra.mxu0 0.0
  %340 = vmatprep.subr.mxu0 0.0
  %341 = vmatpush1.xpose.msra.mxu0 0.0
  %342 = vmatprep.subr.mxu0 0.0
  %343 = vmatpush1.xpose.msra.mxu0 0.0
  %344 = vmatprep.subr.mxu0 0.0
  %345 = vmatpush1.xpose.msra.mxu0 0.0
  %346 = vmatprep.subr.mxu0 0.0
  %347 = vmatpush1.xpose.msra.mxu0 0.0
  %348 = vmatprep.subr.mxu0 0.0
  %349 = vmatpush1.xpose.msra.mxu0 0.0
  %350 = vmatprep.subr.mxu0 0.0
  %351 = vmatpush1.xpose.msra.mxu0 0.0
  %352 = vmatprep.subr.mxu0 0.0
  %353 = vmatpush1.xpose.msra.mxu0 0.0
  %354 = vmatprep.subr.mxu0 0.0
  %355 = vmatpush1.xpose.msra.mxu0 0.0
  %356 = vmatprep.subr.mxu0 0.0
  %357 = vmatpush1.xpose.msra.mxu0 0.0
  %358 = vmatprep.subr.mxu0 0.0
  %359 = vmatpush1.xpose.msra.mxu0 0.0
  %360 = vmatprep.subr.mxu0 0.0
  %361 = vmatpush1.xpose.msra.mxu0 0.0
  %362 = vmatprep.subr.mxu0 0.0
  %363 = vmatpush1.xpose.msra.mxu0 0.0
  %364 = vmatprep.subr.mxu0 0.0
  %365 = vmatpush1.xpose.msra.mxu0 0.0
  %366 = vmatprep.mubr.f32.mxu0 0.0
  %367 = vmatmul.mubr.f32.gmra.mrb[0].mxu0 %v297
  %v368 = vpop.f32.mrb[0].mxu0
  %v369 = vadd.f32 0.0, %v368
  %v370 = vpop.f32.mrb[0].mxu0
  %371 = vdwg.mxu0
  %v372 = vmul.f32 %v369, 0.35355338
  %vm373 = vcmask 31744
  %v374 = vsel %vm373, %v372, -inf
  %375 = vmax.xlane.f32.xlu0 %v374
  %v376 = vpop.xlane.xlu0 %375
  %v377 = vsub.f32 %v372, %v376
  %v378 = vmul.f32 %v377, 1.442695
  %v379 = vpow.pop %v378
  %v380 = vsel %vm373, %v379, 0.0
  %381 = vadd.xlane.f32.xlu0 %v380
  %v382 = vpop.xlane.xlu0 %381
  %v383 = vrcp.pop %v382
  %v384 = vmul.f32 %v379, %v383
  %v386 = vsel %vm373, %v384, 0
  %vm388 = vcmask 1043456
  %v390 = vsel %vm388, %v292, 0
  %392 = vmatprep.subr.mxu0 0.0
  %393 = vmatpush1.msra.mxu0 %v390
  %394 = vmatprep.subr.mxu0 0.0
  %395 = vmatpush1.msra.mxu0 0.0
  %396 = vmatprep.subr.mxu0 0.0
  %397 = vmatpush1.msra.mxu0 0.0
  %398 = vmatprep.subr.mxu0 0.0
  %399 = vmatpush1.msra.mxu0 0.0
  %400 = vmatprep.subr.mxu0 0.0
  %401 = vmatpush1.msra.mxu0 0.0
  %402 = vmatprep.subr.mxu0 0.0
  %403 = vmatpush1.msra.mxu0 0.0
  %404 = vmatprep.subr.mxu0 0.0
  %405 = vmatpush1.msra.mxu0 0.0
  %406 = vmatprep.subr.mxu0 0.0
  %407 = vmatpush1.msra.mxu0 0.0
  %408 = vmatprep.subr.mxu0 0.0
  %409 = vmatpush1.msra.mxu0 0.0
  %410 = vmatprep.subr.mxu0 0.0
  %411 = vmatpush1.msra.mxu0 0.0
  %412 = vmatprep.subr.mxu0 0.0
  %413 = vmatpush1.msra.mxu0 0.0
  %414 = vmatprep.subr.mxu0 0.0
  %415 = vmatpush1.msra.mxu0 0.0
  %416 = vmatprep.subr.mxu0 0.0
  %417 = vmatpush1.msra.mxu0 0.0
  %418 = vmatprep.subr.mxu0 0.0
  %419 = vmatpush1.msra.mxu0 0.0
  %420 = vmatprep.subr.mxu0 0.0
  %421 = vmatpush1.msra.mxu0 0.0
  %422 = vmatprep.subr.mxu0 0.0
  %423 = vmatpush1.msra.mxu0 0.0
  %424 = vmatprep.subr.mxu0 0.0
  %425 = vmatpush1.msra.mxu0 0.0
  %426 = vmatprep.subr.mxu0 0.0
  %427 = vmatpush1.msra.mxu0 0.0
  %428 = vmatprep.subr.mxu0 0.0
  %429 = vmatpush1.msra.mxu0 0.0
  %430 = vmatprep.subr.mxu0 0.0
  %431 = vmatpush1.msra.mxu0 0.0
  %432 = vmatprep.subr.mxu0 0.0
  %433 = vmatpush1.msra.mxu0 0.0
  %434 = vmatprep.subr.mxu0 0.0
  %435 = vmatpush1.msra.mxu0 0.0
  %436 = vmatprep.subr.mxu0 0.0
  %437 = vmatpush1.msra.mxu0 0.0
  %438 = vmatprep.subr.mxu0 0.0
  %439 = vmatpush1.msra.mxu0 0.0
  %440 = vmatprep.subr.mxu0 0.0
  %441 = vmatpush1.msra.mxu0 0.0
  %442 = vmatprep.subr.mxu0 0.0
  %443 = vmatpush1.msra.mxu0 0.0
  %444 = vmatprep.subr.mxu0 0.0
  %445 = vmatpush1.msra.mxu0 0.0
  %446 = vmatprep.subr.mxu0 0.0
  %447 = vmatpush1.msra.mxu0 0.0
  %448 = vmatprep.subr.mxu0 0.0
  %449 = vmatpush1.msra.mxu0 0.0
  %450 = vmatprep.subr.mxu0 0.0
  %451 = vmatpush1.msra.mxu0 0.0
  %452 = vmatprep.subr.mxu0 0.0
  %453 = vmatpush1.msra.mxu0 0.0
  %454 = vmatprep.subr.mxu0 0.0
  %455 = vmatpush1.msra.mxu0 0.0
  %456 = vmatprep.mubr.f32.mxu0 0.0
  %457 = vmatmul.mubr.f32.gmra.mrb[0].mxu0 %v386
  %v458 = vpop.f32.mrb[0].mxu0
  %v459 = vadd.f32 0.0, %v458
  %v460 = vpop.f32.mrb[0].mxu0
  %461 = vdwg.mxu0
  %462 = vrot.lane.b32.xlu0 %v120, 120
  %v463 = vpop.permute.xlu0 %462
  %464 = vrot.lane.b32.xlu0 %v206, 120
  %v465 = vpop.permute.xlu0 %464
  %v466 = vsel %vm295, %v463, 0
  %v468 = vsel %vm295, %v465, 0
  %470 = vmatprep.subr.mxu0 0.0
  %471 = vmatpush1.xpose.msra.mxu0 %v468
  %472 = vmatprep.subr.mxu0 0.0
  %473 = vmatpush1.xpose.msra.mxu0 0.0
  %474 = vmatprep.subr.mxu0 0.0
  %475 = vmatpush1.xpose.msra.mxu0 0.0
  %476 = vmatprep.subr.mxu0 0.0
  %477 = vmatpush1.xpose.msra.mxu0 0.0
  %478 = vmatprep.subr.mxu0 0.0
  %479 = vmatpush1.xpose.msra.mxu0 0.0
  %480 = vmatprep.subr.mxu0 0.0
  %481 = vmatpush1.xpose.msra.mxu0 0.0
  %482 = vmatprep.subr.mxu0 0.0
  %483 = vmatpush1.xpose.msra.mxu0 0.0
  %484 = vmatprep.subr.mxu0 0.0
  %485 = vmatpush1.xpose.msra.mxu0 0.0
  %486 = vmatprep.subr.mxu0 0.0
  %487 = vmatpush1.xpose.msra.mxu0 0.0
  %488 = vmatprep.subr.mxu0 0.0
  %489 = vmatpush1.xpose.msra.mxu0 0.0
  %490 = vmatprep.subr.mxu0 0.0
  %491 = vmatpush1.xpose.msra.mxu0 0.0
  %492 = vmatprep.subr.mxu0 0.0
  %493 = vmatpush1.xpose.msra.mxu0 0.0
  %494 = vmatprep.subr.mxu0 0.0
  %495 = vmatpush1.xpose.msra.mxu0 0.0
  %496 = vmatprep.subr.mxu0 0.0
  %497 = vmatpush1.xpose.msra.mxu0 0.0
  %498 = vmatprep.subr.mxu0 0.0
  %499 = vmatpush1.xpose.msra.mxu0 0.0
  %500 = vmatprep.subr.mxu0 0.0
  %501 = vmatpush1.xpose.msra.mxu0 0.0
  %502 = vmatprep.subr.mxu0 0.0
  %503 = vmatpush1.xpose.msra.mxu0 0.0
  %504 = vmatprep.subr.mxu0 0.0
  %505 = vmatpush1.xpose.msra.mxu0 0.0
  %506 = vmatprep.subr.mxu0 0.0
  %507 = vmatpush1.xpose.msra.mxu0 0.0
  %508 = vmatprep.subr.mxu0 0.0
  %509 = vmatpush1.xpose.msra.mxu0 0.0
  %510 = vmatprep.subr.mxu0 0.0
  %511 = vmatpush1.xpose.msra.mxu0 0.0
  %512 = vmatprep.subr.mxu0 0.0
  %513 = vmatpush1.xpose.msra.mxu0 0.0
  %514 = vmatprep.subr.mxu0 0.0
  %515 = vmatpush1.xpose.msra.mxu0 0.0
  %516 = vmatprep.subr.mxu0 0.0
  %517 = vmatpush1.xpose.msra.mxu0 0.0
  %518 = vmatprep.subr.mxu0 0.0
  %519 = vmatpush1.xpose.msra.mxu0 0.0
  %520 = vmatprep.subr.mxu0 0.0
  %521 = vmatpush1.xpose.msra.mxu0 0.0
  %522 = vmatprep.subr.mxu0 0.0
  %523 = vmatpush1.xpose.msra.mxu0 0.0
  %524 = vmatprep.subr.mxu0 0.0
  %525 = vmatpush1.xpose.msra.mxu0 0.0
  %526 = vmatprep.subr.mxu0 0.0
  %527 = vmatpush1.xpose.msra.mxu0 0.0
  %528 = vmatprep.subr.mxu0 0.0
  %529 = vmatpush1.xpose.msra.mxu0 0.0
  %530 = vmatprep.subr.mxu0 0.0
  %531 = vmatpush1.xpose.msra.mxu0 0.0
  %532 = vmatprep.subr.mxu0 0.0
  %533 = vmatpush1.xpose.msra.mxu0 0.0
  %534 = vmatprep.mubr.f32.mxu0 0.0
  %535 = vmatmul.mubr.f32.gmra.mrb[0].mxu0 %v466
  %v536 = vpop.f32.mrb[0].mxu0
  %v537 = vadd.f32 0.0, %v536
  %v538 = vpop.f32.mrb[0].mxu0
  %539 = vdwg.mxu0
  %v540 = vmul.f32 %v537, 0.35355338
  %v541 = vsel %vm373, %v540, -inf
  %542 = vmax.xlane.f32.xlu0 %v541
  %v543 = vpop.xlane.xlu0 %542
  %v544 = vsub.f32 %v540, %v543
  %v545 = vmul.f32 %v544, 1.442695
  %v546 = vpow.pop %v545
  %v547 = vsel %vm373, %v546, 0.0
  %548 = vadd.xlane.f32.xlu0 %v547
  %v549 = vpop.xlane.xlu0 %548
  %v550 = vrcp.pop %v549
  %v551 = vmul.f32 %v546, %v550
  %552 = vrot.lane.b32.xlu0 %v292, 120
  %v553 = vpop.permute.xlu0 %552
  %v555 = vsel %vm373, %v551, 0
  %v557 = vsel %vm388, %v553, 0
  %559 = vmatprep.subr.mxu0 0.0
  %560 = vmatpush1.msra.mxu0 %v557
  %561 = vmatprep.subr.mxu0 0.0
  %562 = vmatpush1.msra.mxu0 0.0
  %563 = vmatprep.subr.mxu0 0.0
  %564 = vmatpush1.msra.mxu0 0.0
  %565 = vmatprep.subr.mxu0 0.0
  %566 = vmatpush1.msra.mxu0 0.0
  %567 = vmatprep.subr.mxu0 0.0
  %568 = vmatpush1.msra.mxu0 0.0
  %569 = vmatprep.subr.mxu0 0.0
  %570 = vmatpush1.msra.mxu0 0.0
  %571 = vmatprep.subr.mxu0 0.0
  %572 = vmatpush1.msra.mxu0 0.0
  %573 = vmatprep.subr.mxu0 0.0
  %574 = vmatpush1.msra.mxu0 0.0
  %575 = vmatprep.subr.mxu0 0.0
  %576 = vmatpush1.msra.mxu0 0.0
  %577 = vmatprep.subr.mxu0 0.0
  %578 = vmatpush1.msra.mxu0 0.0
  %579 = vmatprep.subr.mxu0 0.0
  %580 = vmatpush1.msra.mxu0 0.0
  %581 = vmatprep.subr.mxu0 0.0
  %582 = vmatpush1.msra.mxu0 0.0
  %583 = vmatprep.subr.mxu0 0.0
  %584 = vmatpush1.msra.mxu0 0.0
  %585 = vmatprep.subr.mxu0 0.0
  %586 = vmatpush1.msra.mxu0 0.0
  %587 = vmatprep.subr.mxu0 0.0
  %588 = vmatpush1.msra.mxu0 0.0
  %589 = vmatprep.subr.mxu0 0.0
  %590 = vmatpush1.msra.mxu0 0.0
  %591 = vmatprep.subr.mxu0 0.0
  %592 = vmatpush1.msra.mxu0 0.0
  %593 = vmatprep.subr.mxu0 0.0
  %594 = vmatpush1.msra.mxu0 0.0
  %595 = vmatprep.subr.mxu0 0.0
  %596 = vmatpush1.msra.mxu0 0.0
  %597 = vmatprep.subr.mxu0 0.0
  %598 = vmatpush1.msra.mxu0 0.0
  %599 = vmatprep.subr.mxu0 0.0
  %600 = vmatpush1.msra.mxu0 0.0
  %601 = vmatprep.subr.mxu0 0.0
  %602 = vmatpush1.msra.mxu0 0.0
  %603 = vmatprep.subr.mxu0 0.0
  %604 = vmatpush1.msra.mxu0 0.0
  %605 = vmatprep.subr.mxu0 0.0
  %606 = vmatpush1.msra.mxu0 0.0
  %607 = vmatprep.subr.mxu0 0.0
  %608 = vmatpush1.msra.mxu0 0.0
  %609 = vmatprep.subr.mxu0 0.0
  %610 = vmatpush1.msra.mxu0 0.0
  %611 = vmatprep.subr.mxu0 0.0
  %612 = vmatpush1.msra.mxu0 0.0
  %613 = vmatprep.subr.mxu0 0.0
  %614 = vmatpush1.msra.mxu0 0.0
  %615 = vmatprep.subr.mxu0 0.0
  %616 = vmatpush1.msra.mxu0 0.0
  %617 = vmatprep.subr.mxu0 0.0
  %618 = vmatpush1.msra.mxu0 0.0
  %619 = vmatprep.subr.mxu0 0.0
  %620 = vmatpush1.msra.mxu0 0.0
  %621 = vmatprep.subr.mxu0 0.0
  %622 = vmatpush1.msra.mxu0 0.0
  %623 = vmatprep.mubr.f32.mxu0 0.0
  %624 = vmatmul.mubr.f32.gmra.mrb[0].mxu0 %v555
  %v625 = vpop.f32.mrb[0].mxu0
  %v626 = vadd.f32 0.0, %v625
  %v627 = vpop.f32.mrb[0].mxu0
  %628 = vdwg.mxu0
  %629 = vrot.lane.b32.xlu0 %v120, 112
  %v630 = vpop.permute.xlu0 %629
  %631 = vrot.lane.b32.xlu0 %v206, 112
  %v632 = vpop.permute.xlu0 %631
  %v633 = vsel %vm295, %v630, 0
  %v635 = vsel %vm295, %v632, 0
  %637 = vmatprep.subr.mxu0 0.0
  %638 = vmatpush1.xpose.msra.mxu0 %v635
  %639 = vmatprep.subr.mxu0 0.0
  %640 = vmatpush1.xpose.msra.mxu0 0.0
  %641 = vmatprep.subr.mxu0 0.0
  %642 = vmatpush1.xpose.msra.mxu0 0.0
  %643 = vmatprep.subr.mxu0 0.0
  %644 = vmatpush1.xpose.msra.mxu0 0.0
  %645 = vmatprep.subr.mxu0 0.0
  %646 = vmatpush1.xpose.msra.mxu0 0.0
  %647 = vmatprep.subr.mxu0 0.0
  %648 = vmatpush1.xpose.msra.mxu0 0.0
  %649 = vmatprep.subr.mxu0 0.0
  %650 = vmatpush1.xpose.msra.mxu0 0.0
  %651 = vmatprep.subr.mxu0 0.0
  %652 = vmatpush1.xpose.msra.mxu0 0.0
  %653 = vmatprep.subr.mxu0 0.0
  %654 = vmatpush1.xpose.msra.mxu0 0.0
  %655 = vmatprep.subr.mxu0 0.0
  %656 = vmatpush1.xpose.msra.mxu0 0.0
  %657 = vmatprep.subr.mxu0 0.0
  %658 = vmatpush1.xpose.msra.mxu0 0.0
  %659 = vmatprep.subr.mxu0 0.0
  %660 = vmatpush1.xpose.msra.mxu0 0.0
  %661 = vmatprep.subr.mxu0 0.0
  %662 = vmatpush1.xpose.msra.mxu0 0.0
  %663 = vmatprep.subr.mxu0 0.0
  %664 = vmatpush1.xpose.msra.mxu0 0.0
  %665 = vmatprep.subr.mxu0 0.0
  %666 = vmatpush1.xpose.msra.mxu0 0.0
  %667 = vmatprep.subr.mxu0 0.0
  %668 = vmatpush1.xpose.msra.mxu0 0.0
  %669 = vmatprep.subr.mxu0 0.0
  %670 = vmatpush1.xpose.msra.mxu0 0.0
  %671 = vmatprep.subr.mxu0 0.0
  %672 = vmatpush1.xpose.msra.mxu0 0.0
  %673 = vmatprep.subr.mxu0 0.0
  %674 = vmatpush1.xpose.msra.mxu0 0.0
  %675 = vmatprep.subr.mxu0 0.0
  %676 = vmatpush1.xpose.msra.mxu0 0.0
  %677 = vmatprep.subr.mxu0 0.0
  %678 = vmatpush1.xpose.msra.mxu0 0.0
  %679 = vmatprep.subr.mxu0 0.0
  %680 = vmatpush1.xpose.msra.mxu0 0.0
  %681 = vmatprep.subr.mxu0 0.0
  %682 = vmatpush1.xpose.msra.mxu0 0.0
  %683 = vmatprep.subr.mxu0 0.0
  %684 = vmatpush1.xpose.msra.mxu0 0.0
  %685 = vmatprep.subr.mxu0 0.0
  %686 = vmatpush1.xpose.msra.mxu0 0.0
  %687 = vmatprep.subr.mxu0 0.0
  %688 = vmatpush1.xpose.msra.mxu0 0.0
  %689 = vmatprep.subr.mxu0 0.0
  %690 = vmatpush1.xpose.msra.mxu0 0.0
  %691 = vmatprep.subr.mxu0 0.0
  %692 = vmatpush1.xpose.msra.mxu0 0.0
  %693 = vmatprep.subr.mxu0 0.0
  %694 = vmatpush1.xpose.msra.mxu0 0.0
  %695 = vmatprep.subr.mxu0 0.0
  %696 = vmatpush1.xpose.msra.mxu0 0.0
  %697 = vmatprep.subr.mxu0 0.0
  %698 = vmatpush1.xpose.msra.mxu0 0.0
  %699 = vmatprep.subr.mxu0 0.0
  %700 = vmatpush1.xpose.msra.mxu0 0.0
  %701 = vmatprep.mubr.f32.mxu0 0.0
  %702 = vmatmul.mubr.f32.gmra.mrb[0].mxu0 %v633
  %v703 = vpop.f32.mrb[0].mxu0
  %v704 = vadd.f32 0.0, %v703
  %v705 = vpop.f32.mrb[0].mxu0
  %706 = vdwg.mxu0
  %v707 = vmul.f32 %v704, 0.35355338
  %v708 = vsel %vm373, %v707, -inf
  %709 = vmax.xlane.f32.xlu0 %v708
  %v710 = vpop.xlane.xlu0 %709
  %v711 = vsub.f32 %v707, %v710
  %v712 = vmul.f32 %v711, 1.442695
  %v713 = vpow.pop %v712
  %v714 = vsel %vm373, %v713, 0.0
  %715 = vadd.xlane.f32.xlu0 %v714
  %v716 = vpop.xlane.xlu0 %715
  %v717 = vrcp.pop %v716
  %v718 = vmul.f32 %v713, %v717
  %719 = vrot.lane.b32.xlu0 %v292, 112
  %v720 = vpop.permute.xlu0 %719
  %v722 = vsel %vm373, %v718, 0
  %v724 = vsel %vm388, %v720, 0
  %726 = vmatprep.subr.mxu0 0.0
  %727 = vmatpush1.msra.mxu0 %v724
  %728 = vmatprep.subr.mxu0 0.0
  %729 = vmatpush1.msra.mxu0 0.0
  %730 = vmatprep.subr.mxu0 0.0
  %731 = vmatpush1.msra.mxu0 0.0
  %732 = vmatprep.subr.mxu0 0.0
  %733 = vmatpush1.msra.mxu0 0.0
  %734 = vmatprep.subr.mxu0 0.0
  %735 = vmatpush1.msra.mxu0 0.0
  %736 = vmatprep.subr.mxu0 0.0
  %737 = vmatpush1.msra.mxu0 0.0
  %738 = vmatprep.subr.mxu0 0.0
  %739 = vmatpush1.msra.mxu0 0.0
  %740 = vmatprep.subr.mxu0 0.0
  %741 = vmatpush1.msra.mxu0 0.0
  %742 = vmatprep.subr.mxu0 0.0
  %743 = vmatpush1.msra.mxu0 0.0
  %744 = vmatprep.subr.mxu0 0.0
  %745 = vmatpush1.msra.mxu0 0.0
  %746 = vmatprep.subr.mxu0 0.0
  %747 = vmatpush1.msra.mxu0 0.0
  %748 = vmatprep.subr.mxu0 0.0
  %749 = vmatpush1.msra.mxu0 0.0
  %750 = vmatprep.subr.mxu0 0.0
  %751 = vmatpush1.msra.mxu0 0.0
  %752 = vmatprep.subr.mxu0 0.0
  %753 = vmatpush1.msra.mxu0 0.0
  %754 = vmatprep.subr.mxu0 0.0
  %755 = vmatpush1.msra.mxu0 0.0
  %756 = vmatprep.subr.mxu0 0.0
  %757 = vmatpush1.msra.mxu0 0.0
  %758 = vmatprep.subr.mxu0 0.0
  %759 = vmatpush1.msra.mxu0 0.0
  %760 = vmatprep.subr.mxu0 0.0
  %761 = vmatpush1.msra.mxu0 0.0
  %762 = vmatprep.subr.mxu0 0.0
  %763 = vmatpush1.msra.mxu0 0.0
  %764 = vmatprep.subr.mxu0 0.0
  %765 = vmatpush1.msra.mxu0 0.0
  %766 = vmatprep.subr.mxu0 0.0
  %767 = vmatpush1.msra.mxu0 0.0
  %768 = vmatprep.subr.mxu0 0.0
  %769 = vmatpush1.msra.mxu0 0.0
  %770 = vmatprep.subr.mxu0 0.0
  %771 = vmatpush1.msra.mxu0 0.0
  %772 = vmatprep.subr.mxu0 0.0
  %773 = vmatpush1.msra.mxu0 0.0
  %774 = vmatprep.subr.mxu0 0.0
  %775 = vmatpush1.msra.mxu0 0.0
  %776 = vmatprep.subr.mxu0 0.0
  %777 = vmatpush1.msra.mxu0 0.0
  %778 = vmatprep.subr.mxu0 0.0
  %779 = vmatpush1.msra.mxu0 0.0
  %780 = vmatprep.subr.mxu0 0.0
  %781 = vmatpush1.msra.mxu0 0.0
  %782 = vmatprep.subr.mxu0 0.0
  %783 = vmatpush1.msra.mxu0 0.0
  %784 = vmatprep.subr.mxu0 0.0
  %785 = vmatpush1.msra.mxu0 0.0
  %786 = vmatprep.subr.mxu0 0.0
  %787 = vmatpush1.msra.mxu0 0.0
  %788 = vmatprep.subr.mxu0 0.0
  %789 = vmatpush1.msra.mxu0 0.0
  %790 = vmatprep.mubr.f32.mxu0 0.0
  %791 = vmatmul.mubr.f32.gmra.mrb[0].mxu0 %v722
  %v792 = vpop.f32.mrb[0].mxu0
  %v793 = vadd.f32 0.0, %v792
  %v794 = vpop.f32.mrb[0].mxu0
  %795 = vdwg.mxu0
  %796 = vrot.lane.b32.xlu0 %v120, 104
  %v797 = vpop.permute.xlu0 %796
  %798 = vrot.lane.b32.xlu0 %v206, 104
  %v799 = vpop.permute.xlu0 %798
  %v800 = vsel %vm295, %v797, 0
  %v802 = vsel %vm295, %v799, 0
  %804 = vmatprep.subr.mxu0 0.0
  %805 = vmatpush1.xpose.msra.mxu0 %v802
  %806 = vmatprep.subr.mxu0 0.0
  %807 = vmatpush1.xpose.msra.mxu0 0.0
  %808 = vmatprep.subr.mxu0 0.0
  %809 = vmatpush1.xpose.msra.mxu0 0.0
  %810 = vmatprep.subr.mxu0 0.0
  %811 = vmatpush1.xpose.msra.mxu0 0.0
  %812 = vmatprep.subr.mxu0 0.0
  %813 = vmatpush1.xpose.msra.mxu0 0.0
  %814 = vmatprep.subr.mxu0 0.0
  %815 = vmatpush1.xpose.msra.mxu0 0.0
  %816 = vmatprep.subr.mxu0 0.0
  %817 = vmatpush1.xpose.msra.mxu0 0.0
  %818 = vmatprep.subr.mxu0 0.0
  %819 = vmatpush1.xpose.msra.mxu0 0.0
  %820 = vmatprep.subr.mxu0 0.0
  %821 = vmatpush1.xpose.msra.mxu0 0.0
  %822 = vmatprep.subr.mxu0 0.0
  %823 = vmatpush1.xpose.msra.mxu0 0.0
  %824 = vmatprep.subr.mxu0 0.0
  %825 = vmatpush1.xpose.msra.mxu0 0.0
  %826 = vmatprep.subr.mxu0 0.0
  %827 = vmatpush1.xpose.msra.mxu0 0.0
  %828 = vmatprep.subr.mxu0 0.0
  %829 = vmatpush1.xpose.msra.mxu0 0.0
  %830 = vmatprep.subr.mxu0 0.0
  %831 = vmatpush1.xpose.msra.mxu0 0.0
  %832 = vmatprep.subr.mxu0 0.0
  %833 = vmatpush1.xpose.msra.mxu0 0.0
  %834 = vmatprep.subr.mxu0 0.0
  %835 = vmatpush1.xpose.msra.mxu0 0.0
  %836 = vmatprep.subr.mxu0 0.0
  %837 = vmatpush1.xpose.msra.mxu0 0.0
  %838 = vmatprep.subr.mxu0 0.0
  %839 = vmatpush1.xpose.msra.mxu0 0.0
  %840 = vmatprep.subr.mxu0 0.0
  %841 = vmatpush1.xpose.msra.mxu0 0.0
  %842 = vmatprep.subr.mxu0 0.0
  %843 = vmatpush1.xpose.msra.mxu0 0.0
  %844 = vmatprep.subr.mxu0 0.0
  %845 = vmatpush1.xpose.msra.mxu0 0.0
  %846 = vmatprep.subr.mxu0 0.0
  %847 = vmatpush1.xpose.msra.mxu0 0.0
  %848 = vmatprep.subr.mxu0 0.0
  %849 = vmatpush1.xpose.msra.mxu0 0.0
  %850 = vmatprep.subr.mxu0 0.0
  %851 = vmatpush1.xpose.msra.mxu0 0.0
  %852 = vmatprep.subr.mxu0 0.0
  %853 = vmatpush1.xpose.msra.mxu0 0.0
  %854 = vmatprep.subr.mxu0 0.0
  %855 = vmatpush1.xpose.msra.mxu0 0.0
  %856 = vmatprep.subr.mxu0 0.0
  %857 = vmatpush1.xpose.msra.mxu0 0.0
  %858 = vmatprep.subr.mxu0 0.0
  %859 = vmatpush1.xpose.msra.mxu0 0.0
  %860 = vmatprep.subr.mxu0 0.0
  %861 = vmatpush1.xpose.msra.mxu0 0.0
  %862 = vmatprep.subr.mxu0 0.0
  %863 = vmatpush1.xpose.msra.mxu0 0.0
  %864 = vmatprep.subr.mxu0 0.0
  %865 = vmatpush1.xpose.msra.mxu0 0.0
  %866 = vmatprep.subr.mxu0 0.0
  %867 = vmatpush1.xpose.msra.mxu0 0.0
  %868 = vmatprep.mubr.f32.mxu0 0.0
  %869 = vmatmul.mubr.f32.gmra.mrb[0].mxu0 %v800
  %v870 = vpop.f32.mrb[0].mxu0
  %v871 = vadd.f32 0.0, %v870
  %v872 = vpop.f32.mrb[0].mxu0
  %873 = vdwg.mxu0
  %v874 = vmul.f32 %v871, 0.35355338
  %v875 = vsel %vm373, %v874, -inf
  %876 = vmax.xlane.f32.xlu0 %v875
  %v877 = vpop.xlane.xlu0 %876
  %v878 = vsub.f32 %v874, %v877
  %v879 = vmul.f32 %v878, 1.442695
  %v880 = vpow.pop %v879
  %v881 = vsel %vm373, %v880, 0.0
  %882 = vadd.xlane.f32.xlu0 %v881
  %v883 = vpop.xlane.xlu0 %882
  %v884 = vrcp.pop %v883
  %v885 = vmul.f32 %v880, %v884
  %886 = vrot.lane.b32.xlu0 %v292, 104
  %v887 = vpop.permute.xlu0 %886
  %v889 = vsel %vm373, %v885, 0
  %v891 = vsel %vm388, %v887, 0
  %893 = vmatprep.subr.mxu0 0.0
  %894 = vmatpush1.msra.mxu0 %v891
  %895 = vmatprep.subr.mxu0 0.0
  %896 = vmatpush1.msra.mxu0 0.0
  %897 = vmatprep.subr.mxu0 0.0
  %898 = vmatpush1.msra.mxu0 0.0
  %899 = vmatprep.subr.mxu0 0.0
  %900 = vmatpush1.msra.mxu0 0.0
  %901 = vmatprep.subr.mxu0 0.0
  %902 = vmatpush1.msra.mxu0 0.0
  %903 = vmatprep.subr.mxu0 0.0
  %904 = vmatpush1.msra.mxu0 0.0
  %905 = vmatprep.subr.mxu0 0.0
  %906 = vmatpush1.msra.mxu0 0.0
  %907 = vmatprep.subr.mxu0 0.0
  %908 = vmatpush1.msra.mxu0 0.0
  %909 = vmatprep.subr.mxu0 0.0
  %910 = vmatpush1.msra.mxu0 0.0
  %911 = vmatprep.subr.mxu0 0.0
  %912 = vmatpush1.msra.mxu0 0.0
  %913 = vmatprep.subr.mxu0 0.0
  %914 = vmatpush1.msra.mxu0 0.0
  %915 = vmatprep.subr.mxu0 0.0
  %916 = vmatpush1.msra.mxu0 0.0
  %917 = vmatprep.subr.mxu0 0.0
  %918 = vmatpush1.msra.mxu0 0.0
  %919 = vmatprep.subr.mxu0 0.0
  %920 = vmatpush1.msra.mxu0 0.0
  %921 = vmatprep.subr.mxu0 0.0
  %922 = vmatpush1.msra.mxu0 0.0
  %923 = vmatprep.subr.mxu0 0.0
  %924 = vmatpush1.msra.mxu0 0.0
  %925 = vmatprep.subr.mxu0 0.0
  %926 = vmatpush1.msra.mxu0 0.0
  %927 = vmatprep.subr.mxu0 0.0
  %928 = vmatpush1.msra.mxu0 0.0
  %929 = vmatprep.subr.mxu0 0.0
  %930 = vmatpush1.msra.mxu0 0.0
  %931 = vmatprep.subr.mxu0 0.0
  %932 = vmatpush1.msra.mxu0 0.0
  %933 = vmatprep.subr.mxu0 0.0
  %934 = vmatpush1.msra.mxu0 0.0
  %935 = vmatprep.subr.mxu0 0.0
  %936 = vmatpush1.msra.mxu0 0.0
  %937 = vmatprep.subr.mxu0 0.0
  %938 = vmatpush1.msra.mxu0 0.0
  %939 = vmatprep.subr.mxu0 0.0
  %940 = vmatpush1.msra.mxu0 0.0
  %941 = vmatprep.subr.mxu0 0.0
  %942 = vmatpush1.msra.mxu0 0.0
  %943 = vmatprep.subr.mxu0 0.0
  %944 = vmatpush1.msra.mxu0 0.0
  %945 = vmatprep.subr.mxu0 0.0
  %946 = vmatpush1.msra.mxu0 0.0
  %947 = vmatprep.subr.mxu0 0.0
  %948 = vmatpush1.msra.mxu0 0.0
  %949 = vmatprep.subr.mxu0 0.0
  %950 = vmatpush1.msra.mxu0 0.0
  %951 = vmatprep.subr.mxu0 0.0
  %952 = vmatpush1.msra.mxu0 0.0
  %953 = vmatprep.subr.mxu0 0.0
  %954 = vmatpush1.msra.mxu0 0.0
  %955 = vmatprep.subr.mxu0 0.0
  %956 = vmatpush1.msra.mxu0 0.0
  %957 = vmatprep.mubr.f32.mxu0 0.0
  %958 = vmatmul.mubr.f32.gmra.mrb[0].mxu0 %v889
  %v959 = vpop.f32.mrb[0].mxu0
  %v960 = vadd.f32 0.0, %v959
  %v961 = vpop.f32.mrb[0].mxu0
  %962 = vdwg.mxu0
  %964 = vrot.lane.b32.xlu0 %v626, 8
  %v965 = vpop.permute.xlu0 %964
  %968 = vrot.lane.b32.xlu0 %v793, 16
  %v969 = vpop.permute.xlu0 %968
  %972 = vrot.lane.b32.xlu0 %v960, 24
  %v973 = vpop.permute.xlu0 %972
  %v975 = vsel %vm295, %v459, %v965
  %vm976 = vcmask 130048
  %v977 = vsel %vm976, %v975, %v969
  %vm978 = vcmask 195584
  %v979 = vsel %vm978, %v977, %v973
  %v980 = vld [vmem:[%s6] sm:$0xff]
  %v981 = vld [vmem:[%s6 + $0x8] sm:$0xff]
  %v982 = vld [vmem:[%s6 + $0x10] sm:$0xff]
  %v983 = vld [vmem:[%s6 + $0x18] sm:$0xff]
  %v984 = vld [vmem:[%s7] sm:$0x1]
  %v986 = vlaneseq
  %v987 = vshrl.u32 %v986, 7
  %v988 = vsub.s32 0, %v987
  %v989 = vrot.slane %v984, %v988
  %v992 = vsel %vm49, %v979, 0
  %994 = vmatprep.subr.mxu0 0.0
  %995 = vmatpush1.msra.mxu0 %v980
  %996 = vmatprep.subr.mxu0 0.0
  %997 = vmatpush1.msra.mxu0 %v981
  %998 = vmatprep.subr.mxu0 0.0
  %999 = vmatpush1.msra.mxu0 %v982
  %1000 = vmatprep.subr.mxu0 0.0
  %1001 = vmatpush1.msra.mxu0 %v983
  %1002 = vmatprep.subr.mxu0 0.0
  %1003 = vmatpush1.msra.mxu0 0.0
  %1004 = vmatprep.subr.mxu0 0.0
  %1005 = vmatpush1.msra.mxu0 0.0
  %1006 = vmatprep.subr.mxu0 0.0
  %1007 = vmatpush1.msra.mxu0 0.0
  %1008 = vmatprep.subr.mxu0 0.0
  %1009 = vmatpush1.msra.mxu0 0.0
  %1010 = vmatprep.subr.mxu0 0.0
  %1011 = vmatpush1.msra.mxu0 0.0
  %1012 = vmatprep.subr.mxu0 0.0
  %1013 = vmatpush1.msra.mxu0 0.0
  %1014 = vmatprep.subr.mxu0 0.0
  %1015 = vmatpush1.msra.mxu0 0.0
  %1016 = vmatprep.subr.mxu0 0.0
  %1017 = vmatpush1.msra.mxu0 0.0
  %1018 = vmatprep.subr.mxu0 0.0
  %1019 = vmatpush1.msra.mxu0 0.0
  %1020 = vmatprep.subr.mxu0 0.0
  %1021 = vmatpush1.msra.mxu0 0.0
  %1022 = vmatprep.subr.mxu0 0.0
  %1023 = vmatpush1.msra.mxu0 0.0
  %1024 = vmatprep.subr.mxu0 0.0
  %1025 = vmatpush1.msra.mxu0 0.0
  %1026 = vmatprep.subr.mxu0 0.0
  %1027 = vmatpush1.msra.mxu0 0.0
  %1028 = vmatprep.subr.mxu0 0.0
  %1029 = vmatpush1.msra.mxu0 0.0
  %1030 = vmatprep.subr.mxu0 0.0
  %1031 = vmatpush1.msra.mxu0 0.0
  %1032 = vmatprep.subr.mxu0 0.0
  %1033 = vmatpush1.msra.mxu0 0.0
  %1034 = vmatprep.subr.mxu0 0.0
  %1035 = vmatpush1.msra.mxu0 0.0
  %1036 = vmatprep.subr.mxu0 0.0
  %1037 = vmatpush1.msra.mxu0 0.0
  %1038 = vmatprep.subr.mxu0 0.0
  %1039 = vmatpush1.msra.mxu0 0.0
  %1040 = vmatprep.subr.mxu0 0.0
  %1041 = vmatpush1.msra.mxu0 0.0
  %1042 = vmatprep.subr.mxu0 0.0
  %1043 = vmatpush1.msra.mxu0 0.0
  %1044 = vmatprep.subr.mxu0 0.0
  %1045 = vmatpush1.msra.mxu0 0.0
  %1046 = vmatprep.subr.mxu0 0.0
  %1047 = vmatpush1.msra.mxu0 0.0
  %1048 = vmatprep.subr.mxu0 0.0
  %1049 = vmatpush1.msra.mxu0 0.0
  %1050 = vmatprep.subr.mxu0 0.0
  %1051 = vmatpush1.msra.mxu0 0.0
  %1052 = vmatprep.subr.mxu0 0.0
  %1053 = vmatpush1.msra.mxu0 0.0
  %1054 = vmatprep.subr.mxu0 0.0
  %1055 = vmatpush1.msra.mxu0 0.0
  %1056 = vmatprep.subr.mxu0 0.0
  %1057 = vmatpush1.msra.mxu0 0.0
  %1058 = vmatprep.mubr.f32.mxu0 0.0
  %1059 = vmatmul.mubr.f32.gmra.mrb[0].mxu0 %v992
  %v1060 = vpop.f32.mrb[0].mxu0
  %v1061 = vadd.f32 %v989, %v1060
  %v1062 = vpop.f32.mrb[0].mxu0
  %1063 = vdwg.mxu0
  %v1064 = vld [vmem:[%s3] sm:$0xff]
  %v1065 = vadd.f32 %v1064, %v1061
  %v1066 = vsel %vm49, %v1065, 0.0
  %1067 = vadd.xlane.f32.xlu0 %v1066
  %v1068 = vpop.xlane.xlu0 %1067
  %v1069 = vrcp.pop 32.0
  %v1070 = vmul.f32 %v1068, %v1069
  %v1071 = vsub.f32 %v1065, %v1070
  %v1072 = vmul.f32 %v1071, %v1071
  %v1073 = vsel %vm49, %v1072, 0.0
  %1074 = vadd.xlane.f32.xlu0 %v1073
  %v1075 = vpop.xlane.xlu0 %1074
  %v1076 = vmul.f32 %v1075, %v1069
  %v1077 = vadd.f32 %v1076, 1e-05
  %v1078 = vrsqrt.pop %v1077
  %v1079 = vmul.f32 %v1071, %v1078
  %v1080 = vld [vmem:[%s8] sm:$0x1]
  %v1082 = vlaneseq
  %v1083 = vshrl.u32 %v1082, 7
  %v1084 = vsub.s32 0, %v1083
  %v1085 = vrot.slane %v1080, %v1084
  %v1087 = vmul.f32 %v1079, %v1085
  %v1088 = vld [vmem:[%s9] sm:$0x1]
  %v1090 = vlaneseq
  %v1091 = vshrl.u32 %v1090, 7
  %v1092 = vsub.s32 0, %v1091
  %v1093 = vrot.slane %v1088, %v1092
  %v1095 = vadd.f32 %v1087, %v1093
  %1096 = vst.msk [vmem:[%s10] sm:$0xff] %vm49, %v1095
  // Predicated region
  $region42: #{_ssa_core.24} parent=0 // pred_check
    _
  $region43: #{_ssa_core.24} parent=0 // pred_check_branch
    %1098 = sbr.rel (0) target = $region45
  $region44: #{_ssa_core.24} parent=0 // pred_region
    _
  $region45: #{_ssa_core.24} parent=0 // pred_fallthru
    _
  // Predicated region
  $region46: #{_ssa_core.24} parent=0 // pred_check
    _
  $region47: #{_ssa_core.24} parent=0 // pred_check_branch
    %1100 = sbr.rel (0) target = $region49
  $region48: #{_ssa_core.24} parent=0 // pred_region
    _
  $region49: #{_ssa_core.24} parent=0 // pred_fallthru
    _

// kernel: _ssa_core.25
$region0: #{_ssa_core.25}
  #allocation0 [shape = 'u32[]', space=smem, size = 0x4, offset = 0x4, fixed_abs, tag = 'smem constant byte address 0x4 - core index']
  #allocation1 [shape = 'u32[144,128]{1,0:T(1,128)}', space=vmem, size = 0x12000, scoped, tag = 'internal scratch']
  %s0 = inlined_call_operand.vmem [shape: f32[1,8,32], index: 0, kind: input, shape index: {}]
  %s1 = inlined_call_operand.vmem [shape: f32[1,32,32], index: 1, kind: input, shape index: {}]
  %s2 = inlined_call_operand.vmem [shape: f32[1,32,32], index: 2, kind: input, shape index: {}]
  %s3 = inlined_call_operand.vmem [shape: f32[1,8,32], index: 3, kind: input, shape index: {}]
  %s4 = inlined_call_operand.vmem [shape: f32[3,32,32], index: 4, kind: input, shape index: {}]
  %s5 = inlined_call_operand.vmem [shape: f32[3,1,32], index: 5, kind: input, shape index: {}]
  %s6 = inlined_call_operand.vmem [shape: f32[32,32], index: 6, kind: input, shape index: {}]
  %s7 = inlined_call_operand.vmem [shape: f32[1,32], index: 7, kind: input, shape index: {}]
  %s8 = inlined_call_operand.vmem [shape: f32[1,32], index: 8, kind: input, shape index: {}]
  %s9 = inlined_call_operand.vmem [shape: f32[1,32], index: 9, kind: input, shape index: {}]
  %s10 = inlined_call_operand.vmem [shape: f32[1,8,32], index: 10, kind: output, shape index: {}]
  %s11 = sld [smem:[#allocation0]]
  $region50: #{_ssa_core.25} parent=0
    _
  %s13 = ssub.s32 1, %s11
  %s14 = scalar_select 0, %s13, %s11
  // Predicated region
  $region2: #{_ssa_core.25} parent=0 // pred_check
    _
  $region3: #{_ssa_core.25} parent=0 // pred_check_branch
    %16 = sbr.rel (0) target = $region5
  $region4: #{_ssa_core.25} parent=0 // pred_region
    _
  $region5: #{_ssa_core.25} parent=0 // pred_fallthru
    _
  // Predicated region
  $region6: #{_ssa_core.25} parent=0 // pred_check
    _
  $region7: #{_ssa_core.25} parent=0 // pred_check_branch
    %18 = sbr.rel (0) target = $region9
  $region8: #{_ssa_core.25} parent=0 // pred_region
    _
  $region9: #{_ssa_core.25} parent=0 // pred_fallthru
    _
  // Predicated region
  $region10: #{_ssa_core.25} parent=0 // pred_check
    _
  $region11: #{_ssa_core.25} parent=0 // pred_check_branch
    %20 = sbr.rel (0) target = $region13
  $region12: #{_ssa_core.25} parent=0 // pred_region
    _
  $region13: #{_ssa_core.25} parent=0 // pred_fallthru
    _
  // Predicated region
  $region14: #{_ssa_core.25} parent=0 // pred_check
    _
  $region15: #{_ssa_core.25} parent=0 // pred_check_branch
    %22 = sbr.rel (0) target = $region17
  $region16: #{_ssa_core.25} parent=0 // pred_region
    _
  $region17: #{_ssa_core.25} parent=0 // pred_fallthru
    _
  // Predicated region
  $region18: #{_ssa_core.25} parent=0 // pred_check
    _
  $region19: #{_ssa_core.25} parent=0 // pred_check_branch
    %24 = sbr.rel (0) target = $region21
  $region20: #{_ssa_core.25} parent=0 // pred_region
    _
  $region21: #{_ssa_core.25} parent=0 // pred_fallthru
    _
  // Predicated region
  $region22: #{_ssa_core.25} parent=0 // pred_check
    _
  $region23: #{_ssa_core.25} parent=0 // pred_check_branch
    %26 = sbr.rel (0) target = $region25
  $region24: #{_ssa_core.25} parent=0 // pred_region
    _
  $region25: #{_ssa_core.25} parent=0 // pred_fallthru
    _
  // Predicated region
  $region26: #{_ssa_core.25} parent=0 // pred_check
    _
  $region27: #{_ssa_core.25} parent=0 // pred_check_branch
    %28 = sbr.rel (0) target = $region29
  $region28: #{_ssa_core.25} parent=0 // pred_region
    _
  $region29: #{_ssa_core.25} parent=0 // pred_fallthru
    _
  // Predicated region
  $region30: #{_ssa_core.25} parent=0 // pred_check
    _
  $region31: #{_ssa_core.25} parent=0 // pred_check_branch
    %30 = sbr.rel (0) target = $region33
  $region32: #{_ssa_core.25} parent=0 // pred_region
    _
  $region33: #{_ssa_core.25} parent=0 // pred_fallthru
    _
  // Predicated region
  $region34: #{_ssa_core.25} parent=0 // pred_check
    _
  $region35: #{_ssa_core.25} parent=0 // pred_check_branch
    %32 = sbr.rel (0) target = $region37
  $region36: #{_ssa_core.25} parent=0 // pred_region
    _
  $region37: #{_ssa_core.25} parent=0 // pred_fallthru
    _
  // Predicated region
  $region38: #{_ssa_core.25} parent=0 // pred_check
    _
  $region39: #{_ssa_core.25} parent=0 // pred_check_branch
    %34 = sbr.rel (0) target = $region41
  $region40: #{_ssa_core.25} parent=0 // pred_region
    _
  $region41: #{_ssa_core.25} parent=0 // pred_fallthru
    _
  %v35 = vld [vmem:[%s0] sm:$0xff]
  %v36 = vld [vmem:[%s1] sm:$0xff]
  %v37 = vld [vmem:[%s1 + $0x8] sm:$0xff]
  %v38 = vld [vmem:[%s1 + $0x10] sm:$0xff]
  %v39 = vld [vmem:[%s1 + $0x18] sm:$0xff]
  %v40 = vld [vmem:[%s2] sm:$0xff]
  %v41 = vld [vmem:[%s2 + $0x8] sm:$0xff]
  %v42 = vld [vmem:[%s2 + $0x10] sm:$0xff]
  %v43 = vld [vmem:[%s2 + $0x18] sm:$0xff]
  %v44 = vld [vmem:[%s4] sm:$0xff]
  %v45 = vld [vmem:[%s4 + $0x8] sm:$0xff]
  %v46 = vld [vmem:[%s4 + $0x10] sm:$0xff]
  %v47 = vld [vmem:[%s4 + $0x18] sm:$0xff]
  %v48 = vld [vmem:[%s5] sm:$0x1]
  %v50 = vlaneseq
  %v51 = vshrl.u32 %v50, 7
  %v52 = vsub.s32 0, %v51
  %v53 = vrot.slane %v48, %v52
  %vm55 = vcmask 261120
  %v57 = vsel %vm55, %v35, 0
  %59 = vmatprep.subr.mxu0 0.0
  %60 = vmatpush1.msra.mxu0 %v44
  %61 = vmatprep.subr.mxu0 0.0
  %62 = vmatpush1.msra.mxu0 %v45
  %63 = vmatprep.subr.mxu0 0.0
  %64 = vmatpush1.msra.mxu0 %v46
  %65 = vmatprep.subr.mxu0 0.0
  %66 = vmatpush1.msra.mxu0 %v47
  %67 = vmatprep.subr.mxu0 0.0
  %68 = vmatpush1.msra.mxu0 0.0
  %69 = vmatprep.subr.mxu0 0.0
  %70 = vmatpush1.msra.mxu0 0.0
  %71 = vmatprep.subr.mxu0 0.0
  %72 = vmatpush1.msra.mxu0 0.0
  %73 = vmatprep.subr.mxu0 0.0
  %74 = vmatpush1.msra.mxu0 0.0
  %75 = vmatprep.subr.mxu0 0.0
  %76 = vmatpush1.msra.mxu0 0.0
  %77 = vmatprep.subr.mxu0 0.0
  %78 = vmatpush1.msra.mxu0 0.0
  %79 = vmatprep.subr.mxu0 0.0
  %80 = vmatpush1.msra.mxu0 0.0
  %81 = vmatprep.subr.mxu0 0.0
  %82 = vmatpush1.msra.mxu0 0.0
  %83 = vmatprep.subr.mxu0 0.0
  %84 = vmatpush1.msra.mxu0 0.0
  %85 = vmatprep.subr.mxu0 0.0
  %86 = vmatpush1.msra.mxu0 0.0
  %87 = vmatprep.subr.mxu0 0.0
  %88 = vmatpush1.msra.mxu0 0.0
  %89 = vmatprep.subr.mxu0 0.0
  %90 = vmatpush1.msra.mxu0 0.0
  %91 = vmatprep.subr.mxu0 0.0
  %92 = vmatpush1.msra.mxu0 0.0
  %93 = vmatprep.subr.mxu0 0.0
  %94 = vmatpush1.msra.mxu0 0.0
  %95 = vmatprep.subr.mxu0 0.0
  %96 = vmatpush1.msra.mxu0 0.0
  %97 = vmatprep.subr.mxu0 0.0
  %98 = vmatpush1.msra.mxu0 0.0
  %99 = vmatprep.subr.mxu0 0.0
  %100 = vmatpush1.msra.mxu0 0.0
  %101 = vmatprep.subr.mxu0 0.0
  %102 = vmatpush1.msra.mxu0 0.0
  %103 = vmatprep.subr.mxu0 0.0
  %104 = vmatpush1.msra.mxu0 0.0
  %105 = vmatprep.subr.mxu0 0.0
  %106 = vmatpush1.msra.mxu0 0.0
  %107 = vmatprep.subr.mxu0 0.0
  %108 = vmatpush1.msra.mxu0 0.0
  %109 = vmatprep.subr.mxu0 0.0
  %110 = vmatpush1.msra.mxu0 0.0
  %111 = vmatprep.subr.mxu0 0.0
  %112 = vmatpush1.msra.mxu0 0.0
  %113 = vmatprep.subr.mxu0 0.0
  %114 = vmatpush1.msra.mxu0 0.0
  %115 = vmatprep.subr.mxu0 0.0
  %116 = vmatpush1.msra.mxu0 0.0
  %117 = vmatprep.subr.mxu0 0.0
  %118 = vmatpush1.msra.mxu0 0.0
  %119 = vmatprep.subr.mxu0 0.0
  %120 = vmatpush1.msra.mxu0 0.0
  %121 = vmatprep.subr.mxu0 0.0
  %122 = vmatpush1.msra.mxu0 0.0
  %123 = vmatprep.mubr.f32.mxu0 0.0
  %124 = vmatmul.mubr.f32.gmra.mrb[0].mxu0 %v57
  %v125 = vpop.f32.mrb[0].mxu0
  %v126 = vadd.f32 %v53, %v125
  %v127 = vpop.f32.mrb[0].mxu0
  %128 = vdwg.mxu0
  %s129 = scalar_lea.vmem %s4, 32
  %v130 = vld [vmem:[%s129] sm:$0xff]
  %v131 = vld [vmem:[%s129 + $0x8] sm:$0xff]
  %v132 = vld [vmem:[%s129 + $0x10] sm:$0xff]
  %v133 = vld [vmem:[%s129 + $0x18] sm:$0xff]
  %s134 = scalar_lea.vmem %s5, 1
  %v135 = vld [vmem:[%s134] sm:$0x1]
  %v137 = vlaneseq
  %v138 = vshrl.u32 %v137, 7
  %v139 = vsub.s32 0, %v138
  %v140 = vrot.slane %v135, %v139
  %v143 = vsel %vm55, %v36, 0
  %v146 = vsel %vm55, %v37, 0
  %v149 = vsel %vm55, %v38, 0
  %v152 = vsel %vm55, %v39, 0
  %154 = vmatprep.subr.mxu0 0.0
  %155 = vmatpush1.msra.mxu0 %v130
  %156 = vmatprep.subr.mxu0 0.0
  %157 = vmatpush1.msra.mxu0 %v131
  %158 = vmatprep.subr.mxu0 0.0
  %159 = vmatpush1.msra.mxu0 %v132
  %160 = vmatprep.subr.mxu0 0.0
  %161 = vmatpush1.msra.mxu0 %v133
  %162 = vmatprep.subr.mxu0 0.0
  %163 = vmatpush1.msra.mxu0 0.0
  %164 = vmatprep.subr.mxu0 0.0
  %165 = vmatpush1.msra.mxu0 0.0
  %166 = vmatprep.subr.mxu0 0.0
  %167 = vmatpush1.msra.mxu0 0.0
  %168 = vmatprep.subr.mxu0 0.0
  %169 = vmatpush1.msra.mxu0 0.0
  %170 = vmatprep.subr.mxu0 0.0
  %171 = vmatpush1.msra.mxu0 0.0
  %172 = vmatprep.subr.mxu0 0.0
  %173 = vmatpush1.msra.mxu0 0.0
  %174 = vmatprep.subr.mxu0 0.0
  %175 = vmatpush1.msra.mxu0 0.0
  %176 = vmatprep.subr.mxu0 0.0
  %177 = vmatpush1.msra.mxu0 0.0
  %178 = vmatprep.subr.mxu0 0.0
  %179 = vmatpush1.msra.mxu0 0.0
  %180 = vmatprep.subr.mxu0 0.0
  %181 = vmatpush1.msra.mxu0 0.0
  %182 = vmatprep.subr.mxu0 0.0
  %183 = vmatpush1.msra.mxu0 0.0
  %184 = vmatprep.subr.mxu0 0.0
  %185 = vmatpush1.msra.mxu0 0.0
  %186 = vmatprep.subr.mxu0 0.0
  %187 = vmatpush1.msra.mxu0 0.0
  %188 = vmatprep.subr.mxu0 0.0
  %189 = vmatpush1.msra.mxu0 0.0
  %190 = vmatprep.subr.mxu0 0.0
  %191 = vmatpush1.msra.mxu0 0.0
  %192 = vmatprep.subr.mxu0 0.0
  %193 = vmatpush1.msra.mxu0 0.0
  %194 = vmatprep.subr.mxu0 0.0
  %195 = vmatpush1.msra.mxu0 0.0
  %196 = vmatprep.subr.mxu0 0.0
  %197 = vmatpush1.msra.mxu0 0.0
  %198 = vmatprep.subr.mxu0 0.0
  %199 = vmatpush1.msra.mxu0 0.0
  %200 = vmatprep.subr.mxu0 0.0
  %201 = vmatpush1.msra.mxu0 0.0
  %202 = vmatprep.subr.mxu0 0.0
  %203 = vmatpush1.msra.mxu0 0.0
  %204 = vmatprep.subr.mxu0 0.0
  %205 = vmatpush1.msra.mxu0 0.0
  %206 = vmatprep.subr.mxu0 0.0
  %207 = vmatpush1.msra.mxu0 0.0
  %208 = vmatprep.subr.mxu0 0.0
  %209 = vmatpush1.msra.mxu0 0.0
  %210 = vmatprep.subr.mxu0 0.0
  %211 = vmatpush1.msra.mxu0 0.0
  %212 = vmatprep.subr.mxu0 0.0
  %213 = vmatpush1.msra.mxu0 0.0
  %214 = vmatprep.subr.mxu0 0.0
  %215 = vmatpush1.msra.mxu0 0.0
  %216 = vmatprep.subr.mxu0 0.0
  %217 = vmatpush1.msra.mxu0 0.0
  %218 = vmatprep.mubr.f32.mxu0 0.0
  %219 = vmatmul.mubr.f32.gmra.mrb[0].mxu0 %v143
  %v220 = vpop.f32.mrb[0].mxu0
  %v221 = vadd.f32 %v140, %v220
  %v222 = vpop.f32.mrb[0].mxu0
  %223 = vmatprep.mubr.f32.mxu0 0.0
  %224 = vmatmul.mubr.f32.gmra.mrb[0].mxu0 %v146
  %v225 = vpop.f32.mrb[0].mxu0
  %v226 = vadd.f32 %v140, %v225
  %v227 = vpop.f32.mrb[0].mxu0
  %228 = vmatprep.mubr.f32.mxu0 0.0
  %229 = vmatmul.mubr.f32.gmra.mrb[0].mxu0 %v149
  %v230 = vpop.f32.mrb[0].mxu0
  %v231 = vadd.f32 %v140, %v230
  %v232 = vpop.f32.mrb[0].mxu0
  %233 = vmatprep.mubr.f32.mxu0 0.0
  %234 = vmatmul.mubr.f32.gmra.mrb[0].mxu0 %v152
  %v235 = vpop.f32.mrb[0].mxu0
  %v236 = vadd.f32 %v140, %v235
  %v237 = vpop.f32.mrb[0].mxu0
  %238 = vdwg.mxu0
  %s239 = scalar_lea.vmem %s4, 64
  %v240 = vld [vmem:[%s239] sm:$0xff]
  %v241 = vld [vmem:[%s239 + $0x8] sm:$0xff]
  %v242 = vld [vmem:[%s239 + $0x10] sm:$0xff]
  %v243 = vld [vmem:[%s239 + $0x18] sm:$0xff]
  %s244 = scalar_lea.vmem %s5, 2
  %v245 = vld [vmem:[%s244] sm:$0x1]
  %v247 = vlaneseq
  %v248 = vshrl.u32 %v247, 7
  %v249 = vsub.s32 0, %v248
  %v250 = vrot.slane %v245, %v249
  %v253 = vsel %vm55, %v40, 0
  %v256 = vsel %vm55, %v41, 0
  %v259 = vsel %vm55, %v42, 0
  %v262 = vsel %vm55, %v43, 0
  %264 = vmatprep.subr.mxu0 0.0
  %265 = vmatpush1.msra.mxu0 %v240
  %266 = vmatprep.subr.mxu0 0.0
  %267 = vmatpush1.msra.mxu0 %v241
  %268 = vmatprep.subr.mxu0 0.0
  %269 = vmatpush1.msra.mxu0 %v242
  %270 = vmatprep.subr.mxu0 0.0
  %271 = vmatpush1.msra.mxu0 %v243
  %272 = vmatprep.subr.mxu0 0.0
  %273 = vmatpush1.msra.mxu0 0.0
  %274 = vmatprep.subr.mxu0 0.0
  %275 = vmatpush1.msra.mxu0 0.0
  %276 = vmatprep.subr.mxu0 0.0
  %277 = vmatpush1.msra.mxu0 0.0
  %278 = vmatprep.subr.mxu0 0.0
  %279 = vmatpush1.msra.mxu0 0.0
  %280 = vmatprep.subr.mxu0 0.0
  %281 = vmatpush1.msra.mxu0 0.0
  %282 = vmatprep.subr.mxu0 0.0
  %283 = vmatpush1.msra.mxu0 0.0
  %284 = vmatprep.subr.mxu0 0.0
  %285 = vmatpush1.msra.mxu0 0.0
  %286 = vmatprep.subr.mxu0 0.0
  %287 = vmatpush1.msra.mxu0 0.0
  %288 = vmatprep.subr.mxu0 0.0
  %289 = vmatpush1.msra.mxu0 0.0
  %290 = vmatprep.subr.mxu0 0.0
  %291 = vmatpush1.msra.mxu0 0.0
  %292 = vmatprep.subr.mxu0 0.0
  %293 = vmatpush1.msra.mxu0 0.0
  %294 = vmatprep.subr.mxu0 0.0
  %295 = vmatpush1.msra.mxu0 0.0
  %296 = vmatprep.subr.mxu0 0.0
  %297 = vmatpush1.msra.mxu0 0.0
  %298 = vmatprep.subr.mxu0 0.0
  %299 = vmatpush1.msra.mxu0 0.0
  %300 = vmatprep.subr.mxu0 0.0
  %301 = vmatpush1.msra.mxu0 0.0
  %302 = vmatprep.subr.mxu0 0.0
  %303 = vmatpush1.msra.mxu0 0.0
  %304 = vmatprep.subr.mxu0 0.0
  %305 = vmatpush1.msra.mxu0 0.0
  %306 = vmatprep.subr.mxu0 0.0
  %307 = vmatpush1.msra.mxu0 0.0
  %308 = vmatprep.subr.mxu0 0.0
  %309 = vmatpush1.msra.mxu0 0.0
  %310 = vmatprep.subr.mxu0 0.0
  %311 = vmatpush1.msra.mxu0 0.0
  %312 = vmatprep.subr.mxu0 0.0
  %313 = vmatpush1.msra.mxu0 0.0
  %314 = vmatprep.subr.mxu0 0.0
  %315 = vmatpush1.msra.mxu0 0.0
  %316 = vmatprep.subr.mxu0 0.0
  %317 = vmatpush1.msra.mxu0 0.0
  %318 = vmatprep.subr.mxu0 0.0
  %319 = vmatpush1.msra.mxu0 0.0
  %320 = vmatprep.subr.mxu0 0.0
  %321 = vmatpush1.msra.mxu0 0.0
  %322 = vmatprep.subr.mxu0 0.0
  %323 = vmatpush1.msra.mxu0 0.0
  %324 = vmatprep.subr.mxu0 0.0
  %325 = vmatpush1.msra.mxu0 0.0
  %326 = vmatprep.subr.mxu0 0.0
  %327 = vmatpush1.msra.mxu0 0.0
  %328 = vmatprep.mubr.f32.mxu0 0.0
  %329 = vmatmul.mubr.f32.gmra.mrb[0].mxu0 %v253
  %v330 = vpop.f32.mrb[0].mxu0
  %v331 = vadd.f32 %v250, %v330
  %v332 = vpop.f32.mrb[0].mxu0
  %333 = vmatprep.mubr.f32.mxu0 0.0
  %334 = vmatmul.mubr.f32.gmra.mrb[0].mxu0 %v256
  %v335 = vpop.f32.mrb[0].mxu0
  %v336 = vadd.f32 %v250, %v335
  %v337 = vpop.f32.mrb[0].mxu0
  %338 = vmatprep.mubr.f32.mxu0 0.0
  %339 = vmatmul.mubr.f32.gmra.mrb[0].mxu0 %v259
  %v340 = vpop.f32.mrb[0].mxu0
  %v341 = vadd.f32 %v250, %v340
  %v342 = vpop.f32.mrb[0].mxu0
  %343 = vmatprep.mubr.f32.mxu0 0.0
  %344 = vmatmul.mubr.f32.gmra.mrb[0].mxu0 %v262
  %v345 = vpop.f32.mrb[0].mxu0
  %v346 = vadd.f32 %v250, %v345
  %v347 = vpop.f32.mrb[0].mxu0
  %348 = vdwg.mxu0
  %vm349 = vcmask 64512
  %v351 = vsel %vm349, %v126, 0
  %v354 = vsel %vm349, %v221, 0
  %v357 = vsel %vm349, %v226, 0
  %v360 = vsel %vm349, %v231, 0
  %v363 = vsel %vm349, %v236, 0
  %365 = vmatprep.subr.mxu0 0.0
  %366 = vmatpush1.xpose.msra.mxu0 %v354
  %367 = vmatprep.subr.mxu0 0.0
  %368 = vmatpush1.xpose.msra.mxu0 %v357
  %369 = vmatprep.subr.mxu0 0.0
  %370 = vmatpush1.xpose.msra.mxu0 %v360
  %371 = vmatprep.subr.mxu0 0.0
  %372 = vmatpush1.xpose.msra.mxu0 %v363
  %373 = vmatprep.subr.mxu0 0.0
  %374 = vmatpush1.xpose.msra.mxu0 0.0
  %375 = vmatprep.subr.mxu0 0.0
  %376 = vmatpush1.xpose.msra.mxu0 0.0
  %377 = vmatprep.subr.mxu0 0.0
  %378 = vmatpush1.xpose.msra.mxu0 0.0
  %379 = vmatprep.subr.mxu0 0.0
  %380 = vmatpush1.xpose.msra.mxu0 0.0
  %381 = vmatprep.subr.mxu0 0.0
  %382 = vmatpush1.xpose.msra.mxu0 0.0
  %383 = vmatprep.subr.mxu0 0.0
  %384 = vmatpush1.xpose.msra.mxu0 0.0
  %385 = vmatprep.subr.mxu0 0.0
  %386 = vmatpush1.xpose.msra.mxu0 0.0
  %387 = vmatprep.subr.mxu0 0.0
  %388 = vmatpush1.xpose.msra.mxu0 0.0
  %389 = vmatprep.subr.mxu0 0.0
  %390 = vmatpush1.xpose.msra.mxu0 0.0
  %391 = vmatprep.subr.mxu0 0.0
  %392 = vmatpush1.xpose.msra.mxu0 0.0
  %393 = vmatprep.subr.mxu0 0.0
  %394 = vmatpush1.xpose.msra.mxu0 0.0
  %395 = vmatprep.subr.mxu0 0.0
  %396 = vmatpush1.xpose.msra.mxu0 0.0
  %397 = vmatprep.subr.mxu0 0.0
  %398 = vmatpush1.xpose.msra.mxu0 0.0
  %399 = vmatprep.subr.mxu0 0.0
  %400 = vmatpush1.xpose.msra.mxu0 0.0
  %401 = vmatprep.subr.mxu0 0.0
  %402 = vmatpush1.xpose.msra.mxu0 0.0
  %403 = vmatprep.subr.mxu0 0.0
  %404 = vmatpush1.xpose.msra.mxu0 0.0
  %405 = vmatprep.subr.mxu0 0.0
  %406 = vmatpush1.xpose.msra.mxu0 0.0
  %407 = vmatprep.subr.mxu0 0.0
  %408 = vmatpush1.xpose.msra.mxu0 0.0
  %409 = vmatprep.subr.mxu0 0.0
  %410 = vmatpush1.xpose.msra.mxu0 0.0
  %411 = vmatprep.subr.mxu0 0.0
  %412 = vmatpush1.xpose.msra.mxu0 0.0
  %413 = vmatprep.subr.mxu0 0.0
  %414 = vmatpush1.xpose.msra.mxu0 0.0
  %415 = vmatprep.subr.mxu0 0.0
  %416 = vmatpush1.xpose.msra.mxu0 0.0
  %417 = vmatprep.subr.mxu0 0.0
  %418 = vmatpush1.xpose.msra.mxu0 0.0
  %419 = vmatprep.subr.mxu0 0.0
  %420 = vmatpush1.xpose.msra.mxu0 0.0
  %421 = vmatprep.subr.mxu0 0.0
  %422 = vmatpush1.xpose.msra.mxu0 0.0
  %423 = vmatprep.subr.mxu0 0.0
  %424 = vmatpush1.xpose.msra.mxu0 0.0
  %425 = vmatprep.subr.mxu0 0.0
  %426 = vmatpush1.xpose.msra.mxu0 0.0
  %427 = vmatprep.subr.mxu0 0.0
  %428 = vmatpush1.xpose.msra.mxu0 0.0
  %429 = vmatprep.mubr.f32.mxu0 0.0
  %430 = vmatmul.mubr.f32.gmra.mrb[0].mxu0 %v351
  %v431 = vpop.f32.mrb[0].mxu0
  %v432 = vadd.f32 0.0, %v431
  %v433 = vpop.f32.mrb[0].mxu0
  %434 = vdwg.mxu0
  %v435 = vmul.f32 %v432, 0.35355338
  %v436 = vsel %vm55, %v435, -inf
  %437 = vmax.xlane.f32.xlu0 %v436
  %v438 = vpop.xlane.xlu0 %437
  %v439 = vsub.f32 %v435, %v438
  %v440 = vmul.f32 %v439, 1.442695
  %v441 = vpow.pop %v440
  %v442 = vsel %vm55, %v441, 0.0
  %443 = vadd.xlane.f32.xlu0 %v442
  %v444 = vpop.xlane.xlu0 %443
  %v445 = vrcp.pop %v444
  %v446 = vmul.f32 %v441, %v445
  %v448 = vsel %vm55, %v446, 0
  %450 = vmatprep.subr.mxu0 0.0
  %451 = vmatpush1.msra.mxu0 %v331
  %452 = vmatprep.subr.mxu0 0.0
  %453 = vmatpush1.msra.mxu0 %v336
  %454 = vmatprep.subr.mxu0 0.0
  %455 = vmatpush1.msra.mxu0 %v341
  %456 = vmatprep.subr.mxu0 0.0
  %457 = vmatpush1.msra.mxu0 %v346
  %458 = vmatprep.subr.mxu0 0.0
  %459 = vmatpush1.msra.mxu0 0.0
  %460 = vmatprep.subr.mxu0 0.0
  %461 = vmatpush1.msra.mxu0 0.0
  %462 = vmatprep.subr.mxu0 0.0
  %463 = vmatpush1.msra.mxu0 0.0
  %464 = vmatprep.subr.mxu0 0.0
  %465 = vmatpush1.msra.mxu0 0.0
  %466 = vmatprep.subr.mxu0 0.0
  %467 = vmatpush1.msra.mxu0 0.0
  %468 = vmatprep.subr.mxu0 0.0
  %469 = vmatpush1.msra.mxu0 0.0
  %470 = vmatprep.subr.mxu0 0.0
  %471 = vmatpush1.msra.mxu0 0.0
  %472 = vmatprep.subr.mxu0 0.0
  %473 = vmatpush1.msra.mxu0 0.0
  %474 = vmatprep.subr.mxu0 0.0
  %475 = vmatpush1.msra.mxu0 0.0
  %476 = vmatprep.subr.mxu0 0.0
  %477 = vmatpush1.msra.mxu0 0.0
  %478 = vmatprep.subr.mxu0 0.0
  %479 = vmatpush1.msra.mxu0 0.0
  %480 = vmatprep.subr.mxu0 0.0
  %481 = vmatpush1.msra.mxu0 0.0
  %482 = vmatprep.subr.mxu0 0.0
  %483 = vmatpush1.msra.mxu0 0.0
  %484 = vmatprep.subr.mxu0 0.0
  %485 = vmatpush1.msra.mxu0 0.0
  %486 = vmatprep.subr.mxu0 0.0
  %487 = vmatpush1.msra.mxu0 0.0
  %488 = vmatprep.subr.mxu0 0.0
  %489 = vmatpush1.msra.mxu0 0.0
  %490 = vmatprep.subr.mxu0 0.0
  %491 = vmatpush1.msra.mxu0 0.0
  %492 = vmatprep.subr.mxu0 0.0
  %493 = vmatpush1.msra.mxu0 0.0
  %494 = vmatprep.subr.mxu0 0.0
  %495 = vmatpush1.msra.mxu0 0.0
  %496 = vmatprep.subr.mxu0 0.0
  %497 = vmatpush1.msra.mxu0 0.0
  %498 = vmatprep.subr.mxu0 0.0
  %499 = vmatpush1.msra.mxu0 0.0
  %500 = vmatprep.subr.mxu0 0.0
  %501 = vmatpush1.msra.mxu0 0.0
  %502 = vmatprep.subr.mxu0 0.0
  %503 = vmatpush1.msra.mxu0 0.0
  %504 = vmatprep.subr.mxu0 0.0
  %505 = vmatpush1.msra.mxu0 0.0
  %506 = vmatprep.subr.mxu0 0.0
  %507 = vmatpush1.msra.mxu0 0.0
  %508 = vmatprep.subr.mxu0 0.0
  %509 = vmatpush1.msra.mxu0 0.0
  %510 = vmatprep.subr.mxu0 0.0
  %511 = vmatpush1.msra.mxu0 0.0
  %512 = vmatprep.subr.mxu0 0.0
  %513 = vmatpush1.msra.mxu0 0.0
  %514 = vmatprep.mubr.f32.mxu0 0.0
  %515 = vmatmul.mubr.f32.gmra.mrb[0].mxu0 %v448
  %v516 = vpop.f32.mrb[0].mxu0
  %v517 = vadd.f32 0.0, %v516
  %v518 = vpop.f32.mrb[0].mxu0
  %519 = vdwg.mxu0
  %520 = vrot.lane.b32.xlu0 %v126, 120
  %v521 = vpop.permute.xlu0 %520
  %522 = vrot.lane.b32.xlu0 %v221, 120
  %v523 = vpop.permute.xlu0 %522
  %524 = vrot.lane.b32.xlu0 %v226, 120
  %v525 = vpop.permute.xlu0 %524
  %526 = vrot.lane.b32.xlu0 %v231, 120
  %v527 = vpop.permute.xlu0 %526
  %528 = vrot.lane.b32.xlu0 %v236, 120
  %v529 = vpop.permute.xlu0 %528
  %v530 = vsel %vm349, %v521, 0
  %v532 = vsel %vm349, %v523, 0
  %v534 = vsel %vm349, %v525, 0
  %v536 = vsel %vm349, %v527, 0
  %v538 = vsel %vm349, %v529, 0
  %540 = vmatprep.subr.mxu0 0.0
  %541 = vmatpush1.xpose.msra.mxu0 %v532
  %542 = vmatprep.subr.mxu0 0.0
  %543 = vmatpush1.xpose.msra.mxu0 %v534
  %544 = vmatprep.subr.mxu0 0.0
  %545 = vmatpush1.xpose.msra.mxu0 %v536
  %546 = vmatprep.subr.mxu0 0.0
  %547 = vmatpush1.xpose.msra.mxu0 %v538
  %548 = vmatprep.subr.mxu0 0.0
  %549 = vmatpush1.xpose.msra.mxu0 0.0
  %550 = vmatprep.subr.mxu0 0.0
  %551 = vmatpush1.xpose.msra.mxu0 0.0
  %552 = vmatprep.subr.mxu0 0.0
  %553 = vmatpush1.xpose.msra.mxu0 0.0
  %554 = vmatprep.subr.mxu0 0.0
  %555 = vmatpush1.xpose.msra.mxu0 0.0
  %556 = vmatprep.subr.mxu0 0.0
  %557 = vmatpush1.xpose.msra.mxu0 0.0
  %558 = vmatprep.subr.mxu0 0.0
  %559 = vmatpush1.xpose.msra.mxu0 0.0
  %560 = vmatprep.subr.mxu0 0.0
  %561 = vmatpush1.xpose.msra.mxu0 0.0
  %562 = vmatprep.subr.mxu0 0.0
  %563 = vmatpush1.xpose.msra.mxu0 0.0
  %564 = vmatprep.subr.mxu0 0.0
  %565 = vmatpush1.xpose.msra.mxu0 0.0
  %566 = vmatprep.subr.mxu0 0.0
  %567 = vmatpush1.xpose.msra.mxu0 0.0
  %568 = vmatprep.subr.mxu0 0.0
  %569 = vmatpush1.xpose.msra.mxu0 0.0
  %570 = vmatprep.subr.mxu0 0.0
  %571 = vmatpush1.xpose.msra.mxu0 0.0
  %572 = vmatprep.subr.mxu0 0.0
  %573 = vmatpush1.xpose.msra.mxu0 0.0
  %574 = vmatprep.subr.mxu0 0.0
  %575 = vmatpush1.xpose.msra.mxu0 0.0
  %576 = vmatprep.subr.mxu0 0.0
  %577 = vmatpush1.xpose.msra.mxu0 0.0
  %578 = vmatprep.subr.mxu0 0.0
  %579 = vmatpush1.xpose.msra.mxu0 0.0
  %580 = vmatprep.subr.mxu0 0.0
  %581 = vmatpush1.xpose.msra.mxu0 0.0
  %582 = vmatprep.subr.mxu0 0.0
  %583 = vmatpush1.xpose.msra.mxu0 0.0
  %584 = vmatprep.subr.mxu0 0.0
  %585 = vmatpush1.xpose.msra.mxu0 0.0
  %586 = vmatprep.subr.mxu0 0.0
  %587 = vmatpush1.xpose.msra.mxu0 0.0
  %588 = vmatprep.subr.mxu0 0.0
  %589 = vmatpush1.xpose.msra.mxu0 0.0
  %590 = vmatprep.subr.mxu0 0.0
  %591 = vmatpush1.xpose.msra.mxu0 0.0
  %592 = vmatprep.subr.mxu0 0.0
  %593 = vmatpush1.xpose.msra.mxu0 0.0
  %594 = vmatprep.subr.mxu0 0.0
  %595 = vmatpush1.xpose.msra.mxu0 0.0
  %596 = vmatprep.subr.mxu0 0.0
  %597 = vmatpush1.xpose.msra.mxu0 0.0
  %598 = vmatprep.subr.mxu0 0.0
  %599 = vmatpush1.xpose.msra.mxu0 0.0
  %600 = vmatprep.subr.mxu0 0.0
  %601 = vmatpush1.xpose.msra.mxu0 0.0
  %602 = vmatprep.subr.mxu0 0.0
  %603 = vmatpush1.xpose.msra.mxu0 0.0
  %604 = vmatprep.mubr.f32.mxu0 0.0
  %605 = vmatmul.mubr.f32.gmra.mrb[0].mxu0 %v530
  %v606 = vpop.f32.mrb[0].mxu0
  %v607 = vadd.f32 0.0, %v606
  %v608 = vpop.f32.mrb[0].mxu0
  %609 = vdwg.mxu0
  %v610 = vmul.f32 %v607, 0.35355338
  %v611 = vsel %vm55, %v610, -inf
  %612 = vmax.xlane.f32.xlu0 %v611
  %v613 = vpop.xlane.xlu0 %612
  %v614 = vsub.f32 %v610, %v613
  %v615 = vmul.f32 %v614, 1.442695
  %v616 = vpow.pop %v615
  %v617 = vsel %vm55, %v616, 0.0
  %618 = vadd.xlane.f32.xlu0 %v617
  %v619 = vpop.xlane.xlu0 %618
  %v620 = vrcp.pop %v619
  %v621 = vmul.f32 %v616, %v620
  %626 = vrot.lane.b32.xlu0 %v331, 120
  %v627 = vpop.permute.xlu0 %626
  %628 = vrot.lane.b32.xlu0 %v336, 120
  %v629 = vpop.permute.xlu0 %628
  %630 = vrot.lane.b32.xlu0 %v341, 120
  %v631 = vpop.permute.xlu0 %630
  %632 = vrot.lane.b32.xlu0 %v346, 120
  %v633 = vpop.permute.xlu0 %632
  %v639 = vsel %vm55, %v621, 0
  %641 = vmatprep.subr.mxu0 0.0
  %642 = vmatpush1.msra.mxu0 %v627
  %643 = vmatprep.subr.mxu0 0.0
  %644 = vmatpush1.msra.mxu0 %v629
  %645 = vmatprep.subr.mxu0 0.0
  %646 = vmatpush1.msra.mxu0 %v631
  %647 = vmatprep.subr.mxu0 0.0
  %648 = vmatpush1.msra.mxu0 %v633
  %649 = vmatprep.subr.mxu0 0.0
  %650 = vmatpush1.msra.mxu0 0.0
  %651 = vmatprep.subr.mxu0 0.0
  %652 = vmatpush1.msra.mxu0 0.0
  %653 = vmatprep.subr.mxu0 0.0
  %654 = vmatpush1.msra.mxu0 0.0
  %655 = vmatprep.subr.mxu0 0.0
  %656 = vmatpush1.msra.mxu0 0.0
  %657 = vmatprep.subr.mxu0 0.0
  %658 = vmatpush1.msra.mxu0 0.0
  %659 = vmatprep.subr.mxu0 0.0
  %660 = vmatpush1.msra.mxu0 0.0
  %661 = vmatprep.subr.mxu0 0.0
  %662 = vmatpush1.msra.mxu0 0.0
  %663 = vmatprep.subr.mxu0 0.0
  %664 = vmatpush1.msra.mxu0 0.0
  %665 = vmatprep.subr.mxu0 0.0
  %666 = vmatpush1.msra.mxu0 0.0
  %667 = vmatprep.subr.mxu0 0.0
  %668 = vmatpush1.msra.mxu0 0.0
  %669 = vmatprep.subr.mxu0 0.0
  %670 = vmatpush1.msra.mxu0 0.0
  %671 = vmatprep.subr.mxu0 0.0
  %672 = vmatpush1.msra.mxu0 0.0
  %673 = vmatprep.subr.mxu0 0.0
  %674 = vmatpush1.msra.mxu0 0.0
  %675 = vmatprep.subr.mxu0 0.0
  %676 = vmatpush1.msra.mxu0 0.0
  %677 = vmatprep.subr.mxu0 0.0
  %678 = vmatpush1.msra.mxu0 0.0
  %679 = vmatprep.subr.mxu0 0.0
  %680 = vmatpush1.msra.mxu0 0.0
  %681 = vmatprep.subr.mxu0 0.0
  %682 = vmatpush1.msra.mxu0 0.0
  %683 = vmatprep.subr.mxu0 0.0
  %684 = vmatpush1.msra.mxu0 0.0
  %685 = vmatprep.subr.mxu0 0.0
  %686 = vmatpush1.msra.mxu0 0.0
  %687 = vmatprep.subr.mxu0 0.0
  %688 = vmatpush1.msra.mxu0 0.0
  %689 = vmatprep.subr.mxu0 0.0
  %690 = vmatpush1.msra.mxu0 0.0
  %691 = vmatprep.subr.mxu0 0.0
  %692 = vmatpush1.msra.mxu0 0.0
  %693 = vmatprep.subr.mxu0 0.0
  %694 = vmatpush1.msra.mxu0 0.0
  %695 = vmatprep.subr.mxu0 0.0
  %696 = vmatpush1.msra.mxu0 0.0
  %697 = vmatprep.subr.mxu0 0.0
  %698 = vmatpush1.msra.mxu0 0.0
  %699 = vmatprep.subr.mxu0 0.0
  %700 = vmatpush1.msra.mxu0 0.0
  %701 = vmatprep.subr.mxu0 0.0
  %702 = vmatpush1.msra.mxu0 0.0
  %703 = vmatprep.subr.mxu0 0.0
  %704 = vmatpush1.msra.mxu0 0.0
  %705 = vmatprep.mubr.f32.mxu0 0.0
  %706 = vmatmul.mubr.f32.gmra.mrb[0].mxu0 %v639
  %v707 = vpop.f32.mrb[0].mxu0
  %v708 = vadd.f32 0.0, %v707
  %v709 = vpop.f32.mrb[0].mxu0
  %710 = vdwg.mxu0
  %711 = vrot.lane.b32.xlu0 %v126, 112
  %v712 = vpop.permute.xlu0 %711
  %713 = vrot.lane.b32.xlu0 %v221, 112
  %v714 = vpop.permute.xlu0 %713
  %715 = vrot.lane.b32.xlu0 %v226, 112
  %v716 = vpop.permute.xlu0 %715
  %717 = vrot.lane.b32.xlu0 %v231, 112
  %v718 = vpop.permute.xlu0 %717
  %719 = vrot.lane.b32.xlu0 %v236, 112
  %v720 = vpop.permute.xlu0 %719
  %v721 = vsel %vm349, %v712, 0
  %v723 = vsel %vm349, %v714, 0
  %v725 = vsel %vm349, %v716, 0
  %v727 = vsel %vm349, %v718, 0
  %v729 = vsel %vm349, %v720, 0
  %731 = vmatprep.subr.mxu0 0.0
  %732 = vmatpush1.xpose.msra.mxu0 %v723
  %733 = vmatprep.subr.mxu0 0.0
  %734 = vmatpush1.xpose.msra.mxu0 %v725
  %735 = vmatprep.subr.mxu0 0.0
  %736 = vmatpush1.xpose.msra.mxu0 %v727
  %737 = vmatprep.subr.mxu0 0.0
  %738 = vmatpush1.xpose.msra.mxu0 %v729
  %739 = vmatprep.subr.mxu0 0.0
  %740 = vmatpush1.xpose.msra.mxu0 0.0
  %741 = vmatprep.subr.mxu0 0.0
  %742 = vmatpush1.xpose.msra.mxu0 0.0
  %743 = vmatprep.subr.mxu0 0.0
  %744 = vmatpush1.xpose.msra.mxu0 0.0
  %745 = vmatprep.subr.mxu0 0.0
  %746 = vmatpush1.xpose.msra.mxu0 0.0
  %747 = vmatprep.subr.mxu0 0.0
  %748 = vmatpush1.xpose.msra.mxu0 0.0
  %749 = vmatprep.subr.mxu0 0.0
  %750 = vmatpush1.xpose.msra.mxu0 0.0
  %751 = vmatprep.subr.mxu0 0.0
  %752 = vmatpush1.xpose.msra.mxu0 0.0
  %753 = vmatprep.subr.mxu0 0.0
  %754 = vmatpush1.xpose.msra.mxu0 0.0
  %755 = vmatprep.subr.mxu0 0.0
  %756 = vmatpush1.xpose.msra.mxu0 0.0
  %757 = vmatprep.subr.mxu0 0.0
  %758 = vmatpush1.xpose.msra.mxu0 0.0
  %759 = vmatprep.subr.mxu0 0.0
  %760 = vmatpush1.xpose.msra.mxu0 0.0
  %761 = vmatprep.subr.mxu0 0.0
  %762 = vmatpush1.xpose.msra.mxu0 0.0
  %763 = vmatprep.subr.mxu0 0.0
  %764 = vmatpush1.xpose.msra.mxu0 0.0
  %765 = vmatprep.subr.mxu0 0.0
  %766 = vmatpush1.xpose.msra.mxu0 0.0
  %767 = vmatprep.subr.mxu0 0.0
  %768 = vmatpush1.xpose.msra.mxu0 0.0
  %769 = vmatprep.subr.mxu0 0.0
  %770 = vmatpush1.xpose.msra.mxu0 0.0
  %771 = vmatprep.subr.mxu0 0.0
  %772 = vmatpush1.xpose.msra.mxu0 0.0
  %773 = vmatprep.subr.mxu0 0.0
  %774 = vmatpush1.xpose.msra.mxu0 0.0
  %775 = vmatprep.subr.mxu0 0.0
  %776 = vmatpush1.xpose.msra.mxu0 0.0
  %777 = vmatprep.subr.mxu0 0.0
  %778 = vmatpush1.xpose.msra.mxu0 0.0
  %779 = vmatprep.subr.mxu0 0.0
  %780 = vmatpush1.xpose.msra.mxu0 0.0
  %781 = vmatprep.subr.mxu0 0.0
  %782 = vmatpush1.xpose.msra.mxu0 0.0
  %783 = vmatprep.subr.mxu0 0.0
  %784 = vmatpush1.xpose.msra.mxu0 0.0
  %785 = vmatprep.subr.mxu0 0.0
  %786 = vmatpush1.xpose.msra.mxu0 0.0
  %787 = vmatprep.subr.mxu0 0.0
  %788 = vmatpush1.xpose.msra.mxu0 0.0
  %789 = vmatprep.subr.mxu0 0.0
  %790 = vmatpush1.xpose.msra.mxu0 0.0
  %791 = vmatprep.subr.mxu0 0.0
  %792 = vmatpush1.xpose.msra.mxu0 0.0
  %793 = vmatprep.subr.mxu0 0.0
  %794 = vmatpush1.xpose.msra.mxu0 0.0
  %795 = vmatprep.mubr.f32.mxu0 0.0
  %796 = vmatmul.mubr.f32.gmra.mrb[0].mxu0 %v721
  %v797 = vpop.f32.mrb[0].mxu0
  %v798 = vadd.f32 0.0, %v797
  %v799 = vpop.f32.mrb[0].mxu0
  %800 = vdwg.mxu0
  %v801 = vmul.f32 %v798, 0.35355338
  %v802 = vsel %vm55, %v801, -inf
  %803 = vmax.xlane.f32.xlu0 %v802
  %v804 = vpop.xlane.xlu0 %803
  %v805 = vsub.f32 %v801, %v804
  %v806 = vmul.f32 %v805, 1.442695
  %v807 = vpow.pop %v806
  %v808 = vsel %vm55, %v807, 0.0
  %809 = vadd.xlane.f32.xlu0 %v808
  %v810 = vpop.xlane.xlu0 %809
  %v811 = vrcp.pop %v810
  %v812 = vmul.f32 %v807, %v811
  %813 = vrot.lane.b32.xlu0 %v331, 112
  %v814 = vpop.permute.xlu0 %813
  %815 = vrot.lane.b32.xlu0 %v336, 112
  %v816 = vpop.permute.xlu0 %815
  %817 = vrot.lane.b32.xlu0 %v341, 112
  %v818 = vpop.permute.xlu0 %817
  %819 = vrot.lane.b32.xlu0 %v346, 112
  %v820 = vpop.permute.xlu0 %819
  %v826 = vsel %vm55, %v812, 0
  %828 = vmatprep.subr.mxu0 0.0
  %829 = vmatpush1.msra.mxu0 %v814
  %830 = vmatprep.subr.mxu0 0.0
  %831 = vmatpush1.msra.mxu0 %v816
  %832 = vmatprep.subr.mxu0 0.0
  %833 = vmatpush1.msra.mxu0 %v818
  %834 = vmatprep.subr.mxu0 0.0
  %835 = vmatpush1.msra.mxu0 %v820
  %836 = vmatprep.subr.mxu0 0.0
  %837 = vmatpush1.msra.mxu0 0.0
  %838 = vmatprep.subr.mxu0 0.0
  %839 = vmatpush1.msra.mxu0 0.0
  %840 = vmatprep.subr.mxu0 0.0
  %841 = vmatpush1.msra.mxu0 0.0
  %842 = vmatprep.subr.mxu0 0.0
  %843 = vmatpush1.msra.mxu0 0.0
  %844 = vmatprep.subr.mxu0 0.0
  %845 = vmatpush1.msra.mxu0 0.0
  %846 = vmatprep.subr.mxu0 0.0
  %847 = vmatpush1.msra.mxu0 0.0
  %848 = vmatprep.subr.mxu0 0.0
  %849 = vmatpush1.msra.mxu0 0.0
  %850 = vmatprep.subr.mxu0 0.0
  %851 = vmatpush1.msra.mxu0 0.0
  %852 = vmatprep.subr.mxu0 0.0
  %853 = vmatpush1.msra.mxu0 0.0
  %854 = vmatprep.subr.mxu0 0.0
  %855 = vmatpush1.msra.mxu0 0.0
  %856 = vmatprep.subr.mxu0 0.0
  %857 = vmatpush1.msra.mxu0 0.0
  %858 = vmatprep.subr.mxu0 0.0
  %859 = vmatpush1.msra.mxu0 0.0
  %860 = vmatprep.subr.mxu0 0.0
  %861 = vmatpush1.msra.mxu0 0.0
  %862 = vmatprep.subr.mxu0 0.0
  %863 = vmatpush1.msra.mxu0 0.0
  %864 = vmatprep.subr.mxu0 0.0
  %865 = vmatpush1.msra.mxu0 0.0
  %866 = vmatprep.subr.mxu0 0.0
  %867 = vmatpush1.msra.mxu0 0.0
  %868 = vmatprep.subr.mxu0 0.0
  %869 = vmatpush1.msra.mxu0 0.0
  %870 = vmatprep.subr.mxu0 0.0
  %871 = vmatpush1.msra.mxu0 0.0
  %872 = vmatprep.subr.mxu0 0.0
  %873 = vmatpush1.msra.mxu0 0.0
  %874 = vmatprep.subr.mxu0 0.0
  %875 = vmatpush1.msra.mxu0 0.0
  %876 = vmatprep.subr.mxu0 0.0
  %877 = vmatpush1.msra.mxu0 0.0
  %878 = vmatprep.subr.mxu0 0.0
  %879 = vmatpush1.msra.mxu0 0.0
  %880 = vmatprep.subr.mxu0 0.0
  %881 = vmatpush1.msra.mxu0 0.0
  %882 = vmatprep.subr.mxu0 0.0
  %883 = vmatpush1.msra.mxu0 0.0
  %884 = vmatprep.subr.mxu0 0.0
  %885 = vmatpush1.msra.mxu0 0.0
  %886 = vmatprep.subr.mxu0 0.0
  %887 = vmatpush1.msra.mxu0 0.0
  %888 = vmatprep.subr.mxu0 0.0
  %889 = vmatpush1.msra.mxu0 0.0
  %890 = vmatprep.subr.mxu0 0.0
  %891 = vmatpush1.msra.mxu0 0.0
  %892 = vmatprep.mubr.f32.mxu0 0.0
  %893 = vmatmul.mubr.f32.gmra.mrb[0].mxu0 %v826
  %v894 = vpop.f32.mrb[0].mxu0
  %v895 = vadd.f32 0.0, %v894
  %v896 = vpop.f32.mrb[0].mxu0
  %897 = vdwg.mxu0
  %898 = vrot.lane.b32.xlu0 %v126, 104
  %v899 = vpop.permute.xlu0 %898
  %900 = vrot.lane.b32.xlu0 %v221, 104
  %v901 = vpop.permute.xlu0 %900
  %902 = vrot.lane.b32.xlu0 %v226, 104
  %v903 = vpop.permute.xlu0 %902
  %904 = vrot.lane.b32.xlu0 %v231, 104
  %v905 = vpop.permute.xlu0 %904
  %906 = vrot.lane.b32.xlu0 %v236, 104
  %v907 = vpop.permute.xlu0 %906
  %v908 = vsel %vm349, %v899, 0
  %v910 = vsel %vm349, %v901, 0
  %v912 = vsel %vm349, %v903, 0
  %v914 = vsel %vm349, %v905, 0
  %v916 = vsel %vm349, %v907, 0
  %918 = vmatprep.subr.mxu0 0.0
  %919 = vmatpush1.xpose.msra.mxu0 %v910
  %920 = vmatprep.subr.mxu0 0.0
  %921 = vmatpush1.xpose.msra.mxu0 %v912
  %922 = vmatprep.subr.mxu0 0.0
  %923 = vmatpush1.xpose.msra.mxu0 %v914
  %924 = vmatprep.subr.mxu0 0.0
  %925 = vmatpush1.xpose.msra.mxu0 %v916
  %926 = vmatprep.subr.mxu0 0.0
  %927 = vmatpush1.xpose.msra.mxu0 0.0
  %928 = vmatprep.subr.mxu0 0.0
  %929 = vmatpush1.xpose.msra.mxu0 0.0
  %930 = vmatprep.subr.mxu0 0.0
  %931 = vmatpush1.xpose.msra.mxu0 0.0
  %932 = vmatprep.subr.mxu0 0.0
  %933 = vmatpush1.xpose.msra.mxu0 0.0
  %934 = vmatprep.subr.mxu0 0.0
  %935 = vmatpush1.xpose.msra.mxu0 0.0
  %936 = vmatprep.subr.mxu0 0.0
  %937 = vmatpush1.xpose.msra.mxu0 0.0
  %938 = vmatprep.subr.mxu0 0.0
  %939 = vmatpush1.xpose.msra.mxu0 0.0
  %940 = vmatprep.subr.mxu0 0.0
  %941 = vmatpush1.xpose.msra.mxu0 0.0
  %942 = vmatprep.subr.mxu0 0.0
  %943 = vmatpush1.xpose.msra.mxu0 0.0
  %944 = vmatprep.subr.mxu0 0.0
  %945 = vmatpush1.xpose.msra.mxu0 0.0
  %946 = vmatprep.subr.mxu0 0.0
  %947 = vmatpush1.xpose.msra.mxu0 0.0
  %948 = vmatprep.subr.mxu0 0.0
  %949 = vmatpush1.xpose.msra.mxu0 0.0
  %950 = vmatprep.subr.mxu0 0.0
  %951 = vmatpush1.xpose.msra.mxu0 0.0
  %952 = vmatprep.subr.mxu0 0.0
  %953 = vmatpush1.xpose.msra.mxu0 0.0
  %954 = vmatprep.subr.mxu0 0.0
  %955 = vmatpush1.xpose.msra.mxu0 0.0
  %956 = vmatprep.subr.mxu0 0.0
  %957 = vmatpush1.xpose.msra.mxu0 0.0
  %958 = vmatprep.subr.mxu0 0.0
  %959 = vmatpush1.xpose.msra.mxu0 0.0
  %960 = vmatprep.subr.mxu0 0.0
  %961 = vmatpush1.xpose.msra.mxu0 0.0
  %962 = vmatprep.subr.mxu0 0.0
  %963 = vmatpush1.xpose.msra.mxu0 0.0
  %964 = vmatprep.subr.mxu0 0.0
  %965 = vmatpush1.xpose.msra.mxu0 0.0
  %966 = vmatprep.subr.mxu0 0.0
  %967 = vmatpush1.xpose.msra.mxu0 0.0
  %968 = vmatprep.subr.mxu0 0.0
  %969 = vmatpush1.xpose.msra.mxu0 0.0
  %970 = vmatprep.subr.mxu0 0.0
  %971 = vmatpush1.xpose.msra.mxu0 0.0
  %972 = vmatprep.subr.mxu0 0.0
  %973 = vmatpush1.xpose.msra.mxu0 0.0
  %974 = vmatprep.subr.mxu0 0.0
  %975 = vmatpush1.xpose.msra.mxu0 0.0
  %976 = vmatprep.subr.mxu0 0.0
  %977 = vmatpush1.xpose.msra.mxu0 0.0
  %978 = vmatprep.subr.mxu0 0.0
  %979 = vmatpush1.xpose.msra.mxu0 0.0
  %980 = vmatprep.subr.mxu0 0.0
  %981 = vmatpush1.xpose.msra.mxu0 0.0
  %982 = vmatprep.mubr.f32.mxu0 0.0
  %983 = vmatmul.mubr.f32.gmra.mrb[0].mxu0 %v908
  %v984 = vpop.f32.mrb[0].mxu0
  %v985 = vadd.f32 0.0, %v984
  %v986 = vpop.f32.mrb[0].mxu0
  %987 = vdwg.mxu0
  %v988 = vmul.f32 %v985, 0.35355338
  %v989 = vsel %vm55, %v988, -inf
  %990 = vmax.xlane.f32.xlu0 %v989
  %v991 = vpop.xlane.xlu0 %990
  %v992 = vsub.f32 %v988, %v991
  %v993 = vmul.f32 %v992, 1.442695
  %v994 = vpow.pop %v993
  %v995 = vsel %vm55, %v994, 0.0
  %996 = vadd.xlane.f32.xlu0 %v995
  %v997 = vpop.xlane.xlu0 %996
  %v998 = vrcp.pop %v997
  %v999 = vmul.f32 %v994, %v998
  %1000 = vrot.lane.b32.xlu0 %v331, 104
  %v1001 = vpop.permute.xlu0 %1000
  %1002 = vrot.lane.b32.xlu0 %v336, 104
  %v1003 = vpop.permute.xlu0 %1002
  %1004 = vrot.lane.b32.xlu0 %v341, 104
  %v1005 = vpop.permute.xlu0 %1004
  %1006 = vrot.lane.b32.xlu0 %v346, 104
  %v1007 = vpop.permute.xlu0 %1006
  %v1013 = vsel %vm55, %v999, 0
  %1015 = vmatprep.subr.mxu0 0.0
  %1016 = vmatpush1.msra.mxu0 %v1001
  %1017 = vmatprep.subr.mxu0 0.0
  %1018 = vmatpush1.msra.mxu0 %v1003
  %1019 = vmatprep.subr.mxu0 0.0
  %1020 = vmatpush1.msra.mxu0 %v1005
  %1021 = vmatprep.subr.mxu0 0.0
  %1022 = vmatpush1.msra.mxu0 %v1007
  %1023 = vmatprep.subr.mxu0 0.0
  %1024 = vmatpush1.msra.mxu0 0.0
  %1025 = vmatprep.subr.mxu0 0.0
  %1026 = vmatpush1.msra.mxu0 0.0
  %1027 = vmatprep.subr.mxu0 0.0
  %1028 = vmatpush1.msra.mxu0 0.0
  %1029 = vmatprep.subr.mxu0 0.0
  %1030 = vmatpush1.msra.mxu0 0.0
  %1031 = vmatprep.subr.mxu0 0.0
  %1032 = vmatpush1.msra.mxu0 0.0
  %1033 = vmatprep.subr.mxu0 0.0
  %1034 = vmatpush1.msra.mxu0 0.0
  %1035 = vmatprep.subr.mxu0 0.0
  %1036 = vmatpush1.msra.mxu0 0.0
  %1037 = vmatprep.subr.mxu0 0.0
  %1038 = vmatpush1.msra.mxu0 0.0
  %1039 = vmatprep.subr.mxu0 0.0
  %1040 = vmatpush1.msra.mxu0 0.0
  %1041 = vmatprep.subr.mxu0 0.0
  %1042 = vmatpush1.msra.mxu0 0.0
  %1043 = vmatprep.subr.mxu0 0.0
  %1044 = vmatpush1.msra.mxu0 0.0
  %1045 = vmatprep.subr.mxu0 0.0
  %1046 = vmatpush1.msra.mxu0 0.0
  %1047 = vmatprep.subr.mxu0 0.0
  %1048 = vmatpush1.msra.mxu0 0.0
  %1049 = vmatprep.subr.mxu0 0.0
  %1050 = vmatpush1.msra.mxu0 0.0
  %1051 = vmatprep.subr.mxu0 0.0
  %1052 = vmatpush1.msra.mxu0 0.0
  %1053 = vmatprep.subr.mxu0 0.0
  %1054 = vmatpush1.msra.mxu0 0.0
  %1055 = vmatprep.subr.mxu0 0.0
  %1056 = vmatpush1.msra.mxu0 0.0
  %1057 = vmatprep.subr.mxu0 0.0
  %1058 = vmatpush1.msra.mxu0 0.0
  %1059 = vmatprep.subr.mxu0 0.0
  %1060 = vmatpush1.msra.mxu0 0.0
  %1061 = vmatprep.subr.mxu0 0.0
  %1062 = vmatpush1.msra.mxu0 0.0
  %1063 = vmatprep.subr.mxu0 0.0
  %1064 = vmatpush1.msra.mxu0 0.0
  %1065 = vmatprep.subr.mxu0 0.0
  %1066 = vmatpush1.msra.mxu0 0.0
  %1067 = vmatprep.subr.mxu0 0.0
  %1068 = vmatpush1.msra.mxu0 0.0
  %1069 = vmatprep.subr.mxu0 0.0
  %1070 = vmatpush1.msra.mxu0 0.0
  %1071 = vmatprep.subr.mxu0 0.0
  %1072 = vmatpush1.msra.mxu0 0.0
  %1073 = vmatprep.subr.mxu0 0.0
  %1074 = vmatpush1.msra.mxu0 0.0
  %1075 = vmatprep.subr.mxu0 0.0
  %1076 = vmatpush1.msra.mxu0 0.0
  %1077 = vmatprep.subr.mxu0 0.0
  %1078 = vmatpush1.msra.mxu0 0.0
  %1079 = vmatprep.mubr.f32.mxu0 0.0
  %1080 = vmatmul.mubr.f32.gmra.mrb[0].mxu0 %v1013
  %v1081 = vpop.f32.mrb[0].mxu0
  %v1082 = vadd.f32 0.0, %v1081
  %v1083 = vpop.f32.mrb[0].mxu0
  %1084 = vdwg.mxu0
  %1086 = vrot.lane.b32.xlu0 %v708, 8
  %v1087 = vpop.permute.xlu0 %1086
  %1090 = vrot.lane.b32.xlu0 %v895, 16
  %v1091 = vpop.permute.xlu0 %1090
  %1094 = vrot.lane.b32.xlu0 %v1082, 24
  %v1095 = vpop.permute.xlu0 %1094
  %v1097 = vsel %vm349, %v517, %v1087
  %vm1098 = vcmask 130048
  %v1099 = vsel %vm1098, %v1097, %v1091
  %vm1100 = vcmask 195584
  %v1101 = vsel %vm1100, %v1099, %v1095
  %v1102 = vld [vmem:[%s6] sm:$0xff]
  %v1103 = vld [vmem:[%s6 + $0x8] sm:$0xff]
  %v1104 = vld [vmem:[%s6 + $0x10] sm:$0xff]
  %v1105 = vld [vmem:[%s6 + $0x18] sm:$0xff]
  %v1106 = vld [vmem:[%s7] sm:$0x1]
  %v1108 = vlaneseq
  %v1109 = vshrl.u32 %v1108, 7
  %v1110 = vsub.s32 0, %v1109
  %v1111 = vrot.slane %v1106, %v1110
  %v1114 = vsel %vm55, %v1101, 0
  %1116 = vmatprep.subr.mxu0 0.0
  %1117 = vmatpush1.msra.mxu0 %v1102
  %1118 = vmatprep.subr.mxu0 0.0
  %1119 = vmatpush1.msra.mxu0 %v1103
  %1120 = vmatprep.subr.mxu0 0.0
  %1121 = vmatpush1.msra.mxu0 %v1104
  %1122 = vmatprep.subr.mxu0 0.0
  %1123 = vmatpush1.msra.mxu0 %v1105
  %1124 = vmatprep.subr.mxu0 0.0
  %1125 = vmatpush1.msra.mxu0 0.0
  %1126 = vmatprep.subr.mxu0 0.0
  %1127 = vmatpush1.msra.mxu0 0.0
  %1128 = vmatprep.subr.mxu0 0.0
  %1129 = vmatpush1.msra.mxu0 0.0
  %1130 = vmatprep.subr.mxu0 0.0
  %1131 = vmatpush1.msra.mxu0 0.0
  %1132 = vmatprep.subr.mxu0 0.0
  %1133 = vmatpush1.msra.mxu0 0.0
  %1134 = vmatprep.subr.mxu0 0.0
  %1135 = vmatpush1.msra.mxu0 0.0
  %1136 = vmatprep.subr.mxu0 0.0
  %1137 = vmatpush1.msra.mxu0 0.0
  %1138 = vmatprep.subr.mxu0 0.0
  %1139 = vmatpush1.msra.mxu0 0.0
  %1140 = vmatprep.subr.mxu0 0.0
  %1141 = vmatpush1.msra.mxu0 0.0
  %1142 = vmatprep.subr.mxu0 0.0
  %1143 = vmatpush1.msra.mxu0 0.0
  %1144 = vmatprep.subr.mxu0 0.0
  %1145 = vmatpush1.msra.mxu0 0.0
  %1146 = vmatprep.subr.mxu0 0.0
  %1147 = vmatpush1.msra.mxu0 0.0
  %1148 = vmatprep.subr.mxu0 0.0
  %1149 = vmatpush1.msra.mxu0 0.0
  %1150 = vmatprep.subr.mxu0 0.0
  %1151 = vmatpush1.msra.mxu0 0.0
  %1152 = vmatprep.subr.mxu0 0.0
  %1153 = vmatpush1.msra.mxu0 0.0
  %1154 = vmatprep.subr.mxu0 0.0
  %1155 = vmatpush1.msra.mxu0 0.0
  %1156 = vmatprep.subr.mxu0 0.0
  %1157 = vmatpush1.msra.mxu0 0.0
  %1158 = vmatprep.subr.mxu0 0.0
  %1159 = vmatpush1.msra.mxu0 0.0
  %1160 = vmatprep.subr.mxu0 0.0
  %1161 = vmatpush1.msra.mxu0 0.0
  %1162 = vmatprep.subr.mxu0 0.0
  %1163 = vmatpush1.msra.mxu0 0.0
  %1164 = vmatprep.subr.mxu0 0.0
  %1165 = vmatpush1.msra.mxu0 0.0
  %1166 = vmatprep.subr.mxu0 0.0
  %1167 = vmatpush1.msra.mxu0 0.0
  %1168 = vmatprep.subr.mxu0 0.0
  %1169 = vmatpush1.msra.mxu0 0.0
  %1170 = vmatprep.subr.mxu0 0.0
  %1171 = vmatpush1.msra.mxu0 0.0
  %1172 = vmatprep.subr.mxu0 0.0
  %1173 = vmatpush1.msra.mxu0 0.0
  %1174 = vmatprep.subr.mxu0 0.0
  %1175 = vmatpush1.msra.mxu0 0.0
  %1176 = vmatprep.subr.mxu0 0.0
  %1177 = vmatpush1.msra.mxu0 0.0
  %1178 = vmatprep.subr.mxu0 0.0
  %1179 = vmatpush1.msra.mxu0 0.0
  %1180 = vmatprep.mubr.f32.mxu0 0.0
  %1181 = vmatmul.mubr.f32.gmra.mrb[0].mxu0 %v1114
  %v1182 = vpop.f32.mrb[0].mxu0
  %v1183 = vadd.f32 %v1111, %v1182
  %v1184 = vpop.f32.mrb[0].mxu0
  %1185 = vdwg.mxu0
  %v1186 = vld [vmem:[%s3] sm:$0xff]
  %v1187 = vadd.f32 %v1186, %v1183
  %v1188 = vsel %vm55, %v1187, 0.0
  %1189 = vadd.xlane.f32.xlu0 %v1188
  %v1190 = vpop.xlane.xlu0 %1189
  %v1191 = vrcp.pop 32.0
  %v1192 = vmul.f32 %v1190, %v1191
  %v1193 = vsub.f32 %v1187, %v1192
  %v1194 = vmul.f32 %v1193, %v1193
  %v1195 = vsel %vm55, %v1194, 0.0
  %1196 = vadd.xlane.f32.xlu0 %v1195
  %v1197 = vpop.xlane.xlu0 %1196
  %v1198 = vmul.f32 %v1197, %v1191
  %v1199 = vadd.f32 %v1198, 1e-05
  %v1200 = vrsqrt.pop %v1199
  %v1201 = vmul.f32 %v1193, %v1200
  %v1202 = vld [vmem:[%s8] sm:$0x1]
  %v1204 = vlaneseq
  %v1205 = vshrl.u32 %v1204, 7
  %v1206 = vsub.s32 0, %v1205
  %v1207 = vrot.slane %v1202, %v1206
  %v1209 = vmul.f32 %v1201, %v1207
  %v1210 = vld [vmem:[%s9] sm:$0x1]
  %v1212 = vlaneseq
  %v1213 = vshrl.u32 %v1212, 7
  %v1214 = vsub.s32 0, %v1213
  %v1215 = vrot.slane %v1210, %v1214
  %v1217 = vadd.f32 %v1209, %v1215
  %1218 = vst.msk [vmem:[%s10] sm:$0xff] %vm55, %v1217
  // Predicated region
  $region42: #{_ssa_core.25} parent=0 // pred_check
    _
  $region43: #{_ssa_core.25} parent=0 // pred_check_branch
    %1220 = sbr.rel (0) target = $region45
  $region44: #{_ssa_core.25} parent=0 // pred_region
    _
  $region45: #{_ssa_core.25} parent=0 // pred_fallthru
    _
  // Predicated region
  $region46: #{_ssa_core.25} parent=0 // pred_check
    _
  $region47: #{_ssa_core.25} parent=0 // pred_check_branch
    %1222 = sbr.rel (0) target = $region49
  $region48: #{_ssa_core.25} parent=0 // pred_region
    _
  $region49: #{_ssa_core.25} parent=0 // pred_fallthru
    _

// kernel: _ssa_core.32
$region0: #{_ssa_core.32}
  #allocation0 [shape = 'u32[]', space=smem, size = 0x4, offset = 0x4, fixed_abs, tag = 'smem constant byte address 0x4 - core index']
  #allocation1 [shape = 'u32[144,128]{1,0:T(1,128)}', space=vmem, size = 0x12000, scoped, tag = 'internal scratch']
  %s0 = inlined_call_operand.vmem [shape: f32[8,32], index: 0, kind: input, shape index: {}]
  %s1 = inlined_call_operand.vmem [shape: f32[1,32], index: 1, kind: input, shape index: {}]
  %s2 = inlined_call_operand.vmem [shape: f32[1,32], index: 2, kind: input, shape index: {}]
  %s3 = inlined_call_operand.vmem [shape: f32[8,32], index: 3, kind: output, shape index: {}]
  %s4 = sld [smem:[#allocation0]]
  $region22: #{_ssa_core.32} parent=0
    _
  %s6 = ssub.s32 1, %s4
  %s7 = scalar_select 0, %s6, %s4
  // Predicated region
  $region2: #{_ssa_core.32} parent=0 // pred_check
    _
  $region3: #{_ssa_core.32} parent=0 // pred_check_branch
    %9 = sbr.rel (0) target = $region5
  $region4: #{_ssa_core.32} parent=0 // pred_region
    _
  $region5: #{_ssa_core.32} parent=0 // pred_fallthru
    _
  // Predicated region
  $region6: #{_ssa_core.32} parent=0 // pred_check
    _
  $region7: #{_ssa_core.32} parent=0 // pred_check_branch
    %11 = sbr.rel (0) target = $region9
  $region8: #{_ssa_core.32} parent=0 // pred_region
    _
  $region9: #{_ssa_core.32} parent=0 // pred_fallthru
    _
  // Predicated region
  $region10: #{_ssa_core.32} parent=0 // pred_check
    _
  $region11: #{_ssa_core.32} parent=0 // pred_check_branch
    %13 = sbr.rel (0) target = $region13
  $region12: #{_ssa_core.32} parent=0 // pred_region
    _
  $region13: #{_ssa_core.32} parent=0 // pred_fallthru
    _
  %v14 = vld [vmem:[%s0] sm:$0xff]
  %vm15 = vcmask 261120
  %v16 = vsel %vm15, %v14, 0.0
  %17 = vadd.xlane.f32.xlu0 %v16
  %v18 = vpop.xlane.xlu0 %17
  %v19 = vrcp.pop 32.0
  %v20 = vmul.f32 %v18, %v19
  %v21 = vsub.f32 %v14, %v20
  %v22 = vmul.f32 %v21, %v21
  %v23 = vsel %vm15, %v22, 0.0
  %24 = vadd.xlane.f32.xlu0 %v23
  %v25 = vpop.xlane.xlu0 %24
  %v26 = vmul.f32 %v25, %v19
  %v27 = vadd.f32 %v26, 1e-05
  %v28 = vrsqrt.pop %v27
  %v29 = vmul.f32 %v21, %v28
  %v30 = vld [vmem:[%s1] sm:$0x1]
  %v32 = vlaneseq
  %v33 = vshrl.u32 %v32, 7
  %v34 = vsub.s32 0, %v33
  %v35 = vrot.slane %v30, %v34
  %v37 = vmul.f32 %v29, %v35
  %v38 = vld [vmem:[%s2] sm:$0x1]
  %v40 = vlaneseq
  %v41 = vshrl.u32 %v40, 7
  %v42 = vsub.s32 0, %v41
  %v43 = vrot.slane %v38, %v42
  %v45 = vadd.f32 %v37, %v43
  %46 = vst.msk [vmem:[%s3] sm:$0xff] %vm15, %v45
  // Predicated region
  $region14: #{_ssa_core.32} parent=0 // pred_check
    _
  $region15: #{_ssa_core.32} parent=0 // pred_check_branch
    %48 = sbr.rel (0) target = $region17
  $region16: #{_ssa_core.32} parent=0 // pred_region
    _
  $region17: #{_ssa_core.32} parent=0 // pred_fallthru
    _
  // Predicated region
  $region18: #{_ssa_core.32} parent=0 // pred_check
    _
  $region19: #{_ssa_core.32} parent=0 // pred_check_branch
    %50 = sbr.rel (0) target = $region21
  $region20: #{_ssa_core.32} parent=0 // pred_region
    _
  $region21: #{_ssa_core.32} parent=0 // pred_fallthru
    _

// kernel: _ssa_core.27
$region0: #{_ssa_core.27}
  #allocation0 [shape = 'u32[]', space=smem, size = 0x4, offset = 0x4, fixed_abs, tag = 'smem constant byte address 0x4 - core index']
  #allocation1 [shape = 'u32[144,128]{1,0:T(1,128)}', space=vmem, size = 0x12000, scoped, tag = 'internal scratch']
  %s0 = inlined_call_operand.vmem [shape: f32[8,32], index: 0, kind: input, shape index: {}]
  %s1 = inlined_call_operand.vmem [shape: f32[32,64], index: 1, kind: input, shape index: {}]
  %s2 = inlined_call_operand.vmem [shape: f32[1,64], index: 2, kind: input, shape index: {}]
  %s3 = inlined_call_operand.vmem [shape: f32[64,32], index: 3, kind: input, shape index: {}]
  %s4 = inlined_call_operand.vmem [shape: f32[1,32], index: 4, kind: input, shape index: {}]
  %s5 = inlined_call_operand.vmem [shape: f32[1,32], index: 5, kind: input, shape index: {}]
  %s6 = inlined_call_operand.vmem [shape: f32[1,32], index: 6, kind: input, shape index: {}]
  %s7 = inlined_call_operand.vmem [shape: f32[8,32], index: 7, kind: output, shape index: {}]
  %s8 = sld [smem:[#allocation0]]
  $region38: #{_ssa_core.27} parent=0
    _
  %s10 = ssub.s32 1, %s8
  %s11 = scalar_select 0, %s10, %s8
  // Predicated region
  $region2: #{_ssa_core.27} parent=0 // pred_check
    _
  $region3: #{_ssa_core.27} parent=0 // pred_check_branch
    %13 = sbr.rel (0) target = $region5
  $region4: #{_ssa_core.27} parent=0 // pred_region
    _
  $region5: #{_ssa_core.27} parent=0 // pred_fallthru
    _
  // Predicated region
  $region6: #{_ssa_core.27} parent=0 // pred_check
    _
  $region7: #{_ssa_core.27} parent=0 // pred_check_branch
    %15 = sbr.rel (0) target = $region9
  $region8: #{_ssa_core.27} parent=0 // pred_region
    _
  $region9: #{_ssa_core.27} parent=0 // pred_fallthru
    _
  // Predicated region
  $region10: #{_ssa_core.27} parent=0 // pred_check
    _
  $region11: #{_ssa_core.27} parent=0 // pred_check_branch
    %17 = sbr.rel (0) target = $region13
  $region12: #{_ssa_core.27} parent=0 // pred_region
    _
  $region13: #{_ssa_core.27} parent=0 // pred_fallthru
    _
  // Predicated region
  $region14: #{_ssa_core.27} parent=0 // pred_check
    _
  $region15: #{_ssa_core.27} parent=0 // pred_check_branch
    %19 = sbr.rel (0) target = $region17
  $region16: #{_ssa_core.27} parent=0 // pred_region
    _
  $region17: #{_ssa_core.27} parent=0 // pred_fallthru
    _
  // Predicated region
  $region18: #{_ssa_core.27} parent=0 // pred_check
    _
  $region19: #{_ssa_core.27} parent=0 // pred_check_branch
    %21 = sbr.rel (0) target = $region21
  $region20: #{_ssa_core.27} parent=0 // pred_region
    _
  $region21: #{_ssa_core.27} parent=0 // pred_fallthru
    _
  // Predicated region
  $region22: #{_ssa_core.27} parent=0 // pred_check
    _
  $region23: #{_ssa_core.27} parent=0 // pred_check_branch
    %23 = sbr.rel (0) target = $region25
  $region24: #{_ssa_core.27} parent=0 // pred_region
    _
  $region25: #{_ssa_core.27} parent=0 // pred_fallthru
    _
  // Predicated region
  $region26: #{_ssa_core.27} parent=0 // pred_check
    _
  $region27: #{_ssa_core.27} parent=0 // pred_check_branch
    %25 = sbr.rel (0) target = $region29
  $region28: #{_ssa_core.27} parent=0 // pred_region
    _
  $region29: #{_ssa_core.27} parent=0 // pred_fallthru
    _
  %v26 = vld [vmem:[%s0] sm:$0xff]
  %v27 = vld [vmem:[%s1] sm:$0xff]
  %v28 = vld [vmem:[%s1 + $0x8] sm:$0xff]
  %v29 = vld [vmem:[%s1 + $0x10] sm:$0xff]
  %v30 = vld [vmem:[%s1 + $0x18] sm:$0xff]
  %v31 = vld [vmem:[%s2] sm:$0x1]
  %v33 = vlaneseq
  %v34 = vshrl.u32 %v33, 7
  %v35 = vsub.s32 0, %v34
  %v36 = vrot.slane %v31, %v35
  %vm38 = vcmask 261120
  %v40 = vsel %vm38, %v26, 0
  %42 = vmatprep.subr.mxu0 0.0
  %43 = vmatpush1.msra.mxu0 %v27
  %44 = vmatprep.subr.mxu0 0.0
  %45 = vmatpush1.msra.mxu0 %v28
  %46 = vmatprep.subr.mxu0 0.0
  %47 = vmatpush1.msra.mxu0 %v29
  %48 = vmatprep.subr.mxu0 0.0
  %49 = vmatpush1.msra.mxu0 %v30
  %50 = vmatprep.subr.mxu0 0.0
  %51 = vmatpush1.msra.mxu0 0.0
  %52 = vmatprep.subr.mxu0 0.0
  %53 = vmatpush1.msra.mxu0 0.0
  %54 = vmatprep.subr.mxu0 0.0
  %55 = vmatpush1.msra.mxu0 0.0
  %56 = vmatprep.subr.mxu0 0.0
  %57 = vmatpush1.msra.mxu0 0.0
  %58 = vmatprep.subr.mxu0 0.0
  %59 = vmatpush1.msra.mxu0 0.0
  %60 = vmatprep.subr.mxu0 0.0
  %61 = vmatpush1.msra.mxu0 0.0
  %62 = vmatprep.subr.mxu0 0.0
  %63 = vmatpush1.msra.mxu0 0.0
  %64 = vmatprep.subr.mxu0 0.0
  %65 = vmatpush1.msra.mxu0 0.0
  %66 = vmatprep.subr.mxu0 0.0
  %67 = vmatpush1.msra.mxu0 0.0
  %68 = vmatprep.subr.mxu0 0.0
  %69 = vmatpush1.msra.mxu0 0.0
  %70 = vmatprep.subr.mxu0 0.0
  %71 = vmatpush1.msra.mxu0 0.0
  %72 = vmatprep.subr.mxu0 0.0
  %73 = vmatpush1.msra.mxu0 0.0
  %74 = vmatprep.subr.mxu0 0.0
  %75 = vmatpush1.msra.mxu0 0.0
  %76 = vmatprep.subr.mxu0 0.0
  %77 = vmatpush1.msra.mxu0 0.0
  %78 = vmatprep.subr.mxu0 0.0
  %79 = vmatpush1.msra.mxu0 0.0
  %80 = vmatprep.subr.mxu0 0.0
  %81 = vmatpush1.msra.mxu0 0.0
  %82 = vmatprep.subr.mxu0 0.0
  %83 = vmatpush1.msra.mxu0 0.0
  %84 = vmatprep.subr.mxu0 0.0
  %85 = vmatpush1.msra.mxu0 0.0
  %86 = vmatprep.subr.mxu0 0.0
  %87 = vmatpush1.msra.mxu0 0.0
  %88 = vmatprep.subr.mxu0 0.0
  %89 = vmatpush1.msra.mxu0 0.0
  %90 = vmatprep.subr.mxu0 0.0
  %91 = vmatpush1.msra.mxu0 0.0
  %92 = vmatprep.subr.mxu0 0.0
  %93 = vmatpush1.msra.mxu0 0.0
  %94 = vmatprep.subr.mxu0 0.0
  %95 = vmatpush1.msra.mxu0 0.0
  %96 = vmatprep.subr.mxu0 0.0
  %97 = vmatpush1.msra.mxu0 0.0
  %98 = vmatprep.subr.mxu0 0.0
  %99 = vmatpush1.msra.mxu0 0.0
  %100 = vmatprep.subr.mxu0 0.0
  %101 = vmatpush1.msra.mxu0 0.0
  %102 = vmatprep.subr.mxu0 0.0
  %103 = vmatpush1.msra.mxu0 0.0
  %104 = vmatprep.subr.mxu0 0.0
  %105 = vmatpush1.msra.mxu0 0.0
  %106 = vmatprep.mubr.f32.mxu0 0.0
  %107 = vmatmul.mubr.f32.gmra.mrb[0].mxu0 %v40
  %v108 = vpop.f32.mrb[0].mxu0
  %v109 = vadd.f32 %v36, %v108
  %v110 = vpop.f32.mrb[0].mxu0
  %111 = vdwg.mxu0
  %v112 = vmax.f32 %v109, 0.0
  %v113 = vld [vmem:[%s3] sm:$0xff]
  %v114 = vld [vmem:[%s3 + $0x8] sm:$0xff]
  %v115 = vld [vmem:[%s3 + $0x10] sm:$0xff]
  %v116 = vld [vmem:[%s3 + $0x18] sm:$0xff]
  %v117 = vld [vmem:[%s3 + $0x20] sm:$0xff]
  %v118 = vld [vmem:[%s3 + $0x28] sm:$0xff]
  %v119 = vld [vmem:[%s3 + $0x30] sm:$0xff]
  %v120 = vld [vmem:[%s3 + $0x38] sm:$0xff]
  %v121 = vld [vmem:[%s4] sm:$0x1]
  %v123 = vlaneseq
  %v124 = vshrl.u32 %v123, 7
  %v125 = vsub.s32 0, %v124
  %v126 = vrot.slane %v121, %v125
  %vm128 = vcmask 523264
  %v130 = vsel %vm128, %v112, 0
  %132 = vmatprep.subr.mxu0 0.0
  %133 = vmatpush1.msra.mxu0 %v113
  %134 = vmatprep.subr.mxu0 0.0
  %135 = vmatpush1.msra.mxu0 %v114
  %136 = vmatprep.subr.mxu0 0.0
  %137 = vmatpush1.msra.mxu0 %v115
  %138 = vmatprep.subr.mxu0 0.0
  %139 = vmatpush1.msra.mxu0 %v116
  %140 = vmatprep.subr.mxu0 0.0
  %141 = vmatpush1.msra.mxu0 %v117
  %142 = vmatprep.subr.mxu0 0.0
  %143 = vmatpush1.msra.mxu0 %v118
  %144 = vmatprep.subr.mxu0 0.0
  %145 = vmatpush1.msra.mxu0 %v119
  %146 = vmatprep.subr.mxu0 0.0
  %147 = vmatpush1.msra.mxu0 %v120
  %148 = vmatprep.subr.mxu0 0.0
  %149 = vmatpush1.msra.mxu0 0.0
  %150 = vmatprep.subr.mxu0 0.0
  %151 = vmatpush1.msra.mxu0 0.0
  %152 = vmatprep.subr.mxu0 0.0
  %153 = vmatpush1.msra.mxu0 0.0
  %154 = vmatprep.subr.mxu0 0.0
  %155 = vmatpush1.msra.mxu0 0.0
  %156 = vmatprep.subr.mxu0 0.0
  %157 = vmatpush1.msra.mxu0 0.0
  %158 = vmatprep.subr.mxu0 0.0
  %159 = vmatpush1.msra.mxu0 0.0
  %160 = vmatprep.subr.mxu0 0.0
  %161 = vmatpush1.msra.mxu0 0.0
  %162 = vmatprep.subr.mxu0 0.0
  %163 = vmatpush1.msra.mxu0 0.0
  %164 = vmatprep.subr.mxu0 0.0
  %165 = vmatpush1.msra.mxu0 0.0
  %166 = vmatprep.subr.mxu0 0.0
  %167 = vmatpush1.msra.mxu0 0.0
  %168 = vmatprep.subr.mxu0 0.0
  %169 = vmatpush1.msra.mxu0 0.0
  %170 = vmatprep.subr.mxu0 0.0
  %171 = vmatpush1.msra.mxu0 0.0
  %172 = vmatprep.subr.mxu0 0.0
  %173 = vmatpush1.msra.mxu0 0.0
  %174 = vmatprep.subr.mxu0 0.0
  %175 = vmatpush1.msra.mxu0 0.0
  %176 = vmatprep.subr.mxu0 0.0
  %177 = vmatpush1.msra.mxu0 0.0
  %178 = vmatprep.subr.mxu0 0.0
  %179 = vmatpush1.msra.mxu0 0.0
  %180 = vmatprep.subr.mxu0 0.0
  %181 = vmatpush1.msra.mxu0 0.0
  %182 = vmatprep.subr.mxu0 0.0
  %183 = vmatpush1.msra.mxu0 0.0
  %184 = vmatprep.subr.mxu0 0.0
  %185 = vmatpush1.msra.mxu0 0.0
  %186 = vmatprep.subr.mxu0 0.0
  %187 = vmatpush1.msra.mxu0 0.0
  %188 = vmatprep.subr.mxu0 0.0
  %189 = vmatpush1.msra.mxu0 0.0
  %190 = vmatprep.subr.mxu0 0.0
  %191 = vmatpush1.msra.mxu0 0.0
  %192 = vmatprep.subr.mxu0 0.0
  %193 = vmatpush1.msra.mxu0 0.0
  %194 = vmatprep.subr.mxu0 0.0
  %195 = vmatpush1.msra.mxu0 0.0
  %196 = vmatprep.mubr.f32.mxu0 0.0
  %197 = vmatmul.mubr.f32.gmra.mrb[0].mxu0 %v130
  %v198 = vpop.f32.mrb[0].mxu0
  %v199 = vadd.f32 %v126, %v198
  %v200 = vpop.f32.mrb[0].mxu0
  %201 = vdwg.mxu0
  %v202 = vadd.f32 %v26, %v199
  %v203 = vsel %vm38, %v202, 0.0
  %204 = vadd.xlane.f32.xlu0 %v203
  %v205 = vpop.xlane.xlu0 %204
  %v206 = vrcp.pop 32.0
  %v207 = vmul.f32 %v205, %v206
  %v208 = vsub.f32 %v202, %v207
  %v209 = vmul.f32 %v208, %v208
  %v210 = vsel %vm38, %v209, 0.0
  %211 = vadd.xlane.f32.xlu0 %v210
  %v212 = vpop.xlane.xlu0 %211
  %v213 = vmul.f32 %v212, %v206
  %v214 = vadd.f32 %v213, 1e-05
  %v215 = vrsqrt.pop %v214
  %v216 = vmul.f32 %v208, %v215
  %v217 = vld [vmem:[%s5] sm:$0x1]
  %v219 = vlaneseq
  %v220 = vshrl.u32 %v219, 7
  %v221 = vsub.s32 0, %v220
  %v222 = vrot.slane %v217, %v221
  %v224 = vmul.f32 %v216, %v222
  %v225 = vld [vmem:[%s6] sm:$0x1]
  %v227 = vlaneseq
  %v228 = vshrl.u32 %v227, 7
  %v229 = vsub.s32 0, %v228
  %v230 = vrot.slane %v225, %v229
  %v232 = vadd.f32 %v224, %v230
  %233 = vst.msk [vmem:[%s7] sm:$0xff] %vm38, %v232
  // Predicated region
  $region30: #{_ssa_core.27} parent=0 // pred_check
    _
  $region31: #{_ssa_core.27} parent=0 // pred_check_branch
    %235 = sbr.rel (0) target = $region33
  $region32: #{_ssa_core.27} parent=0 // pred_region
    _
  $region33: #{_ssa_core.27} parent=0 // pred_fallthru
    _
  // Predicated region
  $region34: #{_ssa_core.27} parent=0 // pred_check
    _
  $region35: #{_ssa_core.27} parent=0 // pred_check_branch
    %237 = sbr.rel (0) target = $region37
  $region36: #{_ssa_core.27} parent=0 // pred_region
    _
  $region37: #{_ssa_core.27} parent=0 // pred_fallthru
    _

// kernel: _ssa_core.26
$region0: #{_ssa_core.26}
  #allocation0 [shape = 'u32[]', space=smem, size = 0x4, offset = 0x4, fixed_abs, tag = 'smem constant byte address 0x4 - core index']
  #allocation1 [shape = 'u32[144,128]{1,0:T(1,128)}', space=vmem, size = 0x12000, scoped, tag = 'internal scratch']
  %s0 = inlined_call_operand.vmem [shape: f32[1,8,32], index: 0, kind: input, shape index: {}, may-alias: {0,1}]
  %s1 = inlined_call_operand.vmem [shape: f32[1,8,32], index: 1, kind: input, shape index: {}, may-alias: {0,1}]
  %s2 = inlined_call_operand.vmem [shape: f32[1,8,32], index: 2, kind: input, shape index: {}, may-alias: {2,3}]
  %s3 = inlined_call_operand.vmem [shape: f32[1,8,32], index: 3, kind: input, shape index: {}, may-alias: {2,3}]
  %s4 = inlined_call_operand.vmem [shape: f32[3,32,32], index: 4, kind: input, shape index: {}]
  %s5 = inlined_call_operand.vmem [shape: f32[3,1,32], index: 5, kind: input, shape index: {}]
  %s6 = inlined_call_operand.vmem [shape: f32[32,32], index: 6, kind: input, shape index: {}]
  %s7 = inlined_call_operand.vmem [shape: f32[1,32], index: 7, kind: input, shape index: {}]
  %s8 = inlined_call_operand.vmem [shape: f32[1,32], index: 8, kind: input, shape index: {}]
  %s9 = inlined_call_operand.vmem [shape: f32[1,32], index: 9, kind: input, shape index: {}]
  %s10 = inlined_call_operand.vmem [shape: f32[1,8,32], index: 10, kind: output, shape index: {}]
  %s11 = sld [smem:[#allocation0]]
  $region50: #{_ssa_core.26} parent=0
    _
  %s13 = ssub.s32 1, %s11
  %s14 = scalar_select 0, %s13, %s11
  // Predicated region
  $region2: #{_ssa_core.26} parent=0 // pred_check
    _
  $region3: #{_ssa_core.26} parent=0 // pred_check_branch
    %16 = sbr.rel (0) target = $region5
  $region4: #{_ssa_core.26} parent=0 // pred_region
    _
  $region5: #{_ssa_core.26} parent=0 // pred_fallthru
    _
  // Predicated region
  $region6: #{_ssa_core.26} parent=0 // pred_check
    _
  $region7: #{_ssa_core.26} parent=0 // pred_check_branch
    %18 = sbr.rel (0) target = $region9
  $region8: #{_ssa_core.26} parent=0 // pred_region
    _
  $region9: #{_ssa_core.26} parent=0 // pred_fallthru
    _
  // Predicated region
  $region10: #{_ssa_core.26} parent=0 // pred_check
    _
  $region11: #{_ssa_core.26} parent=0 // pred_check_branch
    %20 = sbr.rel (0) target = $region13
  $region12: #{_ssa_core.26} parent=0 // pred_region
    _
  $region13: #{_ssa_core.26} parent=0 // pred_fallthru
    _
  // Predicated region
  $region14: #{_ssa_core.26} parent=0 // pred_check
    _
  $region15: #{_ssa_core.26} parent=0 // pred_check_branch
    %22 = sbr.rel (0) target = $region17
  $region16: #{_ssa_core.26} parent=0 // pred_region
    _
  $region17: #{_ssa_core.26} parent=0 // pred_fallthru
    _
  // Predicated region
  $region18: #{_ssa_core.26} parent=0 // pred_check
    _
  $region19: #{_ssa_core.26} parent=0 // pred_check_branch
    %24 = sbr.rel (0) target = $region21
  $region20: #{_ssa_core.26} parent=0 // pred_region
    _
  $region21: #{_ssa_core.26} parent=0 // pred_fallthru
    _
  // Predicated region
  $region22: #{_ssa_core.26} parent=0 // pred_check
    _
  $region23: #{_ssa_core.26} parent=0 // pred_check_branch
    %26 = sbr.rel (0) target = $region25
  $region24: #{_ssa_core.26} parent=0 // pred_region
    _
  $region25: #{_ssa_core.26} parent=0 // pred_fallthru
    _
  // Predicated region
  $region26: #{_ssa_core.26} parent=0 // pred_check
    _
  $region27: #{_ssa_core.26} parent=0 // pred_check_branch
    %28 = sbr.rel (0) target = $region29
  $region28: #{_ssa_core.26} parent=0 // pred_region
    _
  $region29: #{_ssa_core.26} parent=0 // pred_fallthru
    _
  // Predicated region
  $region30: #{_ssa_core.26} parent=0 // pred_check
    _
  $region31: #{_ssa_core.26} parent=0 // pred_check_branch
    %30 = sbr.rel (0) target = $region33
  $region32: #{_ssa_core.26} parent=0 // pred_region
    _
  $region33: #{_ssa_core.26} parent=0 // pred_fallthru
    _
  // Predicated region
  $region34: #{_ssa_core.26} parent=0 // pred_check
    _
  $region35: #{_ssa_core.26} parent=0 // pred_check_branch
    %32 = sbr.rel (0) target = $region37
  $region36: #{_ssa_core.26} parent=0 // pred_region
    _
  $region37: #{_ssa_core.26} parent=0 // pred_fallthru
    _
  // Predicated region
  $region38: #{_ssa_core.26} parent=0 // pred_check
    _
  $region39: #{_ssa_core.26} parent=0 // pred_check_branch
    %34 = sbr.rel (0) target = $region41
  $region40: #{_ssa_core.26} parent=0 // pred_region
    _
  $region41: #{_ssa_core.26} parent=0 // pred_fallthru
    _
  %v35 = vld [vmem:[%s0] sm:$0xff]
  %v36 = vld [vmem:[%s1] sm:$0xff]
  %v37 = vld [vmem:[%s2] sm:$0xff]
  %v38 = vld [vmem:[%s4] sm:$0xff]
  %v39 = vld [vmem:[%s4 + $0x8] sm:$0xff]
  %v40 = vld [vmem:[%s4 + $0x10] sm:$0xff]
  %v41 = vld [vmem:[%s4 + $0x18] sm:$0xff]
  %v42 = vld [vmem:[%s5] sm:$0x1]
  %v44 = vlaneseq
  %v45 = vshrl.u32 %v44, 7
  %v46 = vsub.s32 0, %v45
  %v47 = vrot.slane %v42, %v46
  %vm49 = vcmask 261120
  %v51 = vsel %vm49, %v35, 0
  %53 = vmatprep.subr.mxu0 0.0
  %54 = vmatpush1.msra.mxu0 %v38
  %55 = vmatprep.subr.mxu0 0.0
  %56 = vmatpush1.msra.mxu0 %v39
  %57 = vmatprep.subr.mxu0 0.0
  %58 = vmatpush1.msra.mxu0 %v40
  %59 = vmatprep.subr.mxu0 0.0
  %60 = vmatpush1.msra.mxu0 %v41
  %61 = vmatprep.subr.mxu0 0.0
  %62 = vmatpush1.msra.mxu0 0.0
  %63 = vmatprep.subr.mxu0 0.0
  %64 = vmatpush1.msra.mxu0 0.0
  %65 = vmatprep.subr.mxu0 0.0
  %66 = vmatpush1.msra.mxu0 0.0
  %67 = vmatprep.subr.mxu0 0.0
  %68 = vmatpush1.msra.mxu0 0.0
  %69 = vmatprep.subr.mxu0 0.0
  %70 = vmatpush1.msra.mxu0 0.0
  %71 = vmatprep.subr.mxu0 0.0
  %72 = vmatpush1.msra.mxu0 0.0
  %73 = vmatprep.subr.mxu0 0.0
  %74 = vmatpush1.msra.mxu0 0.0
  %75 = vmatprep.subr.mxu0 0.0
  %76 = vmatpush1.msra.mxu0 0.0
  %77 = vmatprep.subr.mxu0 0.0
  %78 = vmatpush1.msra.mxu0 0.0
  %79 = vmatprep.subr.mxu0 0.0
  %80 = vmatpush1.msra.mxu0 0.0
  %81 = vmatprep.subr.mxu0 0.0
  %82 = vmatpush1.msra.mxu0 0.0
  %83 = vmatprep.subr.mxu0 0.0
  %84 = vmatpush1.msra.mxu0 0.0
  %85 = vmatprep.subr.mxu0 0.0
  %86 = vmatpush1.msra.mxu0 0.0
  %87 = vmatprep.subr.mxu0 0.0
  %88 = vmatpush1.msra.mxu0 0.0
  %89 = vmatprep.subr.mxu0 0.0
  %90 = vmatpush1.msra.mxu0 0.0
  %91 = vmatprep.subr.mxu0 0.0
  %92 = vmatpush1.msra.mxu0 0.0
  %93 = vmatprep.subr.mxu0 0.0
  %94 = vmatpush1.msra.mxu0 0.0
  %95 = vmatprep.subr.mxu0 0.0
  %96 = vmatpush1.msra.mxu0 0.0
  %97 = vmatprep.subr.mxu0 0.0
  %98 = vmatpush1.msra.mxu0 0.0
  %99 = vmatprep.subr.mxu0 0.0
  %100 = vmatpush1.msra.mxu0 0.0
  %101 = vmatprep.subr.mxu0 0.0
  %102 = vmatpush1.msra.mxu0 0.0
  %103 = vmatprep.subr.mxu0 0.0
  %104 = vmatpush1.msra.mxu0 0.0
  %105 = vmatprep.subr.mxu0 0.0
  %106 = vmatpush1.msra.mxu0 0.0
  %107 = vmatprep.subr.mxu0 0.0
  %108 = vmatpush1.msra.mxu0 0.0
  %109 = vmatprep.subr.mxu0 0.0
  %110 = vmatpush1.msra.mxu0 0.0
  %111 = vmatprep.subr.mxu0 0.0
  %112 = vmatpush1.msra.mxu0 0.0
  %113 = vmatprep.subr.mxu0 0.0
  %114 = vmatpush1.msra.mxu0 0.0
  %115 = vmatprep.subr.mxu0 0.0
  %116 = vmatpush1.msra.mxu0 0.0
  %117 = vmatprep.mubr.f32.mxu0 0.0
  %118 = vmatmul.mubr.f32.gmra.mrb[0].mxu0 %v51
  %v119 = vpop.f32.mrb[0].mxu0
  %v120 = vadd.f32 %v47, %v119
  %v121 = vpop.f32.mrb[0].mxu0
  %122 = vdwg.mxu0
  %s123 = scalar_lea.vmem %s4, 32
  %v124 = vld [vmem:[%s123] sm:$0xff]
  %v125 = vld [vmem:[%s123 + $0x8] sm:$0xff]
  %v126 = vld [vmem:[%s123 + $0x10] sm:$0xff]
  %v127 = vld [vmem:[%s123 + $0x18] sm:$0xff]
  %s128 = scalar_lea.vmem %s5, 1
  %v129 = vld [vmem:[%s128] sm:$0x1]
  %v131 = vlaneseq
  %v132 = vshrl.u32 %v131, 7
  %v133 = vsub.s32 0, %v132
  %v134 = vrot.slane %v129, %v133
  %v137 = vsel %vm49, %v36, 0
  %139 = vmatprep.subr.mxu0 0.0
  %140 = vmatpush1.msra.mxu0 %v124
  %141 = vmatprep.subr.mxu0 0.0
  %142 = vmatpush1.msra.mxu0 %v125
  %143 = vmatprep.subr.mxu0 0.0
  %144 = vmatpush1.msra.mxu0 %v126
  %145 = vmatprep.subr.mxu0 0.0
  %146 = vmatpush1.msra.mxu0 %v127
  %147 = vmatprep.subr.mxu0 0.0
  %148 = vmatpush1.msra.mxu0 0.0
  %149 = vmatprep.subr.mxu0 0.0
  %150 = vmatpush1.msra.mxu0 0.0
  %151 = vmatprep.subr.mxu0 0.0
  %152 = vmatpush1.msra.mxu0 0.0
  %153 = vmatprep.subr.mxu0 0.0
  %154 = vmatpush1.msra.mxu0 0.0
  %155 = vmatprep.subr.mxu0 0.0
  %156 = vmatpush1.msra.mxu0 0.0
  %157 = vmatprep.subr.mxu0 0.0
  %158 = vmatpush1.msra.mxu0 0.0
  %159 = vmatprep.subr.mxu0 0.0
  %160 = vmatpush1.msra.mxu0 0.0
  %161 = vmatprep.subr.mxu0 0.0
  %162 = vmatpush1.msra.mxu0 0.0
  %163 = vmatprep.subr.mxu0 0.0
  %164 = vmatpush1.msra.mxu0 0.0
  %165 = vmatprep.subr.mxu0 0.0
  %166 = vmatpush1.msra.mxu0 0.0
  %167 = vmatprep.subr.mxu0 0.0
  %168 = vmatpush1.msra.mxu0 0.0
  %169 = vmatprep.subr.mxu0 0.0
  %170 = vmatpush1.msra.mxu0 0.0
  %171 = vmatprep.subr.mxu0 0.0
  %172 = vmatpush1.msra.mxu0 0.0
  %173 = vmatprep.subr.mxu0 0.0
  %174 = vmatpush1.msra.mxu0 0.0
  %175 = vmatprep.subr.mxu0 0.0
  %176 = vmatpush1.msra.mxu0 0.0
  %177 = vmatprep.subr.mxu0 0.0
  %178 = vmatpush1.msra.mxu0 0.0
  %179 = vmatprep.subr.mxu0 0.0
  %180 = vmatpush1.msra.mxu0 0.0
  %181 = vmatprep.subr.mxu0 0.0
  %182 = vmatpush1.msra.mxu0 0.0
  %183 = vmatprep.subr.mxu0 0.0
  %184 = vmatpush1.msra.mxu0 0.0
  %185 = vmatprep.subr.mxu0 0.0
  %186 = vmatpush1.msra.mxu0 0.0
  %187 = vmatprep.subr.mxu0 0.0
  %188 = vmatpush1.msra.mxu0 0.0
  %189 = vmatprep.subr.mxu0 0.0
  %190 = vmatpush1.msra.mxu0 0.0
  %191 = vmatprep.subr.mxu0 0.0
  %192 = vmatpush1.msra.mxu0 0.0
  %193 = vmatprep.subr.mxu0 0.0
  %194 = vmatpush1.msra.mxu0 0.0
  %195 = vmatprep.subr.mxu0 0.0
  %196 = vmatpush1.msra.mxu0 0.0
  %197 = vmatprep.subr.mxu0 0.0
  %198 = vmatpush1.msra.mxu0 0.0
  %199 = vmatprep.subr.mxu0 0.0
  %200 = vmatpush1.msra.mxu0 0.0
  %201 = vmatprep.subr.mxu0 0.0
  %202 = vmatpush1.msra.mxu0 0.0
  %203 = vmatprep.mubr.f32.mxu0 0.0
  %204 = vmatmul.mubr.f32.gmra.mrb[0].mxu0 %v137
  %v205 = vpop.f32.mrb[0].mxu0
  %v206 = vadd.f32 %v134, %v205
  %v207 = vpop.f32.mrb[0].mxu0
  %208 = vdwg.mxu0
  %s209 = scalar_lea.vmem %s4, 64
  %v210 = vld [vmem:[%s209] sm:$0xff]
  %v211 = vld [vmem:[%s209 + $0x8] sm:$0xff]
  %v212 = vld [vmem:[%s209 + $0x10] sm:$0xff]
  %v213 = vld [vmem:[%s209 + $0x18] sm:$0xff]
  %s214 = scalar_lea.vmem %s5, 2
  %v215 = vld [vmem:[%s214] sm:$0x1]
  %v217 = vlaneseq
  %v218 = vshrl.u32 %v217, 7
  %v219 = vsub.s32 0, %v218
  %v220 = vrot.slane %v215, %v219
  %v223 = vsel %vm49, %v37, 0
  %225 = vmatprep.subr.mxu0 0.0
  %226 = vmatpush1.msra.mxu0 %v210
  %227 = vmatprep.subr.mxu0 0.0
  %228 = vmatpush1.msra.mxu0 %v211
  %229 = vmatprep.subr.mxu0 0.0
  %230 = vmatpush1.msra.mxu0 %v212
  %231 = vmatprep.subr.mxu0 0.0
  %232 = vmatpush1.msra.mxu0 %v213
  %233 = vmatprep.subr.mxu0 0.0
  %234 = vmatpush1.msra.mxu0 0.0
  %235 = vmatprep.subr.mxu0 0.0
  %236 = vmatpush1.msra.mxu0 0.0
  %237 = vmatprep.subr.mxu0 0.0
  %238 = vmatpush1.msra.mxu0 0.0
  %239 = vmatprep.subr.mxu0 0.0
  %240 = vmatpush1.msra.mxu0 0.0
  %241 = vmatprep.subr.mxu0 0.0
  %242 = vmatpush1.msra.mxu0 0.0
  %243 = vmatprep.subr.mxu0 0.0
  %244 = vmatpush1.msra.mxu0 0.0
  %245 = vmatprep.subr.mxu0 0.0
  %246 = vmatpush1.msra.mxu0 0.0
  %247 = vmatprep.subr.mxu0 0.0
  %248 = vmatpush1.msra.mxu0 0.0
  %249 = vmatprep.subr.mxu0 0.0
  %250 = vmatpush1.msra.mxu0 0.0
  %251 = vmatprep.subr.mxu0 0.0
  %252 = vmatpush1.msra.mxu0 0.0
  %253 = vmatprep.subr.mxu0 0.0
  %254 = vmatpush1.msra.mxu0 0.0
  %255 = vmatprep.subr.mxu0 0.0
  %256 = vmatpush1.msra.mxu0 0.0
  %257 = vmatprep.subr.mxu0 0.0
  %258 = vmatpush1.msra.mxu0 0.0
  %259 = vmatprep.subr.mxu0 0.0
  %260 = vmatpush1.msra.mxu0 0.0
  %261 = vmatprep.subr.mxu0 0.0
  %262 = vmatpush1.msra.mxu0 0.0
  %263 = vmatprep.subr.mxu0 0.0
  %264 = vmatpush1.msra.mxu0 0.0
  %265 = vmatprep.subr.mxu0 0.0
  %266 = vmatpush1.msra.mxu0 0.0
  %267 = vmatprep.subr.mxu0 0.0
  %268 = vmatpush1.msra.mxu0 0.0
  %269 = vmatprep.subr.mxu0 0.0
  %270 = vmatpush1.msra.mxu0 0.0
  %271 = vmatprep.subr.mxu0 0.0
  %272 = vmatpush1.msra.mxu0 0.0
  %273 = vmatprep.subr.mxu0 0.0
  %274 = vmatpush1.msra.mxu0 0.0
  %275 = vmatprep.subr.mxu0 0.0
  %276 = vmatpush1.msra.mxu0 0.0
  %277 = vmatprep.subr.mxu0 0.0
  %278 = vmatpush1.msra.mxu0 0.0
  %279 = vmatprep.subr.mxu0 0.0
  %280 = vmatpush1.msra.mxu0 0.0
  %281 = vmatprep.subr.mxu0 0.0
  %282 = vmatpush1.msra.mxu0 0.0
  %283 = vmatprep.subr.mxu0 0.0
  %284 = vmatpush1.msra.mxu0 0.0
  %285 = vmatprep.subr.mxu0 0.0
  %286 = vmatpush1.msra.mxu0 0.0
  %287 = vmatprep.subr.mxu0 0.0
  %288 = vmatpush1.msra.mxu0 0.0
  %289 = vmatprep.mubr.f32.mxu0 0.0
  %290 = vmatmul.mubr.f32.gmra.mrb[0].mxu0 %v223
  %v291 = vpop.f32.mrb[0].mxu0
  %v292 = vadd.f32 %v220, %v291
  %v293 = vpop.f32.mrb[0].mxu0
  %294 = vdwg.mxu0
  %vm295 = vcmask 64512
  %v297 = vsel %vm295, %v120, 0
  %v300 = vsel %vm295, %v206, 0
  %302 = vmatprep.subr.mxu0 0.0
  %303 = vmatpush1.xpose.msra.mxu0 %v300
  %304 = vmatprep.subr.mxu0 0.0
  %305 = vmatpush1.xpose.msra.mxu0 0.0
  %306 = vmatprep.subr.mxu0 0.0
  %307 = vmatpush1.xpose.msra.mxu0 0.0
  %308 = vmatprep.subr.mxu0 0.0
  %309 = vmatpush1.xpose.msra.mxu0 0.0
  %310 = vmatprep.subr.mxu0 0.0
  %311 = vmatpush1.xpose.msra.mxu0 0.0
  %312 = vmatprep.subr.mxu0 0.0
  %313 = vmatpush1.xpose.msra.mxu0 0.0
  %314 = vmatprep.subr.mxu0 0.0
  %315 = vmatpush1.xpose.msra.mxu0 0.0
  %316 = vmatprep.subr.mxu0 0.0
  %317 = vmatpush1.xpose.msra.mxu0 0.0
  %318 = vmatprep.subr.mxu0 0.0
  %319 = vmatpush1.xpose.msra.mxu0 0.0
  %320 = vmatprep.subr.mxu0 0.0
  %321 = vmatpush1.xpose.msra.mxu0 0.0
  %322 = vmatprep.subr.mxu0 0.0
  %323 = vmatpush1.xpose.msra.mxu0 0.0
  %324 = vmatprep.subr.mxu0 0.0
  %325 = vmatpush1.xpose.msra.mxu0 0.0
  %326 = vmatprep.subr.mxu0 0.0
  %327 = vmatpush1.xpose.msra.mxu0 0.0
  %328 = vmatprep.subr.mxu0 0.0
  %329 = vmatpush1.xpose.msra.mxu0 0.0
  %330 = vmatprep.subr.mxu0 0.0
  %331 = vmatpush1.xpose.msra.mxu0 0.0
  %332 = vmatprep.subr.mxu0 0.0
  %333 = vmatpush1.xpose.msra.mxu0 0.0
  %334 = vmatprep.subr.mxu0 0.0
  %335 = vmatpush1.xpose.msra.mxu0 0.0
  %336 = vmatprep.subr.mxu0 0.0
  %337 = vmatpush1.xpose.msra.mxu0 0.0
  %338 = vmatprep.subr.mxu0 0.0
  %339 = vmatpush1.xpose.msra.mxu0 0.0
  %340 = vmatprep.subr.mxu0 0.0
  %341 = vmatpush1.xpose.msra.mxu0 0.0
  %342 = vmatprep.subr.mxu0 0.0
  %343 = vmatpush1.xpose.msra.mxu0 0.0
  %344 = vmatprep.subr.mxu0 0.0
  %345 = vmatpush1.xpose.msra.mxu0 0.0
  %346 = vmatprep.subr.mxu0 0.0
  %347 = vmatpush1.xpose.msra.mxu0 0.0
  %348 = vmatprep.subr.mxu0 0.0
  %349 = vmatpush1.xpose.msra.mxu0 0.0
  %350 = vmatprep.subr.mxu0 0.0
  %351 = vmatpush1.xpose.msra.mxu0 0.0
  %352 = vmatprep.subr.mxu0 0.0
  %353 = vmatpush1.xpose.msra.mxu0 0.0
  %354 = vmatprep.subr.mxu0 0.0
  %355 = vmatpush1.xpose.msra.mxu0 0.0
  %356 = vmatprep.subr.mxu0 0.0
  %357 = vmatpush1.xpose.msra.mxu0 0.0
  %358 = vmatprep.subr.mxu0 0.0
  %359 = vmatpush1.xpose.msra.mxu0 0.0
  %360 = vmatprep.subr.mxu0 0.0
  %361 = vmatpush1.xpose.msra.mxu0 0.0
  %362 = vmatprep.subr.mxu0 0.0
  %363 = vmatpush1.xpose.msra.mxu0 0.0
  %364 = vmatprep.subr.mxu0 0.0
  %365 = vmatpush1.xpose.msra.mxu0 0.0
  %366 = vmatprep.mubr.f32.mxu0 0.0
  %367 = vmatmul.mubr.f32.gmra.mrb[0].mxu0 %v297
  %v368 = vpop.f32.mrb[0].mxu0
  %v369 = vadd.f32 0.0, %v368
  %v370 = vpop.f32.mrb[0].mxu0
  %371 = vdwg.mxu0
  %v372 = vmul.f32 %v369, 0.35355338
  %v373 = vsel %vm295, %v372, -inf
  %374 = vmax.xlane.f32.xlu0 %v373
  %v375 = vpop.xlane.xlu0 %374
  %v376 = vsub.f32 %v372, %v375
  %v377 = vmul.f32 %v376, 1.442695
  %v378 = vpow.pop %v377
  %v379 = vsel %vm295, %v378, 0.0
  %380 = vadd.xlane.f32.xlu0 %v379
  %v381 = vpop.xlane.xlu0 %380
  %v382 = vrcp.pop %v381
  %v383 = vmul.f32 %v378, %v382
  %v385 = vsel %vm295, %v383, 0
  %387 = vmatprep.subr.mxu0 0.0
  %388 = vmatpush1.msra.mxu0 %v292
  %389 = vmatprep.subr.mxu0 0.0
  %390 = vmatpush1.msra.mxu0 0.0
  %391 = vmatprep.subr.mxu0 0.0
  %392 = vmatpush1.msra.mxu0 0.0
  %393 = vmatprep.subr.mxu0 0.0
  %394 = vmatpush1.msra.mxu0 0.0
  %395 = vmatprep.subr.mxu0 0.0
  %396 = vmatpush1.msra.mxu0 0.0
  %397 = vmatprep.subr.mxu0 0.0
  %398 = vmatpush1.msra.mxu0 0.0
  %399 = vmatprep.subr.mxu0 0.0
  %400 = vmatpush1.msra.mxu0 0.0
  %401 = vmatprep.subr.mxu0 0.0
  %402 = vmatpush1.msra.mxu0 0.0
  %403 = vmatprep.subr.mxu0 0.0
  %404 = vmatpush1.msra.mxu0 0.0
  %405 = vmatprep.subr.mxu0 0.0
  %406 = vmatpush1.msra.mxu0 0.0
  %407 = vmatprep.subr.mxu0 0.0
  %408 = vmatpush1.msra.mxu0 0.0
  %409 = vmatprep.subr.mxu0 0.0
  %410 = vmatpush1.msra.mxu0 0.0
  %411 = vmatprep.subr.mxu0 0.0
  %412 = vmatpush1.msra.mxu0 0.0
  %413 = vmatprep.subr.mxu0 0.0
  %414 = vmatpush1.msra.mxu0 0.0
  %415 = vmatprep.subr.mxu0 0.0
  %416 = vmatpush1.msra.mxu0 0.0
  %417 = vmatprep.subr.mxu0 0.0
  %418 = vmatpush1.msra.mxu0 0.0
  %419 = vmatprep.subr.mxu0 0.0
  %420 = vmatpush1.msra.mxu0 0.0
  %421 = vmatprep.subr.mxu0 0.0
  %422 = vmatpush1.msra.mxu0 0.0
  %423 = vmatprep.subr.mxu0 0.0
  %424 = vmatpush1.msra.mxu0 0.0
  %425 = vmatprep.subr.mxu0 0.0
  %426 = vmatpush1.msra.mxu0 0.0
  %427 = vmatprep.subr.mxu0 0.0
  %428 = vmatpush1.msra.mxu0 0.0
  %429 = vmatprep.subr.mxu0 0.0
  %430 = vmatpush1.msra.mxu0 0.0
  %431 = vmatprep.subr.mxu0 0.0
  %432 = vmatpush1.msra.mxu0 0.0
  %433 = vmatprep.subr.mxu0 0.0
  %434 = vmatpush1.msra.mxu0 0.0
  %435 = vmatprep.subr.mxu0 0.0
  %436 = vmatpush1.msra.mxu0 0.0
  %437 = vmatprep.subr.mxu0 0.0
  %438 = vmatpush1.msra.mxu0 0.0
  %439 = vmatprep.subr.mxu0 0.0
  %440 = vmatpush1.msra.mxu0 0.0
  %441 = vmatprep.subr.mxu0 0.0
  %442 = vmatpush1.msra.mxu0 0.0
  %443 = vmatprep.subr.mxu0 0.0
  %444 = vmatpush1.msra.mxu0 0.0
  %445 = vmatprep.subr.mxu0 0.0
  %446 = vmatpush1.msra.mxu0 0.0
  %447 = vmatprep.subr.mxu0 0.0
  %448 = vmatpush1.msra.mxu0 0.0
  %449 = vmatprep.subr.mxu0 0.0
  %450 = vmatpush1.msra.mxu0 0.0
  %451 = vmatprep.mubr.f32.mxu0 0.0
  %452 = vmatmul.mubr.f32.gmra.mrb[0].mxu0 %v385
  %v453 = vpop.f32.mrb[0].mxu0
  %v454 = vadd.f32 0.0, %v453
  %v455 = vpop.f32.mrb[0].mxu0
  %456 = vdwg.mxu0
  %457 = vrot.lane.b32.xlu0 %v120, 120
  %v458 = vpop.permute.xlu0 %457
  %459 = vrot.lane.b32.xlu0 %v206, 120
  %v460 = vpop.permute.xlu0 %459
  %v461 = vsel %vm295, %v458, 0
  %v463 = vsel %vm295, %v460, 0
  %465 = vmatprep.subr.mxu0 0.0
  %466 = vmatpush1.xpose.msra.mxu0 %v463
  %467 = vmatprep.subr.mxu0 0.0
  %468 = vmatpush1.xpose.msra.mxu0 0.0
  %469 = vmatprep.subr.mxu0 0.0
  %470 = vmatpush1.xpose.msra.mxu0 0.0
  %471 = vmatprep.subr.mxu0 0.0
  %472 = vmatpush1.xpose.msra.mxu0 0.0
  %473 = vmatprep.subr.mxu0 0.0
  %474 = vmatpush1.xpose.msra.mxu0 0.0
  %475 = vmatprep.subr.mxu0 0.0
  %476 = vmatpush1.xpose.msra.mxu0 0.0
  %477 = vmatprep.subr.mxu0 0.0
  %478 = vmatpush1.xpose.msra.mxu0 0.0
  %479 = vmatprep.subr.mxu0 0.0
  %480 = vmatpush1.xpose.msra.mxu0 0.0
  %481 = vmatprep.subr.mxu0 0.0
  %482 = vmatpush1.xpose.msra.mxu0 0.0
  %483 = vmatprep.subr.mxu0 0.0
  %484 = vmatpush1.xpose.msra.mxu0 0.0
  %485 = vmatprep.subr.mxu0 0.0
  %486 = vmatpush1.xpose.msra.mxu0 0.0
  %487 = vmatprep.subr.mxu0 0.0
  %488 = vmatpush1.xpose.msra.mxu0 0.0
  %489 = vmatprep.subr.mxu0 0.0
  %490 = vmatpush1.xpose.msra.mxu0 0.0
  %491 = vmatprep.subr.mxu0 0.0
  %492 = vmatpush1.xpose.msra.mxu0 0.0
  %493 = vmatprep.subr.mxu0 0.0
  %494 = vmatpush1.xpose.msra.mxu0 0.0
  %495 = vmatprep.subr.mxu0 0.0
  %496 = vmatpush1.xpose.msra.mxu0 0.0
  %497 = vmatprep.subr.mxu0 0.0
  %498 = vmatpush1.xpose.msra.mxu0 0.0
  %499 = vmatprep.subr.mxu0 0.0
  %500 = vmatpush1.xpose.msra.mxu0 0.0
  %501 = vmatprep.subr.mxu0 0.0
  %502 = vmatpush1.xpose.msra.mxu0 0.0
  %503 = vmatprep.subr.mxu0 0.0
  %504 = vmatpush1.xpose.msra.mxu0 0.0
  %505 = vmatprep.subr.mxu0 0.0
  %506 = vmatpush1.xpose.msra.mxu0 0.0
  %507 = vmatprep.subr.mxu0 0.0
  %508 = vmatpush1.xpose.msra.mxu0 0.0
  %509 = vmatprep.subr.mxu0 0.0
  %510 = vmatpush1.xpose.msra.mxu0 0.0
  %511 = vmatprep.subr.mxu0 0.0
  %512 = vmatpush1.xpose.msra.mxu0 0.0
  %513 = vmatprep.subr.mxu0 0.0
  %514 = vmatpush1.xpose.msra.mxu0 0.0
  %515 = vmatprep.subr.mxu0 0.0
  %516 = vmatpush1.xpose.msra.mxu0 0.0
  %517 = vmatprep.subr.mxu0 0.0
  %518 = vmatpush1.xpose.msra.mxu0 0.0
  %519 = vmatprep.subr.mxu0 0.0
  %520 = vmatpush1.xpose.msra.mxu0 0.0
  %521 = vmatprep.subr.mxu0 0.0
  %522 = vmatpush1.xpose.msra.mxu0 0.0
  %523 = vmatprep.subr.mxu0 0.0
  %524 = vmatpush1.xpose.msra.mxu0 0.0
  %525 = vmatprep.subr.mxu0 0.0
  %526 = vmatpush1.xpose.msra.mxu0 0.0
  %527 = vmatprep.subr.mxu0 0.0
  %528 = vmatpush1.xpose.msra.mxu0 0.0
  %529 = vmatprep.mubr.f32.mxu0 0.0
  %530 = vmatmul.mubr.f32.gmra.mrb[0].mxu0 %v461
  %v531 = vpop.f32.mrb[0].mxu0
  %v532 = vadd.f32 0.0, %v531
  %v533 = vpop.f32.mrb[0].mxu0
  %534 = vdwg.mxu0
  %v535 = vmul.f32 %v532, 0.35355338
  %v536 = vsel %vm295, %v535, -inf
  %537 = vmax.xlane.f32.xlu0 %v536
  %v538 = vpop.xlane.xlu0 %537
  %v539 = vsub.f32 %v535, %v538
  %v540 = vmul.f32 %v539, 1.442695
  %v541 = vpow.pop %v540
  %v542 = vsel %vm295, %v541, 0.0
  %543 = vadd.xlane.f32.xlu0 %v542
  %v544 = vpop.xlane.xlu0 %543
  %v545 = vrcp.pop %v544
  %v546 = vmul.f32 %v541, %v545
  %548 = vrot.lane.b32.xlu0 %v292, 120
  %v549 = vpop.permute.xlu0 %548
  %v552 = vsel %vm295, %v546, 0
  %554 = vmatprep.subr.mxu0 0.0
  %555 = vmatpush1.msra.mxu0 %v549
  %556 = vmatprep.subr.mxu0 0.0
  %557 = vmatpush1.msra.mxu0 0.0
  %558 = vmatprep.subr.mxu0 0.0
  %559 = vmatpush1.msra.mxu0 0.0
  %560 = vmatprep.subr.mxu0 0.0
  %561 = vmatpush1.msra.mxu0 0.0
  %562 = vmatprep.subr.mxu0 0.0
  %563 = vmatpush1.msra.mxu0 0.0
  %564 = vmatprep.subr.mxu0 0.0
  %565 = vmatpush1.msra.mxu0 0.0
  %566 = vmatprep.subr.mxu0 0.0
  %567 = vmatpush1.msra.mxu0 0.0
  %568 = vmatprep.subr.mxu0 0.0
  %569 = vmatpush1.msra.mxu0 0.0
  %570 = vmatprep.subr.mxu0 0.0
  %571 = vmatpush1.msra.mxu0 0.0
  %572 = vmatprep.subr.mxu0 0.0
  %573 = vmatpush1.msra.mxu0 0.0
  %574 = vmatprep.subr.mxu0 0.0
  %575 = vmatpush1.msra.mxu0 0.0
  %576 = vmatprep.subr.mxu0 0.0
  %577 = vmatpush1.msra.mxu0 0.0
  %578 = vmatprep.subr.mxu0 0.0
  %579 = vmatpush1.msra.mxu0 0.0
  %580 = vmatprep.subr.mxu0 0.0
  %581 = vmatpush1.msra.mxu0 0.0
  %582 = vmatprep.subr.mxu0 0.0
  %583 = vmatpush1.msra.mxu0 0.0
  %584 = vmatprep.subr.mxu0 0.0
  %585 = vmatpush1.msra.mxu0 0.0
  %586 = vmatprep.subr.mxu0 0.0
  %587 = vmatpush1.msra.mxu0 0.0
  %588 = vmatprep.subr.mxu0 0.0
  %589 = vmatpush1.msra.mxu0 0.0
  %590 = vmatprep.subr.mxu0 0.0
  %591 = vmatpush1.msra.mxu0 0.0
  %592 = vmatprep.subr.mxu0 0.0
  %593 = vmatpush1.msra.mxu0 0.0
  %594 = vmatprep.subr.mxu0 0.0
  %595 = vmatpush1.msra.mxu0 0.0
  %596 = vmatprep.subr.mxu0 0.0
  %597 = vmatpush1.msra.mxu0 0.0
  %598 = vmatprep.subr.mxu0 0.0
  %599 = vmatpush1.msra.mxu0 0.0
  %600 = vmatprep.subr.mxu0 0.0
  %601 = vmatpush1.msra.mxu0 0.0
  %602 = vmatprep.subr.mxu0 0.0
  %603 = vmatpush1.msra.mxu0 0.0
  %604 = vmatprep.subr.mxu0 0.0
  %605 = vmatpush1.msra.mxu0 0.0
  %606 = vmatprep.subr.mxu0 0.0
  %607 = vmatpush1.msra.mxu0 0.0
  %608 = vmatprep.subr.mxu0 0.0
  %609 = vmatpush1.msra.mxu0 0.0
  %610 = vmatprep.subr.mxu0 0.0
  %611 = vmatpush1.msra.mxu0 0.0
  %612 = vmatprep.subr.mxu0 0.0
  %613 = vmatpush1.msra.mxu0 0.0
  %614 = vmatprep.subr.mxu0 0.0
  %615 = vmatpush1.msra.mxu0 0.0
  %616 = vmatprep.subr.mxu0 0.0
  %617 = vmatpush1.msra.mxu0 0.0
  %618 = vmatprep.mubr.f32.mxu0 0.0
  %619 = vmatmul.mubr.f32.gmra.mrb[0].mxu0 %v552
  %v620 = vpop.f32.mrb[0].mxu0
  %v621 = vadd.f32 0.0, %v620
  %v622 = vpop.f32.mrb[0].mxu0
  %623 = vdwg.mxu0
  %624 = vrot.lane.b32.xlu0 %v120, 112
  %v625 = vpop.permute.xlu0 %624
  %626 = vrot.lane.b32.xlu0 %v206, 112
  %v627 = vpop.permute.xlu0 %626
  %v628 = vsel %vm295, %v625, 0
  %v630 = vsel %vm295, %v627, 0
  %632 = vmatprep.subr.mxu0 0.0
  %633 = vmatpush1.xpose.msra.mxu0 %v630
  %634 = vmatprep.subr.mxu0 0.0
  %635 = vmatpush1.xpose.msra.mxu0 0.0
  %636 = vmatprep.subr.mxu0 0.0
  %637 = vmatpush1.xpose.msra.mxu0 0.0
  %638 = vmatprep.subr.mxu0 0.0
  %639 = vmatpush1.xpose.msra.mxu0 0.0
  %640 = vmatprep.subr.mxu0 0.0
  %641 = vmatpush1.xpose.msra.mxu0 0.0
  %642 = vmatprep.subr.mxu0 0.0
  %643 = vmatpush1.xpose.msra.mxu0 0.0
  %644 = vmatprep.subr.mxu0 0.0
  %645 = vmatpush1.xpose.msra.mxu0 0.0
  %646 = vmatprep.subr.mxu0 0.0
  %647 = vmatpush1.xpose.msra.mxu0 0.0
  %648 = vmatprep.subr.mxu0 0.0
  %649 = vmatpush1.xpose.msra.mxu0 0.0
  %650 = vmatprep.subr.mxu0 0.0
  %651 = vmatpush1.xpose.msra.mxu0 0.0
  %652 = vmatprep.subr.mxu0 0.0
  %653 = vmatpush1.xpose.msra.mxu0 0.0
  %654 = vmatprep.subr.mxu0 0.0
  %655 = vmatpush1.xpose.msra.mxu0 0.0
  %656 = vmatprep.subr.mxu0 0.0
  %657 = vmatpush1.xpose.msra.mxu0 0.0
  %658 = vmatprep.subr.mxu0 0.0
  %659 = vmatpush1.xpose.msra.mxu0 0.0
  %660 = vmatprep.subr.mxu0 0.0
  %661 = vmatpush1.xpose.msra.mxu0 0.0
  %662 = vmatprep.subr.mxu0 0.0
  %663 = vmatpush1.xpose.msra.mxu0 0.0
  %664 = vmatprep.subr.mxu0 0.0
  %665 = vmatpush1.xpose.msra.mxu0 0.0
  %666 = vmatprep.subr.mxu0 0.0
  %667 = vmatpush1.xpose.msra.mxu0 0.0
  %668 = vmatprep.subr.mxu0 0.0
  %669 = vmatpush1.xpose.msra.mxu0 0.0
  %670 = vmatprep.subr.mxu0 0.0
  %671 = vmatpush1.xpose.msra.mxu0 0.0
  %672 = vmatprep.subr.mxu0 0.0
  %673 = vmatpush1.xpose.msra.mxu0 0.0
  %674 = vmatprep.subr.mxu0 0.0
  %675 = vmatpush1.xpose.msra.mxu0 0.0
  %676 = vmatprep.subr.mxu0 0.0
  %677 = vmatpush1.xpose.msra.mxu0 0.0
  %678 = vmatprep.subr.mxu0 0.0
  %679 = vmatpush1.xpose.msra.mxu0 0.0
  %680 = vmatprep.subr.mxu0 0.0
  %681 = vmatpush1.xpose.msra.mxu0 0.0
  %682 = vmatprep.subr.mxu0 0.0
  %683 = vmatpush1.xpose.msra.mxu0 0.0
  %684 = vmatprep.subr.mxu0 0.0
  %685 = vmatpush1.xpose.msra.mxu0 0.0
  %686 = vmatprep.subr.mxu0 0.0
  %687 = vmatpush1.xpose.msra.mxu0 0.0
  %688 = vmatprep.subr.mxu0 0.0
  %689 = vmatpush1.xpose.msra.mxu0 0.0
  %690 = vmatprep.subr.mxu0 0.0
  %691 = vmatpush1.xpose.msra.mxu0 0.0
  %692 = vmatprep.subr.mxu0 0.0
  %693 = vmatpush1.xpose.msra.mxu0 0.0
  %694 = vmatprep.subr.mxu0 0.0
  %695 = vmatpush1.xpose.msra.mxu0 0.0
  %696 = vmatprep.mubr.f32.mxu0 0.0
  %697 = vmatmul.mubr.f32.gmra.mrb[0].mxu0 %v628
  %v698 = vpop.f32.mrb[0].mxu0
  %v699 = vadd.f32 0.0, %v698
  %v700 = vpop.f32.mrb[0].mxu0
  %701 = vdwg.mxu0
  %v702 = vmul.f32 %v699, 0.35355338
  %v703 = vsel %vm295, %v702, -inf
  %704 = vmax.xlane.f32.xlu0 %v703
  %v705 = vpop.xlane.xlu0 %704
  %v706 = vsub.f32 %v702, %v705
  %v707 = vmul.f32 %v706, 1.442695
  %v708 = vpow.pop %v707
  %v709 = vsel %vm295, %v708, 0.0
  %710 = vadd.xlane.f32.xlu0 %v709
  %v711 = vpop.xlane.xlu0 %710
  %v712 = vrcp.pop %v711
  %v713 = vmul.f32 %v708, %v712
  %714 = vrot.lane.b32.xlu0 %v292, 112
  %v715 = vpop.permute.xlu0 %714
  %v718 = vsel %vm295, %v713, 0
  %720 = vmatprep.subr.mxu0 0.0
  %721 = vmatpush1.msra.mxu0 %v715
  %722 = vmatprep.subr.mxu0 0.0
  %723 = vmatpush1.msra.mxu0 0.0
  %724 = vmatprep.subr.mxu0 0.0
  %725 = vmatpush1.msra.mxu0 0.0
  %726 = vmatprep.subr.mxu0 0.0
  %727 = vmatpush1.msra.mxu0 0.0
  %728 = vmatprep.subr.mxu0 0.0
  %729 = vmatpush1.msra.mxu0 0.0
  %730 = vmatprep.subr.mxu0 0.0
  %731 = vmatpush1.msra.mxu0 0.0
  %732 = vmatprep.subr.mxu0 0.0
  %733 = vmatpush1.msra.mxu0 0.0
  %734 = vmatprep.subr.mxu0 0.0
  %735 = vmatpush1.msra.mxu0 0.0
  %736 = vmatprep.subr.mxu0 0.0
  %737 = vmatpush1.msra.mxu0 0.0
  %738 = vmatprep.subr.mxu0 0.0
  %739 = vmatpush1.msra.mxu0 0.0
  %740 = vmatprep.subr.mxu0 0.0
  %741 = vmatpush1.msra.mxu0 0.0
  %742 = vmatprep.subr.mxu0 0.0
  %743 = vmatpush1.msra.mxu0 0.0
  %744 = vmatprep.subr.mxu0 0.0
  %745 = vmatpush1.msra.mxu0 0.0
  %746 = vmatprep.subr.mxu0 0.0
  %747 = vmatpush1.msra.mxu0 0.0
  %748 = vmatprep.subr.mxu0 0.0
  %749 = vmatpush1.msra.mxu0 0.0
  %750 = vmatprep.subr.mxu0 0.0
  %751 = vmatpush1.msra.mxu0 0.0
  %752 = vmatprep.subr.mxu0 0.0
  %753 = vmatpush1.msra.mxu0 0.0
  %754 = vmatprep.subr.mxu0 0.0
  %755 = vmatpush1.msra.mxu0 0.0
  %756 = vmatprep.subr.mxu0 0.0
  %757 = vmatpush1.msra.mxu0 0.0
  %758 = vmatprep.subr.mxu0 0.0
  %759 = vmatpush1.msra.mxu0 0.0
  %760 = vmatprep.subr.mxu0 0.0
  %761 = vmatpush1.msra.mxu0 0.0
  %762 = vmatprep.subr.mxu0 0.0
  %763 = vmatpush1.msra.mxu0 0.0
  %764 = vmatprep.subr.mxu0 0.0
  %765 = vmatpush1.msra.mxu0 0.0
  %766 = vmatprep.subr.mxu0 0.0
  %767 = vmatpush1.msra.mxu0 0.0
  %768 = vmatprep.subr.mxu0 0.0
  %769 = vmatpush1.msra.mxu0 0.0
  %770 = vmatprep.subr.mxu0 0.0
  %771 = vmatpush1.msra.mxu0 0.0
  %772 = vmatprep.subr.mxu0 0.0
  %773 = vmatpush1.msra.mxu0 0.0
  %774 = vmatprep.subr.mxu0 0.0
  %775 = vmatpush1.msra.mxu0 0.0
  %776 = vmatprep.subr.mxu0 0.0
  %777 = vmatpush1.msra.mxu0 0.0
  %778 = vmatprep.subr.mxu0 0.0
  %779 = vmatpush1.msra.mxu0 0.0
  %780 = vmatprep.subr.mxu0 0.0
  %781 = vmatpush1.msra.mxu0 0.0
  %782 = vmatprep.subr.mxu0 0.0
  %783 = vmatpush1.msra.mxu0 0.0
  %784 = vmatprep.mubr.f32.mxu0 0.0
  %785 = vmatmul.mubr.f32.gmra.mrb[0].mxu0 %v718
  %v786 = vpop.f32.mrb[0].mxu0
  %v787 = vadd.f32 0.0, %v786
  %v788 = vpop.f32.mrb[0].mxu0
  %789 = vdwg.mxu0
  %790 = vrot.lane.b32.xlu0 %v120, 104
  %v791 = vpop.permute.xlu0 %790
  %792 = vrot.lane.b32.xlu0 %v206, 104
  %v793 = vpop.permute.xlu0 %792
  %v794 = vsel %vm295, %v791, 0
  %v796 = vsel %vm295, %v793, 0
  %798 = vmatprep.subr.mxu0 0.0
  %799 = vmatpush1.xpose.msra.mxu0 %v796
  %800 = vmatprep.subr.mxu0 0.0
  %801 = vmatpush1.xpose.msra.mxu0 0.0
  %802 = vmatprep.subr.mxu0 0.0
  %803 = vmatpush1.xpose.msra.mxu0 0.0
  %804 = vmatprep.subr.mxu0 0.0
  %805 = vmatpush1.xpose.msra.mxu0 0.0
  %806 = vmatprep.subr.mxu0 0.0
  %807 = vmatpush1.xpose.msra.mxu0 0.0
  %808 = vmatprep.subr.mxu0 0.0
  %809 = vmatpush1.xpose.msra.mxu0 0.0
  %810 = vmatprep.subr.mxu0 0.0
  %811 = vmatpush1.xpose.msra.mxu0 0.0
  %812 = vmatprep.subr.mxu0 0.0
  %813 = vmatpush1.xpose.msra.mxu0 0.0
  %814 = vmatprep.subr.mxu0 0.0
  %815 = vmatpush1.xpose.msra.mxu0 0.0
  %816 = vmatprep.subr.mxu0 0.0
  %817 = vmatpush1.xpose.msra.mxu0 0.0
  %818 = vmatprep.subr.mxu0 0.0
  %819 = vmatpush1.xpose.msra.mxu0 0.0
  %820 = vmatprep.subr.mxu0 0.0
  %821 = vmatpush1.xpose.msra.mxu0 0.0
  %822 = vmatprep.subr.mxu0 0.0
  %823 = vmatpush1.xpose.msra.mxu0 0.0
  %824 = vmatprep.subr.mxu0 0.0
  %825 = vmatpush1.xpose.msra.mxu0 0.0
  %826 = vmatprep.subr.mxu0 0.0
  %827 = vmatpush1.xpose.msra.mxu0 0.0
  %828 = vmatprep.subr.mxu0 0.0
  %829 = vmatpush1.xpose.msra.mxu0 0.0
  %830 = vmatprep.subr.mxu0 0.0
  %831 = vmatpush1.xpose.msra.mxu0 0.0
  %832 = vmatprep.subr.mxu0 0.0
  %833 = vmatpush1.xpose.msra.mxu0 0.0
  %834 = vmatprep.subr.mxu0 0.0
  %835 = vmatpush1.xpose.msra.mxu0 0.0
  %836 = vmatprep.subr.mxu0 0.0
  %837 = vmatpush1.xpose.msra.mxu0 0.0
  %838 = vmatprep.subr.mxu0 0.0
  %839 = vmatpush1.xpose.msra.mxu0 0.0
  %840 = vmatprep.subr.mxu0 0.0
  %841 = vmatpush1.xpose.msra.mxu0 0.0
  %842 = vmatprep.subr.mxu0 0.0
  %843 = vmatpush1.xpose.msra.mxu0 0.0
  %844 = vmatprep.subr.mxu0 0.0
  %845 = vmatpush1.xpose.msra.mxu0 0.0
  %846 = vmatprep.subr.mxu0 0.0
  %847 = vmatpush1.xpose.msra.mxu0 0.0
  %848 = vmatprep.subr.mxu0 0.0
  %849 = vmatpush1.xpose.msra.mxu0 0.0
  %850 = vmatprep.subr.mxu0 0.0
  %851 = vmatpush1.xpose.msra.mxu0 0.0
  %852 = vmatprep.subr.mxu0 0.0
  %853 = vmatpush1.xpose.msra.mxu0 0.0
  %854 = vmatprep.subr.mxu0 0.0
  %855 = vmatpush1.xpose.msra.mxu0 0.0
  %856 = vmatprep.subr.mxu0 0.0
  %857 = vmatpush1.xpose.msra.mxu0 0.0
  %858 = vmatprep.subr.mxu0 0.0
  %859 = vmatpush1.xpose.msra.mxu0 0.0
  %860 = vmatprep.subr.mxu0 0.0
  %861 = vmatpush1.xpose.msra.mxu0 0.0
  %862 = vmatprep.mubr.f32.mxu0 0.0
  %863 = vmatmul.mubr.f32.gmra.mrb[0].mxu0 %v794
  %v864 = vpop.f32.mrb[0].mxu0
  %v865 = vadd.f32 0.0, %v864
  %v866 = vpop.f32.mrb[0].mxu0
  %867 = vdwg.mxu0
  %v868 = vmul.f32 %v865, 0.35355338
  %v869 = vsel %vm295, %v868, -inf
  %870 = vmax.xlane.f32.xlu0 %v869
  %v871 = vpop.xlane.xlu0 %870
  %v872 = vsub.f32 %v868, %v871
  %v873 = vmul.f32 %v872, 1.442695
  %v874 = vpow.pop %v873
  %v875 = vsel %vm295, %v874, 0.0
  %876 = vadd.xlane.f32.xlu0 %v875
  %v877 = vpop.xlane.xlu0 %876
  %v878 = vrcp.pop %v877
  %v879 = vmul.f32 %v874, %v878
  %880 = vrot.lane.b32.xlu0 %v292, 104
  %v881 = vpop.permute.xlu0 %880
  %v884 = vsel %vm295, %v879, 0
  %886 = vmatprep.subr.mxu0 0.0
  %887 = vmatpush1.msra.mxu0 %v881
  %888 = vmatprep.subr.mxu0 0.0
  %889 = vmatpush1.msra.mxu0 0.0
  %890 = vmatprep.subr.mxu0 0.0
  %891 = vmatpush1.msra.mxu0 0.0
  %892 = vmatprep.subr.mxu0 0.0
  %893 = vmatpush1.msra.mxu0 0.0
  %894 = vmatprep.subr.mxu0 0.0
  %895 = vmatpush1.msra.mxu0 0.0
  %896 = vmatprep.subr.mxu0 0.0
  %897 = vmatpush1.msra.mxu0 0.0
  %898 = vmatprep.subr.mxu0 0.0
  %899 = vmatpush1.msra.mxu0 0.0
  %900 = vmatprep.subr.mxu0 0.0
  %901 = vmatpush1.msra.mxu0 0.0
  %902 = vmatprep.subr.mxu0 0.0
  %903 = vmatpush1.msra.mxu0 0.0
  %904 = vmatprep.subr.mxu0 0.0
  %905 = vmatpush1.msra.mxu0 0.0
  %906 = vmatprep.subr.mxu0 0.0
  %907 = vmatpush1.msra.mxu0 0.0
  %908 = vmatprep.subr.mxu0 0.0
  %909 = vmatpush1.msra.mxu0 0.0
  %910 = vmatprep.subr.mxu0 0.0
  %911 = vmatpush1.msra.mxu0 0.0
  %912 = vmatprep.subr.mxu0 0.0
  %913 = vmatpush1.msra.mxu0 0.0
  %914 = vmatprep.subr.mxu0 0.0
  %915 = vmatpush1.msra.mxu0 0.0
  %916 = vmatprep.subr.mxu0 0.0
  %917 = vmatpush1.msra.mxu0 0.0
  %918 = vmatprep.subr.mxu0 0.0
  %919 = vmatpush1.msra.mxu0 0.0
  %920 = vmatprep.subr.mxu0 0.0
  %921 = vmatpush1.msra.mxu0 0.0
  %922 = vmatprep.subr.mxu0 0.0
  %923 = vmatpush1.msra.mxu0 0.0
  %924 = vmatprep.subr.mxu0 0.0
  %925 = vmatpush1.msra.mxu0 0.0
  %926 = vmatprep.subr.mxu0 0.0
  %927 = vmatpush1.msra.mxu0 0.0
  %928 = vmatprep.subr.mxu0 0.0
  %929 = vmatpush1.msra.mxu0 0.0
  %930 = vmatprep.subr.mxu0 0.0
  %931 = vmatpush1.msra.mxu0 0.0
  %932 = vmatprep.subr.mxu0 0.0
  %933 = vmatpush1.msra.mxu0 0.0
  %934 = vmatprep.subr.mxu0 0.0
  %935 = vmatpush1.msra.mxu0 0.0
  %936 = vmatprep.subr.mxu0 0.0
  %937 = vmatpush1.msra.mxu0 0.0
  %938 = vmatprep.subr.mxu0 0.0
  %939 = vmatpush1.msra.mxu0 0.0
  %940 = vmatprep.subr.mxu0 0.0
  %941 = vmatpush1.msra.mxu0 0.0
  %942 = vmatprep.subr.mxu0 0.0
  %943 = vmatpush1.msra.mxu0 0.0
  %944 = vmatprep.subr.mxu0 0.0
  %945 = vmatpush1.msra.mxu0 0.0
  %946 = vmatprep.subr.mxu0 0.0
  %947 = vmatpush1.msra.mxu0 0.0
  %948 = vmatprep.subr.mxu0 0.0
  %949 = vmatpush1.msra.mxu0 0.0
  %950 = vmatprep.mubr.f32.mxu0 0.0
  %951 = vmatmul.mubr.f32.gmra.mrb[0].mxu0 %v884
  %v952 = vpop.f32.mrb[0].mxu0
  %v953 = vadd.f32 0.0, %v952
  %v954 = vpop.f32.mrb[0].mxu0
  %955 = vdwg.mxu0
  %957 = vrot.lane.b32.xlu0 %v621, 8
  %v958 = vpop.permute.xlu0 %957
  %961 = vrot.lane.b32.xlu0 %v787, 16
  %v962 = vpop.permute.xlu0 %961
  %965 = vrot.lane.b32.xlu0 %v953, 24
  %v966 = vpop.permute.xlu0 %965
  %v968 = vsel %vm295, %v454, %v958
  %vm969 = vcmask 130048
  %v970 = vsel %vm969, %v968, %v962
  %vm971 = vcmask 195584
  %v972 = vsel %vm971, %v970, %v966
  %v973 = vld [vmem:[%s6] sm:$0xff]
  %v974 = vld [vmem:[%s6 + $0x8] sm:$0xff]
  %v975 = vld [vmem:[%s6 + $0x10] sm:$0xff]
  %v976 = vld [vmem:[%s6 + $0x18] sm:$0xff]
  %v977 = vld [vmem:[%s7] sm:$0x1]
  %v979 = vlaneseq
  %v980 = vshrl.u32 %v979, 7
  %v981 = vsub.s32 0, %v980
  %v982 = vrot.slane %v977, %v981
  %v985 = vsel %vm49, %v972, 0
  %987 = vmatprep.subr.mxu0 0.0
  %988 = vmatpush1.msra.mxu0 %v973
  %989 = vmatprep.subr.mxu0 0.0
  %990 = vmatpush1.msra.mxu0 %v974
  %991 = vmatprep.subr.mxu0 0.0
  %992 = vmatpush1.msra.mxu0 %v975
  %993 = vmatprep.subr.mxu0 0.0
  %994 = vmatpush1.msra.mxu0 %v976
  %995 = vmatprep.subr.mxu0 0.0
  %996 = vmatpush1.msra.mxu0 0.0
  %997 = vmatprep.subr.mxu0 0.0
  %998 = vmatpush1.msra.mxu0 0.0
  %999 = vmatprep.subr.mxu0 0.0
  %1000 = vmatpush1.msra.mxu0 0.0
  %1001 = vmatprep.subr.mxu0 0.0
  %1002 = vmatpush1.msra.mxu0 0.0
  %1003 = vmatprep.subr.mxu0 0.0
  %1004 = vmatpush1.msra.mxu0 0.0
  %1005 = vmatprep.subr.mxu0 0.0
  %1006 = vmatpush1.msra.mxu0 0.0
  %1007 = vmatprep.subr.mxu0 0.0
  %1008 = vmatpush1.msra.mxu0 0.0
  %1009 = vmatprep.subr.mxu0 0.0
  %1010 = vmatpush1.msra.mxu0 0.0
  %1011 = vmatprep.subr.mxu0 0.0
  %1012 = vmatpush1.msra.mxu0 0.0
  %1013 = vmatprep.subr.mxu0 0.0
  %1014 = vmatpush1.msra.mxu0 0.0
  %1015 = vmatprep.subr.mxu0 0.0
  %1016 = vmatpush1.msra.mxu0 0.0
  %1017 = vmatprep.subr.mxu0 0.0
  %1018 = vmatpush1.msra.mxu0 0.0
  %1019 = vmatprep.subr.mxu0 0.0
  %1020 = vmatpush1.msra.mxu0 0.0
  %1021 = vmatprep.subr.mxu0 0.0
  %1022 = vmatpush1.msra.mxu0 0.0
  %1023 = vmatprep.subr.mxu0 0.0
  %1024 = vmatpush1.msra.mxu0 0.0
  %1025 = vmatprep.subr.mxu0 0.0
  %1026 = vmatpush1.msra.mxu0 0.0
  %1027 = vmatprep.subr.mxu0 0.0
  %1028 = vmatpush1.msra.mxu0 0.0
  %1029 = vmatprep.subr.mxu0 0.0
  %1030 = vmatpush1.msra.mxu0 0.0
  %1031 = vmatprep.subr.mxu0 0.0
  %1032 = vmatpush1.msra.mxu0 0.0
  %1033 = vmatprep.subr.mxu0 0.0
  %1034 = vmatpush1.msra.mxu0 0.0
  %1035 = vmatprep.subr.mxu0 0.0
  %1036 = vmatpush1.msra.mxu0 0.0
  %1037 = vmatprep.subr.mxu0 0.0
  %1038 = vmatpush1.msra.mxu0 0.0
  %1039 = vmatprep.subr.mxu0 0.0
  %1040 = vmatpush1.msra.mxu0 0.0
  %1041 = vmatprep.subr.mxu0 0.0
  %1042 = vmatpush1.msra.mxu0 0.0
  %1043 = vmatprep.subr.mxu0 0.0
  %1044 = vmatpush1.msra.mxu0 0.0
  %1045 = vmatprep.subr.mxu0 0.0
  %1046 = vmatpush1.msra.mxu0 0.0
  %1047 = vmatprep.subr.mxu0 0.0
  %1048 = vmatpush1.msra.mxu0 0.0
  %1049 = vmatprep.subr.mxu0 0.0
  %1050 = vmatpush1.msra.mxu0 0.0
  %1051 = vmatprep.mubr.f32.mxu0 0.0
  %1052 = vmatmul.mubr.f32.gmra.mrb[0].mxu0 %v985
  %v1053 = vpop.f32.mrb[0].mxu0
  %v1054 = vadd.f32 %v982, %v1053
  %v1055 = vpop.f32.mrb[0].mxu0
  %1056 = vdwg.mxu0
  %v1057 = vld [vmem:[%s3] sm:$0xff]
  %v1058 = vadd.f32 %v1057, %v1054
  %v1059 = vsel %vm49, %v1058, 0.0
  %1060 = vadd.xlane.f32.xlu0 %v1059
  %v1061 = vpop.xlane.xlu0 %1060
  %v1062 = vrcp.pop 32.0
  %v1063 = vmul.f32 %v1061, %v1062
  %v1064 = vsub.f32 %v1058, %v1063
  %v1065 = vmul.f32 %v1064, %v1064
  %v1066 = vsel %vm49, %v1065, 0.0
  %1067 = vadd.xlane.f32.xlu0 %v1066
  %v1068 = vpop.xlane.xlu0 %1067
  %v1069 = vmul.f32 %v1068, %v1062
  %v1070 = vadd.f32 %v1069, 1e-05
  %v1071 = vrsqrt.pop %v1070
  %v1072 = vmul.f32 %v1064, %v1071
  %v1073 = vld [vmem:[%s8] sm:$0x1]
  %v1075 = vlaneseq
  %v1076 = vshrl.u32 %v1075, 7
  %v1077 = vsub.s32 0, %v1076
  %v1078 = vrot.slane %v1073, %v1077
  %v1080 = vmul.f32 %v1072, %v1078
  %v1081 = vld [vmem:[%s9] sm:$0x1]
  %v1083 = vlaneseq
  %v1084 = vshrl.u32 %v1083, 7
  %v1085 = vsub.s32 0, %v1084
  %v1086 = vrot.slane %v1081, %v1085
  %v1088 = vadd.f32 %v1080, %v1086
  %1089 = vst.msk [vmem:[%s10] sm:$0xff] %vm49, %v1088
  // Predicated region
  $region42: #{_ssa_core.26} parent=0 // pred_check
    _
  $region43: #{_ssa_core.26} parent=0 // pred_check_branch
    %1091 = sbr.rel (0) target = $region45
  $region44: #{_ssa_core.26} parent=0 // pred_region
    _
  $region45: #{_ssa_core.26} parent=0 // pred_fallthru
    _
  // Predicated region
  $region46: #{_ssa_core.26} parent=0 // pred_check
    _
  $region47: #{_ssa_core.26} parent=0 // pred_check_branch
    %1093 = sbr.rel (0) target = $region49
  $region48: #{_ssa_core.26} parent=0 // pred_region
    _
  $region49: #{_ssa_core.26} parent=0 // pred_fallthru
    _

// kernel: _ssa_core.33
$region0: #{_ssa_core.33}
  #allocation0 [shape = 'u32[]', space=smem, size = 0x4, offset = 0x4, fixed_abs, tag = 'smem constant byte address 0x4 - core index']
  #allocation1 [shape = 'u32[144,128]{1,0:T(1,128)}', space=vmem, size = 0x12000, scoped, tag = 'internal scratch']
  %s0 = inlined_call_operand.vmem [shape: f32[8,32], index: 0, kind: input, shape index: {}]
  %s1 = inlined_call_operand.vmem [shape: f32[32,11], index: 1, kind: input, shape index: {}]
  %s2 = inlined_call_operand.vmem [shape: f32[1,11], index: 2, kind: input, shape index: {}]
  %s3 = inlined_call_operand.hbm [shape: f32[8,11], index: 3, kind: output, shape index: {}]
  %s4 = sld [smem:[#allocation0]]
  $region22: #{_ssa_core.33} parent=0
    _
  %s6 = ssub.s32 1, %s4
  %s7 = scalar_select 0, %s6, %s4
  $region1: #{_ssa_core.33} parent=0
    #allocation2 [shape = 'u8[4096]{0}', space=vmem, size = 0x1000, scoped, tag = 'output window, operand 0, single buffered']
    #allocation3 [shape = 's32[1]{0}', space=sflag, size = 0x4, scoped, tag = 'scoped memory for _ssa_core.33']
    %8 = vsyncpa [#allocation3], 0
    // Predicated region
    $region2: #{_ssa_core.33} parent=1 // pred_check
      _
    $region3: #{_ssa_core.33} parent=1 // pred_check_branch
      %10 = sbr.rel (0) target = $region5
    $region4: #{_ssa_core.33} parent=1 // pred_region
      _
    $region5: #{_ssa_core.33} parent=1 // pred_fallthru
      _
    // Predicated region
    $region6: #{_ssa_core.33} parent=1 // pred_check
      _
    $region7: #{_ssa_core.33} parent=1 // pred_check_branch
      %12 = sbr.rel (0) target = $region9
    $region8: #{_ssa_core.33} parent=1 // pred_region
      _
    $region9: #{_ssa_core.33} parent=1 // pred_fallthru
      _
    // Predicated region
    $region10: #{_ssa_core.33} parent=1 // pred_check
      _
    $region11: #{_ssa_core.33} parent=1 // pred_check_branch
      %14 = sbr.rel (0) target = $region13
    $region12: #{_ssa_core.33} parent=1 // pred_region
      _
    $region13: #{_ssa_core.33} parent=1 // pred_fallthru
      _
    %v15 = vld [vmem:[%s0] sm:$0xff]
    %v16 = vld [vmem:[%s1] sm:$0xff]
    %v17 = vld [vmem:[%s1 + $0x8] sm:$0xff]
    %v18 = vld [vmem:[%s1 + $0x10] sm:$0xff]
    %v19 = vld [vmem:[%s1 + $0x18] sm:$0xff]
    %v20 = vld [vmem:[%s2] sm:$0x1]
    %v22 = vlaneseq
    %v23 = vshrl.u32 %v22, 7
    %v24 = vsub.s32 0, %v23
    %v25 = vrot.slane %v20, %v24
    %vm27 = vcmask 261120
    %v29 = vsel %vm27, %v15, 0
    %31 = vmatprep.subr.mxu0 0.0
    %32 = vmatpush1.msra.mxu0 %v16
    %33 = vmatprep.subr.mxu0 0.0
    %34 = vmatpush1.msra.mxu0 %v17
    %35 = vmatprep.subr.mxu0 0.0
    %36 = vmatpush1.msra.mxu0 %v18
    %37 = vmatprep.subr.mxu0 0.0
    %38 = vmatpush1.msra.mxu0 %v19
    %39 = vmatprep.subr.mxu0 0.0
    %40 = vmatpush1.msra.mxu0 0.0
    %41 = vmatprep.subr.mxu0 0.0
    %42 = vmatpush1.msra.mxu0 0.0
    %43 = vmatprep.subr.mxu0 0.0
    %44 = vmatpush1.msra.mxu0 0.0
    %45 = vmatprep.subr.mxu0 0.0
    %46 = vmatpush1.msra.mxu0 0.0
    %47 = vmatprep.subr.mxu0 0.0
    %48 = vmatpush1.msra.mxu0 0.0
    %49 = vmatprep.subr.mxu0 0.0
    %50 = vmatpush1.msra.mxu0 0.0
    %51 = vmatprep.subr.mxu0 0.0
    %52 = vmatpush1.msra.mxu0 0.0
    %53 = vmatprep.subr.mxu0 0.0
    %54 = vmatpush1.msra.mxu0 0.0
    %55 = vmatprep.subr.mxu0 0.0
    %56 = vmatpush1.msra.mxu0 0.0
    %57 = vmatprep.subr.mxu0 0.0
    %58 = vmatpush1.msra.mxu0 0.0
    %59 = vmatprep.subr.mxu0 0.0
    %60 = vmatpush1.msra.mxu0 0.0
    %61 = vmatprep.subr.mxu0 0.0
    %62 = vmatpush1.msra.mxu0 0.0
    %63 = vmatprep.subr.mxu0 0.0
    %64 = vmatpush1.msra.mxu0 0.0
    %65 = vmatprep.subr.mxu0 0.0
    %66 = vmatpush1.msra.mxu0 0.0
    %67 = vmatprep.subr.mxu0 0.0
    %68 = vmatpush1.msra.mxu0 0.0
    %69 = vmatprep.subr.mxu0 0.0
    %70 = vmatpush1.msra.mxu0 0.0
    %71 = vmatprep.subr.mxu0 0.0
    %72 = vmatpush1.msra.mxu0 0.0
    %73 = vmatprep.subr.mxu0 0.0
    %74 = vmatpush1.msra.mxu0 0.0
    %75 = vmatprep.subr.mxu0 0.0
    %76 = vmatpush1.msra.mxu0 0.0
    %77 = vmatprep.subr.mxu0 0.0
    %78 = vmatpush1.msra.mxu0 0.0
    %79 = vmatprep.subr.mxu0 0.0
    %80 = vmatpush1.msra.mxu0 0.0
    %81 = vmatprep.subr.mxu0 0.0
    %82 = vmatpush1.msra.mxu0 0.0
    %83 = vmatprep.subr.mxu0 0.0
    %84 = vmatpush1.msra.mxu0 0.0
    %85 = vmatprep.subr.mxu0 0.0
    %86 = vmatpush1.msra.mxu0 0.0
    %87 = vmatprep.subr.mxu0 0.0
    %88 = vmatpush1.msra.mxu0 0.0
    %89 = vmatprep.subr.mxu0 0.0
    %90 = vmatpush1.msra.mxu0 0.0
    %91 = vmatprep.subr.mxu0 0.0
    %92 = vmatpush1.msra.mxu0 0.0
    %93 = vmatprep.subr.mxu0 0.0
    %94 = vmatpush1.msra.mxu0 0.0
    %95 = vmatprep.mubr.f32.mxu0 0.0
    %96 = vmatmul.mubr.f32.gmra.mrb[0].mxu0 %v29
    %v97 = vpop.f32.mrb[0].mxu0
    %v98 = vadd.f32 %v25, %v97
    %v99 = vpop.f32.mrb[0].mxu0
    %100 = vdwg.mxu0
    %vm101 = vcmask 89088
    %102 = vst.msk [vmem:[#allocation2] sm:$0xff] %vm101, %v98
    // Predicated region
    $region14: #{_ssa_core.33} parent=1 // pred_check
      _
    $region15: #{_ssa_core.33} parent=1 // pred_check_branch
      %104 = sbr.rel (0) target = $region17
    $region16: #{_ssa_core.33} parent=1 // pred_region
      %s106 = ssub.s32 128, 128
      %107 = vsyncadd [#allocation3], %s106
      %s109 = sshll.u32 [#allocation2], 4
      %s110 = int_to_ptr.vmem [resolvable:$true] %s109
      %112 = dma.vmem_to_hbm [thread:$0]  %s110, 128, %s3, [#allocation3]
    $region17: #{_ssa_core.33} parent=1 // pred_fallthru
      _
    // Predicated region
    $region18: #{_ssa_core.33} parent=1 // pred_check
      _
    $region19: #{_ssa_core.33} parent=1 // pred_check_branch
      %114 = sbr.rel (0) target = $region21
    $region20: #{_ssa_core.33} parent=1 // pred_region
      %115 = dma.done [#allocation3], 128
    $region21: #{_ssa_core.33} parent=1 // pred_fallthru
      _
    %116 = vsyncpa [#allocation3], 1

// kernel: _ssa_core.35
$region0: #{_ssa_core.35}
  #allocation0 [shape = 'u32[]', space=smem, size = 0x4, offset = 0x4, fixed_abs, tag = 'smem constant byte address 0x4 - core index']
  #allocation1 [shape = 'u32[144,128]{1,0:T(1,128)}', space=vmem, size = 0x12000, scoped, tag = 'internal scratch']
  %s0 = inlined_call_operand.vmem [shape: f32[8,32], index: 0, kind: input, shape index: {}]
  %s1 = inlined_call_operand.vmem [shape: f32[32,32], index: 1, kind: input, shape index: {}]
  %s2 = inlined_call_operand.vmem [shape: f32[1,32], index: 2, kind: input, shape index: {}]
  %s3 = inlined_call_operand.hbm [shape: f32[8,32], index: 3, kind: output, shape index: {}]
  %s4 = sld [smem:[#allocation0]]
  $region22: #{_ssa_core.35} parent=0
    _
  %s6 = ssub.s32 1, %s4
  %s7 = scalar_select 0, %s6, %s4
  $region1: #{_ssa_core.35} parent=0
    #allocation2 [shape = 'u8[4096]{0}', space=vmem, size = 0x1000, scoped, tag = 'output window, operand 0, single buffered']
    #allocation3 [shape = 's32[1]{0}', space=sflag, size = 0x4, scoped, tag = 'scoped memory for _ssa_core.35']
    %8 = vsyncpa [#allocation3], 0
    // Predicated region
    $region2: #{_ssa_core.35} parent=1 // pred_check
      _
    $region3: #{_ssa_core.35} parent=1 // pred_check_branch
      %10 = sbr.rel (0) target = $region5
    $region4: #{_ssa_core.35} parent=1 // pred_region
      _
    $region5: #{_ssa_core.35} parent=1 // pred_fallthru
      _
    // Predicated region
    $region6: #{_ssa_core.35} parent=1 // pred_check
      _
    $region7: #{_ssa_core.35} parent=1 // pred_check_branch
      %12 = sbr.rel (0) target = $region9
    $region8: #{_ssa_core.35} parent=1 // pred_region
      _
    $region9: #{_ssa_core.35} parent=1 // pred_fallthru
      _
    // Predicated region
    $region10: #{_ssa_core.35} parent=1 // pred_check
      _
    $region11: #{_ssa_core.35} parent=1 // pred_check_branch
      %14 = sbr.rel (0) target = $region13
    $region12: #{_ssa_core.35} parent=1 // pred_region
      _
    $region13: #{_ssa_core.35} parent=1 // pred_fallthru
      _
    %v15 = vld [vmem:[%s0] sm:$0xff]
    %v16 = vld [vmem:[%s1] sm:$0xff]
    %v17 = vld [vmem:[%s1 + $0x8] sm:$0xff]
    %v18 = vld [vmem:[%s1 + $0x10] sm:$0xff]
    %v19 = vld [vmem:[%s1 + $0x18] sm:$0xff]
    %v20 = vld [vmem:[%s2] sm:$0x1]
    %v22 = vlaneseq
    %v23 = vshrl.u32 %v22, 7
    %v24 = vsub.s32 0, %v23
    %v25 = vrot.slane %v20, %v24
    %vm27 = vcmask 261120
    %v29 = vsel %vm27, %v15, 0
    %31 = vmatprep.subr.mxu0 0.0
    %32 = vmatpush1.msra.mxu0 %v16
    %33 = vmatprep.subr.mxu0 0.0
    %34 = vmatpush1.msra.mxu0 %v17
    %35 = vmatprep.subr.mxu0 0.0
    %36 = vmatpush1.msra.mxu0 %v18
    %37 = vmatprep.subr.mxu0 0.0
    %38 = vmatpush1.msra.mxu0 %v19
    %39 = vmatprep.subr.mxu0 0.0
    %40 = vmatpush1.msra.mxu0 0.0
    %41 = vmatprep.subr.mxu0 0.0
    %42 = vmatpush1.msra.mxu0 0.0
    %43 = vmatprep.subr.mxu0 0.0
    %44 = vmatpush1.msra.mxu0 0.0
    %45 = vmatprep.subr.mxu0 0.0
    %46 = vmatpush1.msra.mxu0 0.0
    %47 = vmatprep.subr.mxu0 0.0
    %48 = vmatpush1.msra.mxu0 0.0
    %49 = vmatprep.subr.mxu0 0.0
    %50 = vmatpush1.msra.mxu0 0.0
    %51 = vmatprep.subr.mxu0 0.0
    %52 = vmatpush1.msra.mxu0 0.0
    %53 = vmatprep.subr.mxu0 0.0
    %54 = vmatpush1.msra.mxu0 0.0
    %55 = vmatprep.subr.mxu0 0.0
    %56 = vmatpush1.msra.mxu0 0.0
    %57 = vmatprep.subr.mxu0 0.0
    %58 = vmatpush1.msra.mxu0 0.0
    %59 = vmatprep.subr.mxu0 0.0
    %60 = vmatpush1.msra.mxu0 0.0
    %61 = vmatprep.subr.mxu0 0.0
    %62 = vmatpush1.msra.mxu0 0.0
    %63 = vmatprep.subr.mxu0 0.0
    %64 = vmatpush1.msra.mxu0 0.0
    %65 = vmatprep.subr.mxu0 0.0
    %66 = vmatpush1.msra.mxu0 0.0
    %67 = vmatprep.subr.mxu0 0.0
    %68 = vmatpush1.msra.mxu0 0.0
    %69 = vmatprep.subr.mxu0 0.0
    %70 = vmatpush1.msra.mxu0 0.0
    %71 = vmatprep.subr.mxu0 0.0
    %72 = vmatpush1.msra.mxu0 0.0
    %73 = vmatprep.subr.mxu0 0.0
    %74 = vmatpush1.msra.mxu0 0.0
    %75 = vmatprep.subr.mxu0 0.0
    %76 = vmatpush1.msra.mxu0 0.0
    %77 = vmatprep.subr.mxu0 0.0
    %78 = vmatpush1.msra.mxu0 0.0
    %79 = vmatprep.subr.mxu0 0.0
    %80 = vmatpush1.msra.mxu0 0.0
    %81 = vmatprep.subr.mxu0 0.0
    %82 = vmatpush1.msra.mxu0 0.0
    %83 = vmatprep.subr.mxu0 0.0
    %84 = vmatpush1.msra.mxu0 0.0
    %85 = vmatprep.subr.mxu0 0.0
    %86 = vmatpush1.msra.mxu0 0.0
    %87 = vmatprep.subr.mxu0 0.0
    %88 = vmatpush1.msra.mxu0 0.0
    %89 = vmatprep.subr.mxu0 0.0
    %90 = vmatpush1.msra.mxu0 0.0
    %91 = vmatprep.subr.mxu0 0.0
    %92 = vmatpush1.msra.mxu0 0.0
    %93 = vmatprep.subr.mxu0 0.0
    %94 = vmatpush1.msra.mxu0 0.0
    %95 = vmatprep.mubr.f32.mxu0 0.0
    %96 = vmatmul.mubr.f32.gmra.mrb[0].mxu0 %v29
    %v97 = vpop.f32.mrb[0].mxu0
    %v98 = vadd.f32 %v25, %v97
    %v99 = vpop.f32.mrb[0].mxu0
    %100 = vdwg.mxu0
    %101 = vst.msk [vmem:[#allocation2] sm:$0xff] %vm27, %v98
    // Predicated region
    $region14: #{_ssa_core.35} parent=1 // pred_check
      _
    $region15: #{_ssa_core.35} parent=1 // pred_check_branch
      %103 = sbr.rel (0) target = $region17
    $region16: #{_ssa_core.35} parent=1 // pred_region
      %s105 = ssub.s32 128, 128
      %106 = vsyncadd [#allocation3], %s105
      %s108 = sshll.u32 [#allocation2], 4
      %s109 = int_to_ptr.vmem [resolvable:$true] %s108
      %111 = dma.vmem_to_hbm [thread:$0]  %s109, 128, %s3, [#allocation3]
    $region17: #{_ssa_core.35} parent=1 // pred_fallthru
      _
    // Predicated region
    $region18: #{_ssa_core.35} parent=1 // pred_check
      _
    $region19: #{_ssa_core.35} parent=1 // pred_check_branch
      %113 = sbr.rel (0) target = $region21
    $region20: #{_ssa_core.35} parent=1 // pred_region
      %114 = dma.done [#allocation3], 128
    $region21: #{_ssa_core.35} parent=1 // pred_fallthru
      _
    %115 = vsyncpa [#allocation3], 1

// kernel: _ssa_core.34
$region0: #{_ssa_core.34}
  #allocation0 [shape = 'u32[]', space=smem, size = 0x4, offset = 0x4, fixed_abs, tag = 'smem constant byte address 0x4 - core index']
  #allocation1 [shape = 'u32[144,128]{1,0:T(1,128)}', space=vmem, size = 0x12000, scoped, tag = 'internal scratch']
  %s0 = inlined_call_operand.vmem [shape: f32[8,32], index: 0, kind: input, shape index: {}]
  %s1 = inlined_call_operand.vmem [shape: f32[32,32], index: 1, kind: input, shape index: {}]
  %s2 = inlined_call_operand.vmem [shape: f32[1,32], index: 2, kind: input, shape index: {}]
  %s3 = inlined_call_operand.vmem [shape: f32[32,32], index: 3, kind: input, shape index: {}]
  %s4 = inlined_call_operand.vmem [shape: f32[1,32], index: 4, kind: input, shape index: {}]
  %s5 = inlined_call_operand.vmem [shape: f32[32,16], index: 5, kind: input, shape index: {}]
  %s6 = inlined_call_operand.vmem [shape: f32[1,16], index: 6, kind: input, shape index: {}]
  %s7 = inlined_call_operand.hbm [shape: f32[8,16], index: 7, kind: output, shape index: {}]
  %s8 = sld [smem:[#allocation0]]
  $region38: #{_ssa_core.34} parent=0
    _
  %s10 = ssub.s32 1, %s8
  %s11 = scalar_select 0, %s10, %s8
  $region1: #{_ssa_core.34} parent=0
    #allocation2 [shape = 'u8[4096]{0}', space=vmem, size = 0x1000, scoped, tag = 'output window, operand 0, single buffered']
    #allocation3 [shape = 's32[1]{0}', space=sflag, size = 0x4, scoped, tag = 'scoped memory for _ssa_core.34']
    %12 = vsyncpa [#allocation3], 0
    // Predicated region
    $region2: #{_ssa_core.34} parent=1 // pred_check
      _
    $region3: #{_ssa_core.34} parent=1 // pred_check_branch
      %14 = sbr.rel (0) target = $region5
    $region4: #{_ssa_core.34} parent=1 // pred_region
      _
    $region5: #{_ssa_core.34} parent=1 // pred_fallthru
      _
    // Predicated region
    $region6: #{_ssa_core.34} parent=1 // pred_check
      _
    $region7: #{_ssa_core.34} parent=1 // pred_check_branch
      %16 = sbr.rel (0) target = $region9
    $region8: #{_ssa_core.34} parent=1 // pred_region
      _
    $region9: #{_ssa_core.34} parent=1 // pred_fallthru
      _
    // Predicated region
    $region10: #{_ssa_core.34} parent=1 // pred_check
      _
    $region11: #{_ssa_core.34} parent=1 // pred_check_branch
      %18 = sbr.rel (0) target = $region13
    $region12: #{_ssa_core.34} parent=1 // pred_region
      _
    $region13: #{_ssa_core.34} parent=1 // pred_fallthru
      _
    // Predicated region
    $region14: #{_ssa_core.34} parent=1 // pred_check
      _
    $region15: #{_ssa_core.34} parent=1 // pred_check_branch
      %20 = sbr.rel (0) target = $region17
    $region16: #{_ssa_core.34} parent=1 // pred_region
      _
    $region17: #{_ssa_core.34} parent=1 // pred_fallthru
      _
    // Predicated region
    $region18: #{_ssa_core.34} parent=1 // pred_check
      _
    $region19: #{_ssa_core.34} parent=1 // pred_check_branch
      %22 = sbr.rel (0) target = $region21
    $region20: #{_ssa_core.34} parent=1 // pred_region
      _
    $region21: #{_ssa_core.34} parent=1 // pred_fallthru
      _
    // Predicated region
    $region22: #{_ssa_core.34} parent=1 // pred_check
      _
    $region23: #{_ssa_core.34} parent=1 // pred_check_branch
      %24 = sbr.rel (0) target = $region25
    $region24: #{_ssa_core.34} parent=1 // pred_region
      _
    $region25: #{_ssa_core.34} parent=1 // pred_fallthru
      _
    // Predicated region
    $region26: #{_ssa_core.34} parent=1 // pred_check
      _
    $region27: #{_ssa_core.34} parent=1 // pred_check_branch
      %26 = sbr.rel (0) target = $region29
    $region28: #{_ssa_core.34} parent=1 // pred_region
      _
    $region29: #{_ssa_core.34} parent=1 // pred_fallthru
      _
    %v27 = vld [vmem:[%s0] sm:$0xff]
    %v28 = vld [vmem:[%s1] sm:$0xff]
    %v29 = vld [vmem:[%s1 + $0x8] sm:$0xff]
    %v30 = vld [vmem:[%s1 + $0x10] sm:$0xff]
    %v31 = vld [vmem:[%s1 + $0x18] sm:$0xff]
    %v32 = vld [vmem:[%s2] sm:$0x1]
    %v34 = vlaneseq
    %v35 = vshrl.u32 %v34, 7
    %v36 = vsub.s32 0, %v35
    %v37 = vrot.slane %v32, %v36
    %vm39 = vcmask 261120
    %v41 = vsel %vm39, %v27, 0
    %43 = vmatprep.subr.mxu0 0.0
    %44 = vmatpush1.msra.mxu0 %v28
    %45 = vmatprep.subr.mxu0 0.0
    %46 = vmatpush1.msra.mxu0 %v29
    %47 = vmatprep.subr.mxu0 0.0
    %48 = vmatpush1.msra.mxu0 %v30
    %49 = vmatprep.subr.mxu0 0.0
    %50 = vmatpush1.msra.mxu0 %v31
    %51 = vmatprep.subr.mxu0 0.0
    %52 = vmatpush1.msra.mxu0 0.0
    %53 = vmatprep.subr.mxu0 0.0
    %54 = vmatpush1.msra.mxu0 0.0
    %55 = vmatprep.subr.mxu0 0.0
    %56 = vmatpush1.msra.mxu0 0.0
    %57 = vmatprep.subr.mxu0 0.0
    %58 = vmatpush1.msra.mxu0 0.0
    %59 = vmatprep.subr.mxu0 0.0
    %60 = vmatpush1.msra.mxu0 0.0
    %61 = vmatprep.subr.mxu0 0.0
    %62 = vmatpush1.msra.mxu0 0.0
    %63 = vmatprep.subr.mxu0 0.0
    %64 = vmatpush1.msra.mxu0 0.0
    %65 = vmatprep.subr.mxu0 0.0
    %66 = vmatpush1.msra.mxu0 0.0
    %67 = vmatprep.subr.mxu0 0.0
    %68 = vmatpush1.msra.mxu0 0.0
    %69 = vmatprep.subr.mxu0 0.0
    %70 = vmatpush1.msra.mxu0 0.0
    %71 = vmatprep.subr.mxu0 0.0
    %72 = vmatpush1.msra.mxu0 0.0
    %73 = vmatprep.subr.mxu0 0.0
    %74 = vmatpush1.msra.mxu0 0.0
    %75 = vmatprep.subr.mxu0 0.0
    %76 = vmatpush1.msra.mxu0 0.0
    %77 = vmatprep.subr.mxu0 0.0
    %78 = vmatpush1.msra.mxu0 0.0
    %79 = vmatprep.subr.mxu0 0.0
    %80 = vmatpush1.msra.mxu0 0.0
    %81 = vmatprep.subr.mxu0 0.0
    %82 = vmatpush1.msra.mxu0 0.0
    %83 = vmatprep.subr.mxu0 0.0
    %84 = vmatpush1.msra.mxu0 0.0
    %85 = vmatprep.subr.mxu0 0.0
    %86 = vmatpush1.msra.mxu0 0.0
    %87 = vmatprep.subr.mxu0 0.0
    %88 = vmatpush1.msra.mxu0 0.0
    %89 = vmatprep.subr.mxu0 0.0
    %90 = vmatpush1.msra.mxu0 0.0
    %91 = vmatprep.subr.mxu0 0.0
    %92 = vmatpush1.msra.mxu0 0.0
    %93 = vmatprep.subr.mxu0 0.0
    %94 = vmatpush1.msra.mxu0 0.0
    %95 = vmatprep.subr.mxu0 0.0
    %96 = vmatpush1.msra.mxu0 0.0
    %97 = vmatprep.subr.mxu0 0.0
    %98 = vmatpush1.msra.mxu0 0.0
    %99 = vmatprep.subr.mxu0 0.0
    %100 = vmatpush1.msra.mxu0 0.0
    %101 = vmatprep.subr.mxu0 0.0
    %102 = vmatpush1.msra.mxu0 0.0
    %103 = vmatprep.subr.mxu0 0.0
    %104 = vmatpush1.msra.mxu0 0.0
    %105 = vmatprep.subr.mxu0 0.0
    %106 = vmatpush1.msra.mxu0 0.0
    %107 = vmatprep.mubr.f32.mxu0 0.0
    %108 = vmatmul.mubr.f32.gmra.mrb[0].mxu0 %v41
    %v109 = vpop.f32.mrb[0].mxu0
    %v110 = vadd.f32 %v37, %v109
    %v111 = vpop.f32.mrb[0].mxu0
    %112 = vdwg.mxu0
    %v113 = vmax.f32 %v110, 0.0
    %v114 = vld [vmem:[%s3] sm:$0xff]
    %v115 = vld [vmem:[%s3 + $0x8] sm:$0xff]
    %v116 = vld [vmem:[%s3 + $0x10] sm:$0xff]
    %v117 = vld [vmem:[%s3 + $0x18] sm:$0xff]
    %v118 = vld [vmem:[%s4] sm:$0x1]
    %v120 = vlaneseq
    %v121 = vshrl.u32 %v120, 7
    %v122 = vsub.s32 0, %v121
    %v123 = vrot.slane %v118, %v122
    %v126 = vsel %vm39, %v113, 0
    %128 = vmatprep.subr.mxu0 0.0
    %129 = vmatpush1.msra.mxu0 %v114
    %130 = vmatprep.subr.mxu0 0.0
    %131 = vmatpush1.msra.mxu0 %v115
    %132 = vmatprep.subr.mxu0 0.0
    %133 = vmatpush1.msra.mxu0 %v116
    %134 = vmatprep.subr.mxu0 0.0
    %135 = vmatpush1.msra.mxu0 %v117
    %136 = vmatprep.subr.mxu0 0.0
    %137 = vmatpush1.msra.mxu0 0.0
    %138 = vmatprep.subr.mxu0 0.0
    %139 = vmatpush1.msra.mxu0 0.0
    %140 = vmatprep.subr.mxu0 0.0
    %141 = vmatpush1.msra.mxu0 0.0
    %142 = vmatprep.subr.mxu0 0.0
    %143 = vmatpush1.msra.mxu0 0.0
    %144 = vmatprep.subr.mxu0 0.0
    %145 = vmatpush1.msra.mxu0 0.0
    %146 = vmatprep.subr.mxu0 0.0
    %147 = vmatpush1.msra.mxu0 0.0
    %148 = vmatprep.subr.mxu0 0.0
    %149 = vmatpush1.msra.mxu0 0.0
    %150 = vmatprep.subr.mxu0 0.0
    %151 = vmatpush1.msra.mxu0 0.0
    %152 = vmatprep.subr.mxu0 0.0
    %153 = vmatpush1.msra.mxu0 0.0
    %154 = vmatprep.subr.mxu0 0.0
    %155 = vmatpush1.msra.mxu0 0.0
    %156 = vmatprep.subr.mxu0 0.0
    %157 = vmatpush1.msra.mxu0 0.0
    %158 = vmatprep.subr.mxu0 0.0
    %159 = vmatpush1.msra.mxu0 0.0
    %160 = vmatprep.subr.mxu0 0.0
    %161 = vmatpush1.msra.mxu0 0.0
    %162 = vmatprep.subr.mxu0 0.0
    %163 = vmatpush1.msra.mxu0 0.0
    %164 = vmatprep.subr.mxu0 0.0
    %165 = vmatpush1.msra.mxu0 0.0
    %166 = vmatprep.subr.mxu0 0.0
    %167 = vmatpush1.msra.mxu0 0.0
    %168 = vmatprep.subr.mxu0 0.0
    %169 = vmatpush1.msra.mxu0 0.0
    %170 = vmatprep.subr.mxu0 0.0
    %171 = vmatpush1.msra.mxu0 0.0
    %172 = vmatprep.subr.mxu0 0.0
    %173 = vmatpush1.msra.mxu0 0.0
    %174 = vmatprep.subr.mxu0 0.0
    %175 = vmatpush1.msra.mxu0 0.0
    %176 = vmatprep.subr.mxu0 0.0
    %177 = vmatpush1.msra.mxu0 0.0
    %178 = vmatprep.subr.mxu0 0.0
    %179 = vmatpush1.msra.mxu0 0.0
    %180 = vmatprep.subr.mxu0 0.0
    %181 = vmatpush1.msra.mxu0 0.0
    %182 = vmatprep.subr.mxu0 0.0
    %183 = vmatpush1.msra.mxu0 0.0
    %184 = vmatprep.subr.mxu0 0.0
    %185 = vmatpush1.msra.mxu0 0.0
    %186 = vmatprep.subr.mxu0 0.0
    %187 = vmatpush1.msra.mxu0 0.0
    %188 = vmatprep.subr.mxu0 0.0
    %189 = vmatpush1.msra.mxu0 0.0
    %190 = vmatprep.subr.mxu0 0.0
    %191 = vmatpush1.msra.mxu0 0.0
    %192 = vmatprep.mubr.f32.mxu0 0.0
    %193 = vmatmul.mubr.f32.gmra.mrb[0].mxu0 %v126
    %v194 = vpop.f32.mrb[0].mxu0
    %v195 = vadd.f32 %v123, %v194
    %v196 = vpop.f32.mrb[0].mxu0
    %197 = vdwg.mxu0
    %v198 = vmax.f32 %v195, 0.0
    %v199 = vld [vmem:[%s5] sm:$0xff]
    %v200 = vld [vmem:[%s5 + $0x8] sm:$0xff]
    %v201 = vld [vmem:[%s5 + $0x10] sm:$0xff]
    %v202 = vld [vmem:[%s5 + $0x18] sm:$0xff]
    %v203 = vld [vmem:[%s6] sm:$0x1]
    %v205 = vlaneseq
    %v206 = vshrl.u32 %v205, 7
    %v207 = vsub.s32 0, %v206
    %v208 = vrot.slane %v203, %v207
    %v211 = vsel %vm39, %v198, 0
    %213 = vmatprep.subr.mxu0 0.0
    %214 = vmatpush1.msra.mxu0 %v199
    %215 = vmatprep.subr.mxu0 0.0
    %216 = vmatpush1.msra.mxu0 %v200
    %217 = vmatprep.subr.mxu0 0.0
    %218 = vmatpush1.msra.mxu0 %v201
    %219 = vmatprep.subr.mxu0 0.0
    %220 = vmatpush1.msra.mxu0 %v202
    %221 = vmatprep.subr.mxu0 0.0
    %222 = vmatpush1.msra.mxu0 0.0
    %223 = vmatprep.subr.mxu0 0.0
    %224 = vmatpush1.msra.mxu0 0.0
    %225 = vmatprep.subr.mxu0 0.0
    %226 = vmatpush1.msra.mxu0 0.0
    %227 = vmatprep.subr.mxu0 0.0
    %228 = vmatpush1.msra.mxu0 0.0
    %229 = vmatprep.subr.mxu0 0.0
    %230 = vmatpush1.msra.mxu0 0.0
    %231 = vmatprep.subr.mxu0 0.0
    %232 = vmatpush1.msra.mxu0 0.0
    %233 = vmatprep.subr.mxu0 0.0
    %234 = vmatpush1.msra.mxu0 0.0
    %235 = vmatprep.subr.mxu0 0.0
    %236 = vmatpush1.msra.mxu0 0.0
    %237 = vmatprep.subr.mxu0 0.0
    %238 = vmatpush1.msra.mxu0 0.0
    %239 = vmatprep.subr.mxu0 0.0
    %240 = vmatpush1.msra.mxu0 0.0
    %241 = vmatprep.subr.mxu0 0.0
    %242 = vmatpush1.msra.mxu0 0.0
    %243 = vmatprep.subr.mxu0 0.0
    %244 = vmatpush1.msra.mxu0 0.0
    %245 = vmatprep.subr.mxu0 0.0
    %246 = vmatpush1.msra.mxu0 0.0
    %247 = vmatprep.subr.mxu0 0.0
    %248 = vmatpush1.msra.mxu0 0.0
    %249 = vmatprep.subr.mxu0 0.0
    %250 = vmatpush1.msra.mxu0 0.0
    %251 = vmatprep.subr.mxu0 0.0
    %252 = vmatpush1.msra.mxu0 0.0
    %253 = vmatprep.subr.mxu0 0.0
    %254 = vmatpush1.msra.mxu0 0.0
    %255 = vmatprep.subr.mxu0 0.0
    %256 = vmatpush1.msra.mxu0 0.0
    %257 = vmatprep.subr.mxu0 0.0
    %258 = vmatpush1.msra.mxu0 0.0
    %259 = vmatprep.subr.mxu0 0.0
    %260 = vmatpush1.msra.mxu0 0.0
    %261 = vmatprep.subr.mxu0 0.0
    %262 = vmatpush1.msra.mxu0 0.0
    %263 = vmatprep.subr.mxu0 0.0
    %264 = vmatpush1.msra.mxu0 0.0
    %265 = vmatprep.subr.mxu0 0.0
    %266 = vmatpush1.msra.mxu0 0.0
    %267 = vmatprep.subr.mxu0 0.0
    %268 = vmatpush1.msra.mxu0 0.0
    %269 = vmatprep.subr.mxu0 0.0
    %270 = vmatpush1.msra.mxu0 0.0
    %271 = vmatprep.subr.mxu0 0.0
    %272 = vmatpush1.msra.mxu0 0.0
    %273 = vmatprep.subr.mxu0 0.0
    %274 = vmatpush1.msra.mxu0 0.0
    %275 = vmatprep.subr.mxu0 0.0
    %276 = vmatpush1.msra.mxu0 0.0
    %277 = vmatprep.mubr.f32.mxu0 0.0
    %278 = vmatmul.mubr.f32.gmra.mrb[0].mxu0 %v211
    %v279 = vpop.f32.mrb[0].mxu0
    %v280 = vadd.f32 %v208, %v279
    %v281 = vpop.f32.mrb[0].mxu0
    %282 = vdwg.mxu0
    %vm283 = vcmask 130048
    %284 = vst.msk [vmem:[#allocation2] sm:$0xff] %vm283, %v280
    // Predicated region
    $region30: #{_ssa_core.34} parent=1 // pred_check
      _
    $region31: #{_ssa_core.34} parent=1 // pred_check_branch
      %286 = sbr.rel (0) target = $region33
    $region32: #{_ssa_core.34} parent=1 // pred_region
      %s288 = ssub.s32 128, 128
      %289 = vsyncadd [#allocation3], %s288
      %s291 = sshll.u32 [#allocation2], 4
      %s292 = int_to_ptr.vmem [resolvable:$true] %s291
      %294 = dma.vmem_to_hbm [thread:$0]  %s292, 128, %s7, [#allocation3]
    $region33: #{_ssa_core.34} parent=1 // pred_fallthru
      _
    // Predicated region
    $region34: #{_ssa_core.34} parent=1 // pred_check
      _
    $region35: #{_ssa_core.34} parent=1 // pred_check_branch
      %296 = sbr.rel (0) target = $region37
    $region36: #{_ssa_core.34} parent=1 // pred_region
      %297 = dma.done [#allocation3], 128
    $region37: #{_ssa_core.34} parent=1 // pred_fallthru
      _
    %298 = vsyncpa [#allocation3], 1

// kernel: _ssa_core.23
$region0: #{_ssa_core.23}
  #allocation0 [shape = 'u32[]', space=smem, size = 0x4, offset = 0x4, fixed_abs, tag = 'smem constant byte address 0x4 - core index']
  #allocation1 [shape = 'u32[144,128]{1,0:T(1,128)}', space=vmem, size = 0x12000, scoped, tag = 'internal scratch']
  %s0 = inlined_call_operand.vmem [shape: f32[32,32], index: 0, kind: input, shape index: {}]
  %s1 = inlined_call_operand.vmem [shape: f32[32,32], index: 1, kind: input, shape index: {}]
  %s2 = inlined_call_operand.vmem [shape: f32[1,32], index: 2, kind: input, shape index: {}]
  %s3 = inlined_call_operand.hbm [shape: f32[32,32], index: 3, kind: output, shape index: {}]
  %s4 = sld [smem:[#allocation0]]
  $region22: #{_ssa_core.23} parent=0
    _
  %s6 = ssub.s32 1, %s4
  %s7 = scalar_select 0, %s6, %s4
  $region1: #{_ssa_core.23} parent=0
    #allocation2 [shape = 'u8[16384]{0}', space=vmem, size = 0x4000, scoped, tag = 'output window, operand 0, single buffered']
    #allocation3 [shape = 's32[1]{0}', space=sflag, size = 0x4, scoped, tag = 'scoped memory for _ssa_core.23']
    %8 = vsyncpa [#allocation3], 0
    // Predicated region
    $region2: #{_ssa_core.23} parent=1 // pred_check
      _
    $region3: #{_ssa_core.23} parent=1 // pred_check_branch
      %10 = sbr.rel (0) target = $region5
    $region4: #{_ssa_core.23} parent=1 // pred_region
      _
    $region5: #{_ssa_core.23} parent=1 // pred_fallthru
      _
    // Predicated region
    $region6: #{_ssa_core.23} parent=1 // pred_check
      _
    $region7: #{_ssa_core.23} parent=1 // pred_check_branch
      %12 = sbr.rel (0) target = $region9
    $region8: #{_ssa_core.23} parent=1 // pred_region
      _
    $region9: #{_ssa_core.23} parent=1 // pred_fallthru
      _
    // Predicated region
    $region10: #{_ssa_core.23} parent=1 // pred_check
      _
    $region11: #{_ssa_core.23} parent=1 // pred_check_branch
      %14 = sbr.rel (0) target = $region13
    $region12: #{_ssa_core.23} parent=1 // pred_region
      _
    $region13: #{_ssa_core.23} parent=1 // pred_fallthru
      _
    %v15 = vld [vmem:[%s0] sm:$0xff]
    %v16 = vld [vmem:[%s0 + $0x8] sm:$0xff]
    %v17 = vld [vmem:[%s0 + $0x10] sm:$0xff]
    %v18 = vld [vmem:[%s0 + $0x18] sm:$0xff]
    %v19 = vld [vmem:[%s1] sm:$0xff]
    %v20 = vld [vmem:[%s1 + $0x8] sm:$0xff]
    %v21 = vld [vmem:[%s1 + $0x10] sm:$0xff]
    %v22 = vld [vmem:[%s1 + $0x18] sm:$0xff]
    %v23 = vld [vmem:[%s2] sm:$0x1]
    %v25 = vlaneseq
    %v26 = vshrl.u32 %v25, 7
    %v27 = vsub.s32 0, %v26
    %v28 = vrot.slane %v23, %v27
    %vm30 = vcmask 261120
    %v32 = vsel %vm30, %v15, 0
    %v35 = vsel %vm30, %v16, 0
    %v38 = vsel %vm30, %v17, 0
    %v41 = vsel %vm30, %v18, 0
    %43 = vmatprep.subr.mxu0 0.0
    %44 = vmatpush1.msra.mxu0 %v19
    %45 = vmatprep.subr.mxu0 0.0
    %46 = vmatpush1.msra.mxu0 %v20
    %47 = vmatprep.subr.mxu0 0.0
    %48 = vmatpush1.msra.mxu0 %v21
    %49 = vmatprep.subr.mxu0 0.0
    %50 = vmatpush1.msra.mxu0 %v22
    %51 = vmatprep.subr.mxu0 0.0
    %52 = vmatpush1.msra.mxu0 0.0
    %53 = vmatprep.subr.mxu0 0.0
    %54 = vmatpush1.msra.mxu0 0.0
    %55 = vmatprep.subr.mxu0 0.0
    %56 = vmatpush1.msra.mxu0 0.0
    %57 = vmatprep.subr.mxu0 0.0
    %58 = vmatpush1.msra.mxu0 0.0
    %59 = vmatprep.subr.mxu0 0.0
    %60 = vmatpush1.msra.mxu0 0.0
    %61 = vmatprep.subr.mxu0 0.0
    %62 = vmatpush1.msra.mxu0 0.0
    %63 = vmatprep.subr.mxu0 0.0
    %64 = vmatpush1.msra.mxu0 0.0
    %65 = vmatprep.subr.mxu0 0.0
    %66 = vmatpush1.msra.mxu0 0.0
    %67 = vmatprep.subr.mxu0 0.0
    %68 = vmatpush1.msra.mxu0 0.0
    %69 = vmatprep.subr.mxu0 0.0
    %70 = vmatpush1.msra.mxu0 0.0
    %71 = vmatprep.subr.mxu0 0.0
    %72 = vmatpush1.msra.mxu0 0.0
    %73 = vmatprep.subr.mxu0 0.0
    %74 = vmatpush1.msra.mxu0 0.0
    %75 = vmatprep.subr.mxu0 0.0
    %76 = vmatpush1.msra.mxu0 0.0
    %77 = vmatprep.subr.mxu0 0.0
    %78 = vmatpush1.msra.mxu0 0.0
    %79 = vmatprep.subr.mxu0 0.0
    %80 = vmatpush1.msra.mxu0 0.0
    %81 = vmatprep.subr.mxu0 0.0
    %82 = vmatpush1.msra.mxu0 0.0
    %83 = vmatprep.subr.mxu0 0.0
    %84 = vmatpush1.msra.mxu0 0.0
    %85 = vmatprep.subr.mxu0 0.0
    %86 = vmatpush1.msra.mxu0 0.0
    %87 = vmatprep.subr.mxu0 0.0
    %88 = vmatpush1.msra.mxu0 0.0
    %89 = vmatprep.subr.mxu0 0.0
    %90 = vmatpush1.msra.mxu0 0.0
    %91 = vmatprep.subr.mxu0 0.0
    %92 = vmatpush1.msra.mxu0 0.0
    %93 = vmatprep.subr.mxu0 0.0
    %94 = vmatpush1.msra.mxu0 0.0
    %95 = vmatprep.subr.mxu0 0.0
    %96 = vmatpush1.msra.mxu0 0.0
    %97 = vmatprep.subr.mxu0 0.0
    %98 = vmatpush1.msra.mxu0 0.0
    %99 = vmatprep.subr.mxu0 0.0
    %100 = vmatpush1.msra.mxu0 0.0
    %101 = vmatprep.subr.mxu0 0.0
    %102 = vmatpush1.msra.mxu0 0.0
    %103 = vmatprep.subr.mxu0 0.0
    %104 = vmatpush1.msra.mxu0 0.0
    %105 = vmatprep.subr.mxu0 0.0
    %106 = vmatpush1.msra.mxu0 0.0
    %107 = vmatprep.mubr.f32.mxu0 0.0
    %108 = vmatmul.mubr.f32.gmra.mrb[0].mxu0 %v32
    %v109 = vpop.f32.mrb[0].mxu0
    %v110 = vadd.f32 %v28, %v109
    %v111 = vpop.f32.mrb[0].mxu0
    %112 = vmatprep.mubr.f32.mxu0 0.0
    %113 = vmatmul.mubr.f32.gmra.mrb[0].mxu0 %v35
    %v114 = vpop.f32.mrb[0].mxu0
    %v115 = vadd.f32 %v28, %v114
    %v116 = vpop.f32.mrb[0].mxu0
    %117 = vmatprep.mubr.f32.mxu0 0.0
    %118 = vmatmul.mubr.f32.gmra.mrb[0].mxu0 %v38
    %v119 = vpop.f32.mrb[0].mxu0
    %v120 = vadd.f32 %v28, %v119
    %v121 = vpop.f32.mrb[0].mxu0
    %122 = vmatprep.mubr.f32.mxu0 0.0
    %123 = vmatmul.mubr.f32.gmra.mrb[0].mxu0 %v41
    %v124 = vpop.f32.mrb[0].mxu0
    %v125 = vadd.f32 %v28, %v124
    %v126 = vpop.f32.mrb[0].mxu0
    %127 = vdwg.mxu0
    %128 = vst.msk [vmem:[#allocation2] sm:$0xff] %vm30, %v110
    %129 = vst.msk [vmem:[#allocation2 + $0x8] sm:$0xff] %vm30, %v115
    %130 = vst.msk [vmem:[#allocation2 + $0x10] sm:$0xff] %vm30, %v120
    %131 = vst.msk [vmem:[#allocation2 + $0x18] sm:$0xff] %vm30, %v125
    // Predicated region
    $region14: #{_ssa_core.23} parent=1 // pred_check
      _
    $region15: #{_ssa_core.23} parent=1 // pred_check_branch
      %133 = sbr.rel (0) target = $region17
    $region16: #{_ssa_core.23} parent=1 // pred_region
      %s135 = ssub.s32 512, 512
      %136 = vsyncadd [#allocation3], %s135
      %s137 = sshll.u32 [#allocation2], 4
      %s138 = int_to_ptr.vmem [resolvable:$true] %s137
      %143 = dma.vmem_to_hbm [thread:$0]  %s138, 512, %s3, [#allocation3], 128, 128, 8
    $region17: #{_ssa_core.23} parent=1 // pred_fallthru
      _
    // Predicated region
    $region18: #{_ssa_core.23} parent=1 // pred_check
      _
    $region19: #{_ssa_core.23} parent=1 // pred_check_branch
      %145 = sbr.rel (0) target = $region21
    $region20: #{_ssa_core.23} parent=1 // pred_region
      %146 = dma.done [#allocation3], 512
    $region21: #{_ssa_core.23} parent=1 // pred_fallthru
      _
    %147 = vsyncpa [#allocation3], 1

</llo_original>
